<compile_context>
chip_gen: v5e
topology: v5e:2x2
jax: 0.10.0
libtpu: 0.0.40
codegen_flags: <defaults>
</compile_context>

<pallas_src>
import math

import jax
import jax.numpy as jnp
from jax.experimental import pallas as pl
from jax.experimental.pallas import tpu as pltpu

INV_SQRT2 = 1.0 / math.sqrt(2.0)
_MISH_CLAMP = 20.0
_BF16 = jnp.bfloat16


def log2_diff(a, b):
    return int(round(math.log2(a) - math.log2(b)))


# ----------------------------------------------------------------------------
# In-kernel helpers
# ----------------------------------------------------------------------------
def _mish(y):
    """mish(y) = y * tanh(softplus(y)) = y * (e^2y + 2e^y) / (e^2y + 2e^y + 2).

    One exp + one approx reciprocal (both EUP) instead of logaddexp + tanh;
    clamped for large y (where mish(y) ~= y) to avoid f32 overflow."""
    t = jnp.exp(jnp.minimum(y, _MISH_CLAMP))
    num = t * (t + 2.0)
    m = y * num * pl.reciprocal(num + 2.0, approx=True)
    return jnp.where(y > _MISH_CLAMP, y, m)


def _affine(acc, ss_ref):
    # ss_ref: (2, Cout) f32 -- row 0 = scale, row 1 = shift (conv bias folded in).
    return acc * ss_ref[0:1, :] + ss_ref[1:2, :]


# ----------------------------------------------------------------------------
# Kernel factories (geometry is bound statically via closures)
# ----------------------------------------------------------------------------
def _make_conv_s1_kernel(Wp, M, with_residual):
    """Stride-1 3x3 ConvBlock on a flattened zero-padded image.

    x_ref : (1, (H+2)*Wp + 2, Cin)  flattened padded rows (+2 tail zeros)
    w_ref : (9, Cin, Cout)          taps in (ky, kx) order
    ss_ref: (2, Cout)               folded norm scale / shift (f32)
    res   : (1, M, Cout)            optional residual frame (bf16)
    o_ref : (1, M, Cout)            output frame, M = H*Wp (cols >= W are junk,
                                    cropped on the host).
    """
    def kernel(x_ref, w_ref, ss_ref, *rest):
        if with_residual:
            res_ref, o_ref = rest
        else:
            (o_ref,) = rest
        cout = o_ref.shape[-1]
        acc = jnp.zeros((M, cout), jnp.float32)
        for ky in range(3):
            for kx in range(3):
                s0 = ky * Wp + kx
                patch = x_ref[0, s0:s0 + M, :]
                acc = acc + jnp.dot(patch, w_ref[ky * 3 + kx],
                                    preferred_element_type=jnp.float32)
        y = _mish(_affine(acc, ss_ref))
        if with_residual:
            y = (y + res_ref[0].astype(jnp.float32)) * INV_SQRT2
        o_ref[0] = y.astype(o_ref.dtype)

    return kernel


def _make_conv_s2_kernel(Wp2, M, skip_mode):
    """Stride-2 3x3 ConvBlock on a 4-phase flattened zero-padded image.

    x_ref : (1, 4, Hp2*Wp2 + 1, Cin)  phase p = 2*(row parity) + (col parity)
    w_ref : (9, Cin, Cout)
    ss_ref: (2, Cout)
    wsk   : (Cin, Cout)  1x1 skip conv weight with the 2x2 avg-pool 1/4 folded in
    bsk   : (1, Cout)    skip conv bias
    o_ref : (1, M, Cout) output frame, M = Ho*Wp2 (last col of each row is junk)
    osk   : (1, M, Cout) skip-path frame (skip_mode == 'separate')

    skip_mode: None | 'separate' | 'combine'  ('combine' = single-layer down
    block: (mish(conv) + skip) / sqrt(2) is emitted directly).
    """
    def kernel(*refs):
        if skip_mode is None:
            x_ref, w_ref, ss_ref, o_ref = refs
        elif skip_mode == "separate":
            x_ref, w_ref, ss_ref, wsk_ref, bsk_ref, o_ref, osk_ref = refs
        else:  # 'combine'
            x_ref, w_ref, ss_ref, wsk_ref, bsk_ref, o_ref = refs
        cout = o_ref.shape[-1]

        acc = jnp.zeros((M, cout), jnp.float32)
        for ky in range(3):
            for kx in range(3):
                p = (ky % 2) * 2 + (kx % 2)
                s0 = (ky // 2) * Wp2 + (kx // 2)
                patch = x_ref[0, p, s0:s0 + M, :]
                acc = acc + jnp.dot(patch, w_ref[ky * 3 + kx],
                                    preferred_element_type=jnp.float32)
        y = _mish(_affine(acc, ss_ref))

        if skip_mode is not None:
            sacc = jnp.zeros((M, cout), jnp.float32)
            # unpadded pool rows 2i, 2i+1 -> padded phases (1,0) / (0,+1)
            for (py, dy) in ((1, 0), (0, 1)):
                for (px, dx) in ((1, 0), (0, 1)):
                    p = py * 2 + px
                    s0 = dy * Wp2 + dx
                    patch = x_ref[0, p, s0:s0 + M, :]
                    sacc = sacc + jnp.dot(patch, wsk_ref[...],
                                          preferred_element_type=jnp.float32)
            skip = sacc + bsk_ref[...]
            if skip_mode == "combine":
                y = (y + skip) * INV_SQRT2
            else:
                osk_ref[0] = skip.astype(osk_ref.dtype)

        o_ref[0] = y.astype(o_ref.dtype)

    return kernel


def _linear_kernel(x_ref, w_ref, b_ref, o_ref):
    y = jnp.dot(x_ref[...], w_ref[...], preferred_element_type=jnp.float32)
    o_ref[...] = (y + b_ref[...]).astype(o_ref.dtype)


# ----------------------------------------------------------------------------
# Host-side glue (1x-size pads / transposes only; XLA fuses them between layers)
# ----------------------------------------------------------------------------
def _flatten_padded_s1(x):
    n, h, w, c = x.shape
    xp = jnp.pad(x, ((0, 0), (1, 1), (1, 1), (0, 0)))
    xf = xp.reshape(n, (h + 2) * (w + 2), c)
    return jnp.pad(xf, ((0, 0), (0, 2), (0, 0)))          # +2 tail zeros


def _flatten_padded_s2(x):
    n, h, w, c = x.shape
    assert h % 2 == 0 and w % 2 == 0
    hp2, wp2 = (h + 2) // 2, (w + 2) // 2
    xp = jnp.pad(x, ((0, 0), (1, 1), (1, 1), (0, 0)))
    ph = xp.reshape(n, hp2, 2, wp2, 2, c).transpose(0, 2, 4, 1, 3, 5)
    phf = ph.reshape(n, 4, hp2 * wp2, c)
    return jnp.pad(phf, ((0, 0), (0, 0), (0, 1), (0, 0)))  # +1 tail zero / phase


def _frame_to_nhwc(frame, ho, wo, wf):
    n, _, c = frame.shape
    return frame.reshape(n, ho, wf, c)[:, :, :wo, :]


def _nhwc_to_frame(x, wf):
    n, h, w, c = x.shape
    return jnp.pad(x, ((0, 0), (0, 0), (0, wf - w), (0, 0))).reshape(n, h * wf, c)


def _nbytes(arrays):
    return int(sum(int(a.size) * jnp.dtype(a.dtype).itemsize for a in arrays))


# ----------------------------------------------------------------------------
# Layer wrappers
# ----------------------------------------------------------------------------
def conv_block_s1(x, w, ss, residual=None):
    """Stride-1 3x3 ConvBlock (conv -> folded norm -> Mish), im2col fused in-kernel.
    x: (N,H,W,Cin) bf16 NHWC -> (N,H,W,Cout) bf16.  If `residual` is given the
    epilogue computes (mish(norm(conv)) + residual) / sqrt(2)."""
    n, h, wdt, cin = x.shape
    cout = w.shape[-1]
    wp = wdt + 2
    m = h * wp
    xf = _flatten_padded_s1(x)
    lf = xf.shape[1]

    inputs = [xf, w, ss]
    in_specs = [pl.BlockSpec((1, lf, cin), lambda i: (i, 0, 0)),
                pl.BlockSpec((9, cin, cout), lambda i: (0, 0, 0)),
                pl.BlockSpec((2, cout), lambda i: (0, 0))]
    if residual is not None:
        inputs.append(_nhwc_to_frame(residual, wp))
        in_specs.append(pl.BlockSpec((1, m, cout), lambda i: (i, 0, 0)))

    frame = pl.pallas_call(
        _make_conv_s1_kernel(wp, m, residual is not None),
        out_shape=jax.ShapeDtypeStruct((n, m, cout), _BF16),
        grid=(n,),
        in_specs=in_specs,
        out_specs=pl.BlockSpec((1, m, cout), lambda i: (i, 0, 0)),
        compiler_params=pltpu.CompilerParams(dimension_semantics=("parallel",)),
        cost_estimate=pl.CostEstimate(
            flops=2 * n * m * 9 * cin * cout,
            transcendentals=n * m * cout,
            bytes_accessed=_nbytes(inputs) + n * m * cout * 2),
    )(*inputs)
    return _frame_to_nhwc(frame, h, wdt, wp)


def conv_block_s2(x, w, ss, skip=None, combine=False):
    """Stride-2 3x3 ConvBlock.  If `skip=(wsk, bsk)` the down-block skip path
    (2x2 avg-pool folded into a 1x1 conv) is computed from the same
    VMEM-resident input; `combine=True` additionally fuses the residual merge."""
    n, h, wdt, cin = x.shape
    cout = w.shape[-1]
    ho, wo = h // 2, wdt // 2
    wp2 = wo + 1
    m = ho * wp2
    xf = _flatten_padded_s2(x)
    l2 = xf.shape[2]

    inputs = [xf, w, ss]
    in_specs = [pl.BlockSpec((1, 4, l2, cin), lambda i: (i, 0, 0, 0)),
                pl.BlockSpec((9, cin, cout), lambda i: (0, 0, 0)),
                pl.BlockSpec((2, cout), lambda i: (0, 0))]
    if skip is not None:
        wsk, bsk = skip
        inputs += [wsk, bsk]
        in_specs += [pl.BlockSpec((cin, cout), lambda i: (0, 0)),
                     pl.BlockSpec((1, cout), lambda i: (0, 0))]

    out_block = pl.BlockSpec((1, m, cout), lambda i: (i, 0, 0))
    if skip is not None and not combine:
        skip_mode = "separate"
        out_shape = (jax.ShapeDtypeStruct((n, m, cout), _BF16),
                     jax.ShapeDtypeStruct((n, m, cout), _BF16))
        out_specs = (out_block, pl.BlockSpec((1, m, cout), lambda i: (i, 0, 0)))
        n_out = 2
    else:
        skip_mode = "combine" if skip is not None else None
        out_shape = jax.ShapeDtypeStruct((n, m, cout), _BF16)
        out_specs = out_block
        n_out = 1

    n_taps = 9 + (4 if skip is not None else 0)
    res = pl.pallas_call(
        _make_conv_s2_kernel(wp2, m, skip_mode),
        out_shape=out_shape,
        grid=(n,),
        in_specs=in_specs,
        out_specs=out_specs,
        compiler_params=pltpu.CompilerParams(dimension_semantics=("parallel",)),
        cost_estimate=pl.CostEstimate(
            flops=2 * n * m * n_taps * cin * cout,
            transcendentals=n * m * cout,
            bytes_accessed=_nbytes(inputs) + n_out * n * m * cout * 2),
    )(*inputs)

    if skip_mode == "separate":
        of, sf = res
        return _frame_to_nhwc(of, ho, wo, wp2), _frame_to_nhwc(sf, ho, wo, wp2)
    return _frame_to_nhwc(res, ho, wo, wp2)


def linear_pallas(x, w, b):
    """(M, K) @ (K, N) + b  -- the tiny FullyConnectedLayer head."""
    m, k = x.shape
    _, nc = w.shape
    return pl.pallas_call(
        _linear_kernel,
        out_shape=jax.ShapeDtypeStruct((m, nc), jnp.float32),
        grid=(1,),
        in_specs=[pl.BlockSpec((m, k), lambda i: (0, 0)),
                  pl.BlockSpec((k, nc), lambda i: (0, 0)),
                  pl.BlockSpec((1, nc), lambda i: (0, 0))],
        out_specs=pl.BlockSpec((m, nc), lambda i: (0, 0)),
        cost_estimate=pl.CostEstimate(
            flops=2 * m * k * nc, transcendentals=0,
            bytes_accessed=_nbytes([x, w, b]) + m * nc * 4),
    )(x, w, b)


# ----------------------------------------------------------------------------
# Deterministic parameter construction (eval-mode, folded scale/shift, bf16)
# ----------------------------------------------------------------------------
def make_convblock(key, cin, cout, norm):
    fan_in = cin * 9
    w = jax.random.normal(key, (3, 3, cin, cout), jnp.float32) / math.sqrt(fan_in)
    b = jnp.zeros((cout,), jnp.float32)
    eps = 1e-5
    if norm == "batch":
        gamma = jnp.ones((cout,), jnp.float32)
        beta = jnp.zeros((cout,), jnp.float32)
        mean = jnp.zeros((cout,), jnp.float32)
        var = jnp.ones((cout,), jnp.float32)
        scale = gamma / jnp.sqrt(var + eps)
        shift = beta - mean * scale
    else:  # norm == 'none'
        scale = jnp.ones((cout,), jnp.float32)
        shift = jnp.zeros((cout,), jnp.float32)
    # Fold conv bias into the shift: scale*(Wx + b) + shift = scale*Wx + (scale*b + shift)
    ss = jnp.stack([scale, scale * b + shift]).astype(jnp.float32)      # (2, cout)
    return {"w": w.reshape(9, cin, cout).astype(_BF16), "ss": ss}


def make_down_block(key, cin, cout, n_layers):
    keys = jax.random.split(key, n_layers + 1)
    layers = []
    for j in range(n_layers):
        lcin = cin if j == 0 else cout
        layers.append(make_convblock(keys[j], lcin, cout, norm="batch"))
    wsk = jax.random.normal(keys[-1], (cin, cout), jnp.float32) / math.sqrt(cin)
    wsk = (0.25 * wsk).astype(_BF16)          # 2x2 avg-pool folded into the 1x1 weight
    bsk = jnp.zeros((1, cout), jnp.float32)
    return {"layers": layers, "wsk": wsk, "bsk": bsk}


def build_encoder_params(key, input_imsize, smallest_imsize, z_dims, nc_in,
                         nc_base, nc_max, n_layers_per_res):
    n_down_up = log2_diff(input_imsize, smallest_imsize)
    nc = [min(nc_max, nc_base * 2 ** i) for i in range(n_down_up + 1)]
    assert len(n_layers_per_res) == n_down_up
    assert nc[0] == nc_base

    keys = iter(jax.random.split(key, 32))
    params = {"stem": make_convblock(next(keys), nc_in, nc[0], norm="none")}
    params["down"] = [
        make_down_block(next(keys), nc[i], nc[i + 1], n_layers_per_res[i])
        for i in range(n_down_up)
    ]

    # FeatMapToLatent: stride-2 ConvBlocks down to 1x1, then FullyConnectedLayer.
    n_fmtl = log2_diff(smallest_imsize, 1)
    convs = []
    c = nc[-1]
    for _ in range(n_fmtl):
        nxt = min(z_dims, c * 2)
        convs.append(make_convblock(next(keys), c, nxt, norm="none"))
        c = nxt
    assert c == z_dims, "final conv channels must equal z_dims for view(-1, z_dims)"

    # StyleGAN FullyConnectedLayer(z, z, linear): y = x @ (w / sqrt(in)).T + b
    wl = jax.random.normal(next(keys), (z_dims, z_dims), jnp.float32)
    params["fmtl"] = {"convs": convs,
                      "lin_w": (wl.T / math.sqrt(z_dims)).astype(_BF16),
                      "lin_b": jnp.zeros((1, z_dims), jnp.float32)}
    params["z_dims"] = z_dims
    return params


# ----------------------------------------------------------------------------
# Encoder forward
# ----------------------------------------------------------------------------
def encoder_forward(x_nchw, params):
    x = jnp.transpose(x_nchw, (0, 2, 3, 1)).astype(_BF16)      # NCHW -> NHWC bf16

    stem = params["stem"]
    x = conv_block_s1(x, stem["w"], stem["ss"])

    for blk in params["down"]:
        layers = blk["layers"]
        skip = (blk["wsk"], blk["bsk"])
        first = layers[0]
        if len(layers) == 1:
            x = conv_block_s2(x, first["w"], first["ss"], skip=skip, combine=True)
        else:
            h, s = conv_block_s2(x, first["w"], first["ss"], skip=skip)
            for layer in layers[1:-1]:
                h = conv_block_s1(h, layer["w"], layer["ss"])
            last = layers[-1]
            x = conv_block_s1(h, last["w"], last["ss"], residual=s)

    for cb in params["fmtl"]["convs"]:
        x = conv_block_s2(x, cb["w"], cb["ss"])

    n = x.shape[0]
    x = x.reshape(n, params["z_dims"])                          # spatial is 1x1 here
    z = linear_pallas(x, params["fmtl"]["lin_w"], params["fmtl"]["lin_b"])
    return z


# ----------------------------------------------------------------------------
if __name__ == "__main__":
    # Small config consistent with the module's construction rules:
    # input 16x16 -> smallest 4x4 (n_down_up = 2), nc = [8, 16, 32], z_dims = 32.
    input_imsize, smallest_imsize = 16, 4
    z_dims, nc_in, nc_base, nc_max = 32, 3, 8, 32
    n_layers_per_res = [2, 2]

    params = build_encoder_params(
        jax.random.PRNGKey(42), input_imsize, smallest_imsize, z_dims,
        nc_in, nc_base, nc_max, n_layers_per_res)

    x = jax.random.normal(jax.random.PRNGKey(0),
                          (2, nc_in, input_imsize, input_imsize), jnp.float32)

    fwd = jax.jit(lambda inp: encoder_forward(inp, params))
    z = jax.block_until_ready(fwd(x))

    assert z.shape == (2, z_dims), z.shape
    assert bool(jnp.all(jnp.isfinite(z)))
    print("KERNEL_OK")
</pallas_src>

<mosaic_0001>
module attributes {stable_mosaic.version = 11 : i64} {
  func.func @kernel(%arg0: i32, %arg1: memref<1x326x3xbf16, #tpu.memory_space<vmem>>, %arg2: memref<9x3x8xbf16, #tpu.memory_space<vmem>>, %arg3: memref<2x8xf32, #tpu.memory_space<vmem>>, %arg4: memref<1x288x8xbf16, #tpu.memory_space<vmem>>) attributes {dimension_semantics = [#tpu.dimension_semantics<parallel>], iteration_bounds = array<i64: 2>, scalar_prefetch = 0 : i64, scratch_operands = 0 : i64, tpu.core_type = #tpu.core_type<tc>, window_params = [{transform_indices = @transform_0, window_bounds = array<i64: 1, 326, 3>}, {pipeline_mode = #tpu.pipeline_mode<synchronous>, transform_indices = @transform_1, window_bounds = array<i64: 9, 3, 8>}, {pipeline_mode = #tpu.pipeline_mode<synchronous>, transform_indices = @transform_2, window_bounds = array<i64: 2, 8>}, {transform_indices = @transform_3, window_bounds = array<i64: 1, 288, 8>}]} {
    %cst = arith.constant 0.000000e+00 : f32
    %0 = vector.broadcast %cst : f32 to vector<288x8xf32>
    %c0 = arith.constant 0 : index
    %c0_0 = arith.constant 0 : index
    %c0_1 = arith.constant 0 : index
    %1 = vector.load %arg1[%c0, %c0_0, %c0_1] : memref<1x326x3xbf16, #tpu.memory_space<vmem>>, vector<1x288x3xbf16>
    %2 = vector.shape_cast %1 : vector<1x288x3xbf16> to vector<288x3xbf16>
    %c0_2 = arith.constant 0 : index
    %c0_3 = arith.constant 0 : index
    %c0_4 = arith.constant 0 : index
    %3 = vector.load %arg2[%c0_2, %c0_3, %c0_4] : memref<9x3x8xbf16, #tpu.memory_space<vmem>>, vector<1x3x8xbf16>
    %4 = vector.shape_cast %3 : vector<1x3x8xbf16> to vector<3x8xbf16>
    %cst_5 = arith.constant dense<0.000000e+00> : vector<288x8xf32>
    %5 = tpu.matmul %2, %4, %cst_5 {dimension_numbers = #tpu.dot_dimension_numbers<[1], [0], [0], [1], [0, 0, 1, 1], [], []>} : vector<288x3xbf16>, vector<3x8xbf16>, vector<288x8xf32> -> vector<288x8xf32>
    %6 = arith.addf %0, %5 : vector<288x8xf32>
    %c0_6 = arith.constant 0 : index
    %c1 = arith.constant 1 : index
    %c0_7 = arith.constant 0 : index
    %7 = vector.load %arg1[%c0_6, %c1, %c0_7] : memref<1x326x3xbf16, #tpu.memory_space<vmem>>, vector<1x288x3xbf16>
    %8 = vector.shape_cast %7 : vector<1x288x3xbf16> to vector<288x3xbf16>
    %c1_8 = arith.constant 1 : index
    %c0_9 = arith.constant 0 : index
    %c0_10 = arith.constant 0 : index
    %9 = vector.load %arg2[%c1_8, %c0_9, %c0_10] : memref<9x3x8xbf16, #tpu.memory_space<vmem>>, vector<1x3x8xbf16>
    %10 = vector.shape_cast %9 : vector<1x3x8xbf16> to vector<3x8xbf16>
    %cst_11 = arith.constant dense<0.000000e+00> : vector<288x8xf32>
    %11 = tpu.matmul %8, %10, %cst_11 {dimension_numbers = #tpu.dot_dimension_numbers<[1], [0], [0], [1], [0, 0, 1, 1], [], []>} : vector<288x3xbf16>, vector<3x8xbf16>, vector<288x8xf32> -> vector<288x8xf32>
    %12 = arith.addf %6, %11 : vector<288x8xf32>
    %c0_12 = arith.constant 0 : index
    %c2 = arith.constant 2 : index
    %c0_13 = arith.constant 0 : index
    %13 = vector.load %arg1[%c0_12, %c2, %c0_13] : memref<1x326x3xbf16, #tpu.memory_space<vmem>>, vector<1x288x3xbf16>
    %14 = vector.shape_cast %13 : vector<1x288x3xbf16> to vector<288x3xbf16>
    %c2_14 = arith.constant 2 : index
    %c0_15 = arith.constant 0 : index
    %c0_16 = arith.constant 0 : index
    %15 = vector.load %arg2[%c2_14, %c0_15, %c0_16] : memref<9x3x8xbf16, #tpu.memory_space<vmem>>, vector<1x3x8xbf16>
    %16 = vector.shape_cast %15 : vector<1x3x8xbf16> to vector<3x8xbf16>
    %cst_17 = arith.constant dense<0.000000e+00> : vector<288x8xf32>
    %17 = tpu.matmul %14, %16, %cst_17 {dimension_numbers = #tpu.dot_dimension_numbers<[1], [0], [0], [1], [0, 0, 1, 1], [], []>} : vector<288x3xbf16>, vector<3x8xbf16>, vector<288x8xf32> -> vector<288x8xf32>
    %18 = arith.addf %12, %17 : vector<288x8xf32>
    %c0_18 = arith.constant 0 : index
    %c18 = arith.constant 18 : index
    %c0_19 = arith.constant 0 : index
    %19 = vector.load %arg1[%c0_18, %c18, %c0_19] : memref<1x326x3xbf16, #tpu.memory_space<vmem>>, vector<1x288x3xbf16>
    %20 = vector.shape_cast %19 : vector<1x288x3xbf16> to vector<288x3xbf16>
    %c3 = arith.constant 3 : index
    %c0_20 = arith.constant 0 : index
    %c0_21 = arith.constant 0 : index
    %21 = vector.load %arg2[%c3, %c0_20, %c0_21] : memref<9x3x8xbf16, #tpu.memory_space<vmem>>, vector<1x3x8xbf16>
    %22 = vector.shape_cast %21 : vector<1x3x8xbf16> to vector<3x8xbf16>
    %cst_22 = arith.constant dense<0.000000e+00> : vector<288x8xf32>
    %23 = tpu.matmul %20, %22, %cst_22 {dimension_numbers = #tpu.dot_dimension_numbers<[1], [0], [0], [1], [0, 0, 1, 1], [], []>} : vector<288x3xbf16>, vector<3x8xbf16>, vector<288x8xf32> -> vector<288x8xf32>
    %24 = arith.addf %18, %23 : vector<288x8xf32>
    %c0_23 = arith.constant 0 : index
    %c19 = arith.constant 19 : index
    %c0_24 = arith.constant 0 : index
    %25 = vector.load %arg1[%c0_23, %c19, %c0_24] : memref<1x326x3xbf16, #tpu.memory_space<vmem>>, vector<1x288x3xbf16>
    %26 = vector.shape_cast %25 : vector<1x288x3xbf16> to vector<288x3xbf16>
    %c4 = arith.constant 4 : index
    %c0_25 = arith.constant 0 : index
    %c0_26 = arith.constant 0 : index
    %27 = vector.load %arg2[%c4, %c0_25, %c0_26] : memref<9x3x8xbf16, #tpu.memory_space<vmem>>, vector<1x3x8xbf16>
    %28 = vector.shape_cast %27 : vector<1x3x8xbf16> to vector<3x8xbf16>
    %cst_27 = arith.constant dense<0.000000e+00> : vector<288x8xf32>
    %29 = tpu.matmul %26, %28, %cst_27 {dimension_numbers = #tpu.dot_dimension_numbers<[1], [0], [0], [1], [0, 0, 1, 1], [], []>} : vector<288x3xbf16>, vector<3x8xbf16>, vector<288x8xf32> -> vector<288x8xf32>
    %30 = arith.addf %24, %29 : vector<288x8xf32>
    %c0_28 = arith.constant 0 : index
    %c20 = arith.constant 20 : index
    %c0_29 = arith.constant 0 : index
    %31 = vector.load %arg1[%c0_28, %c20, %c0_29] : memref<1x326x3xbf16, #tpu.memory_space<vmem>>, vector<1x288x3xbf16>
    %32 = vector.shape_cast %31 : vector<1x288x3xbf16> to vector<288x3xbf16>
    %c5 = arith.constant 5 : index
    %c0_30 = arith.constant 0 : index
    %c0_31 = arith.constant 0 : index
    %33 = vector.load %arg2[%c5, %c0_30, %c0_31] : memref<9x3x8xbf16, #tpu.memory_space<vmem>>, vector<1x3x8xbf16>
    %34 = vector.shape_cast %33 : vector<1x3x8xbf16> to vector<3x8xbf16>
    %cst_32 = arith.constant dense<0.000000e+00> : vector<288x8xf32>
    %35 = tpu.matmul %32, %34, %cst_32 {dimension_numbers = #tpu.dot_dimension_numbers<[1], [0], [0], [1], [0, 0, 1, 1], [], []>} : vector<288x3xbf16>, vector<3x8xbf16>, vector<288x8xf32> -> vector<288x8xf32>
    %36 = arith.addf %30, %35 : vector<288x8xf32>
    %c0_33 = arith.constant 0 : index
    %c36 = arith.constant 36 : index
    %c0_34 = arith.constant 0 : index
    %37 = vector.load %arg1[%c0_33, %c36, %c0_34] : memref<1x326x3xbf16, #tpu.memory_space<vmem>>, vector<1x288x3xbf16>
    %38 = vector.shape_cast %37 : vector<1x288x3xbf16> to vector<288x3xbf16>
    %c6 = arith.constant 6 : index
    %c0_35 = arith.constant 0 : index
    %c0_36 = arith.constant 0 : index
    %39 = vector.load %arg2[%c6, %c0_35, %c0_36] : memref<9x3x8xbf16, #tpu.memory_space<vmem>>, vector<1x3x8xbf16>
    %40 = vector.shape_cast %39 : vector<1x3x8xbf16> to vector<3x8xbf16>
    %cst_37 = arith.constant dense<0.000000e+00> : vector<288x8xf32>
    %41 = tpu.matmul %38, %40, %cst_37 {dimension_numbers = #tpu.dot_dimension_numbers<[1], [0], [0], [1], [0, 0, 1, 1], [], []>} : vector<288x3xbf16>, vector<3x8xbf16>, vector<288x8xf32> -> vector<288x8xf32>
    %42 = arith.addf %36, %41 : vector<288x8xf32>
    %c0_38 = arith.constant 0 : index
    %c37 = arith.constant 37 : index
    %c0_39 = arith.constant 0 : index
    %43 = vector.load %arg1[%c0_38, %c37, %c0_39] : memref<1x326x3xbf16, #tpu.memory_space<vmem>>, vector<1x288x3xbf16>
    %44 = vector.shape_cast %43 : vector<1x288x3xbf16> to vector<288x3xbf16>
    %c7 = arith.constant 7 : index
    %c0_40 = arith.constant 0 : index
    %c0_41 = arith.constant 0 : index
    %45 = vector.load %arg2[%c7, %c0_40, %c0_41] : memref<9x3x8xbf16, #tpu.memory_space<vmem>>, vector<1x3x8xbf16>
    %46 = vector.shape_cast %45 : vector<1x3x8xbf16> to vector<3x8xbf16>
    %cst_42 = arith.constant dense<0.000000e+00> : vector<288x8xf32>
    %47 = tpu.matmul %44, %46, %cst_42 {dimension_numbers = #tpu.dot_dimension_numbers<[1], [0], [0], [1], [0, 0, 1, 1], [], []>} : vector<288x3xbf16>, vector<3x8xbf16>, vector<288x8xf32> -> vector<288x8xf32>
    %48 = arith.addf %42, %47 : vector<288x8xf32>
    %c0_43 = arith.constant 0 : index
    %c38 = arith.constant 38 : index
    %c0_44 = arith.constant 0 : index
    %49 = vector.load %arg1[%c0_43, %c38, %c0_44] : memref<1x326x3xbf16, #tpu.memory_space<vmem>>, vector<1x288x3xbf16>
    %50 = vector.shape_cast %49 : vector<1x288x3xbf16> to vector<288x3xbf16>
    %c8 = arith.constant 8 : index
    %c0_45 = arith.constant 0 : index
    %c0_46 = arith.constant 0 : index
    %51 = vector.load %arg2[%c8, %c0_45, %c0_46] : memref<9x3x8xbf16, #tpu.memory_space<vmem>>, vector<1x3x8xbf16>
    %52 = vector.shape_cast %51 : vector<1x3x8xbf16> to vector<3x8xbf16>
    %cst_47 = arith.constant dense<0.000000e+00> : vector<288x8xf32>
    %53 = tpu.matmul %50, %52, %cst_47 {dimension_numbers = #tpu.dot_dimension_numbers<[1], [0], [0], [1], [0, 0, 1, 1], [], []>} : vector<288x3xbf16>, vector<3x8xbf16>, vector<288x8xf32> -> vector<288x8xf32>
    %54 = arith.addf %48, %53 : vector<288x8xf32>
    %c0_48 = arith.constant 0 : index
    %c0_49 = arith.constant 0 : index
    %55 = vector.load %arg3[%c0_48, %c0_49] : memref<2x8xf32, #tpu.memory_space<vmem>>, vector<1x8xf32>
    %56 = vector.broadcast %55 : vector<1x8xf32> to vector<288x8xf32>
    %57 = arith.mulf %54, %56 : vector<288x8xf32>
    %c1_50 = arith.constant 1 : index
    %c0_51 = arith.constant 0 : index
    %58 = vector.load %arg3[%c1_50, %c0_51] : memref<2x8xf32, #tpu.memory_space<vmem>>, vector<1x8xf32>
    %59 = vector.broadcast %58 : vector<1x8xf32> to vector<288x8xf32>
    %60 = arith.addf %57, %59 : vector<288x8xf32>
    %cst_52 = arith.constant 2.000000e+01 : f32
    %61 = vector.broadcast %cst_52 : f32 to vector<288x8xf32>
    %62 = arith.minimumf %60, %61 : vector<288x8xf32>
    %63 = math.exp %62 : vector<288x8xf32>
    %cst_53 = arith.constant 2.000000e+00 : f32
    %64 = vector.broadcast %cst_53 : f32 to vector<288x8xf32>
    %65 = arith.addf %63, %64 : vector<288x8xf32>
    %66 = arith.mulf %63, %65 : vector<288x8xf32>
    %67 = arith.mulf %60, %66 : vector<288x8xf32>
    %cst_54 = arith.constant 2.000000e+00 : f32
    %68 = vector.broadcast %cst_54 : f32 to vector<288x8xf32>
    %69 = arith.addf %66, %68 : vector<288x8xf32>
    %70 = tpu.reciprocal %69 {approx = true} : vector<288x8xf32> -> vector<288x8xf32>
    %71 = arith.mulf %67, %70 : vector<288x8xf32>
    %cst_55 = arith.constant 2.000000e+01 : f32
    %72 = vector.broadcast %cst_55 : f32 to vector<288x8xf32>
    %73 = arith.cmpf ogt, %60, %72 : vector<288x8xf32>
    %74 = arith.select %73, %60, %71 : vector<288x8xi1>, vector<288x8xf32>
    %75 = arith.truncf %74 : vector<288x8xf32> to vector<288x8xbf16>
    %c0_56 = arith.constant 0 : index
    %c0_57 = arith.constant 0 : index
    %c0_58 = arith.constant 0 : index
    %76 = vector.load %arg4[%c0_56, %c0_57, %c0_58] : memref<1x288x8xbf16, #tpu.memory_space<vmem>>, vector<1x288x8xbf16>
    %77 = vector.shape_cast %76 : vector<1x288x8xbf16> to vector<288x8xbf16>
    %78 = vector.shape_cast %75 : vector<288x8xbf16> to vector<1x288x8xbf16>
    tpu.vector_store %arg4[%c0_56, %c0_57, %c0_58], %78 {strides = array<i32>} : memref<1x288x8xbf16, #tpu.memory_space<vmem>>, vector<1x288x8xbf16>,
    return
  }
  func.func @transform_0(%arg0: i32) -> (i32, i32, i32) {
    %c0_i32 = arith.constant 0 : i32
    %c0_i32_0 = arith.constant 0 : i32
    %c0_i32_1 = arith.constant 0 : i32
    return %arg0, %c0_i32, %c0_i32_0 : i32, i32, i32
  }
  func.func @transform_1(%arg0: i32) -> (i32, i32, i32) {
    %c0_i32 = arith.constant 0 : i32
    %c0_i32_0 = arith.constant 0 : i32
    %c0_i32_1 = arith.constant 0 : i32
    %c0_i32_2 = arith.constant 0 : i32
    return %c0_i32, %c0_i32_0, %c0_i32_1 : i32, i32, i32
  }
  func.func @transform_2(%arg0: i32) -> (i32, i32) {
    %c0_i32 = arith.constant 0 : i32
    %c0_i32_0 = arith.constant 0 : i32
    %c0_i32_1 = arith.constant 0 : i32
    return %c0_i32, %c0_i32_0 : i32, i32
  }
  func.func @transform_3(%arg0: i32) -> (i32, i32, i32) {
    %c0_i32 = arith.constant 0 : i32
    %c0_i32_0 = arith.constant 0 : i32
    %c0_i32_1 = arith.constant 0 : i32
    return %arg0, %c0_i32, %c0_i32_0 : i32, i32, i32
  }
}

module attributes {stable_mosaic.version = 11 : i64} {
  func.func @kernel(%arg0: i32, %arg1: memref<1x4x82x8xbf16, #tpu.memory_space<vmem>>, %arg2: memref<9x8x16xbf16, #tpu.memory_space<vmem>>, %arg3: memref<2x16xf32, #tpu.memory_space<vmem>>, %arg4: memref<8x16xbf16, #tpu.memory_space<vmem>>, %arg5: memref<1x16xf32, #tpu.memory_space<vmem>>, %arg6: memref<1x72x16xbf16, #tpu.memory_space<vmem>>, %arg7: memref<1x72x16xbf16, #tpu.memory_space<vmem>>) attributes {dimension_semantics = [#tpu.dimension_semantics<parallel>], iteration_bounds = array<i64: 2>, scalar_prefetch = 0 : i64, scratch_operands = 0 : i64, tpu.core_type = #tpu.core_type<tc>, window_params = [{transform_indices = @transform_0, window_bounds = array<i64: 1, 4, 82, 8>}, {pipeline_mode = #tpu.pipeline_mode<synchronous>, transform_indices = @transform_1, window_bounds = array<i64: 9, 8, 16>}, {pipeline_mode = #tpu.pipeline_mode<synchronous>, transform_indices = @transform_2, window_bounds = array<i64: 2, 16>}, {pipeline_mode = #tpu.pipeline_mode<synchronous>, transform_indices = @transform_3, window_bounds = array<i64: 8, 16>}, {pipeline_mode = #tpu.pipeline_mode<synchronous>, transform_indices = @transform_4, window_bounds = array<i64: 1, 16>}, {transform_indices = @transform_5, window_bounds = array<i64: 1, 72, 16>}, {transform_indices = @transform_6, window_bounds = array<i64: 1, 72, 16>}]} {
    %cst = arith.constant 0.000000e+00 : f32
    %0 = vector.broadcast %cst : f32 to vector<72x16xf32>
    %c0 = arith.constant 0 : index
    %c0_0 = arith.constant 0 : index
    %c0_1 = arith.constant 0 : index
    %c0_2 = arith.constant 0 : index
    %1 = vector.load %arg1[%c0, %c0_0, %c0_1, %c0_2] : memref<1x4x82x8xbf16, #tpu.memory_space<vmem>>, vector<1x1x72x8xbf16>
    %2 = vector.shape_cast %1 : vector<1x1x72x8xbf16> to vector<72x8xbf16>
    %c0_3 = arith.constant 0 : index
    %c0_4 = arith.constant 0 : index
    %c0_5 = arith.constant 0 : index
    %3 = vector.load %arg2[%c0_3, %c0_4, %c0_5] : memref<9x8x16xbf16, #tpu.memory_space<vmem>>, vector<1x8x16xbf16>
    %4 = vector.shape_cast %3 : vector<1x8x16xbf16> to vector<8x16xbf16>
    %cst_6 = arith.constant dense<0.000000e+00> : vector<72x16xf32>
    %5 = tpu.matmul %2, %4, %cst_6 {dimension_numbers = #tpu.dot_dimension_numbers<[1], [0], [0], [1], [0, 0, 1, 1], [], []>} : vector<72x8xbf16>, vector<8x16xbf16>, vector<72x16xf32> -> vector<72x16xf32>
    %6 = arith.addf %0, %5 : vector<72x16xf32>
    %c0_7 = arith.constant 0 : index
    %c1 = arith.constant 1 : index
    %c0_8 = arith.constant 0 : index
    %c0_9 = arith.constant 0 : index
    %7 = vector.load %arg1[%c0_7, %c1, %c0_8, %c0_9] : memref<1x4x82x8xbf16, #tpu.memory_space<vmem>>, vector<1x1x72x8xbf16>
    %8 = vector.shape_cast %7 : vector<1x1x72x8xbf16> to vector<72x8xbf16>
    %c1_10 = arith.constant 1 : index
    %c0_11 = arith.constant 0 : index
    %c0_12 = arith.constant 0 : index
    %9 = vector.load %arg2[%c1_10, %c0_11, %c0_12] : memref<9x8x16xbf16, #tpu.memory_space<vmem>>, vector<1x8x16xbf16>
    %10 = vector.shape_cast %9 : vector<1x8x16xbf16> to vector<8x16xbf16>
    %cst_13 = arith.constant dense<0.000000e+00> : vector<72x16xf32>
    %11 = tpu.matmul %8, %10, %cst_13 {dimension_numbers = #tpu.dot_dimension_numbers<[1], [0], [0], [1], [0, 0, 1, 1], [], []>} : vector<72x8xbf16>, vector<8x16xbf16>, vector<72x16xf32> -> vector<72x16xf32>
    %12 = arith.addf %6, %11 : vector<72x16xf32>
    %c0_14 = arith.constant 0 : index
    %c0_15 = arith.constant 0 : index
    %c1_16 = arith.constant 1 : index
    %c0_17 = arith.constant 0 : index
    %13 = vector.load %arg1[%c0_14, %c0_15, %c1_16, %c0_17] : memref<1x4x82x8xbf16, #tpu.memory_space<vmem>>, vector<1x1x72x8xbf16>
    %14 = vector.shape_cast %13 : vector<1x1x72x8xbf16> to vector<72x8xbf16>
    %c2 = arith.constant 2 : index
    %c0_18 = arith.constant 0 : index
    %c0_19 = arith.constant 0 : index
    %15 = vector.load %arg2[%c2, %c0_18, %c0_19] : memref<9x8x16xbf16, #tpu.memory_space<vmem>>, vector<1x8x16xbf16>
    %16 = vector.shape_cast %15 : vector<1x8x16xbf16> to vector<8x16xbf16>
    %cst_20 = arith.constant dense<0.000000e+00> : vector<72x16xf32>
    %17 = tpu.matmul %14, %16, %cst_20 {dimension_numbers = #tpu.dot_dimension_numbers<[1], [0], [0], [1], [0, 0, 1, 1], [], []>} : vector<72x8xbf16>, vector<8x16xbf16>, vector<72x16xf32> -> vector<72x16xf32>
    %18 = arith.addf %12, %17 : vector<72x16xf32>
    %c0_21 = arith.constant 0 : index
    %c2_22 = arith.constant 2 : index
    %c0_23 = arith.constant 0 : index
    %c0_24 = arith.constant 0 : index
    %19 = vector.load %arg1[%c0_21, %c2_22, %c0_23, %c0_24] : memref<1x4x82x8xbf16, #tpu.memory_space<vmem>>, vector<1x1x72x8xbf16>
    %20 = vector.shape_cast %19 : vector<1x1x72x8xbf16> to vector<72x8xbf16>
    %c3 = arith.constant 3 : index
    %c0_25 = arith.constant 0 : index
    %c0_26 = arith.constant 0 : index
    %21 = vector.load %arg2[%c3, %c0_25, %c0_26] : memref<9x8x16xbf16, #tpu.memory_space<vmem>>, vector<1x8x16xbf16>
    %22 = vector.shape_cast %21 : vector<1x8x16xbf16> to vector<8x16xbf16>
    %cst_27 = arith.constant dense<0.000000e+00> : vector<72x16xf32>
    %23 = tpu.matmul %20, %22, %cst_27 {dimension_numbers = #tpu.dot_dimension_numbers<[1], [0], [0], [1], [0, 0, 1, 1], [], []>} : vector<72x8xbf16>, vector<8x16xbf16>, vector<72x16xf32> -> vector<72x16xf32>
    %24 = arith.addf %18, %23 : vector<72x16xf32>
    %c0_28 = arith.constant 0 : index
    %c3_29 = arith.constant 3 : index
    %c0_30 = arith.constant 0 : index
    %c0_31 = arith.constant 0 : index
    %25 = vector.load %arg1[%c0_28, %c3_29, %c0_30, %c0_31] : memref<1x4x82x8xbf16, #tpu.memory_space<vmem>>, vector<1x1x72x8xbf16>
    %26 = vector.shape_cast %25 : vector<1x1x72x8xbf16> to vector<72x8xbf16>
    %c4 = arith.constant 4 : index
    %c0_32 = arith.constant 0 : index
    %c0_33 = arith.constant 0 : index
    %27 = vector.load %arg2[%c4, %c0_32, %c0_33] : memref<9x8x16xbf16, #tpu.memory_space<vmem>>, vector<1x8x16xbf16>
    %28 = vector.shape_cast %27 : vector<1x8x16xbf16> to vector<8x16xbf16>
    %cst_34 = arith.constant dense<0.000000e+00> : vector<72x16xf32>
    %29 = tpu.matmul %26, %28, %cst_34 {dimension_numbers = #tpu.dot_dimension_numbers<[1], [0], [0], [1], [0, 0, 1, 1], [], []>} : vector<72x8xbf16>, vector<8x16xbf16>, vector<72x16xf32> -> vector<72x16xf32>
    %30 = arith.addf %24, %29 : vector<72x16xf32>
    %c0_35 = arith.constant 0 : index
    %c2_36 = arith.constant 2 : index
    %c1_37 = arith.constant 1 : index
    %c0_38 = arith.constant 0 : index
    %31 = vector.load %arg1[%c0_35, %c2_36, %c1_37, %c0_38] : memref<1x4x82x8xbf16, #tpu.memory_space<vmem>>, vector<1x1x72x8xbf16>
    %32 = vector.shape_cast %31 : vector<1x1x72x8xbf16> to vector<72x8xbf16>
    %c5 = arith.constant 5 : index
    %c0_39 = arith.constant 0 : index
    %c0_40 = arith.constant 0 : index
    %33 = vector.load %arg2[%c5, %c0_39, %c0_40] : memref<9x8x16xbf16, #tpu.memory_space<vmem>>, vector<1x8x16xbf16>
    %34 = vector.shape_cast %33 : vector<1x8x16xbf16> to vector<8x16xbf16>
    %cst_41 = arith.constant dense<0.000000e+00> : vector<72x16xf32>
    %35 = tpu.matmul %32, %34, %cst_41 {dimension_numbers = #tpu.dot_dimension_numbers<[1], [0], [0], [1], [0, 0, 1, 1], [], []>} : vector<72x8xbf16>, vector<8x16xbf16>, vector<72x16xf32> -> vector<72x16xf32>
    %36 = arith.addf %30, %35 : vector<72x16xf32>
    %c0_42 = arith.constant 0 : index
    %c0_43 = arith.constant 0 : index
    %c9 = arith.constant 9 : index
    %c0_44 = arith.constant 0 : index
    %37 = vector.load %arg1[%c0_42, %c0_43, %c9, %c0_44] : memref<1x4x82x8xbf16, #tpu.memory_space<vmem>>, vector<1x1x72x8xbf16>
    %38 = vector.shape_cast %37 : vector<1x1x72x8xbf16> to vector<72x8xbf16>
    %c6 = arith.constant 6 : index
    %c0_45 = arith.constant 0 : index
    %c0_46 = arith.constant 0 : index
    %39 = vector.load %arg2[%c6, %c0_45, %c0_46] : memref<9x8x16xbf16, #tpu.memory_space<vmem>>, vector<1x8x16xbf16>
    %40 = vector.shape_cast %39 : vector<1x8x16xbf16> to vector<8x16xbf16>
    %cst_47 = arith.constant dense<0.000000e+00> : vector<72x16xf32>
    %41 = tpu.matmul %38, %40, %cst_47 {dimension_numbers = #tpu.dot_dimension_numbers<[1], [0], [0], [1], [0, 0, 1, 1], [], []>} : vector<72x8xbf16>, vector<8x16xbf16>, vector<72x16xf32> -> vector<72x16xf32>
    %42 = arith.addf %36, %41 : vector<72x16xf32>
    %c0_48 = arith.constant 0 : index
    %c1_49 = arith.constant 1 : index
    %c9_50 = arith.constant 9 : index
    %c0_51 = arith.constant 0 : index
    %43 = vector.load %arg1[%c0_48, %c1_49, %c9_50, %c0_51] : memref<1x4x82x8xbf16, #tpu.memory_space<vmem>>, vector<1x1x72x8xbf16>
    %44 = vector.shape_cast %43 : vector<1x1x72x8xbf16> to vector<72x8xbf16>
    %c7 = arith.constant 7 : index
    %c0_52 = arith.constant 0 : index
    %c0_53 = arith.constant 0 : index
    %45 = vector.load %arg2[%c7, %c0_52, %c0_53] : memref<9x8x16xbf16, #tpu.memory_space<vmem>>, vector<1x8x16xbf16>
    %46 = vector.shape_cast %45 : vector<1x8x16xbf16> to vector<8x16xbf16>
    %cst_54 = arith.constant dense<0.000000e+00> : vector<72x16xf32>
    %47 = tpu.matmul %44, %46, %cst_54 {dimension_numbers = #tpu.dot_dimension_numbers<[1], [0], [0], [1], [0, 0, 1, 1], [], []>} : vector<72x8xbf16>, vector<8x16xbf16>, vector<72x16xf32> -> vector<72x16xf32>
    %48 = arith.addf %42, %47 : vector<72x16xf32>
    %c0_55 = arith.constant 0 : index
    %c0_56 = arith.constant 0 : index
    %c10 = arith.constant 10 : index
    %c0_57 = arith.constant 0 : index
    %49 = vector.load %arg1[%c0_55, %c0_56, %c10, %c0_57] : memref<1x4x82x8xbf16, #tpu.memory_space<vmem>>, vector<1x1x72x8xbf16>
    %50 = vector.shape_cast %49 : vector<1x1x72x8xbf16> to vector<72x8xbf16>
    %c8 = arith.constant 8 : index
    %c0_58 = arith.constant 0 : index
    %c0_59 = arith.constant 0 : index
    %51 = vector.load %arg2[%c8, %c0_58, %c0_59] : memref<9x8x16xbf16, #tpu.memory_space<vmem>>, vector<1x8x16xbf16>
    %52 = vector.shape_cast %51 : vector<1x8x16xbf16> to vector<8x16xbf16>
    %cst_60 = arith.constant dense<0.000000e+00> : vector<72x16xf32>
    %53 = tpu.matmul %50, %52, %cst_60 {dimension_numbers = #tpu.dot_dimension_numbers<[1], [0], [0], [1], [0, 0, 1, 1], [], []>} : vector<72x8xbf16>, vector<8x16xbf16>, vector<72x16xf32> -> vector<72x16xf32>
    %54 = arith.addf %48, %53 : vector<72x16xf32>
    %c0_61 = arith.constant 0 : index
    %c0_62 = arith.constant 0 : index
    %55 = vector.load %arg3[%c0_61, %c0_62] : memref<2x16xf32, #tpu.memory_space<vmem>>, vector<1x16xf32>
    %56 = vector.broadcast %55 : vector<1x16xf32> to vector<72x16xf32>
    %57 = arith.mulf %54, %56 : vector<72x16xf32>
    %c1_63 = arith.constant 1 : index
    %c0_64 = arith.constant 0 : index
    %58 = vector.load %arg3[%c1_63, %c0_64] : memref<2x16xf32, #tpu.memory_space<vmem>>, vector<1x16xf32>
    %59 = vector.broadcast %58 : vector<1x16xf32> to vector<72x16xf32>
    %60 = arith.addf %57, %59 : vector<72x16xf32>
    %cst_65 = arith.constant 2.000000e+01 : f32
    %61 = vector.broadcast %cst_65 : f32 to vector<72x16xf32>
    %62 = arith.minimumf %60, %61 : vector<72x16xf32>
    %63 = math.exp %62 : vector<72x16xf32>
    %cst_66 = arith.constant 2.000000e+00 : f32
    %64 = vector.broadcast %cst_66 : f32 to vector<72x16xf32>
    %65 = arith.addf %63, %64 : vector<72x16xf32>
    %66 = arith.mulf %63, %65 : vector<72x16xf32>
    %67 = arith.mulf %60, %66 : vector<72x16xf32>
    %cst_67 = arith.constant 2.000000e+00 : f32
    %68 = vector.broadcast %cst_67 : f32 to vector<72x16xf32>
    %69 = arith.addf %66, %68 : vector<72x16xf32>
    %70 = tpu.reciprocal %69 {approx = true} : vector<72x16xf32> -> vector<72x16xf32>
    %71 = arith.mulf %67, %70 : vector<72x16xf32>
    %cst_68 = arith.constant 2.000000e+01 : f32
    %72 = vector.broadcast %cst_68 : f32 to vector<72x16xf32>
    %73 = arith.cmpf ogt, %60, %72 : vector<72x16xf32>
    %74 = arith.select %73, %60, %71 : vector<72x16xi1>, vector<72x16xf32>
    %cst_69 = arith.constant 0.000000e+00 : f32
    %75 = vector.broadcast %cst_69 : f32 to vector<72x16xf32>
    %c0_70 = arith.constant 0 : index
    %c3_71 = arith.constant 3 : index
    %c0_72 = arith.constant 0 : index
    %c0_73 = arith.constant 0 : index
    %76 = vector.load %arg1[%c0_70, %c3_71, %c0_72, %c0_73] : memref<1x4x82x8xbf16, #tpu.memory_space<vmem>>, vector<1x1x72x8xbf16>
    %77 = vector.shape_cast %76 : vector<1x1x72x8xbf16> to vector<72x8xbf16>
    %c0_74 = arith.constant 0 : index
    %c0_75 = arith.constant 0 : index
    %78 = vector.load %arg4[%c0_74, %c0_75] : memref<8x16xbf16, #tpu.memory_space<vmem>>, vector<8x16xbf16>
    %cst_76 = arith.constant dense<0.000000e+00> : vector<72x16xf32>
    %79 = tpu.matmul %77, %78, %cst_76 {dimension_numbers = #tpu.dot_dimension_numbers<[1], [0], [0], [1], [0, 0, 1, 1], [], []>} : vector<72x8xbf16>, vector<8x16xbf16>, vector<72x16xf32> -> vector<72x16xf32>
    %80 = arith.addf %75, %79 : vector<72x16xf32>
    %c0_77 = arith.constant 0 : index
    %c2_78 = arith.constant 2 : index
    %c1_79 = arith.constant 1 : index
    %c0_80 = arith.constant 0 : index
    %81 = vector.load %arg1[%c0_77, %c2_78, %c1_79, %c0_80] : memref<1x4x82x8xbf16, #tpu.memory_space<vmem>>, vector<1x1x72x8xbf16>
    %82 = vector.shape_cast %81 : vector<1x1x72x8xbf16> to vector<72x8xbf16>
    %c0_81 = arith.constant 0 : index
    %c0_82 = arith.constant 0 : index
    %83 = vector.load %arg4[%c0_81, %c0_82] : memref<8x16xbf16, #tpu.memory_space<vmem>>, vector<8x16xbf16>
    %cst_83 = arith.constant dense<0.000000e+00> : vector<72x16xf32>
    %84 = tpu.matmul %82, %83, %cst_83 {dimension_numbers = #tpu.dot_dimension_numbers<[1], [0], [0], [1], [0, 0, 1, 1], [], []>} : vector<72x8xbf16>, vector<8x16xbf16>, vector<72x16xf32> -> vector<72x16xf32>
    %85 = arith.addf %80, %84 : vector<72x16xf32>
    %c0_84 = arith.constant 0 : index
    %c1_85 = arith.constant 1 : index
    %c9_86 = arith.constant 9 : index
    %c0_87 = arith.constant 0 : index
    %86 = vector.load %arg1[%c0_84, %c1_85, %c9_86, %c0_87] : memref<1x4x82x8xbf16, #tpu.memory_space<vmem>>, vector<1x1x72x8xbf16>
    %87 = vector.shape_cast %86 : vector<1x1x72x8xbf16> to vector<72x8xbf16>
    %c0_88 = arith.constant 0 : index
    %c0_89 = arith.constant 0 : index
    %88 = vector.load %arg4[%c0_88, %c0_89] : memref<8x16xbf16, #tpu.memory_space<vmem>>, vector<8x16xbf16>
    %cst_90 = arith.constant dense<0.000000e+00> : vector<72x16xf32>
    %89 = tpu.matmul %87, %88, %cst_90 {dimension_numbers = #tpu.dot_dimension_numbers<[1], [0], [0], [1], [0, 0, 1, 1], [], []>} : vector<72x8xbf16>, vector<8x16xbf16>, vector<72x16xf32> -> vector<72x16xf32>
    %90 = arith.addf %85, %89 : vector<72x16xf32>
    %c0_91 = arith.constant 0 : index
    %c0_92 = arith.constant 0 : index
    %c10_93 = arith.constant 10 : index
    %c0_94 = arith.constant 0 : index
    %91 = vector.load %arg1[%c0_91, %c0_92, %c10_93, %c0_94] : memref<1x4x82x8xbf16, #tpu.memory_space<vmem>>, vector<1x1x72x8xbf16>
    %92 = vector.shape_cast %91 : vector<1x1x72x8xbf16> to vector<72x8xbf16>
    %c0_95 = arith.constant 0 : index
    %c0_96 = arith.constant 0 : index
    %93 = vector.load %arg4[%c0_95, %c0_96] : memref<8x16xbf16, #tpu.memory_space<vmem>>, vector<8x16xbf16>
    %cst_97 = arith.constant dense<0.000000e+00> : vector<72x16xf32>
    %94 = tpu.matmul %92, %93, %cst_97 {dimension_numbers = #tpu.dot_dimension_numbers<[1], [0], [0], [1], [0, 0, 1, 1], [], []>} : vector<72x8xbf16>, vector<8x16xbf16>, vector<72x16xf32> -> vector<72x16xf32>
    %95 = arith.addf %90, %94 : vector<72x16xf32>
    %c0_98 = arith.constant 0 : index
    %c0_99 = arith.constant 0 : index
    %96 = vector.load %arg5[%c0_98, %c0_99] : memref<1x16xf32, #tpu.memory_space<vmem>>, vector<1x16xf32>
    %97 = vector.broadcast %96 : vector<1x16xf32> to vector<72x16xf32>
    %98 = arith.addf %95, %97 : vector<72x16xf32>
    %99 = arith.truncf %98 : vector<72x16xf32> to vector<72x16xbf16>
    %c0_100 = arith.constant 0 : index
    %c0_101 = arith.constant 0 : index
    %c0_102 = arith.constant 0 : index
    %100 = vector.load %arg7[%c0_100, %c0_101, %c0_102] : memref<1x72x16xbf16, #tpu.memory_space<vmem>>, vector<1x72x16xbf16>
    %101 = vector.shape_cast %100 : vector<1x72x16xbf16> to vector<72x16xbf16>
    %102 = vector.shape_cast %99 : vector<72x16xbf16> to vector<1x72x16xbf16>
    tpu.vector_store %arg7[%c0_100, %c0_101, %c0_102], %102 {strides = array<i32>} : memref<1x72x16xbf16, #tpu.memory_space<vmem>>, vector<1x72x16xbf16>,
    %103 = arith.truncf %74 : vector<72x16xf32> to vector<72x16xbf16>
    %c0_103 = arith.constant 0 : index
    %c0_104 = arith.constant 0 : index
    %c0_105 = arith.constant 0 : index
    %104 = vector.load %arg6[%c0_103, %c0_104, %c0_105] : memref<1x72x16xbf16, #tpu.memory_space<vmem>>, vector<1x72x16xbf16>
    %105 = vector.shape_cast %104 : vector<1x72x16xbf16> to vector<72x16xbf16>
    %106 = vector.shape_cast %103 : vector<72x16xbf16> to vector<1x72x16xbf16>
    tpu.vector_store %arg6[%c0_103, %c0_104, %c0_105], %106 {strides = array<i32>} : memref<1x72x16xbf16, #tpu.memory_space<vmem>>, vector<1x72x16xbf16>,
    return
  }
  func.func @transform_0(%arg0: i32) -> (i32, i32, i32, i32) {
    %c0_i32 = arith.constant 0 : i32
    %c0_i32_0 = arith.constant 0 : i32
    %c0_i32_1 = arith.constant 0 : i32
    %c0_i32_2 = arith.constant 0 : i32
    return %arg0, %c0_i32, %c0_i32_0, %c0_i32_1 : i32, i32, i32, i32
  }
  func.func @transform_1(%arg0: i32) -> (i32, i32, i32) {
    %c0_i32 = arith.constant 0 : i32
    %c0_i32_0 = arith.constant 0 : i32
    %c0_i32_1 = arith.constant 0 : i32
    %c0_i32_2 = arith.constant 0 : i32
    return %c0_i32, %c0_i32_0, %c0_i32_1 : i32, i32, i32
  }
  func.func @transform_2(%arg0: i32) -> (i32, i32) {
    %c0_i32 = arith.constant 0 : i32
    %c0_i32_0 = arith.constant 0 : i32
    %c0_i32_1 = arith.constant 0 : i32
    return %c0_i32, %c0_i32_0 : i32, i32
  }
  func.func @transform_3(%arg0: i32) -> (i32, i32) {
    %c0_i32 = arith.constant 0 : i32
    %c0_i32_0 = arith.constant 0 : i32
    %c0_i32_1 = arith.constant 0 : i32
    return %c0_i32, %c0_i32_0 : i32, i32
  }
  func.func @transform_4(%arg0: i32) -> (i32, i32) {
    %c0_i32 = arith.constant 0 : i32
    %c0_i32_0 = arith.constant 0 : i32
    %c0_i32_1 = arith.constant 0 : i32
    return %c0_i32, %c0_i32_0 : i32, i32
  }
  func.func @transform_5(%arg0: i32) -> (i32, i32, i32) {
    %c0_i32 = arith.constant 0 : i32
    %c0_i32_0 = arith.constant 0 : i32
    %c0_i32_1 = arith.constant 0 : i32
    return %arg0, %c0_i32, %c0_i32_0 : i32, i32, i32
  }
  func.func @transform_6(%arg0: i32) -> (i32, i32, i32) {
    %c0_i32 = arith.constant 0 : i32
    %c0_i32_0 = arith.constant 0 : i32
    %c0_i32_1 = arith.constant 0 : i32
    return %arg0, %c0_i32, %c0_i32_0 : i32, i32, i32
  }
}

module attributes {stable_mosaic.version = 11 : i64} {
  func.func @kernel(%arg0: i32, %arg1: memref<1x102x16xbf16, #tpu.memory_space<vmem>>, %arg2: memref<9x16x16xbf16, #tpu.memory_space<vmem>>, %arg3: memref<2x16xf32, #tpu.memory_space<vmem>>, %arg4: memref<1x80x16xbf16, #tpu.memory_space<vmem>>, %arg5: memref<1x80x16xbf16, #tpu.memory_space<vmem>>) attributes {dimension_semantics = [#tpu.dimension_semantics<parallel>], iteration_bounds = array<i64: 2>, scalar_prefetch = 0 : i64, scratch_operands = 0 : i64, tpu.core_type = #tpu.core_type<tc>, window_params = [{transform_indices = @transform_0, window_bounds = array<i64: 1, 102, 16>}, {pipeline_mode = #tpu.pipeline_mode<synchronous>, transform_indices = @transform_1, window_bounds = array<i64: 9, 16, 16>}, {pipeline_mode = #tpu.pipeline_mode<synchronous>, transform_indices = @transform_2, window_bounds = array<i64: 2, 16>}, {transform_indices = @transform_3, window_bounds = array<i64: 1, 80, 16>}, {transform_indices = @transform_4, window_bounds = array<i64: 1, 80, 16>}]} {
    %cst = arith.constant 0.000000e+00 : f32
    %0 = vector.broadcast %cst : f32 to vector<80x16xf32>
    %c0 = arith.constant 0 : index
    %c0_0 = arith.constant 0 : index
    %c0_1 = arith.constant 0 : index
    %1 = vector.load %arg1[%c0, %c0_0, %c0_1] : memref<1x102x16xbf16, #tpu.memory_space<vmem>>, vector<1x80x16xbf16>
    %2 = vector.shape_cast %1 : vector<1x80x16xbf16> to vector<80x16xbf16>
    %c0_2 = arith.constant 0 : index
    %c0_3 = arith.constant 0 : index
    %c0_4 = arith.constant 0 : index
    %3 = vector.load %arg2[%c0_2, %c0_3, %c0_4] : memref<9x16x16xbf16, #tpu.memory_space<vmem>>, vector<1x16x16xbf16>
    %4 = vector.shape_cast %3 : vector<1x16x16xbf16> to vector<16x16xbf16>
    %cst_5 = arith.constant dense<0.000000e+00> : vector<80x16xf32>
    %5 = tpu.matmul %2, %4, %cst_5 {dimension_numbers = #tpu.dot_dimension_numbers<[1], [0], [0], [1], [0, 0, 1, 1], [], []>} : vector<80x16xbf16>, vector<16x16xbf16>, vector<80x16xf32> -> vector<80x16xf32>
    %6 = arith.addf %0, %5 : vector<80x16xf32>
    %c0_6 = arith.constant 0 : index
    %c1 = arith.constant 1 : index
    %c0_7 = arith.constant 0 : index
    %7 = vector.load %arg1[%c0_6, %c1, %c0_7] : memref<1x102x16xbf16, #tpu.memory_space<vmem>>, vector<1x80x16xbf16>
    %8 = vector.shape_cast %7 : vector<1x80x16xbf16> to vector<80x16xbf16>
    %c1_8 = arith.constant 1 : index
    %c0_9 = arith.constant 0 : index
    %c0_10 = arith.constant 0 : index
    %9 = vector.load %arg2[%c1_8, %c0_9, %c0_10] : memref<9x16x16xbf16, #tpu.memory_space<vmem>>, vector<1x16x16xbf16>
    %10 = vector.shape_cast %9 : vector<1x16x16xbf16> to vector<16x16xbf16>
    %cst_11 = arith.constant dense<0.000000e+00> : vector<80x16xf32>
    %11 = tpu.matmul %8, %10, %cst_11 {dimension_numbers = #tpu.dot_dimension_numbers<[1], [0], [0], [1], [0, 0, 1, 1], [], []>} : vector<80x16xbf16>, vector<16x16xbf16>, vector<80x16xf32> -> vector<80x16xf32>
    %12 = arith.addf %6, %11 : vector<80x16xf32>
    %c0_12 = arith.constant 0 : index
    %c2 = arith.constant 2 : index
    %c0_13 = arith.constant 0 : index
    %13 = vector.load %arg1[%c0_12, %c2, %c0_13] : memref<1x102x16xbf16, #tpu.memory_space<vmem>>, vector<1x80x16xbf16>
    %14 = vector.shape_cast %13 : vector<1x80x16xbf16> to vector<80x16xbf16>
    %c2_14 = arith.constant 2 : index
    %c0_15 = arith.constant 0 : index
    %c0_16 = arith.constant 0 : index
    %15 = vector.load %arg2[%c2_14, %c0_15, %c0_16] : memref<9x16x16xbf16, #tpu.memory_space<vmem>>, vector<1x16x16xbf16>
    %16 = vector.shape_cast %15 : vector<1x16x16xbf16> to vector<16x16xbf16>
    %cst_17 = arith.constant dense<0.000000e+00> : vector<80x16xf32>
    %17 = tpu.matmul %14, %16, %cst_17 {dimension_numbers = #tpu.dot_dimension_numbers<[1], [0], [0], [1], [0, 0, 1, 1], [], []>} : vector<80x16xbf16>, vector<16x16xbf16>, vector<80x16xf32> -> vector<80x16xf32>
    %18 = arith.addf %12, %17 : vector<80x16xf32>
    %c0_18 = arith.constant 0 : index
    %c10 = arith.constant 10 : index
    %c0_19 = arith.constant 0 : index
    %19 = vector.load %arg1[%c0_18, %c10, %c0_19] : memref<1x102x16xbf16, #tpu.memory_space<vmem>>, vector<1x80x16xbf16>
    %20 = vector.shape_cast %19 : vector<1x80x16xbf16> to vector<80x16xbf16>
    %c3 = arith.constant 3 : index
    %c0_20 = arith.constant 0 : index
    %c0_21 = arith.constant 0 : index
    %21 = vector.load %arg2[%c3, %c0_20, %c0_21] : memref<9x16x16xbf16, #tpu.memory_space<vmem>>, vector<1x16x16xbf16>
    %22 = vector.shape_cast %21 : vector<1x16x16xbf16> to vector<16x16xbf16>
    %cst_22 = arith.constant dense<0.000000e+00> : vector<80x16xf32>
    %23 = tpu.matmul %20, %22, %cst_22 {dimension_numbers = #tpu.dot_dimension_numbers<[1], [0], [0], [1], [0, 0, 1, 1], [], []>} : vector<80x16xbf16>, vector<16x16xbf16>, vector<80x16xf32> -> vector<80x16xf32>
    %24 = arith.addf %18, %23 : vector<80x16xf32>
    %c0_23 = arith.constant 0 : index
    %c11 = arith.constant 11 : index
    %c0_24 = arith.constant 0 : index
    %25 = vector.load %arg1[%c0_23, %c11, %c0_24] : memref<1x102x16xbf16, #tpu.memory_space<vmem>>, vector<1x80x16xbf16>
    %26 = vector.shape_cast %25 : vector<1x80x16xbf16> to vector<80x16xbf16>
    %c4 = arith.constant 4 : index
    %c0_25 = arith.constant 0 : index
    %c0_26 = arith.constant 0 : index
    %27 = vector.load %arg2[%c4, %c0_25, %c0_26] : memref<9x16x16xbf16, #tpu.memory_space<vmem>>, vector<1x16x16xbf16>
    %28 = vector.shape_cast %27 : vector<1x16x16xbf16> to vector<16x16xbf16>
    %cst_27 = arith.constant dense<0.000000e+00> : vector<80x16xf32>
    %29 = tpu.matmul %26, %28, %cst_27 {dimension_numbers = #tpu.dot_dimension_numbers<[1], [0], [0], [1], [0, 0, 1, 1], [], []>} : vector<80x16xbf16>, vector<16x16xbf16>, vector<80x16xf32> -> vector<80x16xf32>
    %30 = arith.addf %24, %29 : vector<80x16xf32>
    %c0_28 = arith.constant 0 : index
    %c12 = arith.constant 12 : index
    %c0_29 = arith.constant 0 : index
    %31 = vector.load %arg1[%c0_28, %c12, %c0_29] : memref<1x102x16xbf16, #tpu.memory_space<vmem>>, vector<1x80x16xbf16>
    %32 = vector.shape_cast %31 : vector<1x80x16xbf16> to vector<80x16xbf16>
    %c5 = arith.constant 5 : index
    %c0_30 = arith.constant 0 : index
    %c0_31 = arith.constant 0 : index
    %33 = vector.load %arg2[%c5, %c0_30, %c0_31] : memref<9x16x16xbf16, #tpu.memory_space<vmem>>, vector<1x16x16xbf16>
    %34 = vector.shape_cast %33 : vector<1x16x16xbf16> to vector<16x16xbf16>
    %cst_32 = arith.constant dense<0.000000e+00> : vector<80x16xf32>
    %35 = tpu.matmul %32, %34, %cst_32 {dimension_numbers = #tpu.dot_dimension_numbers<[1], [0], [0], [1], [0, 0, 1, 1], [], []>} : vector<80x16xbf16>, vector<16x16xbf16>, vector<80x16xf32> -> vector<80x16xf32>
    %36 = arith.addf %30, %35 : vector<80x16xf32>
    %c0_33 = arith.constant 0 : index
    %c20 = arith.constant 20 : index
    %c0_34 = arith.constant 0 : index
    %37 = vector.load %arg1[%c0_33, %c20, %c0_34] : memref<1x102x16xbf16, #tpu.memory_space<vmem>>, vector<1x80x16xbf16>
    %38 = vector.shape_cast %37 : vector<1x80x16xbf16> to vector<80x16xbf16>
    %c6 = arith.constant 6 : index
    %c0_35 = arith.constant 0 : index
    %c0_36 = arith.constant 0 : index
    %39 = vector.load %arg2[%c6, %c0_35, %c0_36] : memref<9x16x16xbf16, #tpu.memory_space<vmem>>, vector<1x16x16xbf16>
    %40 = vector.shape_cast %39 : vector<1x16x16xbf16> to vector<16x16xbf16>
    %cst_37 = arith.constant dense<0.000000e+00> : vector<80x16xf32>
    %41 = tpu.matmul %38, %40, %cst_37 {dimension_numbers = #tpu.dot_dimension_numbers<[1], [0], [0], [1], [0, 0, 1, 1], [], []>} : vector<80x16xbf16>, vector<16x16xbf16>, vector<80x16xf32> -> vector<80x16xf32>
    %42 = arith.addf %36, %41 : vector<80x16xf32>
    %c0_38 = arith.constant 0 : index
    %c21 = arith.constant 21 : index
    %c0_39 = arith.constant 0 : index
    %43 = vector.load %arg1[%c0_38, %c21, %c0_39] : memref<1x102x16xbf16, #tpu.memory_space<vmem>>, vector<1x80x16xbf16>
    %44 = vector.shape_cast %43 : vector<1x80x16xbf16> to vector<80x16xbf16>
    %c7 = arith.constant 7 : index
    %c0_40 = arith.constant 0 : index
    %c0_41 = arith.constant 0 : index
    %45 = vector.load %arg2[%c7, %c0_40, %c0_41] : memref<9x16x16xbf16, #tpu.memory_space<vmem>>, vector<1x16x16xbf16>
    %46 = vector.shape_cast %45 : vector<1x16x16xbf16> to vector<16x16xbf16>
    %cst_42 = arith.constant dense<0.000000e+00> : vector<80x16xf32>
    %47 = tpu.matmul %44, %46, %cst_42 {dimension_numbers = #tpu.dot_dimension_numbers<[1], [0], [0], [1], [0, 0, 1, 1], [], []>} : vector<80x16xbf16>, vector<16x16xbf16>, vector<80x16xf32> -> vector<80x16xf32>
    %48 = arith.addf %42, %47 : vector<80x16xf32>
    %c0_43 = arith.constant 0 : index
    %c22 = arith.constant 22 : index
    %c0_44 = arith.constant 0 : index
    %49 = vector.load %arg1[%c0_43, %c22, %c0_44] : memref<1x102x16xbf16, #tpu.memory_space<vmem>>, vector<1x80x16xbf16>
    %50 = vector.shape_cast %49 : vector<1x80x16xbf16> to vector<80x16xbf16>
    %c8 = arith.constant 8 : index
    %c0_45 = arith.constant 0 : index
    %c0_46 = arith.constant 0 : index
    %51 = vector.load %arg2[%c8, %c0_45, %c0_46] : memref<9x16x16xbf16, #tpu.memory_space<vmem>>, vector<1x16x16xbf16>
    %52 = vector.shape_cast %51 : vector<1x16x16xbf16> to vector<16x16xbf16>
    %cst_47 = arith.constant dense<0.000000e+00> : vector<80x16xf32>
    %53 = tpu.matmul %50, %52, %cst_47 {dimension_numbers = #tpu.dot_dimension_numbers<[1], [0], [0], [1], [0, 0, 1, 1], [], []>} : vector<80x16xbf16>, vector<16x16xbf16>, vector<80x16xf32> -> vector<80x16xf32>
    %54 = arith.addf %48, %53 : vector<80x16xf32>
    %c0_48 = arith.constant 0 : index
    %c0_49 = arith.constant 0 : index
    %55 = vector.load %arg3[%c0_48, %c0_49] : memref<2x16xf32, #tpu.memory_space<vmem>>, vector<1x16xf32>
    %56 = vector.broadcast %55 : vector<1x16xf32> to vector<80x16xf32>
    %57 = arith.mulf %54, %56 : vector<80x16xf32>
    %c1_50 = arith.constant 1 : index
    %c0_51 = arith.constant 0 : index
    %58 = vector.load %arg3[%c1_50, %c0_51] : memref<2x16xf32, #tpu.memory_space<vmem>>, vector<1x16xf32>
    %59 = vector.broadcast %58 : vector<1x16xf32> to vector<80x16xf32>
    %60 = arith.addf %57, %59 : vector<80x16xf32>
    %cst_52 = arith.constant 2.000000e+01 : f32
    %61 = vector.broadcast %cst_52 : f32 to vector<80x16xf32>
    %62 = arith.minimumf %60, %61 : vector<80x16xf32>
    %63 = math.exp %62 : vector<80x16xf32>
    %cst_53 = arith.constant 2.000000e+00 : f32
    %64 = vector.broadcast %cst_53 : f32 to vector<80x16xf32>
    %65 = arith.addf %63, %64 : vector<80x16xf32>
    %66 = arith.mulf %63, %65 : vector<80x16xf32>
    %67 = arith.mulf %60, %66 : vector<80x16xf32>
    %cst_54 = arith.constant 2.000000e+00 : f32
    %68 = vector.broadcast %cst_54 : f32 to vector<80x16xf32>
    %69 = arith.addf %66, %68 : vector<80x16xf32>
    %70 = tpu.reciprocal %69 {approx = true} : vector<80x16xf32> -> vector<80x16xf32>
    %71 = arith.mulf %67, %70 : vector<80x16xf32>
    %cst_55 = arith.constant 2.000000e+01 : f32
    %72 = vector.broadcast %cst_55 : f32 to vector<80x16xf32>
    %73 = arith.cmpf ogt, %60, %72 : vector<80x16xf32>
    %74 = arith.select %73, %60, %71 : vector<80x16xi1>, vector<80x16xf32>
    %c0_56 = arith.constant 0 : index
    %c0_57 = arith.constant 0 : index
    %c0_58 = arith.constant 0 : index
    %75 = vector.load %arg4[%c0_56, %c0_57, %c0_58] : memref<1x80x16xbf16, #tpu.memory_space<vmem>>, vector<1x80x16xbf16>
    %76 = vector.shape_cast %75 : vector<1x80x16xbf16> to vector<80x16xbf16>
    %77 = arith.extf %76 : vector<80x16xbf16> to vector<80x16xf32>
    %78 = arith.addf %74, %77 : vector<80x16xf32>
    %cst_59 = arith.constant 0.707106769 : f32
    %79 = vector.broadcast %cst_59 : f32 to vector<80x16xf32>
    %80 = arith.mulf %78, %79 : vector<80x16xf32>
    %81 = arith.truncf %80 : vector<80x16xf32> to vector<80x16xbf16>
    %c0_60 = arith.constant 0 : index
    %c0_61 = arith.constant 0 : index
    %c0_62 = arith.constant 0 : index
    %82 = vector.load %arg5[%c0_60, %c0_61, %c0_62] : memref<1x80x16xbf16, #tpu.memory_space<vmem>>, vector<1x80x16xbf16>
    %83 = vector.shape_cast %82 : vector<1x80x16xbf16> to vector<80x16xbf16>
    %84 = vector.shape_cast %81 : vector<80x16xbf16> to vector<1x80x16xbf16>
    tpu.vector_store %arg5[%c0_60, %c0_61, %c0_62], %84 {strides = array<i32>} : memref<1x80x16xbf16, #tpu.memory_space<vmem>>, vector<1x80x16xbf16>,
    return
  }
  func.func @transform_0(%arg0: i32) -> (i32, i32, i32) {
    %c0_i32 = arith.constant 0 : i32
    %c0_i32_0 = arith.constant 0 : i32
    %c0_i32_1 = arith.constant 0 : i32
    return %arg0, %c0_i32, %c0_i32_0 : i32, i32, i32
  }
  func.func @transform_1(%arg0: i32) -> (i32, i32, i32) {
    %c0_i32 = arith.constant 0 : i32
    %c0_i32_0 = arith.constant 0 : i32
    %c0_i32_1 = arith.constant 0 : i32
    %c0_i32_2 = arith.constant 0 : i32
    return %c0_i32, %c0_i32_0, %c0_i32_1 : i32, i32, i32
  }
  func.func @transform_2(%arg0: i32) -> (i32, i32) {
    %c0_i32 = arith.constant 0 : i32
    %c0_i32_0 = arith.constant 0 : i32
    %c0_i32_1 = arith.constant 0 : i32
    return %c0_i32, %c0_i32_0 : i32, i32
  }
  func.func @transform_3(%arg0: i32) -> (i32, i32, i32) {
    %c0_i32 = arith.constant 0 : i32
    %c0_i32_0 = arith.constant 0 : i32
    %c0_i32_1 = arith.constant 0 : i32
    return %arg0, %c0_i32, %c0_i32_0 : i32, i32, i32
  }
  func.func @transform_4(%arg0: i32) -> (i32, i32, i32) {
    %c0_i32 = arith.constant 0 : i32
    %c0_i32_0 = arith.constant 0 : i32
    %c0_i32_1 = arith.constant 0 : i32
    return %arg0, %c0_i32, %c0_i32_0 : i32, i32, i32
  }
}

module attributes {stable_mosaic.version = 11 : i64} {
  func.func @kernel(%arg0: i32, %arg1: memref<1x4x26x16xbf16, #tpu.memory_space<vmem>>, %arg2: memref<9x16x32xbf16, #tpu.memory_space<vmem>>, %arg3: memref<2x32xf32, #tpu.memory_space<vmem>>, %arg4: memref<16x32xbf16, #tpu.memory_space<vmem>>, %arg5: memref<1x32xf32, #tpu.memory_space<vmem>>, %arg6: memref<1x20x32xbf16, #tpu.memory_space<vmem>>, %arg7: memref<1x20x32xbf16, #tpu.memory_space<vmem>>) attributes {dimension_semantics = [#tpu.dimension_semantics<parallel>], iteration_bounds = array<i64: 2>, scalar_prefetch = 0 : i64, scratch_operands = 0 : i64, tpu.core_type = #tpu.core_type<tc>, window_params = [{transform_indices = @transform_0, window_bounds = array<i64: 1, 4, 26, 16>}, {pipeline_mode = #tpu.pipeline_mode<synchronous>, transform_indices = @transform_1, window_bounds = array<i64: 9, 16, 32>}, {pipeline_mode = #tpu.pipeline_mode<synchronous>, transform_indices = @transform_2, window_bounds = array<i64: 2, 32>}, {pipeline_mode = #tpu.pipeline_mode<synchronous>, transform_indices = @transform_3, window_bounds = array<i64: 16, 32>}, {pipeline_mode = #tpu.pipeline_mode<synchronous>, transform_indices = @transform_4, window_bounds = array<i64: 1, 32>}, {transform_indices = @transform_5, window_bounds = array<i64: 1, 20, 32>}, {transform_indices = @transform_6, window_bounds = array<i64: 1, 20, 32>}]} {
    %cst = arith.constant 0.000000e+00 : f32
    %0 = vector.broadcast %cst : f32 to vector<20x32xf32>
    %c0 = arith.constant 0 : index
    %c0_0 = arith.constant 0 : index
    %c0_1 = arith.constant 0 : index
    %c0_2 = arith.constant 0 : index
    %1 = vector.load %arg1[%c0, %c0_0, %c0_1, %c0_2] : memref<1x4x26x16xbf16, #tpu.memory_space<vmem>>, vector<1x1x20x16xbf16>
    %2 = vector.shape_cast %1 : vector<1x1x20x16xbf16> to vector<20x16xbf16>
    %c0_3 = arith.constant 0 : index
    %c0_4 = arith.constant 0 : index
    %c0_5 = arith.constant 0 : index
    %3 = vector.load %arg2[%c0_3, %c0_4, %c0_5] : memref<9x16x32xbf16, #tpu.memory_space<vmem>>, vector<1x16x32xbf16>
    %4 = vector.shape_cast %3 : vector<1x16x32xbf16> to vector<16x32xbf16>
    %cst_6 = arith.constant dense<0.000000e+00> : vector<20x32xf32>
    %5 = tpu.matmul %2, %4, %cst_6 {dimension_numbers = #tpu.dot_dimension_numbers<[1], [0], [0], [1], [0, 0, 1, 1], [], []>} : vector<20x16xbf16>, vector<16x32xbf16>, vector<20x32xf32> -> vector<20x32xf32>
    %6 = arith.addf %0, %5 : vector<20x32xf32>
    %c0_7 = arith.constant 0 : index
    %c1 = arith.constant 1 : index
    %c0_8 = arith.constant 0 : index
    %c0_9 = arith.constant 0 : index
    %7 = vector.load %arg1[%c0_7, %c1, %c0_8, %c0_9] : memref<1x4x26x16xbf16, #tpu.memory_space<vmem>>, vector<1x1x20x16xbf16>
    %8 = vector.shape_cast %7 : vector<1x1x20x16xbf16> to vector<20x16xbf16>
    %c1_10 = arith.constant 1 : index
    %c0_11 = arith.constant 0 : index
    %c0_12 = arith.constant 0 : index
    %9 = vector.load %arg2[%c1_10, %c0_11, %c0_12] : memref<9x16x32xbf16, #tpu.memory_space<vmem>>, vector<1x16x32xbf16>
    %10 = vector.shape_cast %9 : vector<1x16x32xbf16> to vector<16x32xbf16>
    %cst_13 = arith.constant dense<0.000000e+00> : vector<20x32xf32>
    %11 = tpu.matmul %8, %10, %cst_13 {dimension_numbers = #tpu.dot_dimension_numbers<[1], [0], [0], [1], [0, 0, 1, 1], [], []>} : vector<20x16xbf16>, vector<16x32xbf16>, vector<20x32xf32> -> vector<20x32xf32>
    %12 = arith.addf %6, %11 : vector<20x32xf32>
    %c0_14 = arith.constant 0 : index
    %c0_15 = arith.constant 0 : index
    %c1_16 = arith.constant 1 : index
    %c0_17 = arith.constant 0 : index
    %13 = vector.load %arg1[%c0_14, %c0_15, %c1_16, %c0_17] : memref<1x4x26x16xbf16, #tpu.memory_space<vmem>>, vector<1x1x20x16xbf16>
    %14 = vector.shape_cast %13 : vector<1x1x20x16xbf16> to vector<20x16xbf16>
    %c2 = arith.constant 2 : index
    %c0_18 = arith.constant 0 : index
    %c0_19 = arith.constant 0 : index
    %15 = vector.load %arg2[%c2, %c0_18, %c0_19] : memref<9x16x32xbf16, #tpu.memory_space<vmem>>, vector<1x16x32xbf16>
    %16 = vector.shape_cast %15 : vector<1x16x32xbf16> to vector<16x32xbf16>
    %cst_20 = arith.constant dense<0.000000e+00> : vector<20x32xf32>
    %17 = tpu.matmul %14, %16, %cst_20 {dimension_numbers = #tpu.dot_dimension_numbers<[1], [0], [0], [1], [0, 0, 1, 1], [], []>} : vector<20x16xbf16>, vector<16x32xbf16>, vector<20x32xf32> -> vector<20x32xf32>
    %18 = arith.addf %12, %17 : vector<20x32xf32>
    %c0_21 = arith.constant 0 : index
    %c2_22 = arith.constant 2 : index
    %c0_23 = arith.constant 0 : index
    %c0_24 = arith.constant 0 : index
    %19 = vector.load %arg1[%c0_21, %c2_22, %c0_23, %c0_24] : memref<1x4x26x16xbf16, #tpu.memory_space<vmem>>, vector<1x1x20x16xbf16>
    %20 = vector.shape_cast %19 : vector<1x1x20x16xbf16> to vector<20x16xbf16>
    %c3 = arith.constant 3 : index
    %c0_25 = arith.constant 0 : index
    %c0_26 = arith.constant 0 : index
    %21 = vector.load %arg2[%c3, %c0_25, %c0_26] : memref<9x16x32xbf16, #tpu.memory_space<vmem>>, vector<1x16x32xbf16>
    %22 = vector.shape_cast %21 : vector<1x16x32xbf16> to vector<16x32xbf16>
    %cst_27 = arith.constant dense<0.000000e+00> : vector<20x32xf32>
    %23 = tpu.matmul %20, %22, %cst_27 {dimension_numbers = #tpu.dot_dimension_numbers<[1], [0], [0], [1], [0, 0, 1, 1], [], []>} : vector<20x16xbf16>, vector<16x32xbf16>, vector<20x32xf32> -> vector<20x32xf32>
    %24 = arith.addf %18, %23 : vector<20x32xf32>
    %c0_28 = arith.constant 0 : index
    %c3_29 = arith.constant 3 : index
    %c0_30 = arith.constant 0 : index
    %c0_31 = arith.constant 0 : index
    %25 = vector.load %arg1[%c0_28, %c3_29, %c0_30, %c0_31] : memref<1x4x26x16xbf16, #tpu.memory_space<vmem>>, vector<1x1x20x16xbf16>
    %26 = vector.shape_cast %25 : vector<1x1x20x16xbf16> to vector<20x16xbf16>
    %c4 = arith.constant 4 : index
    %c0_32 = arith.constant 0 : index
    %c0_33 = arith.constant 0 : index
    %27 = vector.load %arg2[%c4, %c0_32, %c0_33] : memref<9x16x32xbf16, #tpu.memory_space<vmem>>, vector<1x16x32xbf16>
    %28 = vector.shape_cast %27 : vector<1x16x32xbf16> to vector<16x32xbf16>
    %cst_34 = arith.constant dense<0.000000e+00> : vector<20x32xf32>
    %29 = tpu.matmul %26, %28, %cst_34 {dimension_numbers = #tpu.dot_dimension_numbers<[1], [0], [0], [1], [0, 0, 1, 1], [], []>} : vector<20x16xbf16>, vector<16x32xbf16>, vector<20x32xf32> -> vector<20x32xf32>
    %30 = arith.addf %24, %29 : vector<20x32xf32>
    %c0_35 = arith.constant 0 : index
    %c2_36 = arith.constant 2 : index
    %c1_37 = arith.constant 1 : index
    %c0_38 = arith.constant 0 : index
    %31 = vector.load %arg1[%c0_35, %c2_36, %c1_37, %c0_38] : memref<1x4x26x16xbf16, #tpu.memory_space<vmem>>, vector<1x1x20x16xbf16>
    %32 = vector.shape_cast %31 : vector<1x1x20x16xbf16> to vector<20x16xbf16>
    %c5 = arith.constant 5 : index
    %c0_39 = arith.constant 0 : index
    %c0_40 = arith.constant 0 : index
    %33 = vector.load %arg2[%c5, %c0_39, %c0_40] : memref<9x16x32xbf16, #tpu.memory_space<vmem>>, vector<1x16x32xbf16>
    %34 = vector.shape_cast %33 : vector<1x16x32xbf16> to vector<16x32xbf16>
    %cst_41 = arith.constant dense<0.000000e+00> : vector<20x32xf32>
    %35 = tpu.matmul %32, %34, %cst_41 {dimension_numbers = #tpu.dot_dimension_numbers<[1], [0], [0], [1], [0, 0, 1, 1], [], []>} : vector<20x16xbf16>, vector<16x32xbf16>, vector<20x32xf32> -> vector<20x32xf32>
    %36 = arith.addf %30, %35 : vector<20x32xf32>
    %c0_42 = arith.constant 0 : index
    %c0_43 = arith.constant 0 : index
    %c5_44 = arith.constant 5 : index
    %c0_45 = arith.constant 0 : index
    %37 = vector.load %arg1[%c0_42, %c0_43, %c5_44, %c0_45] : memref<1x4x26x16xbf16, #tpu.memory_space<vmem>>, vector<1x1x20x16xbf16>
    %38 = vector.shape_cast %37 : vector<1x1x20x16xbf16> to vector<20x16xbf16>
    %c6 = arith.constant 6 : index
    %c0_46 = arith.constant 0 : index
    %c0_47 = arith.constant 0 : index
    %39 = vector.load %arg2[%c6, %c0_46, %c0_47] : memref<9x16x32xbf16, #tpu.memory_space<vmem>>, vector<1x16x32xbf16>
    %40 = vector.shape_cast %39 : vector<1x16x32xbf16> to vector<16x32xbf16>
    %cst_48 = arith.constant dense<0.000000e+00> : vector<20x32xf32>
    %41 = tpu.matmul %38, %40, %cst_48 {dimension_numbers = #tpu.dot_dimension_numbers<[1], [0], [0], [1], [0, 0, 1, 1], [], []>} : vector<20x16xbf16>, vector<16x32xbf16>, vector<20x32xf32> -> vector<20x32xf32>
    %42 = arith.addf %36, %41 : vector<20x32xf32>
    %c0_49 = arith.constant 0 : index
    %c1_50 = arith.constant 1 : index
    %c5_51 = arith.constant 5 : index
    %c0_52 = arith.constant 0 : index
    %43 = vector.load %arg1[%c0_49, %c1_50, %c5_51, %c0_52] : memref<1x4x26x16xbf16, #tpu.memory_space<vmem>>, vector<1x1x20x16xbf16>
    %44 = vector.shape_cast %43 : vector<1x1x20x16xbf16> to vector<20x16xbf16>
    %c7 = arith.constant 7 : index
    %c0_53 = arith.constant 0 : index
    %c0_54 = arith.constant 0 : index
    %45 = vector.load %arg2[%c7, %c0_53, %c0_54] : memref<9x16x32xbf16, #tpu.memory_space<vmem>>, vector<1x16x32xbf16>
    %46 = vector.shape_cast %45 : vector<1x16x32xbf16> to vector<16x32xbf16>
    %cst_55 = arith.constant dense<0.000000e+00> : vector<20x32xf32>
    %47 = tpu.matmul %44, %46, %cst_55 {dimension_numbers = #tpu.dot_dimension_numbers<[1], [0], [0], [1], [0, 0, 1, 1], [], []>} : vector<20x16xbf16>, vector<16x32xbf16>, vector<20x32xf32> -> vector<20x32xf32>
    %48 = arith.addf %42, %47 : vector<20x32xf32>
    %c0_56 = arith.constant 0 : index
    %c0_57 = arith.constant 0 : index
    %c6_58 = arith.constant 6 : index
    %c0_59 = arith.constant 0 : index
    %49 = vector.load %arg1[%c0_56, %c0_57, %c6_58, %c0_59] : memref<1x4x26x16xbf16, #tpu.memory_space<vmem>>, vector<1x1x20x16xbf16>
    %50 = vector.shape_cast %49 : vector<1x1x20x16xbf16> to vector<20x16xbf16>
    %c8 = arith.constant 8 : index
    %c0_60 = arith.constant 0 : index
    %c0_61 = arith.constant 0 : index
    %51 = vector.load %arg2[%c8, %c0_60, %c0_61] : memref<9x16x32xbf16, #tpu.memory_space<vmem>>, vector<1x16x32xbf16>
    %52 = vector.shape_cast %51 : vector<1x16x32xbf16> to vector<16x32xbf16>
    %cst_62 = arith.constant dense<0.000000e+00> : vector<20x32xf32>
    %53 = tpu.matmul %50, %52, %cst_62 {dimension_numbers = #tpu.dot_dimension_numbers<[1], [0], [0], [1], [0, 0, 1, 1], [], []>} : vector<20x16xbf16>, vector<16x32xbf16>, vector<20x32xf32> -> vector<20x32xf32>
    %54 = arith.addf %48, %53 : vector<20x32xf32>
    %c0_63 = arith.constant 0 : index
    %c0_64 = arith.constant 0 : index
    %55 = vector.load %arg3[%c0_63, %c0_64] : memref<2x32xf32, #tpu.memory_space<vmem>>, vector<1x32xf32>
    %56 = vector.broadcast %55 : vector<1x32xf32> to vector<20x32xf32>
    %57 = arith.mulf %54, %56 : vector<20x32xf32>
    %c1_65 = arith.constant 1 : index
    %c0_66 = arith.constant 0 : index
    %58 = vector.load %arg3[%c1_65, %c0_66] : memref<2x32xf32, #tpu.memory_space<vmem>>, vector<1x32xf32>
    %59 = vector.broadcast %58 : vector<1x32xf32> to vector<20x32xf32>
    %60 = arith.addf %57, %59 : vector<20x32xf32>
    %cst_67 = arith.constant 2.000000e+01 : f32
    %61 = vector.broadcast %cst_67 : f32 to vector<20x32xf32>
    %62 = arith.minimumf %60, %61 : vector<20x32xf32>
    %63 = math.exp %62 : vector<20x32xf32>
    %cst_68 = arith.constant 2.000000e+00 : f32
    %64 = vector.broadcast %cst_68 : f32 to vector<20x32xf32>
    %65 = arith.addf %63, %64 : vector<20x32xf32>
    %66 = arith.mulf %63, %65 : vector<20x32xf32>
    %67 = arith.mulf %60, %66 : vector<20x32xf32>
    %cst_69 = arith.constant 2.000000e+00 : f32
    %68 = vector.broadcast %cst_69 : f32 to vector<20x32xf32>
    %69 = arith.addf %66, %68 : vector<20x32xf32>
    %70 = tpu.reciprocal %69 {approx = true} : vector<20x32xf32> -> vector<20x32xf32>
    %71 = arith.mulf %67, %70 : vector<20x32xf32>
    %cst_70 = arith.constant 2.000000e+01 : f32
    %72 = vector.broadcast %cst_70 : f32 to vector<20x32xf32>
    %73 = arith.cmpf ogt, %60, %72 : vector<20x32xf32>
    %74 = arith.select %73, %60, %71 : vector<20x32xi1>, vector<20x32xf32>
    %cst_71 = arith.constant 0.000000e+00 : f32
    %75 = vector.broadcast %cst_71 : f32 to vector<20x32xf32>
    %c0_72 = arith.constant 0 : index
    %c3_73 = arith.constant 3 : index
    %c0_74 = arith.constant 0 : index
    %c0_75 = arith.constant 0 : index
    %76 = vector.load %arg1[%c0_72, %c3_73, %c0_74, %c0_75] : memref<1x4x26x16xbf16, #tpu.memory_space<vmem>>, vector<1x1x20x16xbf16>
    %77 = vector.shape_cast %76 : vector<1x1x20x16xbf16> to vector<20x16xbf16>
    %c0_76 = arith.constant 0 : index
    %c0_77 = arith.constant 0 : index
    %78 = vector.load %arg4[%c0_76, %c0_77] : memref<16x32xbf16, #tpu.memory_space<vmem>>, vector<16x32xbf16>
    %cst_78 = arith.constant dense<0.000000e+00> : vector<20x32xf32>
    %79 = tpu.matmul %77, %78, %cst_78 {dimension_numbers = #tpu.dot_dimension_numbers<[1], [0], [0], [1], [0, 0, 1, 1], [], []>} : vector<20x16xbf16>, vector<16x32xbf16>, vector<20x32xf32> -> vector<20x32xf32>
    %80 = arith.addf %75, %79 : vector<20x32xf32>
    %c0_79 = arith.constant 0 : index
    %c2_80 = arith.constant 2 : index
    %c1_81 = arith.constant 1 : index
    %c0_82 = arith.constant 0 : index
    %81 = vector.load %arg1[%c0_79, %c2_80, %c1_81, %c0_82] : memref<1x4x26x16xbf16, #tpu.memory_space<vmem>>, vector<1x1x20x16xbf16>
    %82 = vector.shape_cast %81 : vector<1x1x20x16xbf16> to vector<20x16xbf16>
    %c0_83 = arith.constant 0 : index
    %c0_84 = arith.constant 0 : index
    %83 = vector.load %arg4[%c0_83, %c0_84] : memref<16x32xbf16, #tpu.memory_space<vmem>>, vector<16x32xbf16>
    %cst_85 = arith.constant dense<0.000000e+00> : vector<20x32xf32>
    %84 = tpu.matmul %82, %83, %cst_85 {dimension_numbers = #tpu.dot_dimension_numbers<[1], [0], [0], [1], [0, 0, 1, 1], [], []>} : vector<20x16xbf16>, vector<16x32xbf16>, vector<20x32xf32> -> vector<20x32xf32>
    %85 = arith.addf %80, %84 : vector<20x32xf32>
    %c0_86 = arith.constant 0 : index
    %c1_87 = arith.constant 1 : index
    %c5_88 = arith.constant 5 : index
    %c0_89 = arith.constant 0 : index
    %86 = vector.load %arg1[%c0_86, %c1_87, %c5_88, %c0_89] : memref<1x4x26x16xbf16, #tpu.memory_space<vmem>>, vector<1x1x20x16xbf16>
    %87 = vector.shape_cast %86 : vector<1x1x20x16xbf16> to vector<20x16xbf16>
    %c0_90 = arith.constant 0 : index
    %c0_91 = arith.constant 0 : index
    %88 = vector.load %arg4[%c0_90, %c0_91] : memref<16x32xbf16, #tpu.memory_space<vmem>>, vector<16x32xbf16>
    %cst_92 = arith.constant dense<0.000000e+00> : vector<20x32xf32>
    %89 = tpu.matmul %87, %88, %cst_92 {dimension_numbers = #tpu.dot_dimension_numbers<[1], [0], [0], [1], [0, 0, 1, 1], [], []>} : vector<20x16xbf16>, vector<16x32xbf16>, vector<20x32xf32> -> vector<20x32xf32>
    %90 = arith.addf %85, %89 : vector<20x32xf32>
    %c0_93 = arith.constant 0 : index
    %c0_94 = arith.constant 0 : index
    %c6_95 = arith.constant 6 : index
    %c0_96 = arith.constant 0 : index
    %91 = vector.load %arg1[%c0_93, %c0_94, %c6_95, %c0_96] : memref<1x4x26x16xbf16, #tpu.memory_space<vmem>>, vector<1x1x20x16xbf16>
    %92 = vector.shape_cast %91 : vector<1x1x20x16xbf16> to vector<20x16xbf16>
    %c0_97 = arith.constant 0 : index
    %c0_98 = arith.constant 0 : index
    %93 = vector.load %arg4[%c0_97, %c0_98] : memref<16x32xbf16, #tpu.memory_space<vmem>>, vector<16x32xbf16>
    %cst_99 = arith.constant dense<0.000000e+00> : vector<20x32xf32>
    %94 = tpu.matmul %92, %93, %cst_99 {dimension_numbers = #tpu.dot_dimension_numbers<[1], [0], [0], [1], [0, 0, 1, 1], [], []>} : vector<20x16xbf16>, vector<16x32xbf16>, vector<20x32xf32> -> vector<20x32xf32>
    %95 = arith.addf %90, %94 : vector<20x32xf32>
    %c0_100 = arith.constant 0 : index
    %c0_101 = arith.constant 0 : index
    %96 = vector.load %arg5[%c0_100, %c0_101] : memref<1x32xf32, #tpu.memory_space<vmem>>, vector<1x32xf32>
    %97 = vector.broadcast %96 : vector<1x32xf32> to vector<20x32xf32>
    %98 = arith.addf %95, %97 : vector<20x32xf32>
    %99 = arith.truncf %98 : vector<20x32xf32> to vector<20x32xbf16>
    %c0_102 = arith.constant 0 : index
    %c0_103 = arith.constant 0 : index
    %c0_104 = arith.constant 0 : index
    %100 = vector.load %arg7[%c0_102, %c0_103, %c0_104] : memref<1x20x32xbf16, #tpu.memory_space<vmem>>, vector<1x20x32xbf16>
    %101 = vector.shape_cast %100 : vector<1x20x32xbf16> to vector<20x32xbf16>
    %102 = vector.shape_cast %99 : vector<20x32xbf16> to vector<1x20x32xbf16>
    tpu.vector_store %arg7[%c0_102, %c0_103, %c0_104], %102 {strides = array<i32>} : memref<1x20x32xbf16, #tpu.memory_space<vmem>>, vector<1x20x32xbf16>,
    %103 = arith.truncf %74 : vector<20x32xf32> to vector<20x32xbf16>
    %c0_105 = arith.constant 0 : index
    %c0_106 = arith.constant 0 : index
    %c0_107 = arith.constant 0 : index
    %104 = vector.load %arg6[%c0_105, %c0_106, %c0_107] : memref<1x20x32xbf16, #tpu.memory_space<vmem>>, vector<1x20x32xbf16>
    %105 = vector.shape_cast %104 : vector<1x20x32xbf16> to vector<20x32xbf16>
    %106 = vector.shape_cast %103 : vector<20x32xbf16> to vector<1x20x32xbf16>
    tpu.vector_store %arg6[%c0_105, %c0_106, %c0_107], %106 {strides = array<i32>} : memref<1x20x32xbf16, #tpu.memory_space<vmem>>, vector<1x20x32xbf16>,
    return
  }
  func.func @transform_0(%arg0: i32) -> (i32, i32, i32, i32) {
    %c0_i32 = arith.constant 0 : i32
    %c0_i32_0 = arith.constant 0 : i32
    %c0_i32_1 = arith.constant 0 : i32
    %c0_i32_2 = arith.constant 0 : i32
    return %arg0, %c0_i32, %c0_i32_0, %c0_i32_1 : i32, i32, i32, i32
  }
  func.func @transform_1(%arg0: i32) -> (i32, i32, i32) {
    %c0_i32 = arith.constant 0 : i32
    %c0_i32_0 = arith.constant 0 : i32
    %c0_i32_1 = arith.constant 0 : i32
    %c0_i32_2 = arith.constant 0 : i32
    return %c0_i32, %c0_i32_0, %c0_i32_1 : i32, i32, i32
  }
  func.func @transform_2(%arg0: i32) -> (i32, i32) {
    %c0_i32 = arith.constant 0 : i32
    %c0_i32_0 = arith.constant 0 : i32
    %c0_i32_1 = arith.constant 0 : i32
    return %c0_i32, %c0_i32_0 : i32, i32
  }
  func.func @transform_3(%arg0: i32) -> (i32, i32) {
    %c0_i32 = arith.constant 0 : i32
    %c0_i32_0 = arith.constant 0 : i32
    %c0_i32_1 = arith.constant 0 : i32
    return %c0_i32, %c0_i32_0 : i32, i32
  }
  func.func @transform_4(%arg0: i32) -> (i32, i32) {
    %c0_i32 = arith.constant 0 : i32
    %c0_i32_0 = arith.constant 0 : i32
    %c0_i32_1 = arith.constant 0 : i32
    return %c0_i32, %c0_i32_0 : i32, i32
  }
  func.func @transform_5(%arg0: i32) -> (i32, i32, i32) {
    %c0_i32 = arith.constant 0 : i32
    %c0_i32_0 = arith.constant 0 : i32
    %c0_i32_1 = arith.constant 0 : i32
    return %arg0, %c0_i32, %c0_i32_0 : i32, i32, i32
  }
  func.func @transform_6(%arg0: i32) -> (i32, i32, i32) {
    %c0_i32 = arith.constant 0 : i32
    %c0_i32_0 = arith.constant 0 : i32
    %c0_i32_1 = arith.constant 0 : i32
    return %arg0, %c0_i32, %c0_i32_0 : i32, i32, i32
  }
}

module attributes {stable_mosaic.version = 11 : i64} {
  func.func @kernel(%arg0: i32, %arg1: memref<1x38x32xbf16, #tpu.memory_space<vmem>>, %arg2: memref<9x32x32xbf16, #tpu.memory_space<vmem>>, %arg3: memref<2x32xf32, #tpu.memory_space<vmem>>, %arg4: memref<1x24x32xbf16, #tpu.memory_space<vmem>>, %arg5: memref<1x24x32xbf16, #tpu.memory_space<vmem>>) attributes {dimension_semantics = [#tpu.dimension_semantics<parallel>], iteration_bounds = array<i64: 2>, scalar_prefetch = 0 : i64, scratch_operands = 0 : i64, tpu.core_type = #tpu.core_type<tc>, window_params = [{transform_indices = @transform_0, window_bounds = array<i64: 1, 38, 32>}, {pipeline_mode = #tpu.pipeline_mode<synchronous>, transform_indices = @transform_1, window_bounds = array<i64: 9, 32, 32>}, {pipeline_mode = #tpu.pipeline_mode<synchronous>, transform_indices = @transform_2, window_bounds = array<i64: 2, 32>}, {transform_indices = @transform_3, window_bounds = array<i64: 1, 24, 32>}, {transform_indices = @transform_4, window_bounds = array<i64: 1, 24, 32>}]} {
    %cst = arith.constant 0.000000e+00 : f32
    %0 = vector.broadcast %cst : f32 to vector<24x32xf32>
    %c0 = arith.constant 0 : index
    %c0_0 = arith.constant 0 : index
    %c0_1 = arith.constant 0 : index
    %1 = vector.load %arg1[%c0, %c0_0, %c0_1] : memref<1x38x32xbf16, #tpu.memory_space<vmem>>, vector<1x24x32xbf16>
    %2 = vector.shape_cast %1 : vector<1x24x32xbf16> to vector<24x32xbf16>
    %c0_2 = arith.constant 0 : index
    %c0_3 = arith.constant 0 : index
    %c0_4 = arith.constant 0 : index
    %3 = vector.load %arg2[%c0_2, %c0_3, %c0_4] : memref<9x32x32xbf16, #tpu.memory_space<vmem>>, vector<1x32x32xbf16>
    %4 = vector.shape_cast %3 : vector<1x32x32xbf16> to vector<32x32xbf16>
    %cst_5 = arith.constant dense<0.000000e+00> : vector<24x32xf32>
    %5 = tpu.matmul %2, %4, %cst_5 {dimension_numbers = #tpu.dot_dimension_numbers<[1], [0], [0], [1], [0, 0, 1, 1], [], []>} : vector<24x32xbf16>, vector<32x32xbf16>, vector<24x32xf32> -> vector<24x32xf32>
    %6 = arith.addf %0, %5 : vector<24x32xf32>
    %c0_6 = arith.constant 0 : index
    %c1 = arith.constant 1 : index
    %c0_7 = arith.constant 0 : index
    %7 = vector.load %arg1[%c0_6, %c1, %c0_7] : memref<1x38x32xbf16, #tpu.memory_space<vmem>>, vector<1x24x32xbf16>
    %8 = vector.shape_cast %7 : vector<1x24x32xbf16> to vector<24x32xbf16>
    %c1_8 = arith.constant 1 : index
    %c0_9 = arith.constant 0 : index
    %c0_10 = arith.constant 0 : index
    %9 = vector.load %arg2[%c1_8, %c0_9, %c0_10] : memref<9x32x32xbf16, #tpu.memory_space<vmem>>, vector<1x32x32xbf16>
    %10 = vector.shape_cast %9 : vector<1x32x32xbf16> to vector<32x32xbf16>
    %cst_11 = arith.constant dense<0.000000e+00> : vector<24x32xf32>
    %11 = tpu.matmul %8, %10, %cst_11 {dimension_numbers = #tpu.dot_dimension_numbers<[1], [0], [0], [1], [0, 0, 1, 1], [], []>} : vector<24x32xbf16>, vector<32x32xbf16>, vector<24x32xf32> -> vector<24x32xf32>
    %12 = arith.addf %6, %11 : vector<24x32xf32>
    %c0_12 = arith.constant 0 : index
    %c2 = arith.constant 2 : index
    %c0_13 = arith.constant 0 : index
    %13 = vector.load %arg1[%c0_12, %c2, %c0_13] : memref<1x38x32xbf16, #tpu.memory_space<vmem>>, vector<1x24x32xbf16>
    %14 = vector.shape_cast %13 : vector<1x24x32xbf16> to vector<24x32xbf16>
    %c2_14 = arith.constant 2 : index
    %c0_15 = arith.constant 0 : index
    %c0_16 = arith.constant 0 : index
    %15 = vector.load %arg2[%c2_14, %c0_15, %c0_16] : memref<9x32x32xbf16, #tpu.memory_space<vmem>>, vector<1x32x32xbf16>
    %16 = vector.shape_cast %15 : vector<1x32x32xbf16> to vector<32x32xbf16>
    %cst_17 = arith.constant dense<0.000000e+00> : vector<24x32xf32>
    %17 = tpu.matmul %14, %16, %cst_17 {dimension_numbers = #tpu.dot_dimension_numbers<[1], [0], [0], [1], [0, 0, 1, 1], [], []>} : vector<24x32xbf16>, vector<32x32xbf16>, vector<24x32xf32> -> vector<24x32xf32>
    %18 = arith.addf %12, %17 : vector<24x32xf32>
    %c0_18 = arith.constant 0 : index
    %c6 = arith.constant 6 : index
    %c0_19 = arith.constant 0 : index
    %19 = vector.load %arg1[%c0_18, %c6, %c0_19] : memref<1x38x32xbf16, #tpu.memory_space<vmem>>, vector<1x24x32xbf16>
    %20 = vector.shape_cast %19 : vector<1x24x32xbf16> to vector<24x32xbf16>
    %c3 = arith.constant 3 : index
    %c0_20 = arith.constant 0 : index
    %c0_21 = arith.constant 0 : index
    %21 = vector.load %arg2[%c3, %c0_20, %c0_21] : memref<9x32x32xbf16, #tpu.memory_space<vmem>>, vector<1x32x32xbf16>
    %22 = vector.shape_cast %21 : vector<1x32x32xbf16> to vector<32x32xbf16>
    %cst_22 = arith.constant dense<0.000000e+00> : vector<24x32xf32>
    %23 = tpu.matmul %20, %22, %cst_22 {dimension_numbers = #tpu.dot_dimension_numbers<[1], [0], [0], [1], [0, 0, 1, 1], [], []>} : vector<24x32xbf16>, vector<32x32xbf16>, vector<24x32xf32> -> vector<24x32xf32>
    %24 = arith.addf %18, %23 : vector<24x32xf32>
    %c0_23 = arith.constant 0 : index
    %c7 = arith.constant 7 : index
    %c0_24 = arith.constant 0 : index
    %25 = vector.load %arg1[%c0_23, %c7, %c0_24] : memref<1x38x32xbf16, #tpu.memory_space<vmem>>, vector<1x24x32xbf16>
    %26 = vector.shape_cast %25 : vector<1x24x32xbf16> to vector<24x32xbf16>
    %c4 = arith.constant 4 : index
    %c0_25 = arith.constant 0 : index
    %c0_26 = arith.constant 0 : index
    %27 = vector.load %arg2[%c4, %c0_25, %c0_26] : memref<9x32x32xbf16, #tpu.memory_space<vmem>>, vector<1x32x32xbf16>
    %28 = vector.shape_cast %27 : vector<1x32x32xbf16> to vector<32x32xbf16>
    %cst_27 = arith.constant dense<0.000000e+00> : vector<24x32xf32>
    %29 = tpu.matmul %26, %28, %cst_27 {dimension_numbers = #tpu.dot_dimension_numbers<[1], [0], [0], [1], [0, 0, 1, 1], [], []>} : vector<24x32xbf16>, vector<32x32xbf16>, vector<24x32xf32> -> vector<24x32xf32>
    %30 = arith.addf %24, %29 : vector<24x32xf32>
    %c0_28 = arith.constant 0 : index
    %c8 = arith.constant 8 : index
    %c0_29 = arith.constant 0 : index
    %31 = vector.load %arg1[%c0_28, %c8, %c0_29] : memref<1x38x32xbf16, #tpu.memory_space<vmem>>, vector<1x24x32xbf16>
    %32 = vector.shape_cast %31 : vector<1x24x32xbf16> to vector<24x32xbf16>
    %c5 = arith.constant 5 : index
    %c0_30 = arith.constant 0 : index
    %c0_31 = arith.constant 0 : index
    %33 = vector.load %arg2[%c5, %c0_30, %c0_31] : memref<9x32x32xbf16, #tpu.memory_space<vmem>>, vector<1x32x32xbf16>
    %34 = vector.shape_cast %33 : vector<1x32x32xbf16> to vector<32x32xbf16>
    %cst_32 = arith.constant dense<0.000000e+00> : vector<24x32xf32>
    %35 = tpu.matmul %32, %34, %cst_32 {dimension_numbers = #tpu.dot_dimension_numbers<[1], [0], [0], [1], [0, 0, 1, 1], [], []>} : vector<24x32xbf16>, vector<32x32xbf16>, vector<24x32xf32> -> vector<24x32xf32>
    %36 = arith.addf %30, %35 : vector<24x32xf32>
    %c0_33 = arith.constant 0 : index
    %c12 = arith.constant 12 : index
    %c0_34 = arith.constant 0 : index
    %37 = vector.load %arg1[%c0_33, %c12, %c0_34] : memref<1x38x32xbf16, #tpu.memory_space<vmem>>, vector<1x24x32xbf16>
    %38 = vector.shape_cast %37 : vector<1x24x32xbf16> to vector<24x32xbf16>
    %c6_35 = arith.constant 6 : index
    %c0_36 = arith.constant 0 : index
    %c0_37 = arith.constant 0 : index
    %39 = vector.load %arg2[%c6_35, %c0_36, %c0_37] : memref<9x32x32xbf16, #tpu.memory_space<vmem>>, vector<1x32x32xbf16>
    %40 = vector.shape_cast %39 : vector<1x32x32xbf16> to vector<32x32xbf16>
    %cst_38 = arith.constant dense<0.000000e+00> : vector<24x32xf32>
    %41 = tpu.matmul %38, %40, %cst_38 {dimension_numbers = #tpu.dot_dimension_numbers<[1], [0], [0], [1], [0, 0, 1, 1], [], []>} : vector<24x32xbf16>, vector<32x32xbf16>, vector<24x32xf32> -> vector<24x32xf32>
    %42 = arith.addf %36, %41 : vector<24x32xf32>
    %c0_39 = arith.constant 0 : index
    %c13 = arith.constant 13 : index
    %c0_40 = arith.constant 0 : index
    %43 = vector.load %arg1[%c0_39, %c13, %c0_40] : memref<1x38x32xbf16, #tpu.memory_space<vmem>>, vector<1x24x32xbf16>
    %44 = vector.shape_cast %43 : vector<1x24x32xbf16> to vector<24x32xbf16>
    %c7_41 = arith.constant 7 : index
    %c0_42 = arith.constant 0 : index
    %c0_43 = arith.constant 0 : index
    %45 = vector.load %arg2[%c7_41, %c0_42, %c0_43] : memref<9x32x32xbf16, #tpu.memory_space<vmem>>, vector<1x32x32xbf16>
    %46 = vector.shape_cast %45 : vector<1x32x32xbf16> to vector<32x32xbf16>
    %cst_44 = arith.constant dense<0.000000e+00> : vector<24x32xf32>
    %47 = tpu.matmul %44, %46, %cst_44 {dimension_numbers = #tpu.dot_dimension_numbers<[1], [0], [0], [1], [0, 0, 1, 1], [], []>} : vector<24x32xbf16>, vector<32x32xbf16>, vector<24x32xf32> -> vector<24x32xf32>
    %48 = arith.addf %42, %47 : vector<24x32xf32>
    %c0_45 = arith.constant 0 : index
    %c14 = arith.constant 14 : index
    %c0_46 = arith.constant 0 : index
    %49 = vector.load %arg1[%c0_45, %c14, %c0_46] : memref<1x38x32xbf16, #tpu.memory_space<vmem>>, vector<1x24x32xbf16>
    %50 = vector.shape_cast %49 : vector<1x24x32xbf16> to vector<24x32xbf16>
    %c8_47 = arith.constant 8 : index
    %c0_48 = arith.constant 0 : index
    %c0_49 = arith.constant 0 : index
    %51 = vector.load %arg2[%c8_47, %c0_48, %c0_49] : memref<9x32x32xbf16, #tpu.memory_space<vmem>>, vector<1x32x32xbf16>
    %52 = vector.shape_cast %51 : vector<1x32x32xbf16> to vector<32x32xbf16>
    %cst_50 = arith.constant dense<0.000000e+00> : vector<24x32xf32>
    %53 = tpu.matmul %50, %52, %cst_50 {dimension_numbers = #tpu.dot_dimension_numbers<[1], [0], [0], [1], [0, 0, 1, 1], [], []>} : vector<24x32xbf16>, vector<32x32xbf16>, vector<24x32xf32> -> vector<24x32xf32>
    %54 = arith.addf %48, %53 : vector<24x32xf32>
    %c0_51 = arith.constant 0 : index
    %c0_52 = arith.constant 0 : index
    %55 = vector.load %arg3[%c0_51, %c0_52] : memref<2x32xf32, #tpu.memory_space<vmem>>, vector<1x32xf32>
    %56 = vector.broadcast %55 : vector<1x32xf32> to vector<24x32xf32>
    %57 = arith.mulf %54, %56 : vector<24x32xf32>
    %c1_53 = arith.constant 1 : index
    %c0_54 = arith.constant 0 : index
    %58 = vector.load %arg3[%c1_53, %c0_54] : memref<2x32xf32, #tpu.memory_space<vmem>>, vector<1x32xf32>
    %59 = vector.broadcast %58 : vector<1x32xf32> to vector<24x32xf32>
    %60 = arith.addf %57, %59 : vector<24x32xf32>
    %cst_55 = arith.constant 2.000000e+01 : f32
    %61 = vector.broadcast %cst_55 : f32 to vector<24x32xf32>
    %62 = arith.minimumf %60, %61 : vector<24x32xf32>
    %63 = math.exp %62 : vector<24x32xf32>
    %cst_56 = arith.constant 2.000000e+00 : f32
    %64 = vector.broadcast %cst_56 : f32 to vector<24x32xf32>
    %65 = arith.addf %63, %64 : vector<24x32xf32>
    %66 = arith.mulf %63, %65 : vector<24x32xf32>
    %67 = arith.mulf %60, %66 : vector<24x32xf32>
    %cst_57 = arith.constant 2.000000e+00 : f32
    %68 = vector.broadcast %cst_57 : f32 to vector<24x32xf32>
    %69 = arith.addf %66, %68 : vector<24x32xf32>
    %70 = tpu.reciprocal %69 {approx = true} : vector<24x32xf32> -> vector<24x32xf32>
    %71 = arith.mulf %67, %70 : vector<24x32xf32>
    %cst_58 = arith.constant 2.000000e+01 : f32
    %72 = vector.broadcast %cst_58 : f32 to vector<24x32xf32>
    %73 = arith.cmpf ogt, %60, %72 : vector<24x32xf32>
    %74 = arith.select %73, %60, %71 : vector<24x32xi1>, vector<24x32xf32>
    %c0_59 = arith.constant 0 : index
    %c0_60 = arith.constant 0 : index
    %c0_61 = arith.constant 0 : index
    %75 = vector.load %arg4[%c0_59, %c0_60, %c0_61] : memref<1x24x32xbf16, #tpu.memory_space<vmem>>, vector<1x24x32xbf16>
    %76 = vector.shape_cast %75 : vector<1x24x32xbf16> to vector<24x32xbf16>
    %77 = arith.extf %76 : vector<24x32xbf16> to vector<24x32xf32>
    %78 = arith.addf %74, %77 : vector<24x32xf32>
    %cst_62 = arith.constant 0.707106769 : f32
    %79 = vector.broadcast %cst_62 : f32 to vector<24x32xf32>
    %80 = arith.mulf %78, %79 : vector<24x32xf32>
    %81 = arith.truncf %80 : vector<24x32xf32> to vector<24x32xbf16>
    %c0_63 = arith.constant 0 : index
    %c0_64 = arith.constant 0 : index
    %c0_65 = arith.constant 0 : index
    %82 = vector.load %arg5[%c0_63, %c0_64, %c0_65] : memref<1x24x32xbf16, #tpu.memory_space<vmem>>, vector<1x24x32xbf16>
    %83 = vector.shape_cast %82 : vector<1x24x32xbf16> to vector<24x32xbf16>
    %84 = vector.shape_cast %81 : vector<24x32xbf16> to vector<1x24x32xbf16>
    tpu.vector_store %arg5[%c0_63, %c0_64, %c0_65], %84 {strides = array<i32>} : memref<1x24x32xbf16, #tpu.memory_space<vmem>>, vector<1x24x32xbf16>,
    return
  }
  func.func @transform_0(%arg0: i32) -> (i32, i32, i32) {
    %c0_i32 = arith.constant 0 : i32
    %c0_i32_0 = arith.constant 0 : i32
    %c0_i32_1 = arith.constant 0 : i32
    return %arg0, %c0_i32, %c0_i32_0 : i32, i32, i32
  }
  func.func @transform_1(%arg0: i32) -> (i32, i32, i32) {
    %c0_i32 = arith.constant 0 : i32
    %c0_i32_0 = arith.constant 0 : i32
    %c0_i32_1 = arith.constant 0 : i32
    %c0_i32_2 = arith.constant 0 : i32
    return %c0_i32, %c0_i32_0, %c0_i32_1 : i32, i32, i32
  }
  func.func @transform_2(%arg0: i32) -> (i32, i32) {
    %c0_i32 = arith.constant 0 : i32
    %c0_i32_0 = arith.constant 0 : i32
    %c0_i32_1 = arith.constant 0 : i32
    return %c0_i32, %c0_i32_0 : i32, i32
  }
  func.func @transform_3(%arg0: i32) -> (i32, i32, i32) {
    %c0_i32 = arith.constant 0 : i32
    %c0_i32_0 = arith.constant 0 : i32
    %c0_i32_1 = arith.constant 0 : i32
    return %arg0, %c0_i32, %c0_i32_0 : i32, i32, i32
  }
  func.func @transform_4(%arg0: i32) -> (i32, i32, i32) {
    %c0_i32 = arith.constant 0 : i32
    %c0_i32_0 = arith.constant 0 : i32
    %c0_i32_1 = arith.constant 0 : i32
    return %arg0, %c0_i32, %c0_i32_0 : i32, i32, i32
  }
}

module attributes {stable_mosaic.version = 11 : i64} {
  func.func @kernel(%arg0: i32, %arg1: memref<1x4x10x32xbf16, #tpu.memory_space<vmem>>, %arg2: memref<9x32x32xbf16, #tpu.memory_space<vmem>>, %arg3: memref<2x32xf32, #tpu.memory_space<vmem>>, %arg4: memref<1x6x32xbf16, #tpu.memory_space<vmem>>) attributes {dimension_semantics = [#tpu.dimension_semantics<parallel>], iteration_bounds = array<i64: 2>, scalar_prefetch = 0 : i64, scratch_operands = 0 : i64, tpu.core_type = #tpu.core_type<tc>, window_params = [{transform_indices = @transform_0, window_bounds = array<i64: 1, 4, 10, 32>}, {pipeline_mode = #tpu.pipeline_mode<synchronous>, transform_indices = @transform_1, window_bounds = array<i64: 9, 32, 32>}, {pipeline_mode = #tpu.pipeline_mode<synchronous>, transform_indices = @transform_2, window_bounds = array<i64: 2, 32>}, {transform_indices = @transform_3, window_bounds = array<i64: 1, 6, 32>}]} {
    %cst = arith.constant 0.000000e+00 : f32
    %0 = vector.broadcast %cst : f32 to vector<6x32xf32>
    %c0 = arith.constant 0 : index
    %c0_0 = arith.constant 0 : index
    %c0_1 = arith.constant 0 : index
    %c0_2 = arith.constant 0 : index
    %1 = vector.load %arg1[%c0, %c0_0, %c0_1, %c0_2] : memref<1x4x10x32xbf16, #tpu.memory_space<vmem>>, vector<1x1x6x32xbf16>
    %2 = vector.shape_cast %1 : vector<1x1x6x32xbf16> to vector<6x32xbf16>
    %c0_3 = arith.constant 0 : index
    %c0_4 = arith.constant 0 : index
    %c0_5 = arith.constant 0 : index
    %3 = vector.load %arg2[%c0_3, %c0_4, %c0_5] : memref<9x32x32xbf16, #tpu.memory_space<vmem>>, vector<1x32x32xbf16>
    %4 = vector.shape_cast %3 : vector<1x32x32xbf16> to vector<32x32xbf16>
    %cst_6 = arith.constant dense<0.000000e+00> : vector<6x32xf32>
    %5 = tpu.matmul %2, %4, %cst_6 {dimension_numbers = #tpu.dot_dimension_numbers<[1], [0], [0], [1], [0, 0, 1, 1], [], []>} : vector<6x32xbf16>, vector<32x32xbf16>, vector<6x32xf32> -> vector<6x32xf32>
    %6 = arith.addf %0, %5 : vector<6x32xf32>
    %c0_7 = arith.constant 0 : index
    %c1 = arith.constant 1 : index
    %c0_8 = arith.constant 0 : index
    %c0_9 = arith.constant 0 : index
    %7 = vector.load %arg1[%c0_7, %c1, %c0_8, %c0_9] : memref<1x4x10x32xbf16, #tpu.memory_space<vmem>>, vector<1x1x6x32xbf16>
    %8 = vector.shape_cast %7 : vector<1x1x6x32xbf16> to vector<6x32xbf16>
    %c1_10 = arith.constant 1 : index
    %c0_11 = arith.constant 0 : index
    %c0_12 = arith.constant 0 : index
    %9 = vector.load %arg2[%c1_10, %c0_11, %c0_12] : memref<9x32x32xbf16, #tpu.memory_space<vmem>>, vector<1x32x32xbf16>
    %10 = vector.shape_cast %9 : vector<1x32x32xbf16> to vector<32x32xbf16>
    %cst_13 = arith.constant dense<0.000000e+00> : vector<6x32xf32>
    %11 = tpu.matmul %8, %10, %cst_13 {dimension_numbers = #tpu.dot_dimension_numbers<[1], [0], [0], [1], [0, 0, 1, 1], [], []>} : vector<6x32xbf16>, vector<32x32xbf16>, vector<6x32xf32> -> vector<6x32xf32>
    %12 = arith.addf %6, %11 : vector<6x32xf32>
    %c0_14 = arith.constant 0 : index
    %c0_15 = arith.constant 0 : index
    %c1_16 = arith.constant 1 : index
    %c0_17 = arith.constant 0 : index
    %13 = vector.load %arg1[%c0_14, %c0_15, %c1_16, %c0_17] : memref<1x4x10x32xbf16, #tpu.memory_space<vmem>>, vector<1x1x6x32xbf16>
    %14 = vector.shape_cast %13 : vector<1x1x6x32xbf16> to vector<6x32xbf16>
    %c2 = arith.constant 2 : index
    %c0_18 = arith.constant 0 : index
    %c0_19 = arith.constant 0 : index
    %15 = vector.load %arg2[%c2, %c0_18, %c0_19] : memref<9x32x32xbf16, #tpu.memory_space<vmem>>, vector<1x32x32xbf16>
    %16 = vector.shape_cast %15 : vector<1x32x32xbf16> to vector<32x32xbf16>
    %cst_20 = arith.constant dense<0.000000e+00> : vector<6x32xf32>
    %17 = tpu.matmul %14, %16, %cst_20 {dimension_numbers = #tpu.dot_dimension_numbers<[1], [0], [0], [1], [0, 0, 1, 1], [], []>} : vector<6x32xbf16>, vector<32x32xbf16>, vector<6x32xf32> -> vector<6x32xf32>
    %18 = arith.addf %12, %17 : vector<6x32xf32>
    %c0_21 = arith.constant 0 : index
    %c2_22 = arith.constant 2 : index
    %c0_23 = arith.constant 0 : index
    %c0_24 = arith.constant 0 : index
    %19 = vector.load %arg1[%c0_21, %c2_22, %c0_23, %c0_24] : memref<1x4x10x32xbf16, #tpu.memory_space<vmem>>, vector<1x1x6x32xbf16>
    %20 = vector.shape_cast %19 : vector<1x1x6x32xbf16> to vector<6x32xbf16>
    %c3 = arith.constant 3 : index
    %c0_25 = arith.constant 0 : index
    %c0_26 = arith.constant 0 : index
    %21 = vector.load %arg2[%c3, %c0_25, %c0_26] : memref<9x32x32xbf16, #tpu.memory_space<vmem>>, vector<1x32x32xbf16>
    %22 = vector.shape_cast %21 : vector<1x32x32xbf16> to vector<32x32xbf16>
    %cst_27 = arith.constant dense<0.000000e+00> : vector<6x32xf32>
    %23 = tpu.matmul %20, %22, %cst_27 {dimension_numbers = #tpu.dot_dimension_numbers<[1], [0], [0], [1], [0, 0, 1, 1], [], []>} : vector<6x32xbf16>, vector<32x32xbf16>, vector<6x32xf32> -> vector<6x32xf32>
    %24 = arith.addf %18, %23 : vector<6x32xf32>
    %c0_28 = arith.constant 0 : index
    %c3_29 = arith.constant 3 : index
    %c0_30 = arith.constant 0 : index
    %c0_31 = arith.constant 0 : index
    %25 = vector.load %arg1[%c0_28, %c3_29, %c0_30, %c0_31] : memref<1x4x10x32xbf16, #tpu.memory_space<vmem>>, vector<1x1x6x32xbf16>
    %26 = vector.shape_cast %25 : vector<1x1x6x32xbf16> to vector<6x32xbf16>
    %c4 = arith.constant 4 : index
    %c0_32 = arith.constant 0 : index
    %c0_33 = arith.constant 0 : index
    %27 = vector.load %arg2[%c4, %c0_32, %c0_33] : memref<9x32x32xbf16, #tpu.memory_space<vmem>>, vector<1x32x32xbf16>
    %28 = vector.shape_cast %27 : vector<1x32x32xbf16> to vector<32x32xbf16>
    %cst_34 = arith.constant dense<0.000000e+00> : vector<6x32xf32>
    %29 = tpu.matmul %26, %28, %cst_34 {dimension_numbers = #tpu.dot_dimension_numbers<[1], [0], [0], [1], [0, 0, 1, 1], [], []>} : vector<6x32xbf16>, vector<32x32xbf16>, vector<6x32xf32> -> vector<6x32xf32>
    %30 = arith.addf %24, %29 : vector<6x32xf32>
    %c0_35 = arith.constant 0 : index
    %c2_36 = arith.constant 2 : index
    %c1_37 = arith.constant 1 : index
    %c0_38 = arith.constant 0 : index
    %31 = vector.load %arg1[%c0_35, %c2_36, %c1_37, %c0_38] : memref<1x4x10x32xbf16, #tpu.memory_space<vmem>>, vector<1x1x6x32xbf16>
    %32 = vector.shape_cast %31 : vector<1x1x6x32xbf16> to vector<6x32xbf16>
    %c5 = arith.constant 5 : index
    %c0_39 = arith.constant 0 : index
    %c0_40 = arith.constant 0 : index
    %33 = vector.load %arg2[%c5, %c0_39, %c0_40] : memref<9x32x32xbf16, #tpu.memory_space<vmem>>, vector<1x32x32xbf16>
    %34 = vector.shape_cast %33 : vector<1x32x32xbf16> to vector<32x32xbf16>
    %cst_41 = arith.constant dense<0.000000e+00> : vector<6x32xf32>
    %35 = tpu.matmul %32, %34, %cst_41 {dimension_numbers = #tpu.dot_dimension_numbers<[1], [0], [0], [1], [0, 0, 1, 1], [], []>} : vector<6x32xbf16>, vector<32x32xbf16>, vector<6x32xf32> -> vector<6x32xf32>
    %36 = arith.addf %30, %35 : vector<6x32xf32>
    %c0_42 = arith.constant 0 : index
    %c0_43 = arith.constant 0 : index
    %c3_44 = arith.constant 3 : index
    %c0_45 = arith.constant 0 : index
    %37 = vector.load %arg1[%c0_42, %c0_43, %c3_44, %c0_45] : memref<1x4x10x32xbf16, #tpu.memory_space<vmem>>, vector<1x1x6x32xbf16>
    %38 = vector.shape_cast %37 : vector<1x1x6x32xbf16> to vector<6x32xbf16>
    %c6 = arith.constant 6 : index
    %c0_46 = arith.constant 0 : index
    %c0_47 = arith.constant 0 : index
    %39 = vector.load %arg2[%c6, %c0_46, %c0_47] : memref<9x32x32xbf16, #tpu.memory_space<vmem>>, vector<1x32x32xbf16>
    %40 = vector.shape_cast %39 : vector<1x32x32xbf16> to vector<32x32xbf16>
    %cst_48 = arith.constant dense<0.000000e+00> : vector<6x32xf32>
    %41 = tpu.matmul %38, %40, %cst_48 {dimension_numbers = #tpu.dot_dimension_numbers<[1], [0], [0], [1], [0, 0, 1, 1], [], []>} : vector<6x32xbf16>, vector<32x32xbf16>, vector<6x32xf32> -> vector<6x32xf32>
    %42 = arith.addf %36, %41 : vector<6x32xf32>
    %c0_49 = arith.constant 0 : index
    %c1_50 = arith.constant 1 : index
    %c3_51 = arith.constant 3 : index
    %c0_52 = arith.constant 0 : index
    %43 = vector.load %arg1[%c0_49, %c1_50, %c3_51, %c0_52] : memref<1x4x10x32xbf16, #tpu.memory_space<vmem>>, vector<1x1x6x32xbf16>
    %44 = vector.shape_cast %43 : vector<1x1x6x32xbf16> to vector<6x32xbf16>
    %c7 = arith.constant 7 : index
    %c0_53 = arith.constant 0 : index
    %c0_54 = arith.constant 0 : index
    %45 = vector.load %arg2[%c7, %c0_53, %c0_54] : memref<9x32x32xbf16, #tpu.memory_space<vmem>>, vector<1x32x32xbf16>
    %46 = vector.shape_cast %45 : vector<1x32x32xbf16> to vector<32x32xbf16>
    %cst_55 = arith.constant dense<0.000000e+00> : vector<6x32xf32>
    %47 = tpu.matmul %44, %46, %cst_55 {dimension_numbers = #tpu.dot_dimension_numbers<[1], [0], [0], [1], [0, 0, 1, 1], [], []>} : vector<6x32xbf16>, vector<32x32xbf16>, vector<6x32xf32> -> vector<6x32xf32>
    %48 = arith.addf %42, %47 : vector<6x32xf32>
    %c0_56 = arith.constant 0 : index
    %c0_57 = arith.constant 0 : index
    %c4_58 = arith.constant 4 : index
    %c0_59 = arith.constant 0 : index
    %49 = vector.load %arg1[%c0_56, %c0_57, %c4_58, %c0_59] : memref<1x4x10x32xbf16, #tpu.memory_space<vmem>>, vector<1x1x6x32xbf16>
    %50 = vector.shape_cast %49 : vector<1x1x6x32xbf16> to vector<6x32xbf16>
    %c8 = arith.constant 8 : index
    %c0_60 = arith.constant 0 : index
    %c0_61 = arith.constant 0 : index
    %51 = vector.load %arg2[%c8, %c0_60, %c0_61] : memref<9x32x32xbf16, #tpu.memory_space<vmem>>, vector<1x32x32xbf16>
    %52 = vector.shape_cast %51 : vector<1x32x32xbf16> to vector<32x32xbf16>
    %cst_62 = arith.constant dense<0.000000e+00> : vector<6x32xf32>
    %53 = tpu.matmul %50, %52, %cst_62 {dimension_numbers = #tpu.dot_dimension_numbers<[1], [0], [0], [1], [0, 0, 1, 1], [], []>} : vector<6x32xbf16>, vector<32x32xbf16>, vector<6x32xf32> -> vector<6x32xf32>
    %54 = arith.addf %48, %53 : vector<6x32xf32>
    %c0_63 = arith.constant 0 : index
    %c0_64 = arith.constant 0 : index
    %55 = vector.load %arg3[%c0_63, %c0_64] : memref<2x32xf32, #tpu.memory_space<vmem>>, vector<1x32xf32>
    %56 = vector.broadcast %55 : vector<1x32xf32> to vector<6x32xf32>
    %57 = arith.mulf %54, %56 : vector<6x32xf32>
    %c1_65 = arith.constant 1 : index
    %c0_66 = arith.constant 0 : index
    %58 = vector.load %arg3[%c1_65, %c0_66] : memref<2x32xf32, #tpu.memory_space<vmem>>, vector<1x32xf32>
    %59 = vector.broadcast %58 : vector<1x32xf32> to vector<6x32xf32>
    %60 = arith.addf %57, %59 : vector<6x32xf32>
    %cst_67 = arith.constant 2.000000e+01 : f32
    %61 = vector.broadcast %cst_67 : f32 to vector<6x32xf32>
    %62 = arith.minimumf %60, %61 : vector<6x32xf32>
    %63 = math.exp %62 : vector<6x32xf32>
    %cst_68 = arith.constant 2.000000e+00 : f32
    %64 = vector.broadcast %cst_68 : f32 to vector<6x32xf32>
    %65 = arith.addf %63, %64 : vector<6x32xf32>
    %66 = arith.mulf %63, %65 : vector<6x32xf32>
    %67 = arith.mulf %60, %66 : vector<6x32xf32>
    %cst_69 = arith.constant 2.000000e+00 : f32
    %68 = vector.broadcast %cst_69 : f32 to vector<6x32xf32>
    %69 = arith.addf %66, %68 : vector<6x32xf32>
    %70 = tpu.reciprocal %69 {approx = true} : vector<6x32xf32> -> vector<6x32xf32>
    %71 = arith.mulf %67, %70 : vector<6x32xf32>
    %cst_70 = arith.constant 2.000000e+01 : f32
    %72 = vector.broadcast %cst_70 : f32 to vector<6x32xf32>
    %73 = arith.cmpf ogt, %60, %72 : vector<6x32xf32>
    %74 = arith.select %73, %60, %71 : vector<6x32xi1>, vector<6x32xf32>
    %75 = arith.truncf %74 : vector<6x32xf32> to vector<6x32xbf16>
    %c0_71 = arith.constant 0 : index
    %c0_72 = arith.constant 0 : index
    %c0_73 = arith.constant 0 : index
    %76 = vector.load %arg4[%c0_71, %c0_72, %c0_73] : memref<1x6x32xbf16, #tpu.memory_space<vmem>>, vector<1x6x32xbf16>
    %77 = vector.shape_cast %76 : vector<1x6x32xbf16> to vector<6x32xbf16>
    %78 = vector.shape_cast %75 : vector<6x32xbf16> to vector<1x6x32xbf16>
    tpu.vector_store %arg4[%c0_71, %c0_72, %c0_73], %78 {strides = array<i32>} : memref<1x6x32xbf16, #tpu.memory_space<vmem>>, vector<1x6x32xbf16>,
    return
  }
  func.func @transform_0(%arg0: i32) -> (i32, i32, i32, i32) {
    %c0_i32 = arith.constant 0 : i32
    %c0_i32_0 = arith.constant 0 : i32
    %c0_i32_1 = arith.constant 0 : i32
    %c0_i32_2 = arith.constant 0 : i32
    return %arg0, %c0_i32, %c0_i32_0, %c0_i32_1 : i32, i32, i32, i32
  }
  func.func @transform_1(%arg0: i32) -> (i32, i32, i32) {
    %c0_i32 = arith.constant 0 : i32
    %c0_i32_0 = arith.constant 0 : i32
    %c0_i32_1 = arith.constant 0 : i32
    %c0_i32_2 = arith.constant 0 : i32
    return %c0_i32, %c0_i32_0, %c0_i32_1 : i32, i32, i32
  }
  func.func @transform_2(%arg0: i32) -> (i32, i32) {
    %c0_i32 = arith.constant 0 : i32
    %c0_i32_0 = arith.constant 0 : i32
    %c0_i32_1 = arith.constant 0 : i32
    return %c0_i32, %c0_i32_0 : i32, i32
  }
  func.func @transform_3(%arg0: i32) -> (i32, i32, i32) {
    %c0_i32 = arith.constant 0 : i32
    %c0_i32_0 = arith.constant 0 : i32
    %c0_i32_1 = arith.constant 0 : i32
    return %arg0, %c0_i32, %c0_i32_0 : i32, i32, i32
  }
}

module attributes {stable_mosaic.version = 11 : i64} {
  func.func @_linear_kernel(%arg0: i32, %arg1: memref<2x32xbf16, #tpu.memory_space<vmem>>, %arg2: memref<32x32xbf16, #tpu.memory_space<vmem>>, %arg3: memref<1x32xf32, #tpu.memory_space<vmem>>, %arg4: memref<2x32xf32, #tpu.memory_space<vmem>>) attributes {dimension_semantics = [#tpu.dimension_semantics<arbitrary>], iteration_bounds = array<i64: 1>, scalar_prefetch = 0 : i64, scratch_operands = 0 : i64, tpu.core_type = #tpu.core_type<tc>, window_params = [{pipeline_mode = #tpu.pipeline_mode<synchronous>, transform_indices = @transform_0, window_bounds = array<i64: 2, 32>}, {pipeline_mode = #tpu.pipeline_mode<synchronous>, transform_indices = @transform_1, window_bounds = array<i64: 32, 32>}, {pipeline_mode = #tpu.pipeline_mode<synchronous>, transform_indices = @transform_2, window_bounds = array<i64: 1, 32>}, {pipeline_mode = #tpu.pipeline_mode<synchronous>, transform_indices = @transform_3, window_bounds = array<i64: 2, 32>}]} {
    %c0 = arith.constant 0 : index
    %c0_0 = arith.constant 0 : index
    %0 = vector.load %arg1[%c0, %c0_0] : memref<2x32xbf16, #tpu.memory_space<vmem>>, vector<2x32xbf16>
    %c0_1 = arith.constant 0 : index
    %c0_2 = arith.constant 0 : index
    %1 = vector.load %arg2[%c0_1, %c0_2] : memref<32x32xbf16, #tpu.memory_space<vmem>>, vector<32x32xbf16>
    %cst = arith.constant dense<0.000000e+00> : vector<2x32xf32>
    %2 = tpu.matmul %0, %1, %cst {dimension_numbers = #tpu.dot_dimension_numbers<[1], [0], [0], [1], [0, 0, 1, 1], [], []>} : vector<2x32xbf16>, vector<32x32xbf16>, vector<2x32xf32> -> vector<2x32xf32>
    %c0_3 = arith.constant 0 : index
    %c0_4 = arith.constant 0 : index
    %3 = vector.load %arg3[%c0_3, %c0_4] : memref<1x32xf32, #tpu.memory_space<vmem>>, vector<1x32xf32>
    %4 = vector.broadcast %3 : vector<1x32xf32> to vector<2x32xf32>
    %5 = arith.addf %2, %4 : vector<2x32xf32>
    %c0_5 = arith.constant 0 : index
    %c0_6 = arith.constant 0 : index
    %6 = vector.load %arg4[%c0_5, %c0_6] : memref<2x32xf32, #tpu.memory_space<vmem>>, vector<2x32xf32>
    tpu.vector_store %arg4[%c0_5, %c0_6], %5 {strides = array<i32>} : memref<2x32xf32, #tpu.memory_space<vmem>>, vector<2x32xf32>,
    return
  }
  func.func @transform_0(%arg0: i32) -> (i32, i32) {
    %c0_i32 = arith.constant 0 : i32
    %c0_i32_0 = arith.constant 0 : i32
    %c0_i32_1 = arith.constant 0 : i32
    return %c0_i32, %c0_i32_0 : i32, i32
  }
  func.func @transform_1(%arg0: i32) -> (i32, i32) {
    %c0_i32 = arith.constant 0 : i32
    %c0_i32_0 = arith.constant 0 : i32
    %c0_i32_1 = arith.constant 0 : i32
    return %c0_i32, %c0_i32_0 : i32, i32
  }
  func.func @transform_2(%arg0: i32) -> (i32, i32) {
    %c0_i32 = arith.constant 0 : i32
    %c0_i32_0 = arith.constant 0 : i32
    %c0_i32_1 = arith.constant 0 : i32
    return %c0_i32, %c0_i32_0 : i32, i32
  }
  func.func @transform_3(%arg0: i32) -> (i32, i32) {
    %c0_i32 = arith.constant 0 : i32
    %c0_i32_0 = arith.constant 0 : i32
    %c0_i32_1 = arith.constant 0 : i32
    return %c0_i32, %c0_i32_0 : i32, i32
  }
}

module attributes {stable_mosaic.version = 11 : i64} {
  func.func @kernel(%arg0: i32, %arg1: memref<1x4x5x32xbf16, #tpu.memory_space<vmem>>, %arg2: memref<9x32x32xbf16, #tpu.memory_space<vmem>>, %arg3: memref<2x32xf32, #tpu.memory_space<vmem>>, %arg4: memref<1x2x32xbf16, #tpu.memory_space<vmem>>) attributes {dimension_semantics = [#tpu.dimension_semantics<parallel>], iteration_bounds = array<i64: 2>, scalar_prefetch = 0 : i64, scratch_operands = 0 : i64, tpu.core_type = #tpu.core_type<tc>, window_params = [{transform_indices = @transform_0, window_bounds = array<i64: 1, 4, 5, 32>}, {pipeline_mode = #tpu.pipeline_mode<synchronous>, transform_indices = @transform_1, window_bounds = array<i64: 9, 32, 32>}, {pipeline_mode = #tpu.pipeline_mode<synchronous>, transform_indices = @transform_2, window_bounds = array<i64: 2, 32>}, {transform_indices = @transform_3, window_bounds = array<i64: 1, 2, 32>}]} {
    %cst = arith.constant 0.000000e+00 : f32
    %0 = vector.broadcast %cst : f32 to vector<2x32xf32>
    %c0 = arith.constant 0 : index
    %c0_0 = arith.constant 0 : index
    %c0_1 = arith.constant 0 : index
    %c0_2 = arith.constant 0 : index
    %1 = vector.load %arg1[%c0, %c0_0, %c0_1, %c0_2] : memref<1x4x5x32xbf16, #tpu.memory_space<vmem>>, vector<1x1x2x32xbf16>
    %2 = vector.shape_cast %1 : vector<1x1x2x32xbf16> to vector<2x32xbf16>
    %c0_3 = arith.constant 0 : index
    %c0_4 = arith.constant 0 : index
    %c0_5 = arith.constant 0 : index
    %3 = vector.load %arg2[%c0_3, %c0_4, %c0_5] : memref<9x32x32xbf16, #tpu.memory_space<vmem>>, vector<1x32x32xbf16>
    %4 = vector.shape_cast %3 : vector<1x32x32xbf16> to vector<32x32xbf16>
    %cst_6 = arith.constant dense<0.000000e+00> : vector<2x32xf32>
    %5 = tpu.matmul %2, %4, %cst_6 {dimension_numbers = #tpu.dot_dimension_numbers<[1], [0], [0], [1], [0, 0, 1, 1], [], []>} : vector<2x32xbf16>, vector<32x32xbf16>, vector<2x32xf32> -> vector<2x32xf32>
    %6 = arith.addf %0, %5 : vector<2x32xf32>
    %c0_7 = arith.constant 0 : index
    %c1 = arith.constant 1 : index
    %c0_8 = arith.constant 0 : index
    %c0_9 = arith.constant 0 : index
    %7 = vector.load %arg1[%c0_7, %c1, %c0_8, %c0_9] : memref<1x4x5x32xbf16, #tpu.memory_space<vmem>>, vector<1x1x2x32xbf16>
    %8 = vector.shape_cast %7 : vector<1x1x2x32xbf16> to vector<2x32xbf16>
    %c1_10 = arith.constant 1 : index
    %c0_11 = arith.constant 0 : index
    %c0_12 = arith.constant 0 : index
    %9 = vector.load %arg2[%c1_10, %c0_11, %c0_12] : memref<9x32x32xbf16, #tpu.memory_space<vmem>>, vector<1x32x32xbf16>
    %10 = vector.shape_cast %9 : vector<1x32x32xbf16> to vector<32x32xbf16>
    %cst_13 = arith.constant dense<0.000000e+00> : vector<2x32xf32>
    %11 = tpu.matmul %8, %10, %cst_13 {dimension_numbers = #tpu.dot_dimension_numbers<[1], [0], [0], [1], [0, 0, 1, 1], [], []>} : vector<2x32xbf16>, vector<32x32xbf16>, vector<2x32xf32> -> vector<2x32xf32>
    %12 = arith.addf %6, %11 : vector<2x32xf32>
    %c0_14 = arith.constant 0 : index
    %c0_15 = arith.constant 0 : index
    %c1_16 = arith.constant 1 : index
    %c0_17 = arith.constant 0 : index
    %13 = vector.load %arg1[%c0_14, %c0_15, %c1_16, %c0_17] : memref<1x4x5x32xbf16, #tpu.memory_space<vmem>>, vector<1x1x2x32xbf16>
    %14 = vector.shape_cast %13 : vector<1x1x2x32xbf16> to vector<2x32xbf16>
    %c2 = arith.constant 2 : index
    %c0_18 = arith.constant 0 : index
    %c0_19 = arith.constant 0 : index
    %15 = vector.load %arg2[%c2, %c0_18, %c0_19] : memref<9x32x32xbf16, #tpu.memory_space<vmem>>, vector<1x32x32xbf16>
    %16 = vector.shape_cast %15 : vector<1x32x32xbf16> to vector<32x32xbf16>
    %cst_20 = arith.constant dense<0.000000e+00> : vector<2x32xf32>
    %17 = tpu.matmul %14, %16, %cst_20 {dimension_numbers = #tpu.dot_dimension_numbers<[1], [0], [0], [1], [0, 0, 1, 1], [], []>} : vector<2x32xbf16>, vector<32x32xbf16>, vector<2x32xf32> -> vector<2x32xf32>
    %18 = arith.addf %12, %17 : vector<2x32xf32>
    %c0_21 = arith.constant 0 : index
    %c2_22 = arith.constant 2 : index
    %c0_23 = arith.constant 0 : index
    %c0_24 = arith.constant 0 : index
    %19 = vector.load %arg1[%c0_21, %c2_22, %c0_23, %c0_24] : memref<1x4x5x32xbf16, #tpu.memory_space<vmem>>, vector<1x1x2x32xbf16>
    %20 = vector.shape_cast %19 : vector<1x1x2x32xbf16> to vector<2x32xbf16>
    %c3 = arith.constant 3 : index
    %c0_25 = arith.constant 0 : index
    %c0_26 = arith.constant 0 : index
    %21 = vector.load %arg2[%c3, %c0_25, %c0_26] : memref<9x32x32xbf16, #tpu.memory_space<vmem>>, vector<1x32x32xbf16>
    %22 = vector.shape_cast %21 : vector<1x32x32xbf16> to vector<32x32xbf16>
    %cst_27 = arith.constant dense<0.000000e+00> : vector<2x32xf32>
    %23 = tpu.matmul %20, %22, %cst_27 {dimension_numbers = #tpu.dot_dimension_numbers<[1], [0], [0], [1], [0, 0, 1, 1], [], []>} : vector<2x32xbf16>, vector<32x32xbf16>, vector<2x32xf32> -> vector<2x32xf32>
    %24 = arith.addf %18, %23 : vector<2x32xf32>
    %c0_28 = arith.constant 0 : index
    %c3_29 = arith.constant 3 : index
    %c0_30 = arith.constant 0 : index
    %c0_31 = arith.constant 0 : index
    %25 = vector.load %arg1[%c0_28, %c3_29, %c0_30, %c0_31] : memref<1x4x5x32xbf16, #tpu.memory_space<vmem>>, vector<1x1x2x32xbf16>
    %26 = vector.shape_cast %25 : vector<1x1x2x32xbf16> to vector<2x32xbf16>
    %c4 = arith.constant 4 : index
    %c0_32 = arith.constant 0 : index
    %c0_33 = arith.constant 0 : index
    %27 = vector.load %arg2[%c4, %c0_32, %c0_33] : memref<9x32x32xbf16, #tpu.memory_space<vmem>>, vector<1x32x32xbf16>
    %28 = vector.shape_cast %27 : vector<1x32x32xbf16> to vector<32x32xbf16>
    %cst_34 = arith.constant dense<0.000000e+00> : vector<2x32xf32>
    %29 = tpu.matmul %26, %28, %cst_34 {dimension_numbers = #tpu.dot_dimension_numbers<[1], [0], [0], [1], [0, 0, 1, 1], [], []>} : vector<2x32xbf16>, vector<32x32xbf16>, vector<2x32xf32> -> vector<2x32xf32>
    %30 = arith.addf %24, %29 : vector<2x32xf32>
    %c0_35 = arith.constant 0 : index
    %c2_36 = arith.constant 2 : index
    %c1_37 = arith.constant 1 : index
    %c0_38 = arith.constant 0 : index
    %31 = vector.load %arg1[%c0_35, %c2_36, %c1_37, %c0_38] : memref<1x4x5x32xbf16, #tpu.memory_space<vmem>>, vector<1x1x2x32xbf16>
    %32 = vector.shape_cast %31 : vector<1x1x2x32xbf16> to vector<2x32xbf16>
    %c5 = arith.constant 5 : index
    %c0_39 = arith.constant 0 : index
    %c0_40 = arith.constant 0 : index
    %33 = vector.load %arg2[%c5, %c0_39, %c0_40] : memref<9x32x32xbf16, #tpu.memory_space<vmem>>, vector<1x32x32xbf16>
    %34 = vector.shape_cast %33 : vector<1x32x32xbf16> to vector<32x32xbf16>
    %cst_41 = arith.constant dense<0.000000e+00> : vector<2x32xf32>
    %35 = tpu.matmul %32, %34, %cst_41 {dimension_numbers = #tpu.dot_dimension_numbers<[1], [0], [0], [1], [0, 0, 1, 1], [], []>} : vector<2x32xbf16>, vector<32x32xbf16>, vector<2x32xf32> -> vector<2x32xf32>
    %36 = arith.addf %30, %35 : vector<2x32xf32>
    %c0_42 = arith.constant 0 : index
    %c0_43 = arith.constant 0 : index
    %c2_44 = arith.constant 2 : index
    %c0_45 = arith.constant 0 : index
    %37 = vector.load %arg1[%c0_42, %c0_43, %c2_44, %c0_45] : memref<1x4x5x32xbf16, #tpu.memory_space<vmem>>, vector<1x1x2x32xbf16>
    %38 = vector.shape_cast %37 : vector<1x1x2x32xbf16> to vector<2x32xbf16>
    %c6 = arith.constant 6 : index
    %c0_46 = arith.constant 0 : index
    %c0_47 = arith.constant 0 : index
    %39 = vector.load %arg2[%c6, %c0_46, %c0_47] : memref<9x32x32xbf16, #tpu.memory_space<vmem>>, vector<1x32x32xbf16>
    %40 = vector.shape_cast %39 : vector<1x32x32xbf16> to vector<32x32xbf16>
    %cst_48 = arith.constant dense<0.000000e+00> : vector<2x32xf32>
    %41 = tpu.matmul %38, %40, %cst_48 {dimension_numbers = #tpu.dot_dimension_numbers<[1], [0], [0], [1], [0, 0, 1, 1], [], []>} : vector<2x32xbf16>, vector<32x32xbf16>, vector<2x32xf32> -> vector<2x32xf32>
    %42 = arith.addf %36, %41 : vector<2x32xf32>
    %c0_49 = arith.constant 0 : index
    %c1_50 = arith.constant 1 : index
    %c2_51 = arith.constant 2 : index
    %c0_52 = arith.constant 0 : index
    %43 = vector.load %arg1[%c0_49, %c1_50, %c2_51, %c0_52] : memref<1x4x5x32xbf16, #tpu.memory_space<vmem>>, vector<1x1x2x32xbf16>
    %44 = vector.shape_cast %43 : vector<1x1x2x32xbf16> to vector<2x32xbf16>
    %c7 = arith.constant 7 : index
    %c0_53 = arith.constant 0 : index
    %c0_54 = arith.constant 0 : index
    %45 = vector.load %arg2[%c7, %c0_53, %c0_54] : memref<9x32x32xbf16, #tpu.memory_space<vmem>>, vector<1x32x32xbf16>
    %46 = vector.shape_cast %45 : vector<1x32x32xbf16> to vector<32x32xbf16>
    %cst_55 = arith.constant dense<0.000000e+00> : vector<2x32xf32>
    %47 = tpu.matmul %44, %46, %cst_55 {dimension_numbers = #tpu.dot_dimension_numbers<[1], [0], [0], [1], [0, 0, 1, 1], [], []>} : vector<2x32xbf16>, vector<32x32xbf16>, vector<2x32xf32> -> vector<2x32xf32>
    %48 = arith.addf %42, %47 : vector<2x32xf32>
    %c0_56 = arith.constant 0 : index
    %c0_57 = arith.constant 0 : index
    %c3_58 = arith.constant 3 : index
    %c0_59 = arith.constant 0 : index
    %49 = vector.load %arg1[%c0_56, %c0_57, %c3_58, %c0_59] : memref<1x4x5x32xbf16, #tpu.memory_space<vmem>>, vector<1x1x2x32xbf16>
    %50 = vector.shape_cast %49 : vector<1x1x2x32xbf16> to vector<2x32xbf16>
    %c8 = arith.constant 8 : index
    %c0_60 = arith.constant 0 : index
    %c0_61 = arith.constant 0 : index
    %51 = vector.load %arg2[%c8, %c0_60, %c0_61] : memref<9x32x32xbf16, #tpu.memory_space<vmem>>, vector<1x32x32xbf16>
    %52 = vector.shape_cast %51 : vector<1x32x32xbf16> to vector<32x32xbf16>
    %cst_62 = arith.constant dense<0.000000e+00> : vector<2x32xf32>
    %53 = tpu.matmul %50, %52, %cst_62 {dimension_numbers = #tpu.dot_dimension_numbers<[1], [0], [0], [1], [0, 0, 1, 1], [], []>} : vector<2x32xbf16>, vector<32x32xbf16>, vector<2x32xf32> -> vector<2x32xf32>
    %54 = arith.addf %48, %53 : vector<2x32xf32>
    %c0_63 = arith.constant 0 : index
    %c0_64 = arith.constant 0 : index
    %55 = vector.load %arg3[%c0_63, %c0_64] : memref<2x32xf32, #tpu.memory_space<vmem>>, vector<1x32xf32>
    %56 = vector.broadcast %55 : vector<1x32xf32> to vector<2x32xf32>
    %57 = arith.mulf %54, %56 : vector<2x32xf32>
    %c1_65 = arith.constant 1 : index
    %c0_66 = arith.constant 0 : index
    %58 = vector.load %arg3[%c1_65, %c0_66] : memref<2x32xf32, #tpu.memory_space<vmem>>, vector<1x32xf32>
    %59 = vector.broadcast %58 : vector<1x32xf32> to vector<2x32xf32>
    %60 = arith.addf %57, %59 : vector<2x32xf32>
    %cst_67 = arith.constant 2.000000e+01 : f32
    %61 = vector.broadcast %cst_67 : f32 to vector<2x32xf32>
    %62 = arith.minimumf %60, %61 : vector<2x32xf32>
    %63 = math.exp %62 : vector<2x32xf32>
    %cst_68 = arith.constant 2.000000e+00 : f32
    %64 = vector.broadcast %cst_68 : f32 to vector<2x32xf32>
    %65 = arith.addf %63, %64 : vector<2x32xf32>
    %66 = arith.mulf %63, %65 : vector<2x32xf32>
    %67 = arith.mulf %60, %66 : vector<2x32xf32>
    %cst_69 = arith.constant 2.000000e+00 : f32
    %68 = vector.broadcast %cst_69 : f32 to vector<2x32xf32>
    %69 = arith.addf %66, %68 : vector<2x32xf32>
    %70 = tpu.reciprocal %69 {approx = true} : vector<2x32xf32> -> vector<2x32xf32>
    %71 = arith.mulf %67, %70 : vector<2x32xf32>
    %cst_70 = arith.constant 2.000000e+01 : f32
    %72 = vector.broadcast %cst_70 : f32 to vector<2x32xf32>
    %73 = arith.cmpf ogt, %60, %72 : vector<2x32xf32>
    %74 = arith.select %73, %60, %71 : vector<2x32xi1>, vector<2x32xf32>
    %75 = arith.truncf %74 : vector<2x32xf32> to vector<2x32xbf16>
    %c0_71 = arith.constant 0 : index
    %c0_72 = arith.constant 0 : index
    %c0_73 = arith.constant 0 : index
    %76 = vector.load %arg4[%c0_71, %c0_72, %c0_73] : memref<1x2x32xbf16, #tpu.memory_space<vmem>>, vector<1x2x32xbf16>
    %77 = vector.shape_cast %76 : vector<1x2x32xbf16> to vector<2x32xbf16>
    %78 = vector.shape_cast %75 : vector<2x32xbf16> to vector<1x2x32xbf16>
    tpu.vector_store %arg4[%c0_71, %c0_72, %c0_73], %78 {strides = array<i32>} : memref<1x2x32xbf16, #tpu.memory_space<vmem>>, vector<1x2x32xbf16>,
    return
  }
  func.func @transform_0(%arg0: i32) -> (i32, i32, i32, i32) {
    %c0_i32 = arith.constant 0 : i32
    %c0_i32_0 = arith.constant 0 : i32
    %c0_i32_1 = arith.constant 0 : i32
    %c0_i32_2 = arith.constant 0 : i32
    return %arg0, %c0_i32, %c0_i32_0, %c0_i32_1 : i32, i32, i32, i32
  }
  func.func @transform_1(%arg0: i32) -> (i32, i32, i32) {
    %c0_i32 = arith.constant 0 : i32
    %c0_i32_0 = arith.constant 0 : i32
    %c0_i32_1 = arith.constant 0 : i32
    %c0_i32_2 = arith.constant 0 : i32
    return %c0_i32, %c0_i32_0, %c0_i32_1 : i32, i32, i32
  }
  func.func @transform_2(%arg0: i32) -> (i32, i32) {
    %c0_i32 = arith.constant 0 : i32
    %c0_i32_0 = arith.constant 0 : i32
    %c0_i32_1 = arith.constant 0 : i32
    return %c0_i32, %c0_i32_0 : i32, i32
  }
  func.func @transform_3(%arg0: i32) -> (i32, i32, i32) {
    %c0_i32 = arith.constant 0 : i32
    %c0_i32_0 = arith.constant 0 : i32
    %c0_i32_1 = arith.constant 0 : i32
    return %arg0, %c0_i32, %c0_i32_0 : i32, i32, i32
  }
}

</mosaic_0001>

<llo_original>
// kernel: _lambda_.9
$region0: #{_lambda_.9}
  #allocation0 [shape = 'u32[]', space=smem, size = 0x4, offset = 0x4, fixed_abs, tag = 'smem constant byte address 0x4 - core index']
  #allocation1 [shape = 'u32[72,128]{1,0:T(1,128)}', space=vmem, size = 0x9000, scoped, tag = 'internal scratch']
  %s0 = inlined_call_operand.vmem [shape: bf16[2,4,82,8], index: 0, kind: input, shape index: {}]
  %s1 = inlined_call_operand.vmem [shape: bf16[9,8,16], index: 1, kind: input, shape index: {}]
  %s2 = inlined_call_operand.vmem [shape: f32[2,16], index: 2, kind: input, shape index: {}]
  %s3 = inlined_call_operand.vmem [shape: bf16[8,16], index: 3, kind: input, shape index: {}]
  %s4 = inlined_call_operand.vmem [shape: f32[1,16], index: 4, kind: input, shape index: {}]
  %s5 = inlined_call_operand.vmem [shape: bf16[2,72,16], index: 5, kind: output, shape index: {0}]
  %s6 = inlined_call_operand.vmem [shape: bf16[2,72,16], index: 6, kind: output, shape index: {1}]
  %7 = xla_tuple %s5, %s6
  %s8 = sld [smem:[#allocation0]]
  $region61: #{_lambda_.9} parent=0
    _
  %s10 = ssub.s32 1, %s8
  %s11 = scalar_select 0, %s10, %s8
  loop: start=0, step=1, limit=4
  $region2: #{_lambda_.9} parent=0 // loop_pre_header
    _
  $region3: #{_lambda_.9} parent=0 // loop_header
    %s13 = sphi 0, %s17
    %p14 = scmp.ge.s32.totalorder %s13, 4
    %s23 = sphi 0, %s25
    %s26 = sphi 0, %s23
    %s27 = sphi 0, %s26
    %s43 = sphi 0, %s27
    %s47 = sphi 0, %s47
    %s49 = sphi 0, %s47
    %s50 = sphi 0, %s49
    %s64 = sphi 0, %s50
    %s68 = sphi 0, %s68
    %s70 = sphi 0, %s68
    %s71 = sphi 0, %s70
    %s85 = sphi 0, %s71
    %s89 = sphi 0, %s89
    %s91 = sphi 0, %s89
    %s92 = sphi 0, %s91
    %s106 = sphi 0, %s92
    %s110 = sphi 0, %s110
    %s112 = sphi 0, %s110
    %s113 = sphi 0, %s112
    %s127 = sphi 0, %s113
    %s133 = sphi 0, %s135
    %s136 = sphi 0, %s133
    %s137 = sphi 0, %s136
    %s153 = sphi 0, %s137
    %s159 = sphi 0, %s161
    %s162 = sphi 0, %s159
    %s163 = sphi 0, %s162
    %s179 = sphi 0, %s163
  $region4: #{_lambda_.9} parent=0 // loop_header_branch
    %16 = sbr.rel (%p14) target = $region8
  $region5: #{_lambda_.9} parent=0 // loop_body
    %s18 = ssub.s32 %s13, 1
    %s19 = ssub.s32 %s13, 2
    %s20 = sadd.s32 %s13, 1
    %s21 = ssub.s32 %s13, %s20
    %p22 = scmp.eq.s32.totalorder %s21, 0
    %s24 = sadd.s32 %s23, 1
    %s25 = scalar_select %p22, %s23, %s24
    %p28 = pneg %p22
    %p29 = scmp.eq.s32.totalorder %s13, 1
    %p30 = por %p28, %p29
    %p31 = scmp.ne.s32.totalorder %s23, %s26
    %p32 = scmp.eq.s32.totalorder %s13, 0
    %p33 = por %p31, %p32
    %p34 = scmp.ne.s32.totalorder %s23, %s26
    %p35 = scmp.eq.s32.totalorder %s18, 1
    %p36 = por %p34, %p35
    %p37 = scmp.ne.s32.totalorder %s26, %s27
    %p38 = scmp.eq.s32.totalorder %s18, 0
    %p39 = por %p37, %p38
    %p40 = scmp.ne.s32.totalorder %s26, %s27
    %p41 = scmp.eq.s32.totalorder %s19, 1
    %p42 = por %p40, %p41
    %p44 = scmp.ne.s32.totalorder %s27, %s43
    %p45 = scmp.eq.s32.totalorder %s19, 0
    %p46 = por %p44, %p45
    %s48 = sadd.s32 %s47, 1
    %p51 = scmp.eq.s32.totalorder %s13, 1
    %p52 = scmp.ne.s32.totalorder %s47, %s49
    %p53 = scmp.eq.s32.totalorder %s13, 0
    %p54 = por %p52, %p53
    %p55 = scmp.ne.s32.totalorder %s47, %s49
    %p56 = scmp.eq.s32.totalorder %s18, 1
    %p57 = por %p55, %p56
    %p58 = scmp.ne.s32.totalorder %s49, %s50
    %p59 = scmp.eq.s32.totalorder %s18, 0
    %p60 = por %p58, %p59
    %p61 = scmp.ne.s32.totalorder %s49, %s50
    %p62 = scmp.eq.s32.totalorder %s19, 1
    %p63 = por %p61, %p62
    %p65 = scmp.ne.s32.totalorder %s50, %s64
    %p66 = scmp.eq.s32.totalorder %s19, 0
    %p67 = por %p65, %p66
    %s69 = sadd.s32 %s68, 1
    %p72 = scmp.eq.s32.totalorder %s13, 1
    %p73 = scmp.ne.s32.totalorder %s68, %s70
    %p74 = scmp.eq.s32.totalorder %s13, 0
    %p75 = por %p73, %p74
    %p76 = scmp.ne.s32.totalorder %s68, %s70
    %p77 = scmp.eq.s32.totalorder %s18, 1
    %p78 = por %p76, %p77
    %p79 = scmp.ne.s32.totalorder %s70, %s71
    %p80 = scmp.eq.s32.totalorder %s18, 0
    %p81 = por %p79, %p80
    %p82 = scmp.ne.s32.totalorder %s70, %s71
    %p83 = scmp.eq.s32.totalorder %s19, 1
    %p84 = por %p82, %p83
    %p86 = scmp.ne.s32.totalorder %s71, %s85
    %p87 = scmp.eq.s32.totalorder %s19, 0
    %p88 = por %p86, %p87
    %s90 = sadd.s32 %s89, 1
    %p93 = scmp.eq.s32.totalorder %s13, 1
    %p94 = scmp.ne.s32.totalorder %s89, %s91
    %p95 = scmp.eq.s32.totalorder %s13, 0
    %p96 = por %p94, %p95
    %p97 = scmp.ne.s32.totalorder %s89, %s91
    %p98 = scmp.eq.s32.totalorder %s18, 1
    %p99 = por %p97, %p98
    %p100 = scmp.ne.s32.totalorder %s91, %s92
    %p101 = scmp.eq.s32.totalorder %s18, 0
    %p102 = por %p100, %p101
    %p103 = scmp.ne.s32.totalorder %s91, %s92
    %p104 = scmp.eq.s32.totalorder %s19, 1
    %p105 = por %p103, %p104
    %p107 = scmp.ne.s32.totalorder %s92, %s106
    %p108 = scmp.eq.s32.totalorder %s19, 0
    %p109 = por %p107, %p108
    %s111 = sadd.s32 %s110, 1
    %p114 = scmp.eq.s32.totalorder %s13, 1
    %p115 = scmp.ne.s32.totalorder %s110, %s112
    %p116 = scmp.eq.s32.totalorder %s13, 0
    %p117 = por %p115, %p116
    %p118 = scmp.ne.s32.totalorder %s110, %s112
    %p119 = scmp.eq.s32.totalorder %s18, 1
    %p120 = por %p118, %p119
    %p121 = scmp.ne.s32.totalorder %s112, %s113
    %p122 = scmp.eq.s32.totalorder %s18, 0
    %p123 = por %p121, %p122
    %p124 = scmp.ne.s32.totalorder %s112, %s113
    %p125 = scmp.eq.s32.totalorder %s19, 1
    %p126 = por %p124, %p125
    %p128 = scmp.ne.s32.totalorder %s113, %s127
    %p129 = scmp.eq.s32.totalorder %s19, 0
    %p130 = por %p128, %p129
    %s131 = ssub.s32 %s13, %s20
    %p132 = scmp.eq.s32.totalorder %s131, 0
    %s134 = sadd.s32 %s133, 1
    %s135 = scalar_select %p132, %s133, %s134
    %p138 = pneg %p132
    %p139 = scmp.eq.s32.totalorder %s13, 1
    %p140 = por %p138, %p139
    %p141 = scmp.ne.s32.totalorder %s133, %s136
    %p142 = scmp.eq.s32.totalorder %s13, 0
    %p143 = por %p141, %p142
    %p144 = scmp.ne.s32.totalorder %s133, %s136
    %p145 = scmp.eq.s32.totalorder %s18, 1
    %p146 = por %p144, %p145
    %p147 = scmp.ne.s32.totalorder %s136, %s137
    %p148 = scmp.eq.s32.totalorder %s18, 0
    %p149 = por %p147, %p148
    %p150 = scmp.ne.s32.totalorder %s136, %s137
    %p151 = scmp.eq.s32.totalorder %s19, 1
    %p152 = por %p150, %p151
    %p154 = scmp.ne.s32.totalorder %s137, %s153
    %p155 = scmp.eq.s32.totalorder %s19, 0
    %p156 = por %p154, %p155
    %s157 = ssub.s32 %s13, %s20
    %p158 = scmp.eq.s32.totalorder %s157, 0
    %s160 = sadd.s32 %s159, 1
    %s161 = scalar_select %p158, %s159, %s160
    %p164 = pneg %p158
    %p165 = scmp.eq.s32.totalorder %s13, 1
    %p166 = por %p164, %p165
    %p167 = scmp.ne.s32.totalorder %s159, %s162
    %p168 = scmp.eq.s32.totalorder %s13, 0
    %p169 = por %p167, %p168
    %p170 = scmp.ne.s32.totalorder %s159, %s162
    %p171 = scmp.eq.s32.totalorder %s18, 1
    %p172 = por %p170, %p171
    %p173 = scmp.ne.s32.totalorder %s162, %s163
    %p174 = scmp.eq.s32.totalorder %s18, 0
    %p175 = por %p173, %p174
    %p176 = scmp.ne.s32.totalorder %s162, %s163
    %p177 = scmp.eq.s32.totalorder %s19, 1
    %p178 = por %p176, %p177
    %p180 = scmp.ne.s32.totalorder %s163, %s179
    %p181 = scmp.eq.s32.totalorder %s19, 0
    %p182 = por %p180, %p181
    %p183 = scmp.le.s32.totalorder 1, %s13
    %p184 = scmp.lt.s32.totalorder %s13, 3
    %p185 = pnand %p183, %p184
    %p186 = pneg %p185
    // Predicated region
    $region9: #{_lambda_.9} parent=5 // pred_check
      _
    $region10: #{_lambda_.9} parent=5 // pred_check_branch
      %188 = sbr.rel (%p185) target = $region12
    $region11: #{_lambda_.9} parent=5 // pred_region
      %s189 = ssub.s32 %s13, 1
      // Predicated region
      $region13: #{_lambda_.9} parent=11 // pred_check
        %p190 = pneg %p60
      $region14: #{_lambda_.9} parent=11 // pred_check_branch
        %192 = sbr.rel (%p190) target = $region16
      $region15: #{_lambda_.9} parent=11 // pred_region
        _
      $region16: #{_lambda_.9} parent=11 // pred_fallthru
        _
      // Predicated region
      $region17: #{_lambda_.9} parent=11 // pred_check
        %p193 = pneg %p81
      $region18: #{_lambda_.9} parent=11 // pred_check_branch
        %195 = sbr.rel (%p193) target = $region20
      $region19: #{_lambda_.9} parent=11 // pred_region
        _
      $region20: #{_lambda_.9} parent=11 // pred_fallthru
        _
      // Predicated region
      $region21: #{_lambda_.9} parent=11 // pred_check
        %p196 = pneg %p102
      $region22: #{_lambda_.9} parent=11 // pred_check_branch
        %198 = sbr.rel (%p196) target = $region24
      $region23: #{_lambda_.9} parent=11 // pred_region
        _
      $region24: #{_lambda_.9} parent=11 // pred_fallthru
        _
      // Predicated region
      $region25: #{_lambda_.9} parent=11 // pred_check
        %p199 = pneg %p123
      $region26: #{_lambda_.9} parent=11 // pred_check_branch
        %201 = sbr.rel (%p199) target = $region28
      $region27: #{_lambda_.9} parent=11 // pred_region
        _
      $region28: #{_lambda_.9} parent=11 // pred_fallthru
        _
    $region12: #{_lambda_.9} parent=5 // pred_fallthru
      _
    %p202 = scmp.lt.s32.totalorder %s13, 2
    // Predicated region
    $region29: #{_lambda_.9} parent=5 // pred_check
      %p203 = pneg %p202
    $region30: #{_lambda_.9} parent=5 // pred_check_branch
      %205 = sbr.rel (%p203) target = $region32
    $region31: #{_lambda_.9} parent=5 // pred_region
      // Predicated region
      $region33: #{_lambda_.9} parent=31 // pred_check
        %p206 = pneg %p33
      $region34: #{_lambda_.9} parent=31 // pred_check_branch
        %208 = sbr.rel (%p206) target = $region36
      $region35: #{_lambda_.9} parent=31 // pred_region
        %p209 = scmp.lt.s32.totalorder %s13, 1
        %s210 = scalar_select %p209, %s13, 1
        %s211 = smul.addr %s210, 44
        %s212 = smul.addr %s211, 4
        %s213 = scalar_lea.vmem %s0, %s212
      $region36: #{_lambda_.9} parent=31 // pred_fallthru
        _
    $region32: #{_lambda_.9} parent=5 // pred_fallthru
      _
    %p214 = scmp.le.s32.totalorder 1, %s13
    %p215 = scmp.lt.s32.totalorder %s13, 3
    %p216 = pnand %p214, %p215
    %p217 = pneg %p216
    // Predicated region
    $region37: #{_lambda_.9} parent=5 // pred_check
      _
    $region38: #{_lambda_.9} parent=5 // pred_check_branch
      %219 = sbr.rel (%p216) target = $region40
    $region39: #{_lambda_.9} parent=5 // pred_region
      %s220 = ssub.s32 %s13, 1
      %p221 = scmp.lt.s32.totalorder %s18, 1
      %s222 = scalar_select %p221, %s18, 1
      %s223 = smul.addr %s222, 44
      %s224 = smul.addr %s223, 4
      %s225 = scalar_lea.vmem %s0, %s224
      %p226 = pneg %p39
      %p227 = pneg %p36
      %p228 = pneg %p60
      %p229 = pneg %p57
      %p230 = pneg %p81
      %p231 = pneg %p78
      %p232 = pneg %p102
      %p233 = pneg %p99
      %p234 = pneg %p123
      %p235 = pneg %p120
      %p236 = pneg %p149
      %p237 = pneg %p146
      %p238 = scmp.lt.s32.totalorder %s18, 1
      %s239 = scalar_select %p238, %s18, 1
      %s240 = smul.addr %s239, 9
      %s241 = smul.addr %s240, 4
      %s242 = scalar_lea.vmem %s5, %s241
      %p243 = pneg %p175
      %p244 = pneg %p172
      %p245 = scmp.lt.s32.totalorder %s18, 1
      %s246 = scalar_select %p245, %s18, 1
      %s247 = smul.addr %s246, 9
      %s248 = smul.addr %s247, 4
      %s249 = scalar_lea.vmem %s6, %s248
      %p250 = scmp.lt.s32.totalorder %s18, 1
      %s251 = scalar_select %p250, %s18, 1
      %s252 = smul.addr %s251, 44
      %s253 = smul.addr %s252, 4
      %s254 = scalar_lea.vmem %s0, %s253
      %p255 = scmp.lt.s32.totalorder %s18, 1
      %s256 = scalar_select %p255, %s18, 1
      %s257 = smul.addr %s256, 9
      %s258 = smul.addr %s257, 4
      %s259 = scalar_lea.vmem %s5, %s258
      %p260 = scmp.lt.s32.totalorder %s18, 1
      %s261 = scalar_select %p260, %s18, 1
      %s262 = smul.addr %s261, 9
      %s263 = smul.addr %s262, 4
      %s264 = scalar_lea.vmem %s6, %s263
      %v266 = vld [vmem:[%s254] sm:$0xf]
      %v267 = vld [vmem:[%s254 + $0x4] sm:$0xf]
      %v268 = vld [vmem:[%s254 + $0x8] sm:$0xf]
      %v269 = vld [vmem:[%s254 + $0xc] sm:$0xf]
      %v270 = vld [vmem:[%s254 + $0x10] sm:$0xf]
      %v271 = vld [vmem:[%s254 + $0x14] sm:$0xf]
      %v272 = vld [vmem:[%s254 + $0x18] sm:$0xf]
      %v273 = vld [vmem:[%s254 + $0x1c] sm:$0xf]
      %v274 = vld [vmem:[%s254 + $0x20] sm:$0xf]
      %v275 = vld [vmem:[%s1] sm:$0xf]
      %s276 = scalar_lea.vmem %s254, 44
      %v277 = vld [vmem:[%s276] sm:$0xf]
      %v278 = vld [vmem:[%s276 + $0x4] sm:$0xf]
      %v279 = vld [vmem:[%s276 + $0x8] sm:$0xf]
      %v280 = vld [vmem:[%s276 + $0xc] sm:$0xf]
      %v281 = vld [vmem:[%s276 + $0x10] sm:$0xf]
      %v282 = vld [vmem:[%s276 + $0x14] sm:$0xf]
      %v283 = vld [vmem:[%s276 + $0x18] sm:$0xf]
      %v284 = vld [vmem:[%s276 + $0x1c] sm:$0xf]
      %v285 = vld [vmem:[%s276 + $0x20] sm:$0xf]
      %s286 = scalar_lea.vmem %s1, 4
      %v287 = vld [vmem:[%s286] sm:$0xf]
      %v297 = vunpack.c.l.b16 %v277
      %v298 = vunpack.c.l.b16 %v278
      %v299 = vunpack.c.l.b16 %v279
      %v300 = vunpack.c.l.b16 %v280
      %v301 = vunpack.c.l.b16 %v281
      %v302 = vunpack.c.l.b16 %v282
      %v303 = vunpack.c.l.b16 %v283
      %v304 = vunpack.c.l.b16 %v284
      %v305 = vunpack.c.l.b16 %v285
      %v306 = vpack.c.b16 %v298, %v297
      %v307 = vpack.c.b16 %v300, %v299
      %v308 = vpack.c.b16 %v302, %v301
      %v309 = vpack.c.b16 %v304, %v303
      %v310 = vpack.c.b16 %v305, %v305
      %vm311 = vcmask 64512
      %v313 = vsel %vm311, %v306, 0
      %v316 = vsel %vm311, %v307, 0
      %v319 = vsel %vm311, %v308, 0
      %v322 = vsel %vm311, %v309, 0
      %v325 = vsel %vm311, %v310, 0
      %vm327 = vcmask 1043456
      %v329 = vsel %vm327, %v287, 0
      %331 = vmatpush.bf16.msra.mxu0 0
      %332 = vmatpush.bf16.msra.mxu0 0
      %333 = vmatpush.bf16.msra.mxu0 0
      %334 = vmatpush.bf16.msra.mxu0 0
      %335 = vmatpush.bf16.msra.mxu0 0
      %336 = vmatpush.bf16.msra.mxu0 0
      %337 = vmatpush.bf16.msra.mxu0 0
      %338 = vmatpush.bf16.msra.mxu0 %v329
      %339 = vmatmul.bf16.gmra.mxu0 %v313
      %v340 = vpop.f32.mrf.mxu0
      %v341 = vadd.f32 0.0, %v340
      %v342 = vpop.f32.mrf.mxu0
      %v343 = vadd.f32 0.0, %v342
      %344 = vmatmul.bf16.gmra.mxu0 %v316
      %v345 = vpop.f32.mrf.mxu0
      %v346 = vadd.f32 0.0, %v345
      %v347 = vpop.f32.mrf.mxu0
      %v348 = vadd.f32 0.0, %v347
      %349 = vmatmul.bf16.gmra.mxu0 %v319
      %v350 = vpop.f32.mrf.mxu0
      %v351 = vadd.f32 0.0, %v350
      %v352 = vpop.f32.mrf.mxu0
      %v353 = vadd.f32 0.0, %v352
      %354 = vmatmul.bf16.gmra.mxu0 %v322
      %v355 = vpop.f32.mrf.mxu0
      %v356 = vadd.f32 0.0, %v355
      %v357 = vpop.f32.mrf.mxu0
      %v358 = vadd.f32 0.0, %v357
      %359 = vmatmul.bf16.gmra.mxu0 %v325
      %v360 = vpop.f32.mrf.mxu0
      %v361 = vadd.f32 0.0, %v360
      %v362 = vpop.f32.mrf.mxu0
      %363 = vdwg.mxu0
      %v373 = vunpack.c.l.b16 %v266
      %v374 = vunpack.c.l.b16 %v267
      %v375 = vunpack.c.l.b16 %v268
      %v376 = vunpack.c.l.b16 %v269
      %v377 = vunpack.c.l.b16 %v270
      %v378 = vunpack.c.l.b16 %v271
      %v379 = vunpack.c.l.b16 %v272
      %v380 = vunpack.c.l.b16 %v273
      %v381 = vunpack.c.l.b16 %v274
      %v382 = vpack.c.b16 %v374, %v373
      %v383 = vpack.c.b16 %v376, %v375
      %v384 = vpack.c.b16 %v378, %v377
      %v385 = vpack.c.b16 %v380, %v379
      %v386 = vpack.c.b16 %v381, %v381
      %v388 = vsel %vm311, %v382, 0
      %v391 = vsel %vm311, %v383, 0
      %v394 = vsel %vm311, %v384, 0
      %v397 = vsel %vm311, %v385, 0
      %v400 = vsel %vm311, %v386, 0
      %v403 = vsel %vm327, %v275, 0
      %405 = vmatpush.bf16.msra.mxu0 0
      %406 = vmatpush.bf16.msra.mxu0 0
      %407 = vmatpush.bf16.msra.mxu0 0
      %408 = vmatpush.bf16.msra.mxu0 0
      %409 = vmatpush.bf16.msra.mxu0 0
      %410 = vmatpush.bf16.msra.mxu0 0
      %411 = vmatpush.bf16.msra.mxu0 0
      %412 = vmatpush.bf16.msra.mxu0 %v403
      %413 = vmatmul.bf16.gmra.mxu0 %v388
      %v414 = vpop.f32.mrf.mxu0
      %v415 = vadd.f32 %v341, %v414
      %v416 = vpop.f32.mrf.mxu0
      %v417 = vadd.f32 %v343, %v416
      %418 = vmatmul.bf16.gmra.mxu0 %v391
      %v419 = vpop.f32.mrf.mxu0
      %v420 = vadd.f32 %v346, %v419
      %v421 = vpop.f32.mrf.mxu0
      %v422 = vadd.f32 %v348, %v421
      %423 = vmatmul.bf16.gmra.mxu0 %v394
      %v424 = vpop.f32.mrf.mxu0
      %v425 = vadd.f32 %v351, %v424
      %v426 = vpop.f32.mrf.mxu0
      %v427 = vadd.f32 %v353, %v426
      %428 = vmatmul.bf16.gmra.mxu0 %v397
      %v429 = vpop.f32.mrf.mxu0
      %v430 = vadd.f32 %v356, %v429
      %v431 = vpop.f32.mrf.mxu0
      %v432 = vadd.f32 %v358, %v431
      %433 = vmatmul.bf16.gmra.mxu0 %v400
      %v434 = vpop.f32.mrf.mxu0
      %v435 = vadd.f32 %v361, %v434
      %v436 = vpop.f32.mrf.mxu0
      %437 = vdwg.mxu0
      %v438 = vld [vmem:[%s254] sm:$0xf]
      %v439 = vld [vmem:[%s254 + $0x4] sm:$0xf]
      %v440 = vld [vmem:[%s254 + $0x8] sm:$0xf]
      %v441 = vld [vmem:[%s254 + $0xc] sm:$0xf]
      %v442 = vld [vmem:[%s254 + $0x10] sm:$0xf]
      %v443 = vld [vmem:[%s254 + $0x14] sm:$0xf]
      %v444 = vld [vmem:[%s254 + $0x18] sm:$0xf]
      %v445 = vld [vmem:[%s254 + $0x1c] sm:$0xf]
      %v446 = vld [vmem:[%s254 + $0x20] sm:$0xf]
      %v447 = vld [vmem:[%s254 + $0x24] sm:$0x1]
      %s448 = scalar_lea.vmem %s1, 8
      %v449 = vld [vmem:[%s448] sm:$0xf]
      %v460 = vunpack.c.l.b16 %v438
      %v461 = vunpack.c.l.b16 %v439
      %v462 = vunpack.c.l.b16 %v440
      %v463 = vunpack.c.l.b16 %v441
      %v464 = vunpack.c.l.b16 %v442
      %v465 = vunpack.c.l.b16 %v443
      %v466 = vunpack.c.l.b16 %v444
      %v467 = vunpack.c.l.b16 %v445
      %v468 = vunpack.c.l.b16 %v446
      %v469 = vunpack.c.l.b16 %v447
      %v470 = vpack.c.b16 %v461, %v460
      %v471 = vpack.c.b16 %v463, %v462
      %v472 = vpack.c.b16 %v465, %v464
      %v473 = vpack.c.b16 %v467, %v466
      %v474 = vpack.c.b16 %v469, %v468
      %vm475 = vsmask.f32 7424
      %v477 = vshrl.u32 %v470, 16
      %v479 = vshll.u32 %v470, 16
      %v481 = vrot.slane %v479, 1
      %v482 = vor.u32 %v477, %v481
      %v484 = vshll.u32 %v471, 16
      %v486 = vrot.slane %v484, 1
      %v487 = vsel %vm475, %v482, %v486
      %v488 = vshrl.u32 %v471, 16
      %v490 = vor.u32 %v488, %v486
      %v492 = vshll.u32 %v472, 16
      %v494 = vrot.slane %v492, 1
      %v495 = vsel %vm475, %v490, %v494
      %v496 = vshrl.u32 %v472, 16
      %v498 = vor.u32 %v496, %v494
      %v500 = vshll.u32 %v473, 16
      %v502 = vrot.slane %v500, 1
      %v503 = vsel %vm475, %v498, %v502
      %v504 = vshrl.u32 %v473, 16
      %v506 = vor.u32 %v504, %v502
      %v508 = vshll.u32 %v474, 16
      %v510 = vrot.slane %v508, 1
      %v511 = vsel %vm475, %v506, %v510
      %v512 = vshrl.u32 %v474, 16
      %v514 = vor.u32 %v512, %v510
      %v516 = vsel %vm311, %v487, 0
      %v519 = vsel %vm311, %v495, 0
      %v522 = vsel %vm311, %v503, 0
      %v525 = vsel %vm311, %v511, 0
      %v528 = vsel %vm311, %v514, 0
      %v531 = vsel %vm327, %v449, 0
      %533 = vmatpush.bf16.msra.mxu0 0
      %534 = vmatpush.bf16.msra.mxu0 0
      %535 = vmatpush.bf16.msra.mxu0 0
      %536 = vmatpush.bf16.msra.mxu0 0
      %537 = vmatpush.bf16.msra.mxu0 0
      %538 = vmatpush.bf16.msra.mxu0 0
      %539 = vmatpush.bf16.msra.mxu0 0
      %540 = vmatpush.bf16.msra.mxu0 %v531
      %541 = vmatmul.bf16.gmra.mxu0 %v516
      %v542 = vpop.f32.mrf.mxu0
      %v543 = vadd.f32 0.0, %v542
      %v544 = vpop.f32.mrf.mxu0
      %v545 = vadd.f32 0.0, %v544
      %546 = vmatmul.bf16.gmra.mxu0 %v519
      %v547 = vpop.f32.mrf.mxu0
      %v548 = vadd.f32 0.0, %v547
      %v549 = vpop.f32.mrf.mxu0
      %v550 = vadd.f32 0.0, %v549
      %551 = vmatmul.bf16.gmra.mxu0 %v522
      %v552 = vpop.f32.mrf.mxu0
      %v553 = vadd.f32 0.0, %v552
      %v554 = vpop.f32.mrf.mxu0
      %v555 = vadd.f32 0.0, %v554
      %556 = vmatmul.bf16.gmra.mxu0 %v525
      %v557 = vpop.f32.mrf.mxu0
      %v558 = vadd.f32 0.0, %v557
      %v559 = vpop.f32.mrf.mxu0
      %v560 = vadd.f32 0.0, %v559
      %561 = vmatmul.bf16.gmra.mxu0 %v528
      %v562 = vpop.f32.mrf.mxu0
      %v563 = vadd.f32 0.0, %v562
      %v564 = vpop.f32.mrf.mxu0
      %565 = vdwg.mxu0
      %v566 = vadd.f32 %v415, %v543
      %v567 = vadd.f32 %v417, %v545
      %v568 = vadd.f32 %v420, %v548
      %v569 = vadd.f32 %v422, %v550
      %v570 = vadd.f32 %v425, %v553
      %v571 = vadd.f32 %v427, %v555
      %v572 = vadd.f32 %v430, %v558
      %v573 = vadd.f32 %v432, %v560
      %v574 = vadd.f32 %v435, %v563
      %s575 = scalar_lea.vmem %s254, 88
      %v576 = vld [vmem:[%s575] sm:$0xf]
      %v577 = vld [vmem:[%s575 + $0x4] sm:$0xf]
      %v578 = vld [vmem:[%s575 + $0x8] sm:$0xf]
      %v579 = vld [vmem:[%s575 + $0xc] sm:$0xf]
      %v580 = vld [vmem:[%s575 + $0x10] sm:$0xf]
      %v581 = vld [vmem:[%s575 + $0x14] sm:$0xf]
      %v582 = vld [vmem:[%s575 + $0x18] sm:$0xf]
      %v583 = vld [vmem:[%s575 + $0x1c] sm:$0xf]
      %v584 = vld [vmem:[%s575 + $0x20] sm:$0xf]
      %s585 = scalar_lea.vmem %s1, 12
      %v586 = vld [vmem:[%s585] sm:$0xf]
      %v596 = vunpack.c.l.b16 %v576
      %v597 = vunpack.c.l.b16 %v577
      %v598 = vunpack.c.l.b16 %v578
      %v599 = vunpack.c.l.b16 %v579
      %v600 = vunpack.c.l.b16 %v580
      %v601 = vunpack.c.l.b16 %v581
      %v602 = vunpack.c.l.b16 %v582
      %v603 = vunpack.c.l.b16 %v583
      %v604 = vunpack.c.l.b16 %v584
      %v605 = vpack.c.b16 %v597, %v596
      %v606 = vpack.c.b16 %v599, %v598
      %v607 = vpack.c.b16 %v601, %v600
      %v608 = vpack.c.b16 %v603, %v602
      %v609 = vpack.c.b16 %v604, %v604
      %v611 = vsel %vm311, %v605, 0
      %v614 = vsel %vm311, %v606, 0
      %v617 = vsel %vm311, %v607, 0
      %v620 = vsel %vm311, %v608, 0
      %v623 = vsel %vm311, %v609, 0
      %v626 = vsel %vm327, %v586, 0
      %628 = vmatpush.bf16.msra.mxu0 0
      %629 = vmatpush.bf16.msra.mxu0 0
      %630 = vmatpush.bf16.msra.mxu0 0
      %631 = vmatpush.bf16.msra.mxu0 0
      %632 = vmatpush.bf16.msra.mxu0 0
      %633 = vmatpush.bf16.msra.mxu0 0
      %634 = vmatpush.bf16.msra.mxu0 0
      %635 = vmatpush.bf16.msra.mxu0 %v626
      %636 = vmatmul.bf16.gmra.mxu0 %v611
      %v637 = vpop.f32.mrf.mxu0
      %v638 = vadd.f32 0.0, %v637
      %v639 = vpop.f32.mrf.mxu0
      %v640 = vadd.f32 0.0, %v639
      %641 = vmatmul.bf16.gmra.mxu0 %v614
      %v642 = vpop.f32.mrf.mxu0
      %v643 = vadd.f32 0.0, %v642
      %v644 = vpop.f32.mrf.mxu0
      %v645 = vadd.f32 0.0, %v644
      %646 = vmatmul.bf16.gmra.mxu0 %v617
      %v647 = vpop.f32.mrf.mxu0
      %v648 = vadd.f32 0.0, %v647
      %v649 = vpop.f32.mrf.mxu0
      %v650 = vadd.f32 0.0, %v649
      %651 = vmatmul.bf16.gmra.mxu0 %v620
      %v652 = vpop.f32.mrf.mxu0
      %v653 = vadd.f32 0.0, %v652
      %v654 = vpop.f32.mrf.mxu0
      %v655 = vadd.f32 0.0, %v654
      %656 = vmatmul.bf16.gmra.mxu0 %v623
      %v657 = vpop.f32.mrf.mxu0
      %v658 = vadd.f32 0.0, %v657
      %v659 = vpop.f32.mrf.mxu0
      %660 = vdwg.mxu0
      %v661 = vadd.f32 %v566, %v638
      %v662 = vadd.f32 %v567, %v640
      %v663 = vadd.f32 %v568, %v643
      %v664 = vadd.f32 %v569, %v645
      %v665 = vadd.f32 %v570, %v648
      %v666 = vadd.f32 %v571, %v650
      %v667 = vadd.f32 %v572, %v653
      %v668 = vadd.f32 %v573, %v655
      %v669 = vadd.f32 %v574, %v658
      %s670 = scalar_lea.vmem %s254, 132
      %v671 = vld [vmem:[%s670] sm:$0xf]
      %v672 = vld [vmem:[%s670 + $0x4] sm:$0xf]
      %v673 = vld [vmem:[%s670 + $0x8] sm:$0xf]
      %v674 = vld [vmem:[%s670 + $0xc] sm:$0xf]
      %v675 = vld [vmem:[%s670 + $0x10] sm:$0xf]
      %v676 = vld [vmem:[%s670 + $0x14] sm:$0xf]
      %v677 = vld [vmem:[%s670 + $0x18] sm:$0xf]
      %v678 = vld [vmem:[%s670 + $0x1c] sm:$0xf]
      %v679 = vld [vmem:[%s670 + $0x20] sm:$0xf]
      %s680 = scalar_lea.vmem %s1, 16
      %v681 = vld [vmem:[%s680] sm:$0xf]
      %v691 = vunpack.c.l.b16 %v671
      %v692 = vunpack.c.l.b16 %v672
      %v693 = vunpack.c.l.b16 %v673
      %v694 = vunpack.c.l.b16 %v674
      %v695 = vunpack.c.l.b16 %v675
      %v696 = vunpack.c.l.b16 %v676
      %v697 = vunpack.c.l.b16 %v677
      %v698 = vunpack.c.l.b16 %v678
      %v699 = vunpack.c.l.b16 %v679
      %v700 = vpack.c.b16 %v692, %v691
      %v701 = vpack.c.b16 %v694, %v693
      %v702 = vpack.c.b16 %v696, %v695
      %v703 = vpack.c.b16 %v698, %v697
      %v704 = vpack.c.b16 %v699, %v699
      %v706 = vsel %vm311, %v700, 0
      %v709 = vsel %vm311, %v701, 0
      %v712 = vsel %vm311, %v702, 0
      %v715 = vsel %vm311, %v703, 0
      %v718 = vsel %vm311, %v704, 0
      %v721 = vsel %vm327, %v681, 0
      %723 = vmatpush.bf16.msra.mxu0 0
      %724 = vmatpush.bf16.msra.mxu0 0
      %725 = vmatpush.bf16.msra.mxu0 0
      %726 = vmatpush.bf16.msra.mxu0 0
      %727 = vmatpush.bf16.msra.mxu0 0
      %728 = vmatpush.bf16.msra.mxu0 0
      %729 = vmatpush.bf16.msra.mxu0 0
      %730 = vmatpush.bf16.msra.mxu0 %v721
      %731 = vmatmul.bf16.gmra.mxu0 %v706
      %v732 = vpop.f32.mrf.mxu0
      %v733 = vadd.f32 0.0, %v732
      %v734 = vpop.f32.mrf.mxu0
      %v735 = vadd.f32 0.0, %v734
      %736 = vmatmul.bf16.gmra.mxu0 %v709
      %v737 = vpop.f32.mrf.mxu0
      %v738 = vadd.f32 0.0, %v737
      %v739 = vpop.f32.mrf.mxu0
      %v740 = vadd.f32 0.0, %v739
      %741 = vmatmul.bf16.gmra.mxu0 %v712
      %v742 = vpop.f32.mrf.mxu0
      %v743 = vadd.f32 0.0, %v742
      %v744 = vpop.f32.mrf.mxu0
      %v745 = vadd.f32 0.0, %v744
      %746 = vmatmul.bf16.gmra.mxu0 %v715
      %v747 = vpop.f32.mrf.mxu0
      %v748 = vadd.f32 0.0, %v747
      %v749 = vpop.f32.mrf.mxu0
      %v750 = vadd.f32 0.0, %v749
      %751 = vmatmul.bf16.gmra.mxu0 %v718
      %v752 = vpop.f32.mrf.mxu0
      %v753 = vadd.f32 0.0, %v752
      %v754 = vpop.f32.mrf.mxu0
      %755 = vdwg.mxu0
      %v756 = vadd.f32 %v661, %v733
      %v757 = vadd.f32 %v662, %v735
      %v758 = vadd.f32 %v663, %v738
      %v759 = vadd.f32 %v664, %v740
      %v760 = vadd.f32 %v665, %v743
      %v761 = vadd.f32 %v666, %v745
      %v762 = vadd.f32 %v667, %v748
      %v763 = vadd.f32 %v668, %v750
      %v764 = vadd.f32 %v669, %v753
      %v765 = vld [vmem:[%s575] sm:$0xf]
      %v766 = vld [vmem:[%s575 + $0x4] sm:$0xf]
      %v767 = vld [vmem:[%s575 + $0x8] sm:$0xf]
      %v768 = vld [vmem:[%s575 + $0xc] sm:$0xf]
      %v769 = vld [vmem:[%s575 + $0x10] sm:$0xf]
      %v770 = vld [vmem:[%s575 + $0x14] sm:$0xf]
      %v771 = vld [vmem:[%s575 + $0x18] sm:$0xf]
      %v772 = vld [vmem:[%s575 + $0x1c] sm:$0xf]
      %v773 = vld [vmem:[%s575 + $0x20] sm:$0xf]
      %v774 = vld [vmem:[%s575 + $0x24] sm:$0x1]
      %s775 = scalar_lea.vmem %s1, 20
      %v776 = vld [vmem:[%s775] sm:$0xf]
      %v787 = vunpack.c.l.b16 %v765
      %v788 = vunpack.c.l.b16 %v766
      %v789 = vunpack.c.l.b16 %v767
      %v790 = vunpack.c.l.b16 %v768
      %v791 = vunpack.c.l.b16 %v769
      %v792 = vunpack.c.l.b16 %v770
      %v793 = vunpack.c.l.b16 %v771
      %v794 = vunpack.c.l.b16 %v772
      %v795 = vunpack.c.l.b16 %v773
      %v796 = vunpack.c.l.b16 %v774
      %v797 = vpack.c.b16 %v788, %v787
      %v798 = vpack.c.b16 %v790, %v789
      %v799 = vpack.c.b16 %v792, %v791
      %v800 = vpack.c.b16 %v794, %v793
      %v801 = vpack.c.b16 %v796, %v795
      %v803 = vshrl.u32 %v797, 16
      %v805 = vshll.u32 %v797, 16
      %v807 = vrot.slane %v805, 1
      %v808 = vor.u32 %v803, %v807
      %v810 = vshll.u32 %v798, 16
      %v812 = vrot.slane %v810, 1
      %v813 = vsel %vm475, %v808, %v812
      %v814 = vshrl.u32 %v798, 16
      %v816 = vor.u32 %v814, %v812
      %v818 = vshll.u32 %v799, 16
      %v820 = vrot.slane %v818, 1
      %v821 = vsel %vm475, %v816, %v820
      %v822 = vshrl.u32 %v799, 16
      %v824 = vor.u32 %v822, %v820
      %v826 = vshll.u32 %v800, 16
      %v828 = vrot.slane %v826, 1
      %v829 = vsel %vm475, %v824, %v828
      %v830 = vshrl.u32 %v800, 16
      %v832 = vor.u32 %v830, %v828
      %v834 = vshll.u32 %v801, 16
      %v836 = vrot.slane %v834, 1
      %v837 = vsel %vm475, %v832, %v836
      %v838 = vshrl.u32 %v801, 16
      %v840 = vor.u32 %v838, %v836
      %v842 = vsel %vm311, %v813, 0
      %v845 = vsel %vm311, %v821, 0
      %v848 = vsel %vm311, %v829, 0
      %v851 = vsel %vm311, %v837, 0
      %v854 = vsel %vm311, %v840, 0
      %v857 = vsel %vm327, %v776, 0
      %859 = vmatpush.bf16.msra.mxu0 0
      %860 = vmatpush.bf16.msra.mxu0 0
      %861 = vmatpush.bf16.msra.mxu0 0
      %862 = vmatpush.bf16.msra.mxu0 0
      %863 = vmatpush.bf16.msra.mxu0 0
      %864 = vmatpush.bf16.msra.mxu0 0
      %865 = vmatpush.bf16.msra.mxu0 0
      %866 = vmatpush.bf16.msra.mxu0 %v857
      %867 = vmatmul.bf16.gmra.mxu0 %v842
      %v868 = vpop.f32.mrf.mxu0
      %v869 = vadd.f32 0.0, %v868
      %v870 = vpop.f32.mrf.mxu0
      %v871 = vadd.f32 0.0, %v870
      %872 = vmatmul.bf16.gmra.mxu0 %v845
      %v873 = vpop.f32.mrf.mxu0
      %v874 = vadd.f32 0.0, %v873
      %v875 = vpop.f32.mrf.mxu0
      %v876 = vadd.f32 0.0, %v875
      %877 = vmatmul.bf16.gmra.mxu0 %v848
      %v878 = vpop.f32.mrf.mxu0
      %v879 = vadd.f32 0.0, %v878
      %v880 = vpop.f32.mrf.mxu0
      %v881 = vadd.f32 0.0, %v880
      %882 = vmatmul.bf16.gmra.mxu0 %v851
      %v883 = vpop.f32.mrf.mxu0
      %v884 = vadd.f32 0.0, %v883
      %v885 = vpop.f32.mrf.mxu0
      %v886 = vadd.f32 0.0, %v885
      %887 = vmatmul.bf16.gmra.mxu0 %v854
      %v888 = vpop.f32.mrf.mxu0
      %v889 = vadd.f32 0.0, %v888
      %v890 = vpop.f32.mrf.mxu0
      %891 = vdwg.mxu0
      %v892 = vadd.f32 %v756, %v869
      %v893 = vadd.f32 %v757, %v871
      %v894 = vadd.f32 %v758, %v874
      %v895 = vadd.f32 %v759, %v876
      %v896 = vadd.f32 %v760, %v879
      %v897 = vadd.f32 %v761, %v881
      %v898 = vadd.f32 %v762, %v884
      %v899 = vadd.f32 %v763, %v886
      %v900 = vadd.f32 %v764, %v889
      %v901 = vld [vmem:[%s254 + $0x4] sm:$0xf]
      %v902 = vld [vmem:[%s254 + $0x8] sm:$0xf]
      %v903 = vld [vmem:[%s254 + $0xc] sm:$0xf]
      %v904 = vld [vmem:[%s254 + $0x10] sm:$0xf]
      %v905 = vld [vmem:[%s254 + $0x14] sm:$0xf]
      %v906 = vld [vmem:[%s254 + $0x18] sm:$0xf]
      %v907 = vld [vmem:[%s254 + $0x1c] sm:$0xf]
      %v908 = vld [vmem:[%s254 + $0x20] sm:$0xf]
      %v909 = vld [vmem:[%s254 + $0x24] sm:$0xf]
      %v910 = vld [vmem:[%s254 + $0x28] sm:$0x1]
      %s911 = scalar_lea.vmem %s1, 24
      %v912 = vld [vmem:[%s911] sm:$0xf]
      %v923 = vunpack.c.l.b16 %v901
      %v924 = vunpack.c.l.b16 %v902
      %v925 = vunpack.c.l.b16 %v903
      %v926 = vunpack.c.l.b16 %v904
      %v927 = vunpack.c.l.b16 %v905
      %v928 = vunpack.c.l.b16 %v906
      %v929 = vunpack.c.l.b16 %v907
      %v930 = vunpack.c.l.b16 %v908
      %v931 = vunpack.c.l.b16 %v909
      %v932 = vunpack.c.l.b16 %v910
      %v933 = vpack.c.b16 %v924, %v923
      %v934 = vpack.c.b16 %v926, %v925
      %v935 = vpack.c.b16 %v928, %v927
      %v936 = vpack.c.b16 %v930, %v929
      %v937 = vpack.c.b16 %v932, %v931
      %v939 = vshrl.u32 %v933, 16
      %v941 = vshll.u32 %v933, 16
      %v943 = vrot.slane %v941, 1
      %v944 = vor.u32 %v939, %v943
      %v946 = vshll.u32 %v934, 16
      %v948 = vrot.slane %v946, 1
      %v949 = vsel %vm475, %v944, %v948
      %v950 = vshrl.u32 %v934, 16
      %v952 = vor.u32 %v950, %v948
      %v954 = vshll.u32 %v935, 16
      %v956 = vrot.slane %v954, 1
      %v957 = vsel %vm475, %v952, %v956
      %v958 = vshrl.u32 %v935, 16
      %v960 = vor.u32 %v958, %v956
      %v962 = vshll.u32 %v936, 16
      %v964 = vrot.slane %v962, 1
      %v965 = vsel %vm475, %v960, %v964
      %v966 = vshrl.u32 %v936, 16
      %v968 = vor.u32 %v966, %v964
      %v970 = vshll.u32 %v937, 16
      %v972 = vrot.slane %v970, 1
      %v973 = vsel %vm475, %v968, %v972
      %v974 = vshrl.u32 %v937, 16
      %v976 = vor.u32 %v974, %v972
      %v978 = vsel %vm311, %v949, 0
      %v981 = vsel %vm311, %v957, 0
      %v984 = vsel %vm311, %v965, 0
      %v987 = vsel %vm311, %v973, 0
      %v990 = vsel %vm311, %v976, 0
      %v993 = vsel %vm327, %v912, 0
      %995 = vmatpush.bf16.msra.mxu0 0
      %996 = vmatpush.bf16.msra.mxu0 0
      %997 = vmatpush.bf16.msra.mxu0 0
      %998 = vmatpush.bf16.msra.mxu0 0
      %999 = vmatpush.bf16.msra.mxu0 0
      %1000 = vmatpush.bf16.msra.mxu0 0
      %1001 = vmatpush.bf16.msra.mxu0 0
      %1002 = vmatpush.bf16.msra.mxu0 %v993
      %1003 = vmatmul.bf16.gmra.mxu0 %v978
      %v1004 = vpop.f32.mrf.mxu0
      %v1005 = vadd.f32 0.0, %v1004
      %v1006 = vpop.f32.mrf.mxu0
      %v1007 = vadd.f32 0.0, %v1006
      %1008 = vmatmul.bf16.gmra.mxu0 %v981
      %v1009 = vpop.f32.mrf.mxu0
      %v1010 = vadd.f32 0.0, %v1009
      %v1011 = vpop.f32.mrf.mxu0
      %v1012 = vadd.f32 0.0, %v1011
      %1013 = vmatmul.bf16.gmra.mxu0 %v984
      %v1014 = vpop.f32.mrf.mxu0
      %v1015 = vadd.f32 0.0, %v1014
      %v1016 = vpop.f32.mrf.mxu0
      %v1017 = vadd.f32 0.0, %v1016
      %1018 = vmatmul.bf16.gmra.mxu0 %v987
      %v1019 = vpop.f32.mrf.mxu0
      %v1020 = vadd.f32 0.0, %v1019
      %v1021 = vpop.f32.mrf.mxu0
      %v1022 = vadd.f32 0.0, %v1021
      %1023 = vmatmul.bf16.gmra.mxu0 %v990
      %v1024 = vpop.f32.mrf.mxu0
      %v1025 = vadd.f32 0.0, %v1024
      %v1026 = vpop.f32.mrf.mxu0
      %1027 = vdwg.mxu0
      %v1028 = vadd.f32 %v892, %v1005
      %v1029 = vadd.f32 %v893, %v1007
      %v1030 = vadd.f32 %v894, %v1010
      %v1031 = vadd.f32 %v895, %v1012
      %v1032 = vadd.f32 %v896, %v1015
      %v1033 = vadd.f32 %v897, %v1017
      %v1034 = vadd.f32 %v898, %v1020
      %v1035 = vadd.f32 %v899, %v1022
      %v1036 = vadd.f32 %v900, %v1025
      %v1037 = vld [vmem:[%s276 + $0x4] sm:$0xf]
      %v1038 = vld [vmem:[%s276 + $0x8] sm:$0xf]
      %v1039 = vld [vmem:[%s276 + $0xc] sm:$0xf]
      %v1040 = vld [vmem:[%s276 + $0x10] sm:$0xf]
      %v1041 = vld [vmem:[%s276 + $0x14] sm:$0xf]
      %v1042 = vld [vmem:[%s276 + $0x18] sm:$0xf]
      %v1043 = vld [vmem:[%s276 + $0x1c] sm:$0xf]
      %v1044 = vld [vmem:[%s276 + $0x20] sm:$0xf]
      %v1045 = vld [vmem:[%s276 + $0x24] sm:$0xf]
      %v1046 = vld [vmem:[%s276 + $0x28] sm:$0x1]
      %s1047 = scalar_lea.vmem %s1, 28
      %v1048 = vld [vmem:[%s1047] sm:$0xf]
      %v1059 = vunpack.c.l.b16 %v1037
      %v1060 = vunpack.c.l.b16 %v1038
      %v1061 = vunpack.c.l.b16 %v1039
      %v1062 = vunpack.c.l.b16 %v1040
      %v1063 = vunpack.c.l.b16 %v1041
      %v1064 = vunpack.c.l.b16 %v1042
      %v1065 = vunpack.c.l.b16 %v1043
      %v1066 = vunpack.c.l.b16 %v1044
      %v1067 = vunpack.c.l.b16 %v1045
      %v1068 = vunpack.c.l.b16 %v1046
      %v1069 = vpack.c.b16 %v1060, %v1059
      %v1070 = vpack.c.b16 %v1062, %v1061
      %v1071 = vpack.c.b16 %v1064, %v1063
      %v1072 = vpack.c.b16 %v1066, %v1065
      %v1073 = vpack.c.b16 %v1068, %v1067
      %v1075 = vshrl.u32 %v1069, 16
      %v1077 = vshll.u32 %v1069, 16
      %v1079 = vrot.slane %v1077, 1
      %v1080 = vor.u32 %v1075, %v1079
      %v1082 = vshll.u32 %v1070, 16
      %v1084 = vrot.slane %v1082, 1
      %v1085 = vsel %vm475, %v1080, %v1084
      %v1086 = vshrl.u32 %v1070, 16
      %v1088 = vor.u32 %v1086, %v1084
      %v1090 = vshll.u32 %v1071, 16
      %v1092 = vrot.slane %v1090, 1
      %v1093 = vsel %vm475, %v1088, %v1092
      %v1094 = vshrl.u32 %v1071, 16
      %v1096 = vor.u32 %v1094, %v1092
      %v1098 = vshll.u32 %v1072, 16
      %v1100 = vrot.slane %v1098, 1
      %v1101 = vsel %vm475, %v1096, %v1100
      %v1102 = vshrl.u32 %v1072, 16
      %v1104 = vor.u32 %v1102, %v1100
      %v1106 = vshll.u32 %v1073, 16
      %v1108 = vrot.slane %v1106, 1
      %v1109 = vsel %vm475, %v1104, %v1108
      %v1110 = vshrl.u32 %v1073, 16
      %v1112 = vor.u32 %v1110, %v1108
      %v1114 = vsel %vm311, %v1085, 0
      %v1117 = vsel %vm311, %v1093, 0
      %v1120 = vsel %vm311, %v1101, 0
      %v1123 = vsel %vm311, %v1109, 0
      %v1126 = vsel %vm311, %v1112, 0
      %v1129 = vsel %vm327, %v1048, 0
      %1131 = vmatpush.bf16.msra.mxu0 0
      %1132 = vmatpush.bf16.msra.mxu0 0
      %1133 = vmatpush.bf16.msra.mxu0 0
      %1134 = vmatpush.bf16.msra.mxu0 0
      %1135 = vmatpush.bf16.msra.mxu0 0
      %1136 = vmatpush.bf16.msra.mxu0 0
      %1137 = vmatpush.bf16.msra.mxu0 0
      %1138 = vmatpush.bf16.msra.mxu0 %v1129
      %1139 = vmatmul.bf16.gmra.mxu0 %v1114
      %v1140 = vpop.f32.mrf.mxu0
      %v1141 = vadd.f32 0.0, %v1140
      %v1142 = vpop.f32.mrf.mxu0
      %v1143 = vadd.f32 0.0, %v1142
      %1144 = vmatmul.bf16.gmra.mxu0 %v1117
      %v1145 = vpop.f32.mrf.mxu0
      %v1146 = vadd.f32 0.0, %v1145
      %v1147 = vpop.f32.mrf.mxu0
      %v1148 = vadd.f32 0.0, %v1147
      %1149 = vmatmul.bf16.gmra.mxu0 %v1120
      %v1150 = vpop.f32.mrf.mxu0
      %v1151 = vadd.f32 0.0, %v1150
      %v1152 = vpop.f32.mrf.mxu0
      %v1153 = vadd.f32 0.0, %v1152
      %1154 = vmatmul.bf16.gmra.mxu0 %v1123
      %v1155 = vpop.f32.mrf.mxu0
      %v1156 = vadd.f32 0.0, %v1155
      %v1157 = vpop.f32.mrf.mxu0
      %v1158 = vadd.f32 0.0, %v1157
      %1159 = vmatmul.bf16.gmra.mxu0 %v1126
      %v1160 = vpop.f32.mrf.mxu0
      %v1161 = vadd.f32 0.0, %v1160
      %v1162 = vpop.f32.mrf.mxu0
      %1163 = vdwg.mxu0
      %v1164 = vadd.f32 %v1028, %v1141
      %v1165 = vadd.f32 %v1029, %v1143
      %v1166 = vadd.f32 %v1030, %v1146
      %v1167 = vadd.f32 %v1031, %v1148
      %v1168 = vadd.f32 %v1032, %v1151
      %v1169 = vadd.f32 %v1033, %v1153
      %v1170 = vadd.f32 %v1034, %v1156
      %v1171 = vadd.f32 %v1035, %v1158
      %v1172 = vadd.f32 %v1036, %v1161
      %v1173 = vld [vmem:[%s254 + $0x4] sm:$0xe]
      %s1174 = scalar_lea.vmem %s1, 32
      %v1175 = vld [vmem:[%s1174] sm:$0xf]
      %v1177 = vunpack.c.l.b16 %v1173
      %v1178 = vpack.c.b16 %v924, %v1177
      %vm1179 = vcmask 1046528
      %v1180 = vrot.slane %v1178, 1
      %v1181 = vrot.slane %v934, 1
      %v1182 = vsel %vm1179, %v1180, %v1181
      %v1183 = vrot.slane %v935, 1
      %v1184 = vsel %vm1179, %v1181, %v1183
      %v1185 = vrot.slane %v936, 1
      %v1186 = vsel %vm1179, %v1183, %v1185
      %v1187 = vrot.slane %v937, 1
      %v1188 = vsel %vm1179, %v1185, %v1187
      %v1190 = vsel %vm311, %v1182, 0
      %v1193 = vsel %vm311, %v1184, 0
      %v1196 = vsel %vm311, %v1186, 0
      %v1199 = vsel %vm311, %v1188, 0
      %v1202 = vsel %vm311, %v1187, 0
      %v1205 = vsel %vm327, %v1175, 0
      %1207 = vmatpush.bf16.msra.mxu0 0
      %1208 = vmatpush.bf16.msra.mxu0 0
      %1209 = vmatpush.bf16.msra.mxu0 0
      %1210 = vmatpush.bf16.msra.mxu0 0
      %1211 = vmatpush.bf16.msra.mxu0 0
      %1212 = vmatpush.bf16.msra.mxu0 0
      %1213 = vmatpush.bf16.msra.mxu0 0
      %1214 = vmatpush.bf16.msra.mxu0 %v1205
      %1215 = vmatmul.bf16.gmra.mxu0 %v1190
      %v1216 = vpop.f32.mrf.mxu0
      %v1217 = vadd.f32 0.0, %v1216
      %v1218 = vpop.f32.mrf.mxu0
      %v1219 = vadd.f32 0.0, %v1218
      %1220 = vmatmul.bf16.gmra.mxu0 %v1193
      %v1221 = vpop.f32.mrf.mxu0
      %v1222 = vadd.f32 0.0, %v1221
      %v1223 = vpop.f32.mrf.mxu0
      %v1224 = vadd.f32 0.0, %v1223
      %1225 = vmatmul.bf16.gmra.mxu0 %v1196
      %v1226 = vpop.f32.mrf.mxu0
      %v1227 = vadd.f32 0.0, %v1226
      %v1228 = vpop.f32.mrf.mxu0
      %v1229 = vadd.f32 0.0, %v1228
      %1230 = vmatmul.bf16.gmra.mxu0 %v1199
      %v1231 = vpop.f32.mrf.mxu0
      %v1232 = vadd.f32 0.0, %v1231
      %v1233 = vpop.f32.mrf.mxu0
      %v1234 = vadd.f32 0.0, %v1233
      %1235 = vmatmul.bf16.gmra.mxu0 %v1202
      %v1236 = vpop.f32.mrf.mxu0
      %v1237 = vadd.f32 0.0, %v1236
      %v1238 = vpop.f32.mrf.mxu0
      %1239 = vdwg.mxu0
      %v1240 = vadd.f32 %v1164, %v1217
      %v1241 = vadd.f32 %v1165, %v1219
      %v1242 = vadd.f32 %v1166, %v1222
      %v1243 = vadd.f32 %v1167, %v1224
      %v1244 = vadd.f32 %v1168, %v1227
      %v1245 = vadd.f32 %v1169, %v1229
      %v1246 = vadd.f32 %v1170, %v1232
      %v1247 = vadd.f32 %v1171, %v1234
      %v1248 = vadd.f32 %v1172, %v1237
      %v1249 = vld [vmem:[%s2] sm:$0x1]
      %v1250 = vperm.slane %v1249, 0
      %v1251 = vmul.f32 %v1240, %v1250
      %v1252 = vmul.f32 %v1241, %v1250
      %v1253 = vmul.f32 %v1242, %v1250
      %v1254 = vmul.f32 %v1243, %v1250
      %v1255 = vmul.f32 %v1244, %v1250
      %v1256 = vmul.f32 %v1245, %v1250
      %v1257 = vmul.f32 %v1246, %v1250
      %v1258 = vmul.f32 %v1247, %v1250
      %v1259 = vmul.f32 %v1248, %v1250
      %v1260 = vld [vmem:[%s2 + $0x1] sm:$0x1]
      %v1261 = vperm.slane %v1260, 0
      %v1262 = vadd.f32 %v1251, %v1261
      %v1263 = vadd.f32 %v1252, %v1261
      %v1264 = vadd.f32 %v1253, %v1261
      %v1265 = vadd.f32 %v1254, %v1261
      %v1266 = vadd.f32 %v1255, %v1261
      %v1267 = vadd.f32 %v1256, %v1261
      %v1268 = vadd.f32 %v1257, %v1261
      %v1269 = vadd.f32 %v1258, %v1261
      %v1270 = vadd.f32 %v1259, %v1261
      %v1271 = vmin.f32 %v1262, 20.0
      %v1272 = vmin.f32 %v1263, 20.0
      %v1273 = vmin.f32 %v1264, 20.0
      %v1274 = vmin.f32 %v1265, 20.0
      %v1275 = vmin.f32 %v1266, 20.0
      %v1276 = vmin.f32 %v1267, 20.0
      %v1277 = vmin.f32 %v1268, 20.0
      %v1278 = vmin.f32 %v1269, 20.0
      %v1279 = vmin.f32 %v1270, 20.0
      %v1280 = vmul.f32 %v1271, 1.442695
      %v1281 = vpow.pop %v1280
      %v1282 = vmul.f32 %v1272, 1.442695
      %v1283 = vpow.pop %v1282
      %v1284 = vmul.f32 %v1273, 1.442695
      %v1285 = vpow.pop %v1284
      %v1286 = vmul.f32 %v1274, 1.442695
      %v1287 = vpow.pop %v1286
      %v1288 = vmul.f32 %v1275, 1.442695
      %v1289 = vpow.pop %v1288
      %v1290 = vmul.f32 %v1276, 1.442695
      %v1291 = vpow.pop %v1290
      %v1292 = vmul.f32 %v1277, 1.442695
      %v1293 = vpow.pop %v1292
      %v1294 = vmul.f32 %v1278, 1.442695
      %v1295 = vpow.pop %v1294
      %v1296 = vmul.f32 %v1279, 1.442695
      %v1297 = vpow.pop %v1296
      %v1298 = vadd.f32 %v1281, 2.0
      %v1299 = vadd.f32 %v1283, 2.0
      %v1300 = vadd.f32 %v1285, 2.0
      %v1301 = vadd.f32 %v1287, 2.0
      %v1302 = vadd.f32 %v1289, 2.0
      %v1303 = vadd.f32 %v1291, 2.0
      %v1304 = vadd.f32 %v1293, 2.0
      %v1305 = vadd.f32 %v1295, 2.0
      %v1306 = vadd.f32 %v1297, 2.0
      %v1307 = vmul.f32 %v1281, %v1298
      %v1308 = vmul.f32 %v1283, %v1299
      %v1309 = vmul.f32 %v1285, %v1300
      %v1310 = vmul.f32 %v1287, %v1301
      %v1311 = vmul.f32 %v1289, %v1302
      %v1312 = vmul.f32 %v1291, %v1303
      %v1313 = vmul.f32 %v1293, %v1304
      %v1314 = vmul.f32 %v1295, %v1305
      %v1315 = vmul.f32 %v1297, %v1306
      %v1316 = vmul.f32 %v1262, %v1307
      %v1317 = vmul.f32 %v1263, %v1308
      %v1318 = vmul.f32 %v1264, %v1309
      %v1319 = vmul.f32 %v1265, %v1310
      %v1320 = vmul.f32 %v1266, %v1311
      %v1321 = vmul.f32 %v1267, %v1312
      %v1322 = vmul.f32 %v1268, %v1313
      %v1323 = vmul.f32 %v1269, %v1314
      %v1324 = vmul.f32 %v1270, %v1315
      %v1325 = vadd.f32 %v1307, 2.0
      %v1326 = vadd.f32 %v1308, 2.0
      %v1327 = vadd.f32 %v1309, 2.0
      %v1328 = vadd.f32 %v1310, 2.0
      %v1329 = vadd.f32 %v1311, 2.0
      %v1330 = vadd.f32 %v1312, 2.0
      %v1331 = vadd.f32 %v1313, 2.0
      %v1332 = vadd.f32 %v1314, 2.0
      %v1333 = vadd.f32 %v1315, 2.0
      %v1334 = vrcp.pop %v1325
      %v1335 = vrcp.pop %v1326
      %v1336 = vrcp.pop %v1327
      %v1337 = vrcp.pop %v1328
      %v1338 = vrcp.pop %v1329
      %v1339 = vrcp.pop %v1330
      %v1340 = vrcp.pop %v1331
      %v1341 = vrcp.pop %v1332
      %v1342 = vrcp.pop %v1333
      %v1343 = vmul.f32 %v1316, %v1334
      %v1344 = vmul.f32 %v1317, %v1335
      %v1345 = vmul.f32 %v1318, %v1336
      %v1346 = vmul.f32 %v1319, %v1337
      %v1347 = vmul.f32 %v1320, %v1338
      %v1348 = vmul.f32 %v1321, %v1339
      %v1349 = vmul.f32 %v1322, %v1340
      %v1350 = vmul.f32 %v1323, %v1341
      %v1351 = vmul.f32 %v1324, %v1342
      %vm1352 = vcmp.gt.f32.partialorder %v1262, 20.0
      %vm1353 = vcmp.gt.f32.partialorder %v1263, 20.0
      %vm1354 = vcmp.gt.f32.partialorder %v1264, 20.0
      %vm1355 = vcmp.gt.f32.partialorder %v1265, 20.0
      %vm1356 = vcmp.gt.f32.partialorder %v1266, 20.0
      %vm1357 = vcmp.gt.f32.partialorder %v1267, 20.0
      %vm1358 = vcmp.gt.f32.partialorder %v1268, 20.0
      %vm1359 = vcmp.gt.f32.partialorder %v1269, 20.0
      %vm1360 = vcmp.gt.f32.partialorder %v1270, 20.0
      %v1361 = vsel %vm1352, %v1262, %v1343
      %v1362 = vsel %vm1353, %v1263, %v1344
      %v1363 = vsel %vm1354, %v1264, %v1345
      %v1364 = vsel %vm1355, %v1265, %v1346
      %v1365 = vsel %vm1356, %v1266, %v1347
      %v1366 = vsel %vm1357, %v1267, %v1348
      %v1367 = vsel %vm1358, %v1268, %v1349
      %v1368 = vsel %vm1359, %v1269, %v1350
      %v1369 = vsel %vm1360, %v1270, %v1351
      %v1370 = vld [vmem:[%s3] sm:$0xf]
      %v1372 = vsel %vm327, %v1370, 0
      %1374 = vmatpush.bf16.msra.mxu0 0
      %1375 = vmatpush.bf16.msra.mxu0 0
      %1376 = vmatpush.bf16.msra.mxu0 0
      %1377 = vmatpush.bf16.msra.mxu0 0
      %1378 = vmatpush.bf16.msra.mxu0 0
      %1379 = vmatpush.bf16.msra.mxu0 0
      %1380 = vmatpush.bf16.msra.mxu0 0
      %1381 = vmatpush.bf16.msra.mxu0 %v1372
      %1382 = vmatmul.bf16.gmra.mxu0 %v842
      %v1383 = vpop.f32.mrf.mxu0
      %v1384 = vadd.f32 0.0, %v1383
      %v1385 = vpop.f32.mrf.mxu0
      %v1386 = vadd.f32 0.0, %v1385
      %1387 = vmatmul.bf16.gmra.mxu0 %v845
      %v1388 = vpop.f32.mrf.mxu0
      %v1389 = vadd.f32 0.0, %v1388
      %v1390 = vpop.f32.mrf.mxu0
      %v1391 = vadd.f32 0.0, %v1390
      %1392 = vmatmul.bf16.gmra.mxu0 %v848
      %v1393 = vpop.f32.mrf.mxu0
      %v1394 = vadd.f32 0.0, %v1393
      %v1395 = vpop.f32.mrf.mxu0
      %v1396 = vadd.f32 0.0, %v1395
      %1397 = vmatmul.bf16.gmra.mxu0 %v851
      %v1398 = vpop.f32.mrf.mxu0
      %v1399 = vadd.f32 0.0, %v1398
      %v1400 = vpop.f32.mrf.mxu0
      %v1401 = vadd.f32 0.0, %v1400
      %1402 = vmatmul.bf16.gmra.mxu0 %v854
      %v1403 = vpop.f32.mrf.mxu0
      %v1404 = vadd.f32 0.0, %v1403
      %v1405 = vpop.f32.mrf.mxu0
      %1406 = vdwg.mxu0
      %1407 = vmatpush.bf16.msra.mxu0 0
      %1408 = vmatpush.bf16.msra.mxu0 0
      %1409 = vmatpush.bf16.msra.mxu0 0
      %1410 = vmatpush.bf16.msra.mxu0 0
      %1411 = vmatpush.bf16.msra.mxu0 0
      %1412 = vmatpush.bf16.msra.mxu0 0
      %1413 = vmatpush.bf16.msra.mxu0 0
      %1414 = vmatpush.bf16.msra.mxu0 %v1372
      %1415 = vmatmul.bf16.gmra.mxu0 %v706
      %v1416 = vpop.f32.mrf.mxu0
      %v1417 = vadd.f32 %v1384, %v1416
      %v1418 = vpop.f32.mrf.mxu0
      %v1419 = vadd.f32 %v1386, %v1418
      %1420 = vmatmul.bf16.gmra.mxu0 %v709
      %v1421 = vpop.f32.mrf.mxu0
      %v1422 = vadd.f32 %v1389, %v1421
      %v1423 = vpop.f32.mrf.mxu0
      %v1424 = vadd.f32 %v1391, %v1423
      %1425 = vmatmul.bf16.gmra.mxu0 %v712
      %v1426 = vpop.f32.mrf.mxu0
      %v1427 = vadd.f32 %v1394, %v1426
      %v1428 = vpop.f32.mrf.mxu0
      %v1429 = vadd.f32 %v1396, %v1428
      %1430 = vmatmul.bf16.gmra.mxu0 %v715
      %v1431 = vpop.f32.mrf.mxu0
      %v1432 = vadd.f32 %v1399, %v1431
      %v1433 = vpop.f32.mrf.mxu0
      %v1434 = vadd.f32 %v1401, %v1433
      %1435 = vmatmul.bf16.gmra.mxu0 %v718
      %v1436 = vpop.f32.mrf.mxu0
      %v1437 = vadd.f32 %v1404, %v1436
      %v1438 = vpop.f32.mrf.mxu0
      %1439 = vdwg.mxu0
      %1440 = vmatpush.bf16.msra.mxu0 0
      %1441 = vmatpush.bf16.msra.mxu0 0
      %1442 = vmatpush.bf16.msra.mxu0 0
      %1443 = vmatpush.bf16.msra.mxu0 0
      %1444 = vmatpush.bf16.msra.mxu0 0
      %1445 = vmatpush.bf16.msra.mxu0 0
      %1446 = vmatpush.bf16.msra.mxu0 0
      %1447 = vmatpush.bf16.msra.mxu0 %v1372
      %1448 = vmatmul.bf16.gmra.mxu0 %v1114
      %v1449 = vpop.f32.mrf.mxu0
      %v1450 = vadd.f32 0.0, %v1449
      %v1451 = vpop.f32.mrf.mxu0
      %v1452 = vadd.f32 0.0, %v1451
      %1453 = vmatmul.bf16.gmra.mxu0 %v1117
      %v1454 = vpop.f32.mrf.mxu0
      %v1455 = vadd.f32 0.0, %v1454
      %v1456 = vpop.f32.mrf.mxu0
      %v1457 = vadd.f32 0.0, %v1456
      %1458 = vmatmul.bf16.gmra.mxu0 %v1120
      %v1459 = vpop.f32.mrf.mxu0
      %v1460 = vadd.f32 0.0, %v1459
      %v1461 = vpop.f32.mrf.mxu0
      %v1462 = vadd.f32 0.0, %v1461
      %1463 = vmatmul.bf16.gmra.mxu0 %v1123
      %v1464 = vpop.f32.mrf.mxu0
      %v1465 = vadd.f32 0.0, %v1464
      %v1466 = vpop.f32.mrf.mxu0
      %v1467 = vadd.f32 0.0, %v1466
      %1468 = vmatmul.bf16.gmra.mxu0 %v1126
      %v1469 = vpop.f32.mrf.mxu0
      %v1470 = vadd.f32 0.0, %v1469
      %v1471 = vpop.f32.mrf.mxu0
      %1472 = vdwg.mxu0
      %v1473 = vadd.f32 %v1417, %v1450
      %v1474 = vadd.f32 %v1419, %v1452
      %v1475 = vadd.f32 %v1422, %v1455
      %v1476 = vadd.f32 %v1424, %v1457
      %v1477 = vadd.f32 %v1427, %v1460
      %v1478 = vadd.f32 %v1429, %v1462
      %v1479 = vadd.f32 %v1432, %v1465
      %v1480 = vadd.f32 %v1434, %v1467
      %v1481 = vadd.f32 %v1437, %v1470
      %1482 = vmatpush.bf16.msra.mxu0 0
      %1483 = vmatpush.bf16.msra.mxu0 0
      %1484 = vmatpush.bf16.msra.mxu0 0
      %1485 = vmatpush.bf16.msra.mxu0 0
      %1486 = vmatpush.bf16.msra.mxu0 0
      %1487 = vmatpush.bf16.msra.mxu0 0
      %1488 = vmatpush.bf16.msra.mxu0 0
      %1489 = vmatpush.bf16.msra.mxu0 %v1372
      %1490 = vmatmul.bf16.gmra.mxu0 %v1190
      %v1491 = vpop.f32.mrf.mxu0
      %v1492 = vadd.f32 0.0, %v1491
      %v1493 = vpop.f32.mrf.mxu0
      %v1494 = vadd.f32 0.0, %v1493
      %1495 = vmatmul.bf16.gmra.mxu0 %v1193
      %v1496 = vpop.f32.mrf.mxu0
      %v1497 = vadd.f32 0.0, %v1496
      %v1498 = vpop.f32.mrf.mxu0
      %v1499 = vadd.f32 0.0, %v1498
      %1500 = vmatmul.bf16.gmra.mxu0 %v1196
      %v1501 = vpop.f32.mrf.mxu0
      %v1502 = vadd.f32 0.0, %v1501
      %v1503 = vpop.f32.mrf.mxu0
      %v1504 = vadd.f32 0.0, %v1503
      %1505 = vmatmul.bf16.gmra.mxu0 %v1199
      %v1506 = vpop.f32.mrf.mxu0
      %v1507 = vadd.f32 0.0, %v1506
      %v1508 = vpop.f32.mrf.mxu0
      %v1509 = vadd.f32 0.0, %v1508
      %1510 = vmatmul.bf16.gmra.mxu0 %v1202
      %v1511 = vpop.f32.mrf.mxu0
      %v1512 = vadd.f32 0.0, %v1511
      %v1513 = vpop.f32.mrf.mxu0
      %1514 = vdwg.mxu0
      %v1515 = vadd.f32 %v1473, %v1492
      %v1516 = vadd.f32 %v1474, %v1494
      %v1517 = vadd.f32 %v1475, %v1497
      %v1518 = vadd.f32 %v1476, %v1499
      %v1519 = vadd.f32 %v1477, %v1502
      %v1520 = vadd.f32 %v1478, %v1504
      %v1521 = vadd.f32 %v1479, %v1507
      %v1522 = vadd.f32 %v1480, %v1509
      %v1523 = vadd.f32 %v1481, %v1512
      %v1524 = vld [vmem:[%s4] sm:$0x1]
      %v1526 = vperm.slane %v1524, 0
      %v1528 = vadd.f32 %v1515, %v1526
      %v1529 = vadd.f32 %v1516, %v1526
      %v1530 = vadd.f32 %v1517, %v1526
      %v1531 = vadd.f32 %v1518, %v1526
      %v1532 = vadd.f32 %v1519, %v1526
      %v1533 = vadd.f32 %v1520, %v1526
      %v1534 = vadd.f32 %v1521, %v1526
      %v1535 = vadd.f32 %v1522, %v1526
      %v1536 = vadd.f32 %v1523, %v1526
      %v1537 = vpack.c.bf16 %v1528, %v1528
      %v1538 = vpack.c.bf16 %v1529, %v1529
      %v1539 = vpack.c.bf16 %v1530, %v1530
      %v1540 = vpack.c.bf16 %v1531, %v1531
      %v1541 = vpack.c.bf16 %v1532, %v1532
      %v1542 = vpack.c.bf16 %v1533, %v1533
      %v1543 = vpack.c.bf16 %v1534, %v1534
      %v1544 = vpack.c.bf16 %v1535, %v1535
      %v1545 = vpack.c.bf16 %v1536, %v1536
      %vm1546 = vcmask 125952
      %1547 = vst.msk [vmem:[%s264] sm:$0xf] %vm1546, %v1537
      %1548 = vst.msk [vmem:[%s264 + $0x4] sm:$0xf] %vm1546, %v1538
      %1549 = vst.msk [vmem:[%s264 + $0x8] sm:$0xf] %vm1546, %v1539
      %1550 = vst.msk [vmem:[%s264 + $0xc] sm:$0xf] %vm1546, %v1540
      %1551 = vst.msk [vmem:[%s264 + $0x10] sm:$0xf] %vm1546, %v1541
      %1552 = vst.msk [vmem:[%s264 + $0x14] sm:$0xf] %vm1546, %v1542
      %1553 = vst.msk [vmem:[%s264 + $0x18] sm:$0xf] %vm1546, %v1543
      %1554 = vst.msk [vmem:[%s264 + $0x1c] sm:$0xf] %vm1546, %v1544
      %1555 = vst.msk [vmem:[%s264 + $0x20] sm:$0xf] %vm1546, %v1545
      %v1556 = vpack.c.bf16 %v1361, %v1361
      %v1557 = vpack.c.bf16 %v1362, %v1362
      %v1558 = vpack.c.bf16 %v1363, %v1363
      %v1559 = vpack.c.bf16 %v1364, %v1364
      %v1560 = vpack.c.bf16 %v1365, %v1365
      %v1561 = vpack.c.bf16 %v1366, %v1366
      %v1562 = vpack.c.bf16 %v1367, %v1367
      %v1563 = vpack.c.bf16 %v1368, %v1368
      %v1564 = vpack.c.bf16 %v1369, %v1369
      %1565 = vst.msk [vmem:[%s259] sm:$0xf] %vm1546, %v1556
      %1566 = vst.msk [vmem:[%s259 + $0x4] sm:$0xf] %vm1546, %v1557
      %1567 = vst.msk [vmem:[%s259 + $0x8] sm:$0xf] %vm1546, %v1558
      %1568 = vst.msk [vmem:[%s259 + $0xc] sm:$0xf] %vm1546, %v1559
      %1569 = vst.msk [vmem:[%s259 + $0x10] sm:$0xf] %vm1546, %v1560
      %1570 = vst.msk [vmem:[%s259 + $0x14] sm:$0xf] %vm1546, %v1561
      %1571 = vst.msk [vmem:[%s259 + $0x18] sm:$0xf] %vm1546, %v1562
      %1572 = vst.msk [vmem:[%s259 + $0x1c] sm:$0xf] %vm1546, %v1563
      %1573 = vst.msk [vmem:[%s259 + $0x20] sm:$0xf] %vm1546, %v1564
      %p1574 = scmp.lt.s32.totalorder %s18, 1
      %s1575 = scalar_select %p1574, %s18, 1
      %s1576 = smul.addr %s1575, 9
      %s1577 = smul.addr %s1576, 4
      %s1578 = scalar_lea.vmem %s5, %s1577
      %p1579 = scmp.lt.s32.totalorder %s18, 1
      %s1580 = scalar_select %p1579, %s18, 1
      %s1581 = smul.addr %s1580, 9
      %s1582 = smul.addr %s1581, 4
      %s1583 = scalar_lea.vmem %s6, %s1582
      // Predicated region
      $region41: #{_lambda_.9} parent=39 // pred_check
        %p1584 = pneg %p146
      $region42: #{_lambda_.9} parent=39 // pred_check_branch
        %1586 = sbr.rel (%p1584) target = $region44
      $region43: #{_lambda_.9} parent=39 // pred_region
        _
      $region44: #{_lambda_.9} parent=39 // pred_fallthru
        _
      // Predicated region
      $region45: #{_lambda_.9} parent=39 // pred_check
        %p1587 = pneg %p172
      $region46: #{_lambda_.9} parent=39 // pred_check_branch
        %1589 = sbr.rel (%p1587) target = $region48
      $region47: #{_lambda_.9} parent=39 // pred_region
        _
      $region48: #{_lambda_.9} parent=39 // pred_fallthru
        _
    $region40: #{_lambda_.9} parent=5 // pred_fallthru
      _
    %p1590 = scmp.le.s32.totalorder 2, %s13
    // Predicated region
    $region49: #{_lambda_.9} parent=5 // pred_check
      %p1591 = pneg %p1590
    $region50: #{_lambda_.9} parent=5 // pred_check_branch
      %1593 = sbr.rel (%p1591) target = $region52
    $region51: #{_lambda_.9} parent=5 // pred_region
      %s1594 = ssub.s32 %s13, 2
      // Predicated region
      $region53: #{_lambda_.9} parent=51 // pred_check
        %p1595 = pneg %p152
      $region54: #{_lambda_.9} parent=51 // pred_check_branch
        %1597 = sbr.rel (%p1595) target = $region56
      $region55: #{_lambda_.9} parent=51 // pred_region
        %p1598 = scmp.lt.s32.totalorder %s19, 1
        %s1599 = scalar_select %p1598, %s19, 1
        %s1600 = smul.addr %s1599, 9
        %s1601 = smul.addr %s1600, 4
        %s1602 = scalar_lea.vmem %s5, %s1601
      $region56: #{_lambda_.9} parent=51 // pred_fallthru
        _
      // Predicated region
      $region57: #{_lambda_.9} parent=51 // pred_check
        %p1603 = pneg %p178
      $region58: #{_lambda_.9} parent=51 // pred_check_branch
        %1605 = sbr.rel (%p1603) target = $region60
      $region59: #{_lambda_.9} parent=51 // pred_region
        %p1606 = scmp.lt.s32.totalorder %s19, 1
        %s1607 = scalar_select %p1606, %s19, 1
        %s1608 = smul.addr %s1607, 9
        %s1609 = smul.addr %s1608, 4
        %s1610 = scalar_lea.vmem %s6, %s1609
      $region60: #{_lambda_.9} parent=51 // pred_fallthru
        _
    $region52: #{_lambda_.9} parent=5 // pred_fallthru
      _
  $region6: #{_lambda_.9} parent=0 // loop_footer
    %s17 = sadd.s32 1, %s13
  $region7: #{_lambda_.9} parent=0 // loop_footer_branch
    %12 = sbr.rel target = $region3
  $region8: #{_lambda_.9} parent=0 // loop_exit
    _

// kernel: _lambda_.8
$region0: #{_lambda_.8}
  #allocation0 [shape = 'u32[]', space=smem, size = 0x4, offset = 0x4, fixed_abs, tag = 'smem constant byte address 0x4 - core index']
  #allocation1 [shape = 'u32[72,128]{1,0:T(1,128)}', space=vmem, size = 0x9000, scoped, tag = 'internal scratch']
  %s0 = inlined_call_operand.vmem [shape: bf16[2,326,3], index: 0, kind: input, shape index: {}]
  %s1 = inlined_call_operand.vmem [shape: bf16[9,3,8], index: 1, kind: input, shape index: {}]
  %s2 = inlined_call_operand.vmem [shape: f32[2,8], index: 2, kind: input, shape index: {}]
  %s3 = inlined_call_operand.vmem [shape: bf16[2,288,8], index: 3, kind: output, shape index: {}]
  %s4 = sld [smem:[#allocation0]]
  $region45: #{_lambda_.8} parent=0
    _
  %s6 = ssub.s32 1, %s4
  %s7 = scalar_select 0, %s6, %s4
  loop: start=0, step=1, limit=4
  $region2: #{_lambda_.8} parent=0 // loop_pre_header
    _
  $region3: #{_lambda_.8} parent=0 // loop_header
    %s9 = sphi 0, %s13
    %p10 = scmp.ge.s32.totalorder %s9, 4
    %s19 = sphi 0, %s21
    %s22 = sphi 0, %s19
    %s23 = sphi 0, %s22
    %s39 = sphi 0, %s23
    %s43 = sphi 0, %s43
    %s45 = sphi 0, %s43
    %s46 = sphi 0, %s45
    %s60 = sphi 0, %s46
    %s64 = sphi 0, %s64
    %s66 = sphi 0, %s64
    %s67 = sphi 0, %s66
    %s81 = sphi 0, %s67
    %s87 = sphi 0, %s89
    %s90 = sphi 0, %s87
    %s91 = sphi 0, %s90
    %s107 = sphi 0, %s91
  $region4: #{_lambda_.8} parent=0 // loop_header_branch
    %12 = sbr.rel (%p10) target = $region8
  $region5: #{_lambda_.8} parent=0 // loop_body
    %s14 = ssub.s32 %s9, 1
    %s15 = ssub.s32 %s9, 2
    %s16 = sadd.s32 %s9, 1
    %s17 = ssub.s32 %s9, %s16
    %p18 = scmp.eq.s32.totalorder %s17, 0
    %s20 = sadd.s32 %s19, 1
    %s21 = scalar_select %p18, %s19, %s20
    %p24 = pneg %p18
    %p25 = scmp.eq.s32.totalorder %s9, 1
    %p26 = por %p24, %p25
    %p27 = scmp.ne.s32.totalorder %s19, %s22
    %p28 = scmp.eq.s32.totalorder %s9, 0
    %p29 = por %p27, %p28
    %p30 = scmp.ne.s32.totalorder %s19, %s22
    %p31 = scmp.eq.s32.totalorder %s14, 1
    %p32 = por %p30, %p31
    %p33 = scmp.ne.s32.totalorder %s22, %s23
    %p34 = scmp.eq.s32.totalorder %s14, 0
    %p35 = por %p33, %p34
    %p36 = scmp.ne.s32.totalorder %s22, %s23
    %p37 = scmp.eq.s32.totalorder %s15, 1
    %p38 = por %p36, %p37
    %p40 = scmp.ne.s32.totalorder %s23, %s39
    %p41 = scmp.eq.s32.totalorder %s15, 0
    %p42 = por %p40, %p41
    %s44 = sadd.s32 %s43, 1
    %p47 = scmp.eq.s32.totalorder %s9, 1
    %p48 = scmp.ne.s32.totalorder %s43, %s45
    %p49 = scmp.eq.s32.totalorder %s9, 0
    %p50 = por %p48, %p49
    %p51 = scmp.ne.s32.totalorder %s43, %s45
    %p52 = scmp.eq.s32.totalorder %s14, 1
    %p53 = por %p51, %p52
    %p54 = scmp.ne.s32.totalorder %s45, %s46
    %p55 = scmp.eq.s32.totalorder %s14, 0
    %p56 = por %p54, %p55
    %p57 = scmp.ne.s32.totalorder %s45, %s46
    %p58 = scmp.eq.s32.totalorder %s15, 1
    %p59 = por %p57, %p58
    %p61 = scmp.ne.s32.totalorder %s46, %s60
    %p62 = scmp.eq.s32.totalorder %s15, 0
    %p63 = por %p61, %p62
    %s65 = sadd.s32 %s64, 1
    %p68 = scmp.eq.s32.totalorder %s9, 1
    %p69 = scmp.ne.s32.totalorder %s64, %s66
    %p70 = scmp.eq.s32.totalorder %s9, 0
    %p71 = por %p69, %p70
    %p72 = scmp.ne.s32.totalorder %s64, %s66
    %p73 = scmp.eq.s32.totalorder %s14, 1
    %p74 = por %p72, %p73
    %p75 = scmp.ne.s32.totalorder %s66, %s67
    %p76 = scmp.eq.s32.totalorder %s14, 0
    %p77 = por %p75, %p76
    %p78 = scmp.ne.s32.totalorder %s66, %s67
    %p79 = scmp.eq.s32.totalorder %s15, 1
    %p80 = por %p78, %p79
    %p82 = scmp.ne.s32.totalorder %s67, %s81
    %p83 = scmp.eq.s32.totalorder %s15, 0
    %p84 = por %p82, %p83
    %s85 = ssub.s32 %s9, %s16
    %p86 = scmp.eq.s32.totalorder %s85, 0
    %s88 = sadd.s32 %s87, 1
    %s89 = scalar_select %p86, %s87, %s88
    %p92 = pneg %p86
    %p93 = scmp.eq.s32.totalorder %s9, 1
    %p94 = por %p92, %p93
    %p95 = scmp.ne.s32.totalorder %s87, %s90
    %p96 = scmp.eq.s32.totalorder %s9, 0
    %p97 = por %p95, %p96
    %p98 = scmp.ne.s32.totalorder %s87, %s90
    %p99 = scmp.eq.s32.totalorder %s14, 1
    %p100 = por %p98, %p99
    %p101 = scmp.ne.s32.totalorder %s90, %s91
    %p102 = scmp.eq.s32.totalorder %s14, 0
    %p103 = por %p101, %p102
    %p104 = scmp.ne.s32.totalorder %s90, %s91
    %p105 = scmp.eq.s32.totalorder %s15, 1
    %p106 = por %p104, %p105
    %p108 = scmp.ne.s32.totalorder %s91, %s107
    %p109 = scmp.eq.s32.totalorder %s15, 0
    %p110 = por %p108, %p109
    %p111 = scmp.le.s32.totalorder 1, %s9
    %p112 = scmp.lt.s32.totalorder %s9, 3
    %p113 = pnand %p111, %p112
    %p114 = pneg %p113
    // Predicated region
    $region9: #{_lambda_.8} parent=5 // pred_check
      _
    $region10: #{_lambda_.8} parent=5 // pred_check_branch
      %116 = sbr.rel (%p113) target = $region12
    $region11: #{_lambda_.8} parent=5 // pred_region
      %s117 = ssub.s32 %s9, 1
      // Predicated region
      $region13: #{_lambda_.8} parent=11 // pred_check
        %p118 = pneg %p56
      $region14: #{_lambda_.8} parent=11 // pred_check_branch
        %120 = sbr.rel (%p118) target = $region16
      $region15: #{_lambda_.8} parent=11 // pred_region
        _
      $region16: #{_lambda_.8} parent=11 // pred_fallthru
        _
      // Predicated region
      $region17: #{_lambda_.8} parent=11 // pred_check
        %p121 = pneg %p77
      $region18: #{_lambda_.8} parent=11 // pred_check_branch
        %123 = sbr.rel (%p121) target = $region20
      $region19: #{_lambda_.8} parent=11 // pred_region
        _
      $region20: #{_lambda_.8} parent=11 // pred_fallthru
        _
    $region12: #{_lambda_.8} parent=5 // pred_fallthru
      _
    %p124 = scmp.lt.s32.totalorder %s9, 2
    // Predicated region
    $region21: #{_lambda_.8} parent=5 // pred_check
      %p125 = pneg %p124
    $region22: #{_lambda_.8} parent=5 // pred_check_branch
      %127 = sbr.rel (%p125) target = $region24
    $region23: #{_lambda_.8} parent=5 // pred_region
      // Predicated region
      $region25: #{_lambda_.8} parent=23 // pred_check
        %p128 = pneg %p29
      $region26: #{_lambda_.8} parent=23 // pred_check_branch
        %130 = sbr.rel (%p128) target = $region28
      $region27: #{_lambda_.8} parent=23 // pred_region
        %p131 = scmp.lt.s32.totalorder %s9, 1
        %s132 = scalar_select %p131, %s9, 1
        %s133 = smul.addr %s132, 41
        %s134 = smul.addr %s133, 4
        %s135 = scalar_lea.vmem %s0, %s134
      $region28: #{_lambda_.8} parent=23 // pred_fallthru
        _
    $region24: #{_lambda_.8} parent=5 // pred_fallthru
      _
    %p136 = scmp.le.s32.totalorder 1, %s9
    %p137 = scmp.lt.s32.totalorder %s9, 3
    %p138 = pnand %p136, %p137
    %p139 = pneg %p138
    // Predicated region
    $region29: #{_lambda_.8} parent=5 // pred_check
      _
    $region30: #{_lambda_.8} parent=5 // pred_check_branch
      %141 = sbr.rel (%p138) target = $region32
    $region31: #{_lambda_.8} parent=5 // pred_region
      %s142 = ssub.s32 %s9, 1
      %p143 = scmp.lt.s32.totalorder %s14, 1
      %s144 = scalar_select %p143, %s14, 1
      %s145 = smul.addr %s144, 41
      %s146 = smul.addr %s145, 4
      %s147 = scalar_lea.vmem %s0, %s146
      %p148 = pneg %p35
      %p149 = pneg %p32
      %p150 = pneg %p56
      %p151 = pneg %p53
      %p152 = pneg %p77
      %p153 = pneg %p74
      %p154 = pneg %p103
      %p155 = pneg %p100
      %p156 = scmp.lt.s32.totalorder %s14, 1
      %s157 = scalar_select %p156, %s14, 1
      %s158 = smul.addr %s157, 36
      %s159 = smul.addr %s158, 4
      %s160 = scalar_lea.vmem %s3, %s159
      %p161 = scmp.lt.s32.totalorder %s14, 1
      %s162 = scalar_select %p161, %s14, 1
      %s163 = smul.addr %s162, 41
      %s164 = smul.addr %s163, 4
      %s165 = scalar_lea.vmem %s0, %s164
      %p166 = scmp.lt.s32.totalorder %s14, 1
      %s167 = scalar_select %p166, %s14, 1
      %s168 = smul.addr %s167, 36
      %s169 = smul.addr %s168, 4
      %s170 = scalar_lea.vmem %s3, %s169
      %v172 = vld [vmem:[%s165] sm:$0xf]
      %v173 = vld [vmem:[%s165 + $0x4] sm:$0xf]
      %v174 = vld [vmem:[%s165 + $0x8] sm:$0xf]
      %v175 = vld [vmem:[%s165 + $0xc] sm:$0xf]
      %v176 = vld [vmem:[%s165 + $0x10] sm:$0xf]
      %v177 = vld [vmem:[%s165 + $0x14] sm:$0xf]
      %v178 = vld [vmem:[%s165 + $0x18] sm:$0xf]
      %v179 = vld [vmem:[%s165 + $0x1c] sm:$0xf]
      %v180 = vld [vmem:[%s165 + $0x20] sm:$0xf]
      %v181 = vld [vmem:[%s165 + $0x24] sm:$0xf]
      %v182 = vld [vmem:[%s165 + $0x28] sm:$0xf]
      %v183 = vld [vmem:[%s165 + $0x2c] sm:$0xf]
      %v184 = vld [vmem:[%s165 + $0x30] sm:$0xf]
      %v185 = vld [vmem:[%s165 + $0x34] sm:$0xf]
      %v186 = vld [vmem:[%s165 + $0x38] sm:$0xf]
      %v187 = vld [vmem:[%s165 + $0x3c] sm:$0xf]
      %v188 = vld [vmem:[%s165 + $0x40] sm:$0xf]
      %v189 = vld [vmem:[%s165 + $0x44] sm:$0xf]
      %v190 = vld [vmem:[%s165 + $0x48] sm:$0xf]
      %v191 = vld [vmem:[%s165 + $0x4c] sm:$0xf]
      %v192 = vld [vmem:[%s165 + $0x50] sm:$0xf]
      %v193 = vld [vmem:[%s165 + $0x54] sm:$0xf]
      %v194 = vld [vmem:[%s165 + $0x58] sm:$0xf]
      %v195 = vld [vmem:[%s165 + $0x5c] sm:$0xf]
      %v196 = vld [vmem:[%s165 + $0x60] sm:$0xf]
      %v197 = vld [vmem:[%s165 + $0x64] sm:$0xf]
      %v198 = vld [vmem:[%s165 + $0x68] sm:$0xf]
      %v199 = vld [vmem:[%s165 + $0x6c] sm:$0xf]
      %v200 = vld [vmem:[%s165 + $0x70] sm:$0xf]
      %v201 = vld [vmem:[%s165 + $0x74] sm:$0xf]
      %v202 = vld [vmem:[%s165 + $0x78] sm:$0xf]
      %v203 = vld [vmem:[%s165 + $0x7c] sm:$0xf]
      %v204 = vld [vmem:[%s165 + $0x80] sm:$0xf]
      %v205 = vld [vmem:[%s165 + $0x84] sm:$0xf]
      %v206 = vld [vmem:[%s165 + $0x88] sm:$0xf]
      %v207 = vld [vmem:[%s165 + $0x8c] sm:$0xf]
      %v208 = vld [vmem:[%s1] sm:$0x3]
      %v209 = vld [vmem:[%s165 + $0x90] sm:$0x1]
      %s210 = scalar_lea.vmem %s1, 2
      %v211 = vld [vmem:[%s210] sm:$0x3]
      %v249 = vunpack.c.l.b16 %v172
      %v250 = vunpack.c.l.b16 %v173
      %v251 = vunpack.c.l.b16 %v174
      %v252 = vunpack.c.l.b16 %v175
      %v253 = vunpack.c.l.b16 %v176
      %v254 = vunpack.c.l.b16 %v177
      %v255 = vunpack.c.l.b16 %v178
      %v256 = vunpack.c.l.b16 %v179
      %v257 = vunpack.c.l.b16 %v180
      %v258 = vunpack.c.l.b16 %v181
      %v259 = vunpack.c.l.b16 %v182
      %v260 = vunpack.c.l.b16 %v183
      %v261 = vunpack.c.l.b16 %v184
      %v262 = vunpack.c.l.b16 %v185
      %v263 = vunpack.c.l.b16 %v186
      %v264 = vunpack.c.l.b16 %v187
      %v265 = vunpack.c.l.b16 %v188
      %v266 = vunpack.c.l.b16 %v189
      %v267 = vunpack.c.l.b16 %v190
      %v268 = vunpack.c.l.b16 %v191
      %v269 = vunpack.c.l.b16 %v192
      %v270 = vunpack.c.l.b16 %v193
      %v271 = vunpack.c.l.b16 %v194
      %v272 = vunpack.c.l.b16 %v195
      %v273 = vunpack.c.l.b16 %v196
      %v274 = vunpack.c.l.b16 %v197
      %v275 = vunpack.c.l.b16 %v198
      %v276 = vunpack.c.l.b16 %v199
      %v277 = vunpack.c.l.b16 %v200
      %v278 = vunpack.c.l.b16 %v201
      %v279 = vunpack.c.l.b16 %v202
      %v280 = vunpack.c.l.b16 %v203
      %v281 = vunpack.c.l.b16 %v204
      %v282 = vunpack.c.l.b16 %v205
      %v283 = vunpack.c.l.b16 %v206
      %v284 = vunpack.c.l.b16 %v207
      %v285 = vunpack.c.l.b16 %v209
      %v286 = vpack.c.b16 %v250, %v249
      %v287 = vpack.c.b16 %v252, %v251
      %v288 = vpack.c.b16 %v254, %v253
      %v289 = vpack.c.b16 %v256, %v255
      %v290 = vpack.c.b16 %v258, %v257
      %v291 = vpack.c.b16 %v260, %v259
      %v292 = vpack.c.b16 %v262, %v261
      %v293 = vpack.c.b16 %v264, %v263
      %v294 = vpack.c.b16 %v266, %v265
      %v295 = vpack.c.b16 %v268, %v267
      %v296 = vpack.c.b16 %v270, %v269
      %v297 = vpack.c.b16 %v272, %v271
      %v298 = vpack.c.b16 %v274, %v273
      %v299 = vpack.c.b16 %v276, %v275
      %v300 = vpack.c.b16 %v278, %v277
      %v301 = vpack.c.b16 %v280, %v279
      %v302 = vpack.c.b16 %v282, %v281
      %v303 = vpack.c.b16 %v284, %v283
      %v304 = vpack.c.b16 %v285, %v285
      %vm305 = vsmask.f32 7424
      %v307 = vshrl.u32 %v286, 16
      %v309 = vshll.u32 %v286, 16
      %v311 = vrot.slane %v309, 1
      %v312 = vor.u32 %v307, %v311
      %v314 = vshll.u32 %v287, 16
      %v316 = vrot.slane %v314, 1
      %v317 = vsel %vm305, %v312, %v316
      %v318 = vshrl.u32 %v287, 16
      %v320 = vor.u32 %v318, %v316
      %v322 = vshll.u32 %v288, 16
      %v324 = vrot.slane %v322, 1
      %v325 = vsel %vm305, %v320, %v324
      %v326 = vshrl.u32 %v288, 16
      %v328 = vor.u32 %v326, %v324
      %v330 = vshll.u32 %v289, 16
      %v332 = vrot.slane %v330, 1
      %v333 = vsel %vm305, %v328, %v332
      %v334 = vshrl.u32 %v289, 16
      %v336 = vor.u32 %v334, %v332
      %v338 = vshll.u32 %v290, 16
      %v340 = vrot.slane %v338, 1
      %v341 = vsel %vm305, %v336, %v340
      %v342 = vshrl.u32 %v290, 16
      %v344 = vor.u32 %v342, %v340
      %v346 = vshll.u32 %v291, 16
      %v348 = vrot.slane %v346, 1
      %v349 = vsel %vm305, %v344, %v348
      %v350 = vshrl.u32 %v291, 16
      %v352 = vor.u32 %v350, %v348
      %v354 = vshll.u32 %v292, 16
      %v356 = vrot.slane %v354, 1
      %v357 = vsel %vm305, %v352, %v356
      %v358 = vshrl.u32 %v292, 16
      %v360 = vor.u32 %v358, %v356
      %v362 = vshll.u32 %v293, 16
      %v364 = vrot.slane %v362, 1
      %v365 = vsel %vm305, %v360, %v364
      %v366 = vshrl.u32 %v293, 16
      %v368 = vor.u32 %v366, %v364
      %v370 = vshll.u32 %v294, 16
      %v372 = vrot.slane %v370, 1
      %v373 = vsel %vm305, %v368, %v372
      %v374 = vshrl.u32 %v294, 16
      %v376 = vor.u32 %v374, %v372
      %v378 = vshll.u32 %v295, 16
      %v380 = vrot.slane %v378, 1
      %v381 = vsel %vm305, %v376, %v380
      %v382 = vshrl.u32 %v295, 16
      %v384 = vor.u32 %v382, %v380
      %v386 = vshll.u32 %v296, 16
      %v388 = vrot.slane %v386, 1
      %v389 = vsel %vm305, %v384, %v388
      %v390 = vshrl.u32 %v296, 16
      %v392 = vor.u32 %v390, %v388
      %v394 = vshll.u32 %v297, 16
      %v396 = vrot.slane %v394, 1
      %v397 = vsel %vm305, %v392, %v396
      %v398 = vshrl.u32 %v297, 16
      %v400 = vor.u32 %v398, %v396
      %v402 = vshll.u32 %v298, 16
      %v404 = vrot.slane %v402, 1
      %v405 = vsel %vm305, %v400, %v404
      %v406 = vshrl.u32 %v298, 16
      %v408 = vor.u32 %v406, %v404
      %v410 = vshll.u32 %v299, 16
      %v412 = vrot.slane %v410, 1
      %v413 = vsel %vm305, %v408, %v412
      %v414 = vshrl.u32 %v299, 16
      %v416 = vor.u32 %v414, %v412
      %v418 = vshll.u32 %v300, 16
      %v420 = vrot.slane %v418, 1
      %v421 = vsel %vm305, %v416, %v420
      %v422 = vshrl.u32 %v300, 16
      %v424 = vor.u32 %v422, %v420
      %v426 = vshll.u32 %v301, 16
      %v428 = vrot.slane %v426, 1
      %v429 = vsel %vm305, %v424, %v428
      %v430 = vshrl.u32 %v301, 16
      %v432 = vor.u32 %v430, %v428
      %v434 = vshll.u32 %v302, 16
      %v436 = vrot.slane %v434, 1
      %v437 = vsel %vm305, %v432, %v436
      %v438 = vshrl.u32 %v302, 16
      %v440 = vor.u32 %v438, %v436
      %v442 = vshll.u32 %v303, 16
      %v444 = vrot.slane %v442, 1
      %v445 = vsel %vm305, %v440, %v444
      %v446 = vshrl.u32 %v303, 16
      %v448 = vor.u32 %v446, %v444
      %v450 = vshll.u32 %v304, 16
      %v452 = vrot.slane %v450, 1
      %v453 = vsel %vm305, %v448, %v452
      %vm454 = vcmask 23552
      %v456 = vsel %vm454, %v317, 0
      %v459 = vsel %vm454, %v325, 0
      %v462 = vsel %vm454, %v333, 0
      %v465 = vsel %vm454, %v341, 0
      %v468 = vsel %vm454, %v349, 0
      %v471 = vsel %vm454, %v357, 0
      %v474 = vsel %vm454, %v365, 0
      %v477 = vsel %vm454, %v373, 0
      %v480 = vsel %vm454, %v381, 0
      %v483 = vsel %vm454, %v389, 0
      %v486 = vsel %vm454, %v397, 0
      %v489 = vsel %vm454, %v405, 0
      %v492 = vsel %vm454, %v413, 0
      %v495 = vsel %vm454, %v421, 0
      %v498 = vsel %vm454, %v429, 0
      %v501 = vsel %vm454, %v437, 0
      %v504 = vsel %vm454, %v445, 0
      %v507 = vsel %vm454, %v453, 0
      %vm509 = vcmask 1040384
      %vm510 = vcmask 1041408
      %v511 = vsel %vm509, 4294967295, 65535
      %v512 = vsel %vm510, %v511, 0
      %v514 = vand.u32 %v211, %v512
      %516 = vmatpush.bf16.msra.mxu0 0
      %517 = vmatpush.bf16.msra.mxu0 0
      %518 = vmatpush.bf16.msra.mxu0 0
      %519 = vmatpush.bf16.msra.mxu0 0
      %520 = vmatpush.bf16.msra.mxu0 0
      %521 = vmatpush.bf16.msra.mxu0 0
      %522 = vmatpush.bf16.msra.mxu0 0
      %523 = vmatpush.bf16.msra.mxu0 %v514
      %524 = vmatmul.bf16.gmra.mxu0 %v456
      %v525 = vpop.f32.mrf.mxu0
      %v526 = vadd.f32 0.0, %v525
      %v527 = vpop.f32.mrf.mxu0
      %v528 = vadd.f32 0.0, %v527
      %529 = vmatmul.bf16.gmra.mxu0 %v459
      %v530 = vpop.f32.mrf.mxu0
      %v531 = vadd.f32 0.0, %v530
      %v532 = vpop.f32.mrf.mxu0
      %v533 = vadd.f32 0.0, %v532
      %534 = vmatmul.bf16.gmra.mxu0 %v462
      %v535 = vpop.f32.mrf.mxu0
      %v536 = vadd.f32 0.0, %v535
      %v537 = vpop.f32.mrf.mxu0
      %v538 = vadd.f32 0.0, %v537
      %539 = vmatmul.bf16.gmra.mxu0 %v465
      %v540 = vpop.f32.mrf.mxu0
      %v541 = vadd.f32 0.0, %v540
      %v542 = vpop.f32.mrf.mxu0
      %v543 = vadd.f32 0.0, %v542
      %544 = vmatmul.bf16.gmra.mxu0 %v468
      %v545 = vpop.f32.mrf.mxu0
      %v546 = vadd.f32 0.0, %v545
      %v547 = vpop.f32.mrf.mxu0
      %v548 = vadd.f32 0.0, %v547
      %549 = vmatmul.bf16.gmra.mxu0 %v471
      %v550 = vpop.f32.mrf.mxu0
      %v551 = vadd.f32 0.0, %v550
      %v552 = vpop.f32.mrf.mxu0
      %v553 = vadd.f32 0.0, %v552
      %554 = vmatmul.bf16.gmra.mxu0 %v474
      %v555 = vpop.f32.mrf.mxu0
      %v556 = vadd.f32 0.0, %v555
      %v557 = vpop.f32.mrf.mxu0
      %v558 = vadd.f32 0.0, %v557
      %559 = vmatmul.bf16.gmra.mxu0 %v477
      %v560 = vpop.f32.mrf.mxu0
      %v561 = vadd.f32 0.0, %v560
      %v562 = vpop.f32.mrf.mxu0
      %v563 = vadd.f32 0.0, %v562
      %564 = vmatmul.bf16.gmra.mxu0 %v480
      %v565 = vpop.f32.mrf.mxu0
      %v566 = vadd.f32 0.0, %v565
      %v567 = vpop.f32.mrf.mxu0
      %v568 = vadd.f32 0.0, %v567
      %569 = vmatmul.bf16.gmra.mxu0 %v483
      %v570 = vpop.f32.mrf.mxu0
      %v571 = vadd.f32 0.0, %v570
      %v572 = vpop.f32.mrf.mxu0
      %v573 = vadd.f32 0.0, %v572
      %574 = vmatmul.bf16.gmra.mxu0 %v486
      %v575 = vpop.f32.mrf.mxu0
      %v576 = vadd.f32 0.0, %v575
      %v577 = vpop.f32.mrf.mxu0
      %v578 = vadd.f32 0.0, %v577
      %579 = vmatmul.bf16.gmra.mxu0 %v489
      %v580 = vpop.f32.mrf.mxu0
      %v581 = vadd.f32 0.0, %v580
      %v582 = vpop.f32.mrf.mxu0
      %v583 = vadd.f32 0.0, %v582
      %584 = vmatmul.bf16.gmra.mxu0 %v492
      %v585 = vpop.f32.mrf.mxu0
      %v586 = vadd.f32 0.0, %v585
      %v587 = vpop.f32.mrf.mxu0
      %v588 = vadd.f32 0.0, %v587
      %589 = vmatmul.bf16.gmra.mxu0 %v495
      %v590 = vpop.f32.mrf.mxu0
      %v591 = vadd.f32 0.0, %v590
      %v592 = vpop.f32.mrf.mxu0
      %v593 = vadd.f32 0.0, %v592
      %594 = vmatmul.bf16.gmra.mxu0 %v498
      %v595 = vpop.f32.mrf.mxu0
      %v596 = vadd.f32 0.0, %v595
      %v597 = vpop.f32.mrf.mxu0
      %v598 = vadd.f32 0.0, %v597
      %599 = vmatmul.bf16.gmra.mxu0 %v501
      %v600 = vpop.f32.mrf.mxu0
      %v601 = vadd.f32 0.0, %v600
      %v602 = vpop.f32.mrf.mxu0
      %v603 = vadd.f32 0.0, %v602
      %604 = vmatmul.bf16.gmra.mxu0 %v504
      %v605 = vpop.f32.mrf.mxu0
      %v606 = vadd.f32 0.0, %v605
      %v607 = vpop.f32.mrf.mxu0
      %v608 = vadd.f32 0.0, %v607
      %609 = vmatmul.bf16.gmra.mxu0 %v507
      %v610 = vpop.f32.mrf.mxu0
      %v611 = vadd.f32 0.0, %v610
      %v612 = vpop.f32.mrf.mxu0
      %v613 = vadd.f32 0.0, %v612
      %614 = vdwg.mxu0
      %v615 = vsel %vm454, %v286, 0
      %v617 = vsel %vm454, %v287, 0
      %v619 = vsel %vm454, %v288, 0
      %v621 = vsel %vm454, %v289, 0
      %v623 = vsel %vm454, %v290, 0
      %v625 = vsel %vm454, %v291, 0
      %v627 = vsel %vm454, %v292, 0
      %v629 = vsel %vm454, %v293, 0
      %v631 = vsel %vm454, %v294, 0
      %v633 = vsel %vm454, %v295, 0
      %v635 = vsel %vm454, %v296, 0
      %v637 = vsel %vm454, %v297, 0
      %v639 = vsel %vm454, %v298, 0
      %v641 = vsel %vm454, %v299, 0
      %v643 = vsel %vm454, %v300, 0
      %v645 = vsel %vm454, %v301, 0
      %v647 = vsel %vm454, %v302, 0
      %v649 = vsel %vm454, %v303, 0
      %v652 = vand.u32 %v208, %v512
      %654 = vmatpush.bf16.msra.mxu0 0
      %655 = vmatpush.bf16.msra.mxu0 0
      %656 = vmatpush.bf16.msra.mxu0 0
      %657 = vmatpush.bf16.msra.mxu0 0
      %658 = vmatpush.bf16.msra.mxu0 0
      %659 = vmatpush.bf16.msra.mxu0 0
      %660 = vmatpush.bf16.msra.mxu0 0
      %661 = vmatpush.bf16.msra.mxu0 %v652
      %662 = vmatmul.bf16.gmra.mxu0 %v615
      %v663 = vpop.f32.mrf.mxu0
      %v664 = vadd.f32 %v526, %v663
      %v665 = vpop.f32.mrf.mxu0
      %v666 = vadd.f32 %v528, %v665
      %667 = vmatmul.bf16.gmra.mxu0 %v617
      %v668 = vpop.f32.mrf.mxu0
      %v669 = vadd.f32 %v531, %v668
      %v670 = vpop.f32.mrf.mxu0
      %v671 = vadd.f32 %v533, %v670
      %672 = vmatmul.bf16.gmra.mxu0 %v619
      %v673 = vpop.f32.mrf.mxu0
      %v674 = vadd.f32 %v536, %v673
      %v675 = vpop.f32.mrf.mxu0
      %v676 = vadd.f32 %v538, %v675
      %677 = vmatmul.bf16.gmra.mxu0 %v621
      %v678 = vpop.f32.mrf.mxu0
      %v679 = vadd.f32 %v541, %v678
      %v680 = vpop.f32.mrf.mxu0
      %v681 = vadd.f32 %v543, %v680
      %682 = vmatmul.bf16.gmra.mxu0 %v623
      %v683 = vpop.f32.mrf.mxu0
      %v684 = vadd.f32 %v546, %v683
      %v685 = vpop.f32.mrf.mxu0
      %v686 = vadd.f32 %v548, %v685
      %687 = vmatmul.bf16.gmra.mxu0 %v625
      %v688 = vpop.f32.mrf.mxu0
      %v689 = vadd.f32 %v551, %v688
      %v690 = vpop.f32.mrf.mxu0
      %v691 = vadd.f32 %v553, %v690
      %692 = vmatmul.bf16.gmra.mxu0 %v627
      %v693 = vpop.f32.mrf.mxu0
      %v694 = vadd.f32 %v556, %v693
      %v695 = vpop.f32.mrf.mxu0
      %v696 = vadd.f32 %v558, %v695
      %697 = vmatmul.bf16.gmra.mxu0 %v629
      %v698 = vpop.f32.mrf.mxu0
      %v699 = vadd.f32 %v561, %v698
      %v700 = vpop.f32.mrf.mxu0
      %v701 = vadd.f32 %v563, %v700
      %702 = vmatmul.bf16.gmra.mxu0 %v631
      %v703 = vpop.f32.mrf.mxu0
      %v704 = vadd.f32 %v566, %v703
      %v705 = vpop.f32.mrf.mxu0
      %v706 = vadd.f32 %v568, %v705
      %707 = vmatmul.bf16.gmra.mxu0 %v633
      %v708 = vpop.f32.mrf.mxu0
      %v709 = vadd.f32 %v571, %v708
      %v710 = vpop.f32.mrf.mxu0
      %v711 = vadd.f32 %v573, %v710
      %712 = vmatmul.bf16.gmra.mxu0 %v635
      %v713 = vpop.f32.mrf.mxu0
      %v714 = vadd.f32 %v576, %v713
      %v715 = vpop.f32.mrf.mxu0
      %v716 = vadd.f32 %v578, %v715
      %717 = vmatmul.bf16.gmra.mxu0 %v637
      %v718 = vpop.f32.mrf.mxu0
      %v719 = vadd.f32 %v581, %v718
      %v720 = vpop.f32.mrf.mxu0
      %v721 = vadd.f32 %v583, %v720
      %722 = vmatmul.bf16.gmra.mxu0 %v639
      %v723 = vpop.f32.mrf.mxu0
      %v724 = vadd.f32 %v586, %v723
      %v725 = vpop.f32.mrf.mxu0
      %v726 = vadd.f32 %v588, %v725
      %727 = vmatmul.bf16.gmra.mxu0 %v641
      %v728 = vpop.f32.mrf.mxu0
      %v729 = vadd.f32 %v591, %v728
      %v730 = vpop.f32.mrf.mxu0
      %v731 = vadd.f32 %v593, %v730
      %732 = vmatmul.bf16.gmra.mxu0 %v643
      %v733 = vpop.f32.mrf.mxu0
      %v734 = vadd.f32 %v596, %v733
      %v735 = vpop.f32.mrf.mxu0
      %v736 = vadd.f32 %v598, %v735
      %737 = vmatmul.bf16.gmra.mxu0 %v645
      %v738 = vpop.f32.mrf.mxu0
      %v739 = vadd.f32 %v601, %v738
      %v740 = vpop.f32.mrf.mxu0
      %v741 = vadd.f32 %v603, %v740
      %742 = vmatmul.bf16.gmra.mxu0 %v647
      %v743 = vpop.f32.mrf.mxu0
      %v744 = vadd.f32 %v606, %v743
      %v745 = vpop.f32.mrf.mxu0
      %v746 = vadd.f32 %v608, %v745
      %747 = vmatmul.bf16.gmra.mxu0 %v649
      %v748 = vpop.f32.mrf.mxu0
      %v749 = vadd.f32 %v611, %v748
      %v750 = vpop.f32.mrf.mxu0
      %v751 = vadd.f32 %v613, %v750
      %752 = vdwg.mxu0
      %v753 = vld [vmem:[%s165] sm:$0xe]
      %s754 = scalar_lea.vmem %s1, 4
      %v755 = vld [vmem:[%s754] sm:$0x3]
      %v757 = vunpack.c.l.b16 %v753
      %v758 = vpack.c.b16 %v250, %v757
      %vm759 = vcmask 1046528
      %v760 = vrot.slane %v758, 1
      %v761 = vrot.slane %v287, 1
      %v762 = vsel %vm759, %v760, %v761
      %v763 = vrot.slane %v288, 1
      %v764 = vsel %vm759, %v761, %v763
      %v765 = vrot.slane %v289, 1
      %v766 = vsel %vm759, %v763, %v765
      %v767 = vrot.slane %v290, 1
      %v768 = vsel %vm759, %v765, %v767
      %v769 = vrot.slane %v291, 1
      %v770 = vsel %vm759, %v767, %v769
      %v771 = vrot.slane %v292, 1
      %v772 = vsel %vm759, %v769, %v771
      %v773 = vrot.slane %v293, 1
      %v774 = vsel %vm759, %v771, %v773
      %v775 = vrot.slane %v294, 1
      %v776 = vsel %vm759, %v773, %v775
      %v777 = vrot.slane %v295, 1
      %v778 = vsel %vm759, %v775, %v777
      %v779 = vrot.slane %v296, 1
      %v780 = vsel %vm759, %v777, %v779
      %v781 = vrot.slane %v297, 1
      %v782 = vsel %vm759, %v779, %v781
      %v783 = vrot.slane %v298, 1
      %v784 = vsel %vm759, %v781, %v783
      %v785 = vrot.slane %v299, 1
      %v786 = vsel %vm759, %v783, %v785
      %v787 = vrot.slane %v300, 1
      %v788 = vsel %vm759, %v785, %v787
      %v789 = vrot.slane %v301, 1
      %v790 = vsel %vm759, %v787, %v789
      %v791 = vrot.slane %v302, 1
      %v792 = vsel %vm759, %v789, %v791
      %v793 = vrot.slane %v303, 1
      %v794 = vsel %vm759, %v791, %v793
      %v795 = vrot.slane %v304, 1
      %v796 = vsel %vm759, %v793, %v795
      %v798 = vsel %vm454, %v762, 0
      %v801 = vsel %vm454, %v764, 0
      %v804 = vsel %vm454, %v766, 0
      %v807 = vsel %vm454, %v768, 0
      %v810 = vsel %vm454, %v770, 0
      %v813 = vsel %vm454, %v772, 0
      %v816 = vsel %vm454, %v774, 0
      %v819 = vsel %vm454, %v776, 0
      %v822 = vsel %vm454, %v778, 0
      %v825 = vsel %vm454, %v780, 0
      %v828 = vsel %vm454, %v782, 0
      %v831 = vsel %vm454, %v784, 0
      %v834 = vsel %vm454, %v786, 0
      %v837 = vsel %vm454, %v788, 0
      %v840 = vsel %vm454, %v790, 0
      %v843 = vsel %vm454, %v792, 0
      %v846 = vsel %vm454, %v794, 0
      %v849 = vsel %vm454, %v796, 0
      %v852 = vand.u32 %v755, %v512
      %854 = vmatpush.bf16.msra.mxu0 0
      %855 = vmatpush.bf16.msra.mxu0 0
      %856 = vmatpush.bf16.msra.mxu0 0
      %857 = vmatpush.bf16.msra.mxu0 0
      %858 = vmatpush.bf16.msra.mxu0 0
      %859 = vmatpush.bf16.msra.mxu0 0
      %860 = vmatpush.bf16.msra.mxu0 0
      %861 = vmatpush.bf16.msra.mxu0 %v852
      %862 = vmatmul.bf16.gmra.mxu0 %v798
      %v863 = vpop.f32.mrf.mxu0
      %v864 = vadd.f32 0.0, %v863
      %v865 = vpop.f32.mrf.mxu0
      %v866 = vadd.f32 0.0, %v865
      %867 = vmatmul.bf16.gmra.mxu0 %v801
      %v868 = vpop.f32.mrf.mxu0
      %v869 = vadd.f32 0.0, %v868
      %v870 = vpop.f32.mrf.mxu0
      %v871 = vadd.f32 0.0, %v870
      %872 = vmatmul.bf16.gmra.mxu0 %v804
      %v873 = vpop.f32.mrf.mxu0
      %v874 = vadd.f32 0.0, %v873
      %v875 = vpop.f32.mrf.mxu0
      %v876 = vadd.f32 0.0, %v875
      %877 = vmatmul.bf16.gmra.mxu0 %v807
      %v878 = vpop.f32.mrf.mxu0
      %v879 = vadd.f32 0.0, %v878
      %v880 = vpop.f32.mrf.mxu0
      %v881 = vadd.f32 0.0, %v880
      %882 = vmatmul.bf16.gmra.mxu0 %v810
      %v883 = vpop.f32.mrf.mxu0
      %v884 = vadd.f32 0.0, %v883
      %v885 = vpop.f32.mrf.mxu0
      %v886 = vadd.f32 0.0, %v885
      %887 = vmatmul.bf16.gmra.mxu0 %v813
      %v888 = vpop.f32.mrf.mxu0
      %v889 = vadd.f32 0.0, %v888
      %v890 = vpop.f32.mrf.mxu0
      %v891 = vadd.f32 0.0, %v890
      %892 = vmatmul.bf16.gmra.mxu0 %v816
      %v893 = vpop.f32.mrf.mxu0
      %v894 = vadd.f32 0.0, %v893
      %v895 = vpop.f32.mrf.mxu0
      %v896 = vadd.f32 0.0, %v895
      %897 = vmatmul.bf16.gmra.mxu0 %v819
      %v898 = vpop.f32.mrf.mxu0
      %v899 = vadd.f32 0.0, %v898
      %v900 = vpop.f32.mrf.mxu0
      %v901 = vadd.f32 0.0, %v900
      %902 = vmatmul.bf16.gmra.mxu0 %v822
      %v903 = vpop.f32.mrf.mxu0
      %v904 = vadd.f32 0.0, %v903
      %v905 = vpop.f32.mrf.mxu0
      %v906 = vadd.f32 0.0, %v905
      %907 = vmatmul.bf16.gmra.mxu0 %v825
      %v908 = vpop.f32.mrf.mxu0
      %v909 = vadd.f32 0.0, %v908
      %v910 = vpop.f32.mrf.mxu0
      %v911 = vadd.f32 0.0, %v910
      %912 = vmatmul.bf16.gmra.mxu0 %v828
      %v913 = vpop.f32.mrf.mxu0
      %v914 = vadd.f32 0.0, %v913
      %v915 = vpop.f32.mrf.mxu0
      %v916 = vadd.f32 0.0, %v915
      %917 = vmatmul.bf16.gmra.mxu0 %v831
      %v918 = vpop.f32.mrf.mxu0
      %v919 = vadd.f32 0.0, %v918
      %v920 = vpop.f32.mrf.mxu0
      %v921 = vadd.f32 0.0, %v920
      %922 = vmatmul.bf16.gmra.mxu0 %v834
      %v923 = vpop.f32.mrf.mxu0
      %v924 = vadd.f32 0.0, %v923
      %v925 = vpop.f32.mrf.mxu0
      %v926 = vadd.f32 0.0, %v925
      %927 = vmatmul.bf16.gmra.mxu0 %v837
      %v928 = vpop.f32.mrf.mxu0
      %v929 = vadd.f32 0.0, %v928
      %v930 = vpop.f32.mrf.mxu0
      %v931 = vadd.f32 0.0, %v930
      %932 = vmatmul.bf16.gmra.mxu0 %v840
      %v933 = vpop.f32.mrf.mxu0
      %v934 = vadd.f32 0.0, %v933
      %v935 = vpop.f32.mrf.mxu0
      %v936 = vadd.f32 0.0, %v935
      %937 = vmatmul.bf16.gmra.mxu0 %v843
      %v938 = vpop.f32.mrf.mxu0
      %v939 = vadd.f32 0.0, %v938
      %v940 = vpop.f32.mrf.mxu0
      %v941 = vadd.f32 0.0, %v940
      %942 = vmatmul.bf16.gmra.mxu0 %v846
      %v943 = vpop.f32.mrf.mxu0
      %v944 = vadd.f32 0.0, %v943
      %v945 = vpop.f32.mrf.mxu0
      %v946 = vadd.f32 0.0, %v945
      %947 = vmatmul.bf16.gmra.mxu0 %v849
      %v948 = vpop.f32.mrf.mxu0
      %v949 = vadd.f32 0.0, %v948
      %v950 = vpop.f32.mrf.mxu0
      %v951 = vadd.f32 0.0, %v950
      %952 = vdwg.mxu0
      %v953 = vadd.f32 %v664, %v864
      %v954 = vadd.f32 %v666, %v866
      %v955 = vadd.f32 %v669, %v869
      %v956 = vadd.f32 %v671, %v871
      %v957 = vadd.f32 %v674, %v874
      %v958 = vadd.f32 %v676, %v876
      %v959 = vadd.f32 %v679, %v879
      %v960 = vadd.f32 %v681, %v881
      %v961 = vadd.f32 %v684, %v884
      %v962 = vadd.f32 %v686, %v886
      %v963 = vadd.f32 %v689, %v889
      %v964 = vadd.f32 %v691, %v891
      %v965 = vadd.f32 %v694, %v894
      %v966 = vadd.f32 %v696, %v896
      %v967 = vadd.f32 %v699, %v899
      %v968 = vadd.f32 %v701, %v901
      %v969 = vadd.f32 %v704, %v904
      %v970 = vadd.f32 %v706, %v906
      %v971 = vadd.f32 %v709, %v909
      %v972 = vadd.f32 %v711, %v911
      %v973 = vadd.f32 %v714, %v914
      %v974 = vadd.f32 %v716, %v916
      %v975 = vadd.f32 %v719, %v919
      %v976 = vadd.f32 %v721, %v921
      %v977 = vadd.f32 %v724, %v924
      %v978 = vadd.f32 %v726, %v926
      %v979 = vadd.f32 %v729, %v929
      %v980 = vadd.f32 %v731, %v931
      %v981 = vadd.f32 %v734, %v934
      %v982 = vadd.f32 %v736, %v936
      %v983 = vadd.f32 %v739, %v939
      %v984 = vadd.f32 %v741, %v941
      %v985 = vadd.f32 %v744, %v944
      %v986 = vadd.f32 %v746, %v946
      %v987 = vadd.f32 %v749, %v949
      %v988 = vadd.f32 %v751, %v951
      %v989 = vld [vmem:[%s165 + $0x8] sm:$0xe]
      %v990 = vld [vmem:[%s165 + $0xc] sm:$0xf]
      %v991 = vld [vmem:[%s165 + $0x10] sm:$0xf]
      %v992 = vld [vmem:[%s165 + $0x14] sm:$0xf]
      %v993 = vld [vmem:[%s165 + $0x18] sm:$0xf]
      %v994 = vld [vmem:[%s165 + $0x1c] sm:$0xf]
      %v995 = vld [vmem:[%s165 + $0x20] sm:$0xf]
      %v996 = vld [vmem:[%s165 + $0x24] sm:$0xf]
      %v997 = vld [vmem:[%s165 + $0x28] sm:$0xf]
      %v998 = vld [vmem:[%s165 + $0x2c] sm:$0xf]
      %v999 = vld [vmem:[%s165 + $0x30] sm:$0xf]
      %v1000 = vld [vmem:[%s165 + $0x34] sm:$0xf]
      %v1001 = vld [vmem:[%s165 + $0x38] sm:$0xf]
      %v1002 = vld [vmem:[%s165 + $0x3c] sm:$0xf]
      %v1003 = vld [vmem:[%s165 + $0x40] sm:$0xf]
      %v1004 = vld [vmem:[%s165 + $0x44] sm:$0xf]
      %v1005 = vld [vmem:[%s165 + $0x48] sm:$0xf]
      %v1006 = vld [vmem:[%s165 + $0x4c] sm:$0xf]
      %v1007 = vld [vmem:[%s165 + $0x50] sm:$0xf]
      %v1008 = vld [vmem:[%s165 + $0x54] sm:$0xf]
      %v1009 = vld [vmem:[%s165 + $0x58] sm:$0xf]
      %v1010 = vld [vmem:[%s165 + $0x5c] sm:$0xf]
      %v1011 = vld [vmem:[%s165 + $0x60] sm:$0xf]
      %v1012 = vld [vmem:[%s165 + $0x64] sm:$0xf]
      %v1013 = vld [vmem:[%s165 + $0x68] sm:$0xf]
      %v1014 = vld [vmem:[%s165 + $0x6c] sm:$0xf]
      %v1015 = vld [vmem:[%s165 + $0x70] sm:$0xf]
      %v1016 = vld [vmem:[%s165 + $0x74] sm:$0xf]
      %v1017 = vld [vmem:[%s165 + $0x78] sm:$0xf]
      %v1018 = vld [vmem:[%s165 + $0x7c] sm:$0xf]
      %v1019 = vld [vmem:[%s165 + $0x80] sm:$0xf]
      %v1020 = vld [vmem:[%s165 + $0x84] sm:$0xf]
      %v1021 = vld [vmem:[%s165 + $0x88] sm:$0xf]
      %v1022 = vld [vmem:[%s165 + $0x8c] sm:$0xf]
      %v1023 = vld [vmem:[%s165 + $0x90] sm:$0xf]
      %v1024 = vld [vmem:[%s165 + $0x94] sm:$0xf]
      %v1025 = vld [vmem:[%s165 + $0x98] sm:$0x1]
      %s1026 = scalar_lea.vmem %s1, 6
      %v1027 = vld [vmem:[%s1026] sm:$0x3]
      %v1065 = vunpack.c.l.b16 %v989
      %v1066 = vunpack.c.l.b16 %v990
      %v1067 = vunpack.c.l.b16 %v991
      %v1068 = vunpack.c.l.b16 %v992
      %v1069 = vunpack.c.l.b16 %v993
      %v1070 = vunpack.c.l.b16 %v994
      %v1071 = vunpack.c.l.b16 %v995
      %v1072 = vunpack.c.l.b16 %v996
      %v1073 = vunpack.c.l.b16 %v997
      %v1074 = vunpack.c.l.b16 %v998
      %v1075 = vunpack.c.l.b16 %v999
      %v1076 = vunpack.c.l.b16 %v1000
      %v1077 = vunpack.c.l.b16 %v1001
      %v1078 = vunpack.c.l.b16 %v1002
      %v1079 = vunpack.c.l.b16 %v1003
      %v1080 = vunpack.c.l.b16 %v1004
      %v1081 = vunpack.c.l.b16 %v1005
      %v1082 = vunpack.c.l.b16 %v1006
      %v1083 = vunpack.c.l.b16 %v1007
      %v1084 = vunpack.c.l.b16 %v1008
      %v1085 = vunpack.c.l.b16 %v1009
      %v1086 = vunpack.c.l.b16 %v1010
      %v1087 = vunpack.c.l.b16 %v1011
      %v1088 = vunpack.c.l.b16 %v1012
      %v1089 = vunpack.c.l.b16 %v1013
      %v1090 = vunpack.c.l.b16 %v1014
      %v1091 = vunpack.c.l.b16 %v1015
      %v1092 = vunpack.c.l.b16 %v1016
      %v1093 = vunpack.c.l.b16 %v1017
      %v1094 = vunpack.c.l.b16 %v1018
      %v1095 = vunpack.c.l.b16 %v1019
      %v1096 = vunpack.c.l.b16 %v1020
      %v1097 = vunpack.c.l.b16 %v1021
      %v1098 = vunpack.c.l.b16 %v1022
      %v1099 = vunpack.c.l.b16 %v1023
      %v1100 = vunpack.c.l.b16 %v1024
      %v1101 = vunpack.c.l.b16 %v1025
      %v1102 = vpack.c.b16 %v1066, %v1065
      %v1103 = vpack.c.b16 %v1068, %v1067
      %v1104 = vpack.c.b16 %v1070, %v1069
      %v1105 = vpack.c.b16 %v1072, %v1071
      %v1106 = vpack.c.b16 %v1074, %v1073
      %v1107 = vpack.c.b16 %v1076, %v1075
      %v1108 = vpack.c.b16 %v1078, %v1077
      %v1109 = vpack.c.b16 %v1080, %v1079
      %v1110 = vpack.c.b16 %v1082, %v1081
      %v1111 = vpack.c.b16 %v1084, %v1083
      %v1112 = vpack.c.b16 %v1086, %v1085
      %v1113 = vpack.c.b16 %v1088, %v1087
      %v1114 = vpack.c.b16 %v1090, %v1089
      %v1115 = vpack.c.b16 %v1092, %v1091
      %v1116 = vpack.c.b16 %v1094, %v1093
      %v1117 = vpack.c.b16 %v1096, %v1095
      %v1118 = vpack.c.b16 %v1098, %v1097
      %v1119 = vpack.c.b16 %v1100, %v1099
      %v1120 = vpack.c.b16 %v1101, %v1101
      %v1121 = vrot.slane %v1102, 1
      %v1122 = vrot.slane %v1103, 1
      %v1123 = vsel %vm759, %v1121, %v1122
      %v1124 = vrot.slane %v1104, 1
      %v1125 = vsel %vm759, %v1122, %v1124
      %v1126 = vrot.slane %v1105, 1
      %v1127 = vsel %vm759, %v1124, %v1126
      %v1128 = vrot.slane %v1106, 1
      %v1129 = vsel %vm759, %v1126, %v1128
      %v1130 = vrot.slane %v1107, 1
      %v1131 = vsel %vm759, %v1128, %v1130
      %v1132 = vrot.slane %v1108, 1
      %v1133 = vsel %vm759, %v1130, %v1132
      %v1134 = vrot.slane %v1109, 1
      %v1135 = vsel %vm759, %v1132, %v1134
      %v1136 = vrot.slane %v1110, 1
      %v1137 = vsel %vm759, %v1134, %v1136
      %v1138 = vrot.slane %v1111, 1
      %v1139 = vsel %vm759, %v1136, %v1138
      %v1140 = vrot.slane %v1112, 1
      %v1141 = vsel %vm759, %v1138, %v1140
      %v1142 = vrot.slane %v1113, 1
      %v1143 = vsel %vm759, %v1140, %v1142
      %v1144 = vrot.slane %v1114, 1
      %v1145 = vsel %vm759, %v1142, %v1144
      %v1146 = vrot.slane %v1115, 1
      %v1147 = vsel %vm759, %v1144, %v1146
      %v1148 = vrot.slane %v1116, 1
      %v1149 = vsel %vm759, %v1146, %v1148
      %v1150 = vrot.slane %v1117, 1
      %v1151 = vsel %vm759, %v1148, %v1150
      %v1152 = vrot.slane %v1118, 1
      %v1153 = vsel %vm759, %v1150, %v1152
      %v1154 = vrot.slane %v1119, 1
      %v1155 = vsel %vm759, %v1152, %v1154
      %v1156 = vrot.slane %v1120, 1
      %v1157 = vsel %vm759, %v1154, %v1156
      %v1159 = vsel %vm454, %v1123, 0
      %v1162 = vsel %vm454, %v1125, 0
      %v1165 = vsel %vm454, %v1127, 0
      %v1168 = vsel %vm454, %v1129, 0
      %v1171 = vsel %vm454, %v1131, 0
      %v1174 = vsel %vm454, %v1133, 0
      %v1177 = vsel %vm454, %v1135, 0
      %v1180 = vsel %vm454, %v1137, 0
      %v1183 = vsel %vm454, %v1139, 0
      %v1186 = vsel %vm454, %v1141, 0
      %v1189 = vsel %vm454, %v1143, 0
      %v1192 = vsel %vm454, %v1145, 0
      %v1195 = vsel %vm454, %v1147, 0
      %v1198 = vsel %vm454, %v1149, 0
      %v1201 = vsel %vm454, %v1151, 0
      %v1204 = vsel %vm454, %v1153, 0
      %v1207 = vsel %vm454, %v1155, 0
      %v1210 = vsel %vm454, %v1157, 0
      %v1213 = vand.u32 %v1027, %v512
      %1215 = vmatpush.bf16.msra.mxu0 0
      %1216 = vmatpush.bf16.msra.mxu0 0
      %1217 = vmatpush.bf16.msra.mxu0 0
      %1218 = vmatpush.bf16.msra.mxu0 0
      %1219 = vmatpush.bf16.msra.mxu0 0
      %1220 = vmatpush.bf16.msra.mxu0 0
      %1221 = vmatpush.bf16.msra.mxu0 0
      %1222 = vmatpush.bf16.msra.mxu0 %v1213
      %1223 = vmatmul.bf16.gmra.mxu0 %v1159
      %v1224 = vpop.f32.mrf.mxu0
      %v1225 = vadd.f32 0.0, %v1224
      %v1226 = vpop.f32.mrf.mxu0
      %v1227 = vadd.f32 0.0, %v1226
      %1228 = vmatmul.bf16.gmra.mxu0 %v1162
      %v1229 = vpop.f32.mrf.mxu0
      %v1230 = vadd.f32 0.0, %v1229
      %v1231 = vpop.f32.mrf.mxu0
      %v1232 = vadd.f32 0.0, %v1231
      %1233 = vmatmul.bf16.gmra.mxu0 %v1165
      %v1234 = vpop.f32.mrf.mxu0
      %v1235 = vadd.f32 0.0, %v1234
      %v1236 = vpop.f32.mrf.mxu0
      %v1237 = vadd.f32 0.0, %v1236
      %1238 = vmatmul.bf16.gmra.mxu0 %v1168
      %v1239 = vpop.f32.mrf.mxu0
      %v1240 = vadd.f32 0.0, %v1239
      %v1241 = vpop.f32.mrf.mxu0
      %v1242 = vadd.f32 0.0, %v1241
      %1243 = vmatmul.bf16.gmra.mxu0 %v1171
      %v1244 = vpop.f32.mrf.mxu0
      %v1245 = vadd.f32 0.0, %v1244
      %v1246 = vpop.f32.mrf.mxu0
      %v1247 = vadd.f32 0.0, %v1246
      %1248 = vmatmul.bf16.gmra.mxu0 %v1174
      %v1249 = vpop.f32.mrf.mxu0
      %v1250 = vadd.f32 0.0, %v1249
      %v1251 = vpop.f32.mrf.mxu0
      %v1252 = vadd.f32 0.0, %v1251
      %1253 = vmatmul.bf16.gmra.mxu0 %v1177
      %v1254 = vpop.f32.mrf.mxu0
      %v1255 = vadd.f32 0.0, %v1254
      %v1256 = vpop.f32.mrf.mxu0
      %v1257 = vadd.f32 0.0, %v1256
      %1258 = vmatmul.bf16.gmra.mxu0 %v1180
      %v1259 = vpop.f32.mrf.mxu0
      %v1260 = vadd.f32 0.0, %v1259
      %v1261 = vpop.f32.mrf.mxu0
      %v1262 = vadd.f32 0.0, %v1261
      %1263 = vmatmul.bf16.gmra.mxu0 %v1183
      %v1264 = vpop.f32.mrf.mxu0
      %v1265 = vadd.f32 0.0, %v1264
      %v1266 = vpop.f32.mrf.mxu0
      %v1267 = vadd.f32 0.0, %v1266
      %1268 = vmatmul.bf16.gmra.mxu0 %v1186
      %v1269 = vpop.f32.mrf.mxu0
      %v1270 = vadd.f32 0.0, %v1269
      %v1271 = vpop.f32.mrf.mxu0
      %v1272 = vadd.f32 0.0, %v1271
      %1273 = vmatmul.bf16.gmra.mxu0 %v1189
      %v1274 = vpop.f32.mrf.mxu0
      %v1275 = vadd.f32 0.0, %v1274
      %v1276 = vpop.f32.mrf.mxu0
      %v1277 = vadd.f32 0.0, %v1276
      %1278 = vmatmul.bf16.gmra.mxu0 %v1192
      %v1279 = vpop.f32.mrf.mxu0
      %v1280 = vadd.f32 0.0, %v1279
      %v1281 = vpop.f32.mrf.mxu0
      %v1282 = vadd.f32 0.0, %v1281
      %1283 = vmatmul.bf16.gmra.mxu0 %v1195
      %v1284 = vpop.f32.mrf.mxu0
      %v1285 = vadd.f32 0.0, %v1284
      %v1286 = vpop.f32.mrf.mxu0
      %v1287 = vadd.f32 0.0, %v1286
      %1288 = vmatmul.bf16.gmra.mxu0 %v1198
      %v1289 = vpop.f32.mrf.mxu0
      %v1290 = vadd.f32 0.0, %v1289
      %v1291 = vpop.f32.mrf.mxu0
      %v1292 = vadd.f32 0.0, %v1291
      %1293 = vmatmul.bf16.gmra.mxu0 %v1201
      %v1294 = vpop.f32.mrf.mxu0
      %v1295 = vadd.f32 0.0, %v1294
      %v1296 = vpop.f32.mrf.mxu0
      %v1297 = vadd.f32 0.0, %v1296
      %1298 = vmatmul.bf16.gmra.mxu0 %v1204
      %v1299 = vpop.f32.mrf.mxu0
      %v1300 = vadd.f32 0.0, %v1299
      %v1301 = vpop.f32.mrf.mxu0
      %v1302 = vadd.f32 0.0, %v1301
      %1303 = vmatmul.bf16.gmra.mxu0 %v1207
      %v1304 = vpop.f32.mrf.mxu0
      %v1305 = vadd.f32 0.0, %v1304
      %v1306 = vpop.f32.mrf.mxu0
      %v1307 = vadd.f32 0.0, %v1306
      %1308 = vmatmul.bf16.gmra.mxu0 %v1210
      %v1309 = vpop.f32.mrf.mxu0
      %v1310 = vadd.f32 0.0, %v1309
      %v1311 = vpop.f32.mrf.mxu0
      %v1312 = vadd.f32 0.0, %v1311
      %1313 = vdwg.mxu0
      %v1314 = vadd.f32 %v953, %v1225
      %v1315 = vadd.f32 %v954, %v1227
      %v1316 = vadd.f32 %v955, %v1230
      %v1317 = vadd.f32 %v956, %v1232
      %v1318 = vadd.f32 %v957, %v1235
      %v1319 = vadd.f32 %v958, %v1237
      %v1320 = vadd.f32 %v959, %v1240
      %v1321 = vadd.f32 %v960, %v1242
      %v1322 = vadd.f32 %v961, %v1245
      %v1323 = vadd.f32 %v962, %v1247
      %v1324 = vadd.f32 %v963, %v1250
      %v1325 = vadd.f32 %v964, %v1252
      %v1326 = vadd.f32 %v965, %v1255
      %v1327 = vadd.f32 %v966, %v1257
      %v1328 = vadd.f32 %v967, %v1260
      %v1329 = vadd.f32 %v968, %v1262
      %v1330 = vadd.f32 %v969, %v1265
      %v1331 = vadd.f32 %v970, %v1267
      %v1332 = vadd.f32 %v971, %v1270
      %v1333 = vadd.f32 %v972, %v1272
      %v1334 = vadd.f32 %v973, %v1275
      %v1335 = vadd.f32 %v974, %v1277
      %v1336 = vadd.f32 %v975, %v1280
      %v1337 = vadd.f32 %v976, %v1282
      %v1338 = vadd.f32 %v977, %v1285
      %v1339 = vadd.f32 %v978, %v1287
      %v1340 = vadd.f32 %v979, %v1290
      %v1341 = vadd.f32 %v980, %v1292
      %v1342 = vadd.f32 %v981, %v1295
      %v1343 = vadd.f32 %v982, %v1297
      %v1344 = vadd.f32 %v983, %v1300
      %v1345 = vadd.f32 %v984, %v1302
      %v1346 = vadd.f32 %v985, %v1305
      %v1347 = vadd.f32 %v986, %v1307
      %v1348 = vadd.f32 %v987, %v1310
      %v1349 = vadd.f32 %v988, %v1312
      %v1350 = vld [vmem:[%s165 + $0x98] sm:$0x3]
      %s1351 = scalar_lea.vmem %s1, 8
      %v1352 = vld [vmem:[%s1351] sm:$0x3]
      %v1354 = vunpack.c.l.b16 %v1350
      %v1355 = vpack.c.b16 %v1354, %v1354
      %vm1356 = vsmask.f32 6400
      %v1358 = vshrl.u32 %v1102, 16
      %v1360 = vrot.slane %v1358, 1
      %v1361 = vshll.u32 %v1102, 16
      %v1363 = vrot.slane %v1361, 2
      %v1364 = vor.u32 %v1360, %v1363
      %v1366 = vshrl.u32 %v1103, 16
      %v1368 = vrot.slane %v1366, 1
      %v1369 = vshll.u32 %v1103, 16
      %v1371 = vrot.slane %v1369, 2
      %v1372 = vor.u32 %v1368, %v1371
      %v1373 = vsel %vm1356, %v1364, %v1372
      %v1375 = vshrl.u32 %v1104, 16
      %v1377 = vrot.slane %v1375, 1
      %v1378 = vshll.u32 %v1104, 16
      %v1380 = vrot.slane %v1378, 2
      %v1381 = vor.u32 %v1377, %v1380
      %v1382 = vsel %vm1356, %v1372, %v1381
      %v1384 = vshrl.u32 %v1105, 16
      %v1386 = vrot.slane %v1384, 1
      %v1387 = vshll.u32 %v1105, 16
      %v1389 = vrot.slane %v1387, 2
      %v1390 = vor.u32 %v1386, %v1389
      %v1391 = vsel %vm1356, %v1381, %v1390
      %v1393 = vshrl.u32 %v1106, 16
      %v1395 = vrot.slane %v1393, 1
      %v1396 = vshll.u32 %v1106, 16
      %v1398 = vrot.slane %v1396, 2
      %v1399 = vor.u32 %v1395, %v1398
      %v1400 = vsel %vm1356, %v1390, %v1399
      %v1402 = vshrl.u32 %v1107, 16
      %v1404 = vrot.slane %v1402, 1
      %v1405 = vshll.u32 %v1107, 16
      %v1407 = vrot.slane %v1405, 2
      %v1408 = vor.u32 %v1404, %v1407
      %v1409 = vsel %vm1356, %v1399, %v1408
      %v1411 = vshrl.u32 %v1108, 16
      %v1413 = vrot.slane %v1411, 1
      %v1414 = vshll.u32 %v1108, 16
      %v1416 = vrot.slane %v1414, 2
      %v1417 = vor.u32 %v1413, %v1416
      %v1418 = vsel %vm1356, %v1408, %v1417
      %v1420 = vshrl.u32 %v1109, 16
      %v1422 = vrot.slane %v1420, 1
      %v1423 = vshll.u32 %v1109, 16
      %v1425 = vrot.slane %v1423, 2
      %v1426 = vor.u32 %v1422, %v1425
      %v1427 = vsel %vm1356, %v1417, %v1426
      %v1429 = vshrl.u32 %v1110, 16
      %v1431 = vrot.slane %v1429, 1
      %v1432 = vshll.u32 %v1110, 16
      %v1434 = vrot.slane %v1432, 2
      %v1435 = vor.u32 %v1431, %v1434
      %v1436 = vsel %vm1356, %v1426, %v1435
      %v1438 = vshrl.u32 %v1111, 16
      %v1440 = vrot.slane %v1438, 1
      %v1441 = vshll.u32 %v1111, 16
      %v1443 = vrot.slane %v1441, 2
      %v1444 = vor.u32 %v1440, %v1443
      %v1445 = vsel %vm1356, %v1435, %v1444
      %v1447 = vshrl.u32 %v1112, 16
      %v1449 = vrot.slane %v1447, 1
      %v1450 = vshll.u32 %v1112, 16
      %v1452 = vrot.slane %v1450, 2
      %v1453 = vor.u32 %v1449, %v1452
      %v1454 = vsel %vm1356, %v1444, %v1453
      %v1456 = vshrl.u32 %v1113, 16
      %v1458 = vrot.slane %v1456, 1
      %v1459 = vshll.u32 %v1113, 16
      %v1461 = vrot.slane %v1459, 2
      %v1462 = vor.u32 %v1458, %v1461
      %v1463 = vsel %vm1356, %v1453, %v1462
      %v1465 = vshrl.u32 %v1114, 16
      %v1467 = vrot.slane %v1465, 1
      %v1468 = vshll.u32 %v1114, 16
      %v1470 = vrot.slane %v1468, 2
      %v1471 = vor.u32 %v1467, %v1470
      %v1472 = vsel %vm1356, %v1462, %v1471
      %v1474 = vshrl.u32 %v1115, 16
      %v1476 = vrot.slane %v1474, 1
      %v1477 = vshll.u32 %v1115, 16
      %v1479 = vrot.slane %v1477, 2
      %v1480 = vor.u32 %v1476, %v1479
      %v1481 = vsel %vm1356, %v1471, %v1480
      %v1483 = vshrl.u32 %v1116, 16
      %v1485 = vrot.slane %v1483, 1
      %v1486 = vshll.u32 %v1116, 16
      %v1488 = vrot.slane %v1486, 2
      %v1489 = vor.u32 %v1485, %v1488
      %v1490 = vsel %vm1356, %v1480, %v1489
      %v1492 = vshrl.u32 %v1117, 16
      %v1494 = vrot.slane %v1492, 1
      %v1495 = vshll.u32 %v1117, 16
      %v1497 = vrot.slane %v1495, 2
      %v1498 = vor.u32 %v1494, %v1497
      %v1499 = vsel %vm1356, %v1489, %v1498
      %v1501 = vshrl.u32 %v1118, 16
      %v1503 = vrot.slane %v1501, 1
      %v1504 = vshll.u32 %v1118, 16
      %v1506 = vrot.slane %v1504, 2
      %v1507 = vor.u32 %v1503, %v1506
      %v1508 = vsel %vm1356, %v1498, %v1507
      %v1510 = vshrl.u32 %v1119, 16
      %v1512 = vrot.slane %v1510, 1
      %v1513 = vshll.u32 %v1119, 16
      %v1515 = vrot.slane %v1513, 2
      %v1516 = vor.u32 %v1512, %v1515
      %v1517 = vsel %vm1356, %v1507, %v1516
      %v1519 = vshrl.u32 %v1355, 16
      %v1521 = vrot.slane %v1519, 1
      %v1522 = vshll.u32 %v1355, 16
      %v1524 = vrot.slane %v1522, 2
      %v1525 = vor.u32 %v1521, %v1524
      %v1526 = vsel %vm1356, %v1516, %v1525
      %v1528 = vsel %vm454, %v1373, 0
      %v1531 = vsel %vm454, %v1382, 0
      %v1534 = vsel %vm454, %v1391, 0
      %v1537 = vsel %vm454, %v1400, 0
      %v1540 = vsel %vm454, %v1409, 0
      %v1543 = vsel %vm454, %v1418, 0
      %v1546 = vsel %vm454, %v1427, 0
      %v1549 = vsel %vm454, %v1436, 0
      %v1552 = vsel %vm454, %v1445, 0
      %v1555 = vsel %vm454, %v1454, 0
      %v1558 = vsel %vm454, %v1463, 0
      %v1561 = vsel %vm454, %v1472, 0
      %v1564 = vsel %vm454, %v1481, 0
      %v1567 = vsel %vm454, %v1490, 0
      %v1570 = vsel %vm454, %v1499, 0
      %v1573 = vsel %vm454, %v1508, 0
      %v1576 = vsel %vm454, %v1517, 0
      %v1579 = vsel %vm454, %v1526, 0
      %v1582 = vand.u32 %v1352, %v512
      %1584 = vmatpush.bf16.msra.mxu0 0
      %1585 = vmatpush.bf16.msra.mxu0 0
      %1586 = vmatpush.bf16.msra.mxu0 0
      %1587 = vmatpush.bf16.msra.mxu0 0
      %1588 = vmatpush.bf16.msra.mxu0 0
      %1589 = vmatpush.bf16.msra.mxu0 0
      %1590 = vmatpush.bf16.msra.mxu0 0
      %1591 = vmatpush.bf16.msra.mxu0 %v1582
      %1592 = vmatmul.bf16.gmra.mxu0 %v1528
      %v1593 = vpop.f32.mrf.mxu0
      %v1594 = vadd.f32 0.0, %v1593
      %v1595 = vpop.f32.mrf.mxu0
      %v1596 = vadd.f32 0.0, %v1595
      %1597 = vmatmul.bf16.gmra.mxu0 %v1531
      %v1598 = vpop.f32.mrf.mxu0
      %v1599 = vadd.f32 0.0, %v1598
      %v1600 = vpop.f32.mrf.mxu0
      %v1601 = vadd.f32 0.0, %v1600
      %1602 = vmatmul.bf16.gmra.mxu0 %v1534
      %v1603 = vpop.f32.mrf.mxu0
      %v1604 = vadd.f32 0.0, %v1603
      %v1605 = vpop.f32.mrf.mxu0
      %v1606 = vadd.f32 0.0, %v1605
      %1607 = vmatmul.bf16.gmra.mxu0 %v1537
      %v1608 = vpop.f32.mrf.mxu0
      %v1609 = vadd.f32 0.0, %v1608
      %v1610 = vpop.f32.mrf.mxu0
      %v1611 = vadd.f32 0.0, %v1610
      %1612 = vmatmul.bf16.gmra.mxu0 %v1540
      %v1613 = vpop.f32.mrf.mxu0
      %v1614 = vadd.f32 0.0, %v1613
      %v1615 = vpop.f32.mrf.mxu0
      %v1616 = vadd.f32 0.0, %v1615
      %1617 = vmatmul.bf16.gmra.mxu0 %v1543
      %v1618 = vpop.f32.mrf.mxu0
      %v1619 = vadd.f32 0.0, %v1618
      %v1620 = vpop.f32.mrf.mxu0
      %v1621 = vadd.f32 0.0, %v1620
      %1622 = vmatmul.bf16.gmra.mxu0 %v1546
      %v1623 = vpop.f32.mrf.mxu0
      %v1624 = vadd.f32 0.0, %v1623
      %v1625 = vpop.f32.mrf.mxu0
      %v1626 = vadd.f32 0.0, %v1625
      %1627 = vmatmul.bf16.gmra.mxu0 %v1549
      %v1628 = vpop.f32.mrf.mxu0
      %v1629 = vadd.f32 0.0, %v1628
      %v1630 = vpop.f32.mrf.mxu0
      %v1631 = vadd.f32 0.0, %v1630
      %1632 = vmatmul.bf16.gmra.mxu0 %v1552
      %v1633 = vpop.f32.mrf.mxu0
      %v1634 = vadd.f32 0.0, %v1633
      %v1635 = vpop.f32.mrf.mxu0
      %v1636 = vadd.f32 0.0, %v1635
      %1637 = vmatmul.bf16.gmra.mxu0 %v1555
      %v1638 = vpop.f32.mrf.mxu0
      %v1639 = vadd.f32 0.0, %v1638
      %v1640 = vpop.f32.mrf.mxu0
      %v1641 = vadd.f32 0.0, %v1640
      %1642 = vmatmul.bf16.gmra.mxu0 %v1558
      %v1643 = vpop.f32.mrf.mxu0
      %v1644 = vadd.f32 0.0, %v1643
      %v1645 = vpop.f32.mrf.mxu0
      %v1646 = vadd.f32 0.0, %v1645
      %1647 = vmatmul.bf16.gmra.mxu0 %v1561
      %v1648 = vpop.f32.mrf.mxu0
      %v1649 = vadd.f32 0.0, %v1648
      %v1650 = vpop.f32.mrf.mxu0
      %v1651 = vadd.f32 0.0, %v1650
      %1652 = vmatmul.bf16.gmra.mxu0 %v1564
      %v1653 = vpop.f32.mrf.mxu0
      %v1654 = vadd.f32 0.0, %v1653
      %v1655 = vpop.f32.mrf.mxu0
      %v1656 = vadd.f32 0.0, %v1655
      %1657 = vmatmul.bf16.gmra.mxu0 %v1567
      %v1658 = vpop.f32.mrf.mxu0
      %v1659 = vadd.f32 0.0, %v1658
      %v1660 = vpop.f32.mrf.mxu0
      %v1661 = vadd.f32 0.0, %v1660
      %1662 = vmatmul.bf16.gmra.mxu0 %v1570
      %v1663 = vpop.f32.mrf.mxu0
      %v1664 = vadd.f32 0.0, %v1663
      %v1665 = vpop.f32.mrf.mxu0
      %v1666 = vadd.f32 0.0, %v1665
      %1667 = vmatmul.bf16.gmra.mxu0 %v1573
      %v1668 = vpop.f32.mrf.mxu0
      %v1669 = vadd.f32 0.0, %v1668
      %v1670 = vpop.f32.mrf.mxu0
      %v1671 = vadd.f32 0.0, %v1670
      %1672 = vmatmul.bf16.gmra.mxu0 %v1576
      %v1673 = vpop.f32.mrf.mxu0
      %v1674 = vadd.f32 0.0, %v1673
      %v1675 = vpop.f32.mrf.mxu0
      %v1676 = vadd.f32 0.0, %v1675
      %1677 = vmatmul.bf16.gmra.mxu0 %v1579
      %v1678 = vpop.f32.mrf.mxu0
      %v1679 = vadd.f32 0.0, %v1678
      %v1680 = vpop.f32.mrf.mxu0
      %v1681 = vadd.f32 0.0, %v1680
      %1682 = vdwg.mxu0
      %v1683 = vadd.f32 %v1314, %v1594
      %v1684 = vadd.f32 %v1315, %v1596
      %v1685 = vadd.f32 %v1316, %v1599
      %v1686 = vadd.f32 %v1317, %v1601
      %v1687 = vadd.f32 %v1318, %v1604
      %v1688 = vadd.f32 %v1319, %v1606
      %v1689 = vadd.f32 %v1320, %v1609
      %v1690 = vadd.f32 %v1321, %v1611
      %v1691 = vadd.f32 %v1322, %v1614
      %v1692 = vadd.f32 %v1323, %v1616
      %v1693 = vadd.f32 %v1324, %v1619
      %v1694 = vadd.f32 %v1325, %v1621
      %v1695 = vadd.f32 %v1326, %v1624
      %v1696 = vadd.f32 %v1327, %v1626
      %v1697 = vadd.f32 %v1328, %v1629
      %v1698 = vadd.f32 %v1329, %v1631
      %v1699 = vadd.f32 %v1330, %v1634
      %v1700 = vadd.f32 %v1331, %v1636
      %v1701 = vadd.f32 %v1332, %v1639
      %v1702 = vadd.f32 %v1333, %v1641
      %v1703 = vadd.f32 %v1334, %v1644
      %v1704 = vadd.f32 %v1335, %v1646
      %v1705 = vadd.f32 %v1336, %v1649
      %v1706 = vadd.f32 %v1337, %v1651
      %v1707 = vadd.f32 %v1338, %v1654
      %v1708 = vadd.f32 %v1339, %v1656
      %v1709 = vadd.f32 %v1340, %v1659
      %v1710 = vadd.f32 %v1341, %v1661
      %v1711 = vadd.f32 %v1342, %v1664
      %v1712 = vadd.f32 %v1343, %v1666
      %v1713 = vadd.f32 %v1344, %v1669
      %v1714 = vadd.f32 %v1345, %v1671
      %v1715 = vadd.f32 %v1346, %v1674
      %v1716 = vadd.f32 %v1347, %v1676
      %v1717 = vadd.f32 %v1348, %v1679
      %v1718 = vadd.f32 %v1349, %v1681
      %v1719 = vld [vmem:[%s165 + $0x8] sm:$0xc]
      %s1720 = scalar_lea.vmem %s1, 10
      %v1721 = vld [vmem:[%s1720] sm:$0x3]
      %v1723 = vunpack.c.l.b16 %v1719
      %v1724 = vpack.c.b16 %v1066, %v1723
      %vm1725 = vcmask 1045504
      %v1726 = vrot.slane %v1724, 2
      %v1727 = vrot.slane %v1103, 2
      %v1728 = vsel %vm1725, %v1726, %v1727
      %v1729 = vrot.slane %v1104, 2
      %v1730 = vsel %vm1725, %v1727, %v1729
      %v1731 = vrot.slane %v1105, 2
      %v1732 = vsel %vm1725, %v1729, %v1731
      %v1733 = vrot.slane %v1106, 2
      %v1734 = vsel %vm1725, %v1731, %v1733
      %v1735 = vrot.slane %v1107, 2
      %v1736 = vsel %vm1725, %v1733, %v1735
      %v1737 = vrot.slane %v1108, 2
      %v1738 = vsel %vm1725, %v1735, %v1737
      %v1739 = vrot.slane %v1109, 2
      %v1740 = vsel %vm1725, %v1737, %v1739
      %v1741 = vrot.slane %v1110, 2
      %v1742 = vsel %vm1725, %v1739, %v1741
      %v1743 = vrot.slane %v1111, 2
      %v1744 = vsel %vm1725, %v1741, %v1743
      %v1745 = vrot.slane %v1112, 2
      %v1746 = vsel %vm1725, %v1743, %v1745
      %v1747 = vrot.slane %v1113, 2
      %v1748 = vsel %vm1725, %v1745, %v1747
      %v1749 = vrot.slane %v1114, 2
      %v1750 = vsel %vm1725, %v1747, %v1749
      %v1751 = vrot.slane %v1115, 2
      %v1752 = vsel %vm1725, %v1749, %v1751
      %v1753 = vrot.slane %v1116, 2
      %v1754 = vsel %vm1725, %v1751, %v1753
      %v1755 = vrot.slane %v1117, 2
      %v1756 = vsel %vm1725, %v1753, %v1755
      %v1757 = vrot.slane %v1118, 2
      %v1758 = vsel %vm1725, %v1755, %v1757
      %v1759 = vrot.slane %v1119, 2
      %v1760 = vsel %vm1725, %v1757, %v1759
      %v1761 = vrot.slane %v1355, 2
      %v1762 = vsel %vm1725, %v1759, %v1761
      %v1764 = vsel %vm454, %v1728, 0
      %v1767 = vsel %vm454, %v1730, 0
      %v1770 = vsel %vm454, %v1732, 0
      %v1773 = vsel %vm454, %v1734, 0
      %v1776 = vsel %vm454, %v1736, 0
      %v1779 = vsel %vm454, %v1738, 0
      %v1782 = vsel %vm454, %v1740, 0
      %v1785 = vsel %vm454, %v1742, 0
      %v1788 = vsel %vm454, %v1744, 0
      %v1791 = vsel %vm454, %v1746, 0
      %v1794 = vsel %vm454, %v1748, 0
      %v1797 = vsel %vm454, %v1750, 0
      %v1800 = vsel %vm454, %v1752, 0
      %v1803 = vsel %vm454, %v1754, 0
      %v1806 = vsel %vm454, %v1756, 0
      %v1809 = vsel %vm454, %v1758, 0
      %v1812 = vsel %vm454, %v1760, 0
      %v1815 = vsel %vm454, %v1762, 0
      %v1818 = vand.u32 %v1721, %v512
      %1820 = vmatpush.bf16.msra.mxu0 0
      %1821 = vmatpush.bf16.msra.mxu0 0
      %1822 = vmatpush.bf16.msra.mxu0 0
      %1823 = vmatpush.bf16.msra.mxu0 0
      %1824 = vmatpush.bf16.msra.mxu0 0
      %1825 = vmatpush.bf16.msra.mxu0 0
      %1826 = vmatpush.bf16.msra.mxu0 0
      %1827 = vmatpush.bf16.msra.mxu0 %v1818
      %1828 = vmatmul.bf16.gmra.mxu0 %v1764
      %v1829 = vpop.f32.mrf.mxu0
      %v1830 = vadd.f32 0.0, %v1829
      %v1831 = vpop.f32.mrf.mxu0
      %v1832 = vadd.f32 0.0, %v1831
      %1833 = vmatmul.bf16.gmra.mxu0 %v1767
      %v1834 = vpop.f32.mrf.mxu0
      %v1835 = vadd.f32 0.0, %v1834
      %v1836 = vpop.f32.mrf.mxu0
      %v1837 = vadd.f32 0.0, %v1836
      %1838 = vmatmul.bf16.gmra.mxu0 %v1770
      %v1839 = vpop.f32.mrf.mxu0
      %v1840 = vadd.f32 0.0, %v1839
      %v1841 = vpop.f32.mrf.mxu0
      %v1842 = vadd.f32 0.0, %v1841
      %1843 = vmatmul.bf16.gmra.mxu0 %v1773
      %v1844 = vpop.f32.mrf.mxu0
      %v1845 = vadd.f32 0.0, %v1844
      %v1846 = vpop.f32.mrf.mxu0
      %v1847 = vadd.f32 0.0, %v1846
      %1848 = vmatmul.bf16.gmra.mxu0 %v1776
      %v1849 = vpop.f32.mrf.mxu0
      %v1850 = vadd.f32 0.0, %v1849
      %v1851 = vpop.f32.mrf.mxu0
      %v1852 = vadd.f32 0.0, %v1851
      %1853 = vmatmul.bf16.gmra.mxu0 %v1779
      %v1854 = vpop.f32.mrf.mxu0
      %v1855 = vadd.f32 0.0, %v1854
      %v1856 = vpop.f32.mrf.mxu0
      %v1857 = vadd.f32 0.0, %v1856
      %1858 = vmatmul.bf16.gmra.mxu0 %v1782
      %v1859 = vpop.f32.mrf.mxu0
      %v1860 = vadd.f32 0.0, %v1859
      %v1861 = vpop.f32.mrf.mxu0
      %v1862 = vadd.f32 0.0, %v1861
      %1863 = vmatmul.bf16.gmra.mxu0 %v1785
      %v1864 = vpop.f32.mrf.mxu0
      %v1865 = vadd.f32 0.0, %v1864
      %v1866 = vpop.f32.mrf.mxu0
      %v1867 = vadd.f32 0.0, %v1866
      %1868 = vmatmul.bf16.gmra.mxu0 %v1788
      %v1869 = vpop.f32.mrf.mxu0
      %v1870 = vadd.f32 0.0, %v1869
      %v1871 = vpop.f32.mrf.mxu0
      %v1872 = vadd.f32 0.0, %v1871
      %1873 = vmatmul.bf16.gmra.mxu0 %v1791
      %v1874 = vpop.f32.mrf.mxu0
      %v1875 = vadd.f32 0.0, %v1874
      %v1876 = vpop.f32.mrf.mxu0
      %v1877 = vadd.f32 0.0, %v1876
      %1878 = vmatmul.bf16.gmra.mxu0 %v1794
      %v1879 = vpop.f32.mrf.mxu0
      %v1880 = vadd.f32 0.0, %v1879
      %v1881 = vpop.f32.mrf.mxu0
      %v1882 = vadd.f32 0.0, %v1881
      %1883 = vmatmul.bf16.gmra.mxu0 %v1797
      %v1884 = vpop.f32.mrf.mxu0
      %v1885 = vadd.f32 0.0, %v1884
      %v1886 = vpop.f32.mrf.mxu0
      %v1887 = vadd.f32 0.0, %v1886
      %1888 = vmatmul.bf16.gmra.mxu0 %v1800
      %v1889 = vpop.f32.mrf.mxu0
      %v1890 = vadd.f32 0.0, %v1889
      %v1891 = vpop.f32.mrf.mxu0
      %v1892 = vadd.f32 0.0, %v1891
      %1893 = vmatmul.bf16.gmra.mxu0 %v1803
      %v1894 = vpop.f32.mrf.mxu0
      %v1895 = vadd.f32 0.0, %v1894
      %v1896 = vpop.f32.mrf.mxu0
      %v1897 = vadd.f32 0.0, %v1896
      %1898 = vmatmul.bf16.gmra.mxu0 %v1806
      %v1899 = vpop.f32.mrf.mxu0
      %v1900 = vadd.f32 0.0, %v1899
      %v1901 = vpop.f32.mrf.mxu0
      %v1902 = vadd.f32 0.0, %v1901
      %1903 = vmatmul.bf16.gmra.mxu0 %v1809
      %v1904 = vpop.f32.mrf.mxu0
      %v1905 = vadd.f32 0.0, %v1904
      %v1906 = vpop.f32.mrf.mxu0
      %v1907 = vadd.f32 0.0, %v1906
      %1908 = vmatmul.bf16.gmra.mxu0 %v1812
      %v1909 = vpop.f32.mrf.mxu0
      %v1910 = vadd.f32 0.0, %v1909
      %v1911 = vpop.f32.mrf.mxu0
      %v1912 = vadd.f32 0.0, %v1911
      %1913 = vmatmul.bf16.gmra.mxu0 %v1815
      %v1914 = vpop.f32.mrf.mxu0
      %v1915 = vadd.f32 0.0, %v1914
      %v1916 = vpop.f32.mrf.mxu0
      %v1917 = vadd.f32 0.0, %v1916
      %1918 = vdwg.mxu0
      %v1919 = vadd.f32 %v1683, %v1830
      %v1920 = vadd.f32 %v1684, %v1832
      %v1921 = vadd.f32 %v1685, %v1835
      %v1922 = vadd.f32 %v1686, %v1837
      %v1923 = vadd.f32 %v1687, %v1840
      %v1924 = vadd.f32 %v1688, %v1842
      %v1925 = vadd.f32 %v1689, %v1845
      %v1926 = vadd.f32 %v1690, %v1847
      %v1927 = vadd.f32 %v1691, %v1850
      %v1928 = vadd.f32 %v1692, %v1852
      %v1929 = vadd.f32 %v1693, %v1855
      %v1930 = vadd.f32 %v1694, %v1857
      %v1931 = vadd.f32 %v1695, %v1860
      %v1932 = vadd.f32 %v1696, %v1862
      %v1933 = vadd.f32 %v1697, %v1865
      %v1934 = vadd.f32 %v1698, %v1867
      %v1935 = vadd.f32 %v1699, %v1870
      %v1936 = vadd.f32 %v1700, %v1872
      %v1937 = vadd.f32 %v1701, %v1875
      %v1938 = vadd.f32 %v1702, %v1877
      %v1939 = vadd.f32 %v1703, %v1880
      %v1940 = vadd.f32 %v1704, %v1882
      %v1941 = vadd.f32 %v1705, %v1885
      %v1942 = vadd.f32 %v1706, %v1887
      %v1943 = vadd.f32 %v1707, %v1890
      %v1944 = vadd.f32 %v1708, %v1892
      %v1945 = vadd.f32 %v1709, %v1895
      %v1946 = vadd.f32 %v1710, %v1897
      %v1947 = vadd.f32 %v1711, %v1900
      %v1948 = vadd.f32 %v1712, %v1902
      %v1949 = vadd.f32 %v1713, %v1905
      %v1950 = vadd.f32 %v1714, %v1907
      %v1951 = vadd.f32 %v1715, %v1910
      %v1952 = vadd.f32 %v1716, %v1912
      %v1953 = vadd.f32 %v1717, %v1915
      %v1954 = vadd.f32 %v1718, %v1917
      %v1955 = vld [vmem:[%s165 + $0x10] sm:$0xc]
      %v1956 = vld [vmem:[%s165 + $0x14] sm:$0xf]
      %v1957 = vld [vmem:[%s165 + $0x18] sm:$0xf]
      %v1958 = vld [vmem:[%s165 + $0x1c] sm:$0xf]
      %v1959 = vld [vmem:[%s165 + $0x20] sm:$0xf]
      %v1960 = vld [vmem:[%s165 + $0x24] sm:$0xf]
      %v1961 = vld [vmem:[%s165 + $0x28] sm:$0xf]
      %v1962 = vld [vmem:[%s165 + $0x2c] sm:$0xf]
      %v1963 = vld [vmem:[%s165 + $0x30] sm:$0xf]
      %v1964 = vld [vmem:[%s165 + $0x34] sm:$0xf]
      %v1965 = vld [vmem:[%s165 + $0x38] sm:$0xf]
      %v1966 = vld [vmem:[%s165 + $0x3c] sm:$0xf]
      %v1967 = vld [vmem:[%s165 + $0x40] sm:$0xf]
      %v1968 = vld [vmem:[%s165 + $0x44] sm:$0xf]
      %v1969 = vld [vmem:[%s165 + $0x48] sm:$0xf]
      %v1970 = vld [vmem:[%s165 + $0x4c] sm:$0xf]
      %v1971 = vld [vmem:[%s165 + $0x50] sm:$0xf]
      %v1972 = vld [vmem:[%s165 + $0x54] sm:$0xf]
      %v1973 = vld [vmem:[%s165 + $0x58] sm:$0xf]
      %v1974 = vld [vmem:[%s165 + $0x5c] sm:$0xf]
      %v1975 = vld [vmem:[%s165 + $0x60] sm:$0xf]
      %v1976 = vld [vmem:[%s165 + $0x64] sm:$0xf]
      %v1977 = vld [vmem:[%s165 + $0x68] sm:$0xf]
      %v1978 = vld [vmem:[%s165 + $0x6c] sm:$0xf]
      %v1979 = vld [vmem:[%s165 + $0x70] sm:$0xf]
      %v1980 = vld [vmem:[%s165 + $0x74] sm:$0xf]
      %v1981 = vld [vmem:[%s165 + $0x78] sm:$0xf]
      %v1982 = vld [vmem:[%s165 + $0x7c] sm:$0xf]
      %v1983 = vld [vmem:[%s165 + $0x80] sm:$0xf]
      %v1984 = vld [vmem:[%s165 + $0x84] sm:$0xf]
      %v1985 = vld [vmem:[%s165 + $0x88] sm:$0xf]
      %v1986 = vld [vmem:[%s165 + $0x8c] sm:$0xf]
      %v1987 = vld [vmem:[%s165 + $0x90] sm:$0xf]
      %v1988 = vld [vmem:[%s165 + $0x94] sm:$0xf]
      %v1989 = vld [vmem:[%s165 + $0x98] sm:$0xf]
      %v1990 = vld [vmem:[%s165 + $0x9c] sm:$0xf]
      %v1991 = vld [vmem:[%s165 + $0xa0] sm:$0x3]
      %s1992 = scalar_lea.vmem %s1, 12
      %v1993 = vld [vmem:[%s1992] sm:$0x3]
      %v2031 = vunpack.c.l.b16 %v1955
      %v2032 = vunpack.c.l.b16 %v1956
      %v2033 = vunpack.c.l.b16 %v1957
      %v2034 = vunpack.c.l.b16 %v1958
      %v2035 = vunpack.c.l.b16 %v1959
      %v2036 = vunpack.c.l.b16 %v1960
      %v2037 = vunpack.c.l.b16 %v1961
      %v2038 = vunpack.c.l.b16 %v1962
      %v2039 = vunpack.c.l.b16 %v1963
      %v2040 = vunpack.c.l.b16 %v1964
      %v2041 = vunpack.c.l.b16 %v1965
      %v2042 = vunpack.c.l.b16 %v1966
      %v2043 = vunpack.c.l.b16 %v1967
      %v2044 = vunpack.c.l.b16 %v1968
      %v2045 = vunpack.c.l.b16 %v1969
      %v2046 = vunpack.c.l.b16 %v1970
      %v2047 = vunpack.c.l.b16 %v1971
      %v2048 = vunpack.c.l.b16 %v1972
      %v2049 = vunpack.c.l.b16 %v1973
      %v2050 = vunpack.c.l.b16 %v1974
      %v2051 = vunpack.c.l.b16 %v1975
      %v2052 = vunpack.c.l.b16 %v1976
      %v2053 = vunpack.c.l.b16 %v1977
      %v2054 = vunpack.c.l.b16 %v1978
      %v2055 = vunpack.c.l.b16 %v1979
      %v2056 = vunpack.c.l.b16 %v1980
      %v2057 = vunpack.c.l.b16 %v1981
      %v2058 = vunpack.c.l.b16 %v1982
      %v2059 = vunpack.c.l.b16 %v1983
      %v2060 = vunpack.c.l.b16 %v1984
      %v2061 = vunpack.c.l.b16 %v1985
      %v2062 = vunpack.c.l.b16 %v1986
      %v2063 = vunpack.c.l.b16 %v1987
      %v2064 = vunpack.c.l.b16 %v1988
      %v2065 = vunpack.c.l.b16 %v1989
      %v2066 = vunpack.c.l.b16 %v1990
      %v2067 = vunpack.c.l.b16 %v1991
      %v2068 = vpack.c.b16 %v2032, %v2031
      %v2069 = vpack.c.b16 %v2034, %v2033
      %v2070 = vpack.c.b16 %v2036, %v2035
      %v2071 = vpack.c.b16 %v2038, %v2037
      %v2072 = vpack.c.b16 %v2040, %v2039
      %v2073 = vpack.c.b16 %v2042, %v2041
      %v2074 = vpack.c.b16 %v2044, %v2043
      %v2075 = vpack.c.b16 %v2046, %v2045
      %v2076 = vpack.c.b16 %v2048, %v2047
      %v2077 = vpack.c.b16 %v2050, %v2049
      %v2078 = vpack.c.b16 %v2052, %v2051
      %v2079 = vpack.c.b16 %v2054, %v2053
      %v2080 = vpack.c.b16 %v2056, %v2055
      %v2081 = vpack.c.b16 %v2058, %v2057
      %v2082 = vpack.c.b16 %v2060, %v2059
      %v2083 = vpack.c.b16 %v2062, %v2061
      %v2084 = vpack.c.b16 %v2064, %v2063
      %v2085 = vpack.c.b16 %v2066, %v2065
      %v2086 = vpack.c.b16 %v2067, %v2067
      %v2087 = vrot.slane %v2068, 2
      %v2088 = vrot.slane %v2069, 2
      %v2089 = vsel %vm1725, %v2087, %v2088
      %v2090 = vrot.slane %v2070, 2
      %v2091 = vsel %vm1725, %v2088, %v2090
      %v2092 = vrot.slane %v2071, 2
      %v2093 = vsel %vm1725, %v2090, %v2092
      %v2094 = vrot.slane %v2072, 2
      %v2095 = vsel %vm1725, %v2092, %v2094
      %v2096 = vrot.slane %v2073, 2
      %v2097 = vsel %vm1725, %v2094, %v2096
      %v2098 = vrot.slane %v2074, 2
      %v2099 = vsel %vm1725, %v2096, %v2098
      %v2100 = vrot.slane %v2075, 2
      %v2101 = vsel %vm1725, %v2098, %v2100
      %v2102 = vrot.slane %v2076, 2
      %v2103 = vsel %vm1725, %v2100, %v2102
      %v2104 = vrot.slane %v2077, 2
      %v2105 = vsel %vm1725, %v2102, %v2104
      %v2106 = vrot.slane %v2078, 2
      %v2107 = vsel %vm1725, %v2104, %v2106
      %v2108 = vrot.slane %v2079, 2
      %v2109 = vsel %vm1725, %v2106, %v2108
      %v2110 = vrot.slane %v2080, 2
      %v2111 = vsel %vm1725, %v2108, %v2110
      %v2112 = vrot.slane %v2081, 2
      %v2113 = vsel %vm1725, %v2110, %v2112
      %v2114 = vrot.slane %v2082, 2
      %v2115 = vsel %vm1725, %v2112, %v2114
      %v2116 = vrot.slane %v2083, 2
      %v2117 = vsel %vm1725, %v2114, %v2116
      %v2118 = vrot.slane %v2084, 2
      %v2119 = vsel %vm1725, %v2116, %v2118
      %v2120 = vrot.slane %v2085, 2
      %v2121 = vsel %vm1725, %v2118, %v2120
      %v2122 = vrot.slane %v2086, 2
      %v2123 = vsel %vm1725, %v2120, %v2122
      %v2125 = vsel %vm454, %v2089, 0
      %v2128 = vsel %vm454, %v2091, 0
      %v2131 = vsel %vm454, %v2093, 0
      %v2134 = vsel %vm454, %v2095, 0
      %v2137 = vsel %vm454, %v2097, 0
      %v2140 = vsel %vm454, %v2099, 0
      %v2143 = vsel %vm454, %v2101, 0
      %v2146 = vsel %vm454, %v2103, 0
      %v2149 = vsel %vm454, %v2105, 0
      %v2152 = vsel %vm454, %v2107, 0
      %v2155 = vsel %vm454, %v2109, 0
      %v2158 = vsel %vm454, %v2111, 0
      %v2161 = vsel %vm454, %v2113, 0
      %v2164 = vsel %vm454, %v2115, 0
      %v2167 = vsel %vm454, %v2117, 0
      %v2170 = vsel %vm454, %v2119, 0
      %v2173 = vsel %vm454, %v2121, 0
      %v2176 = vsel %vm454, %v2123, 0
      %v2179 = vand.u32 %v1993, %v512
      %2181 = vmatpush.bf16.msra.mxu0 0
      %2182 = vmatpush.bf16.msra.mxu0 0
      %2183 = vmatpush.bf16.msra.mxu0 0
      %2184 = vmatpush.bf16.msra.mxu0 0
      %2185 = vmatpush.bf16.msra.mxu0 0
      %2186 = vmatpush.bf16.msra.mxu0 0
      %2187 = vmatpush.bf16.msra.mxu0 0
      %2188 = vmatpush.bf16.msra.mxu0 %v2179
      %2189 = vmatmul.bf16.gmra.mxu0 %v2125
      %v2190 = vpop.f32.mrf.mxu0
      %v2191 = vadd.f32 0.0, %v2190
      %v2192 = vpop.f32.mrf.mxu0
      %v2193 = vadd.f32 0.0, %v2192
      %2194 = vmatmul.bf16.gmra.mxu0 %v2128
      %v2195 = vpop.f32.mrf.mxu0
      %v2196 = vadd.f32 0.0, %v2195
      %v2197 = vpop.f32.mrf.mxu0
      %v2198 = vadd.f32 0.0, %v2197
      %2199 = vmatmul.bf16.gmra.mxu0 %v2131
      %v2200 = vpop.f32.mrf.mxu0
      %v2201 = vadd.f32 0.0, %v2200
      %v2202 = vpop.f32.mrf.mxu0
      %v2203 = vadd.f32 0.0, %v2202
      %2204 = vmatmul.bf16.gmra.mxu0 %v2134
      %v2205 = vpop.f32.mrf.mxu0
      %v2206 = vadd.f32 0.0, %v2205
      %v2207 = vpop.f32.mrf.mxu0
      %v2208 = vadd.f32 0.0, %v2207
      %2209 = vmatmul.bf16.gmra.mxu0 %v2137
      %v2210 = vpop.f32.mrf.mxu0
      %v2211 = vadd.f32 0.0, %v2210
      %v2212 = vpop.f32.mrf.mxu0
      %v2213 = vadd.f32 0.0, %v2212
      %2214 = vmatmul.bf16.gmra.mxu0 %v2140
      %v2215 = vpop.f32.mrf.mxu0
      %v2216 = vadd.f32 0.0, %v2215
      %v2217 = vpop.f32.mrf.mxu0
      %v2218 = vadd.f32 0.0, %v2217
      %2219 = vmatmul.bf16.gmra.mxu0 %v2143
      %v2220 = vpop.f32.mrf.mxu0
      %v2221 = vadd.f32 0.0, %v2220
      %v2222 = vpop.f32.mrf.mxu0
      %v2223 = vadd.f32 0.0, %v2222
      %2224 = vmatmul.bf16.gmra.mxu0 %v2146
      %v2225 = vpop.f32.mrf.mxu0
      %v2226 = vadd.f32 0.0, %v2225
      %v2227 = vpop.f32.mrf.mxu0
      %v2228 = vadd.f32 0.0, %v2227
      %2229 = vmatmul.bf16.gmra.mxu0 %v2149
      %v2230 = vpop.f32.mrf.mxu0
      %v2231 = vadd.f32 0.0, %v2230
      %v2232 = vpop.f32.mrf.mxu0
      %v2233 = vadd.f32 0.0, %v2232
      %2234 = vmatmul.bf16.gmra.mxu0 %v2152
      %v2235 = vpop.f32.mrf.mxu0
      %v2236 = vadd.f32 0.0, %v2235
      %v2237 = vpop.f32.mrf.mxu0
      %v2238 = vadd.f32 0.0, %v2237
      %2239 = vmatmul.bf16.gmra.mxu0 %v2155
      %v2240 = vpop.f32.mrf.mxu0
      %v2241 = vadd.f32 0.0, %v2240
      %v2242 = vpop.f32.mrf.mxu0
      %v2243 = vadd.f32 0.0, %v2242
      %2244 = vmatmul.bf16.gmra.mxu0 %v2158
      %v2245 = vpop.f32.mrf.mxu0
      %v2246 = vadd.f32 0.0, %v2245
      %v2247 = vpop.f32.mrf.mxu0
      %v2248 = vadd.f32 0.0, %v2247
      %2249 = vmatmul.bf16.gmra.mxu0 %v2161
      %v2250 = vpop.f32.mrf.mxu0
      %v2251 = vadd.f32 0.0, %v2250
      %v2252 = vpop.f32.mrf.mxu0
      %v2253 = vadd.f32 0.0, %v2252
      %2254 = vmatmul.bf16.gmra.mxu0 %v2164
      %v2255 = vpop.f32.mrf.mxu0
      %v2256 = vadd.f32 0.0, %v2255
      %v2257 = vpop.f32.mrf.mxu0
      %v2258 = vadd.f32 0.0, %v2257
      %2259 = vmatmul.bf16.gmra.mxu0 %v2167
      %v2260 = vpop.f32.mrf.mxu0
      %v2261 = vadd.f32 0.0, %v2260
      %v2262 = vpop.f32.mrf.mxu0
      %v2263 = vadd.f32 0.0, %v2262
      %2264 = vmatmul.bf16.gmra.mxu0 %v2170
      %v2265 = vpop.f32.mrf.mxu0
      %v2266 = vadd.f32 0.0, %v2265
      %v2267 = vpop.f32.mrf.mxu0
      %v2268 = vadd.f32 0.0, %v2267
      %2269 = vmatmul.bf16.gmra.mxu0 %v2173
      %v2270 = vpop.f32.mrf.mxu0
      %v2271 = vadd.f32 0.0, %v2270
      %v2272 = vpop.f32.mrf.mxu0
      %v2273 = vadd.f32 0.0, %v2272
      %2274 = vmatmul.bf16.gmra.mxu0 %v2176
      %v2275 = vpop.f32.mrf.mxu0
      %v2276 = vadd.f32 0.0, %v2275
      %v2277 = vpop.f32.mrf.mxu0
      %v2278 = vadd.f32 0.0, %v2277
      %2279 = vdwg.mxu0
      %v2280 = vadd.f32 %v1919, %v2191
      %v2281 = vadd.f32 %v1920, %v2193
      %v2282 = vadd.f32 %v1921, %v2196
      %v2283 = vadd.f32 %v1922, %v2198
      %v2284 = vadd.f32 %v1923, %v2201
      %v2285 = vadd.f32 %v1924, %v2203
      %v2286 = vadd.f32 %v1925, %v2206
      %v2287 = vadd.f32 %v1926, %v2208
      %v2288 = vadd.f32 %v1927, %v2211
      %v2289 = vadd.f32 %v1928, %v2213
      %v2290 = vadd.f32 %v1929, %v2216
      %v2291 = vadd.f32 %v1930, %v2218
      %v2292 = vadd.f32 %v1931, %v2221
      %v2293 = vadd.f32 %v1932, %v2223
      %v2294 = vadd.f32 %v1933, %v2226
      %v2295 = vadd.f32 %v1934, %v2228
      %v2296 = vadd.f32 %v1935, %v2231
      %v2297 = vadd.f32 %v1936, %v2233
      %v2298 = vadd.f32 %v1937, %v2236
      %v2299 = vadd.f32 %v1938, %v2238
      %v2300 = vadd.f32 %v1939, %v2241
      %v2301 = vadd.f32 %v1940, %v2243
      %v2302 = vadd.f32 %v1941, %v2246
      %v2303 = vadd.f32 %v1942, %v2248
      %v2304 = vadd.f32 %v1943, %v2251
      %v2305 = vadd.f32 %v1944, %v2253
      %v2306 = vadd.f32 %v1945, %v2256
      %v2307 = vadd.f32 %v1946, %v2258
      %v2308 = vadd.f32 %v1947, %v2261
      %v2309 = vadd.f32 %v1948, %v2263
      %v2310 = vadd.f32 %v1949, %v2266
      %v2311 = vadd.f32 %v1950, %v2268
      %v2312 = vadd.f32 %v1951, %v2271
      %v2313 = vadd.f32 %v1952, %v2273
      %v2314 = vadd.f32 %v1953, %v2276
      %v2315 = vadd.f32 %v1954, %v2278
      %v2316 = vld [vmem:[%s165 + $0xa0] sm:$0x7]
      %s2317 = scalar_lea.vmem %s1, 14
      %v2318 = vld [vmem:[%s2317] sm:$0x3]
      %v2320 = vunpack.c.l.b16 %v2316
      %v2321 = vpack.c.b16 %v2320, %v2320
      %vm2322 = vsmask.f32 5376
      %v2324 = vshrl.u32 %v2068, 16
      %v2326 = vrot.slane %v2324, 2
      %v2327 = vshll.u32 %v2068, 16
      %v2329 = vrot.slane %v2327, 3
      %v2330 = vor.u32 %v2326, %v2329
      %v2332 = vshrl.u32 %v2069, 16
      %v2334 = vrot.slane %v2332, 2
      %v2335 = vshll.u32 %v2069, 16
      %v2337 = vrot.slane %v2335, 3
      %v2338 = vor.u32 %v2334, %v2337
      %v2339 = vsel %vm2322, %v2330, %v2338
      %v2341 = vshrl.u32 %v2070, 16
      %v2343 = vrot.slane %v2341, 2
      %v2344 = vshll.u32 %v2070, 16
      %v2346 = vrot.slane %v2344, 3
      %v2347 = vor.u32 %v2343, %v2346
      %v2348 = vsel %vm2322, %v2338, %v2347
      %v2350 = vshrl.u32 %v2071, 16
      %v2352 = vrot.slane %v2350, 2
      %v2353 = vshll.u32 %v2071, 16
      %v2355 = vrot.slane %v2353, 3
      %v2356 = vor.u32 %v2352, %v2355
      %v2357 = vsel %vm2322, %v2347, %v2356
      %v2359 = vshrl.u32 %v2072, 16
      %v2361 = vrot.slane %v2359, 2
      %v2362 = vshll.u32 %v2072, 16
      %v2364 = vrot.slane %v2362, 3
      %v2365 = vor.u32 %v2361, %v2364
      %v2366 = vsel %vm2322, %v2356, %v2365
      %v2368 = vshrl.u32 %v2073, 16
      %v2370 = vrot.slane %v2368, 2
      %v2371 = vshll.u32 %v2073, 16
      %v2373 = vrot.slane %v2371, 3
      %v2374 = vor.u32 %v2370, %v2373
      %v2375 = vsel %vm2322, %v2365, %v2374
      %v2377 = vshrl.u32 %v2074, 16
      %v2379 = vrot.slane %v2377, 2
      %v2380 = vshll.u32 %v2074, 16
      %v2382 = vrot.slane %v2380, 3
      %v2383 = vor.u32 %v2379, %v2382
      %v2384 = vsel %vm2322, %v2374, %v2383
      %v2386 = vshrl.u32 %v2075, 16
      %v2388 = vrot.slane %v2386, 2
      %v2389 = vshll.u32 %v2075, 16
      %v2391 = vrot.slane %v2389, 3
      %v2392 = vor.u32 %v2388, %v2391
      %v2393 = vsel %vm2322, %v2383, %v2392
      %v2395 = vshrl.u32 %v2076, 16
      %v2397 = vrot.slane %v2395, 2
      %v2398 = vshll.u32 %v2076, 16
      %v2400 = vrot.slane %v2398, 3
      %v2401 = vor.u32 %v2397, %v2400
      %v2402 = vsel %vm2322, %v2392, %v2401
      %v2404 = vshrl.u32 %v2077, 16
      %v2406 = vrot.slane %v2404, 2
      %v2407 = vshll.u32 %v2077, 16
      %v2409 = vrot.slane %v2407, 3
      %v2410 = vor.u32 %v2406, %v2409
      %v2411 = vsel %vm2322, %v2401, %v2410
      %v2413 = vshrl.u32 %v2078, 16
      %v2415 = vrot.slane %v2413, 2
      %v2416 = vshll.u32 %v2078, 16
      %v2418 = vrot.slane %v2416, 3
      %v2419 = vor.u32 %v2415, %v2418
      %v2420 = vsel %vm2322, %v2410, %v2419
      %v2422 = vshrl.u32 %v2079, 16
      %v2424 = vrot.slane %v2422, 2
      %v2425 = vshll.u32 %v2079, 16
      %v2427 = vrot.slane %v2425, 3
      %v2428 = vor.u32 %v2424, %v2427
      %v2429 = vsel %vm2322, %v2419, %v2428
      %v2431 = vshrl.u32 %v2080, 16
      %v2433 = vrot.slane %v2431, 2
      %v2434 = vshll.u32 %v2080, 16
      %v2436 = vrot.slane %v2434, 3
      %v2437 = vor.u32 %v2433, %v2436
      %v2438 = vsel %vm2322, %v2428, %v2437
      %v2440 = vshrl.u32 %v2081, 16
      %v2442 = vrot.slane %v2440, 2
      %v2443 = vshll.u32 %v2081, 16
      %v2445 = vrot.slane %v2443, 3
      %v2446 = vor.u32 %v2442, %v2445
      %v2447 = vsel %vm2322, %v2437, %v2446
      %v2449 = vshrl.u32 %v2082, 16
      %v2451 = vrot.slane %v2449, 2
      %v2452 = vshll.u32 %v2082, 16
      %v2454 = vrot.slane %v2452, 3
      %v2455 = vor.u32 %v2451, %v2454
      %v2456 = vsel %vm2322, %v2446, %v2455
      %v2458 = vshrl.u32 %v2083, 16
      %v2460 = vrot.slane %v2458, 2
      %v2461 = vshll.u32 %v2083, 16
      %v2463 = vrot.slane %v2461, 3
      %v2464 = vor.u32 %v2460, %v2463
      %v2465 = vsel %vm2322, %v2455, %v2464
      %v2467 = vshrl.u32 %v2084, 16
      %v2469 = vrot.slane %v2467, 2
      %v2470 = vshll.u32 %v2084, 16
      %v2472 = vrot.slane %v2470, 3
      %v2473 = vor.u32 %v2469, %v2472
      %v2474 = vsel %vm2322, %v2464, %v2473
      %v2476 = vshrl.u32 %v2085, 16
      %v2478 = vrot.slane %v2476, 2
      %v2479 = vshll.u32 %v2085, 16
      %v2481 = vrot.slane %v2479, 3
      %v2482 = vor.u32 %v2478, %v2481
      %v2483 = vsel %vm2322, %v2473, %v2482
      %v2485 = vshrl.u32 %v2321, 16
      %v2487 = vrot.slane %v2485, 2
      %v2488 = vshll.u32 %v2321, 16
      %v2490 = vrot.slane %v2488, 3
      %v2491 = vor.u32 %v2487, %v2490
      %v2492 = vsel %vm2322, %v2482, %v2491
      %v2494 = vsel %vm454, %v2339, 0
      %v2497 = vsel %vm454, %v2348, 0
      %v2500 = vsel %vm454, %v2357, 0
      %v2503 = vsel %vm454, %v2366, 0
      %v2506 = vsel %vm454, %v2375, 0
      %v2509 = vsel %vm454, %v2384, 0
      %v2512 = vsel %vm454, %v2393, 0
      %v2515 = vsel %vm454, %v2402, 0
      %v2518 = vsel %vm454, %v2411, 0
      %v2521 = vsel %vm454, %v2420, 0
      %v2524 = vsel %vm454, %v2429, 0
      %v2527 = vsel %vm454, %v2438, 0
      %v2530 = vsel %vm454, %v2447, 0
      %v2533 = vsel %vm454, %v2456, 0
      %v2536 = vsel %vm454, %v2465, 0
      %v2539 = vsel %vm454, %v2474, 0
      %v2542 = vsel %vm454, %v2483, 0
      %v2545 = vsel %vm454, %v2492, 0
      %v2548 = vand.u32 %v2318, %v512
      %2550 = vmatpush.bf16.msra.mxu0 0
      %2551 = vmatpush.bf16.msra.mxu0 0
      %2552 = vmatpush.bf16.msra.mxu0 0
      %2553 = vmatpush.bf16.msra.mxu0 0
      %2554 = vmatpush.bf16.msra.mxu0 0
      %2555 = vmatpush.bf16.msra.mxu0 0
      %2556 = vmatpush.bf16.msra.mxu0 0
      %2557 = vmatpush.bf16.msra.mxu0 %v2548
      %2558 = vmatmul.bf16.gmra.mxu0 %v2494
      %v2559 = vpop.f32.mrf.mxu0
      %v2560 = vadd.f32 0.0, %v2559
      %v2561 = vpop.f32.mrf.mxu0
      %v2562 = vadd.f32 0.0, %v2561
      %2563 = vmatmul.bf16.gmra.mxu0 %v2497
      %v2564 = vpop.f32.mrf.mxu0
      %v2565 = vadd.f32 0.0, %v2564
      %v2566 = vpop.f32.mrf.mxu0
      %v2567 = vadd.f32 0.0, %v2566
      %2568 = vmatmul.bf16.gmra.mxu0 %v2500
      %v2569 = vpop.f32.mrf.mxu0
      %v2570 = vadd.f32 0.0, %v2569
      %v2571 = vpop.f32.mrf.mxu0
      %v2572 = vadd.f32 0.0, %v2571
      %2573 = vmatmul.bf16.gmra.mxu0 %v2503
      %v2574 = vpop.f32.mrf.mxu0
      %v2575 = vadd.f32 0.0, %v2574
      %v2576 = vpop.f32.mrf.mxu0
      %v2577 = vadd.f32 0.0, %v2576
      %2578 = vmatmul.bf16.gmra.mxu0 %v2506
      %v2579 = vpop.f32.mrf.mxu0
      %v2580 = vadd.f32 0.0, %v2579
      %v2581 = vpop.f32.mrf.mxu0
      %v2582 = vadd.f32 0.0, %v2581
      %2583 = vmatmul.bf16.gmra.mxu0 %v2509
      %v2584 = vpop.f32.mrf.mxu0
      %v2585 = vadd.f32 0.0, %v2584
      %v2586 = vpop.f32.mrf.mxu0
      %v2587 = vadd.f32 0.0, %v2586
      %2588 = vmatmul.bf16.gmra.mxu0 %v2512
      %v2589 = vpop.f32.mrf.mxu0
      %v2590 = vadd.f32 0.0, %v2589
      %v2591 = vpop.f32.mrf.mxu0
      %v2592 = vadd.f32 0.0, %v2591
      %2593 = vmatmul.bf16.gmra.mxu0 %v2515
      %v2594 = vpop.f32.mrf.mxu0
      %v2595 = vadd.f32 0.0, %v2594
      %v2596 = vpop.f32.mrf.mxu0
      %v2597 = vadd.f32 0.0, %v2596
      %2598 = vmatmul.bf16.gmra.mxu0 %v2518
      %v2599 = vpop.f32.mrf.mxu0
      %v2600 = vadd.f32 0.0, %v2599
      %v2601 = vpop.f32.mrf.mxu0
      %v2602 = vadd.f32 0.0, %v2601
      %2603 = vmatmul.bf16.gmra.mxu0 %v2521
      %v2604 = vpop.f32.mrf.mxu0
      %v2605 = vadd.f32 0.0, %v2604
      %v2606 = vpop.f32.mrf.mxu0
      %v2607 = vadd.f32 0.0, %v2606
      %2608 = vmatmul.bf16.gmra.mxu0 %v2524
      %v2609 = vpop.f32.mrf.mxu0
      %v2610 = vadd.f32 0.0, %v2609
      %v2611 = vpop.f32.mrf.mxu0
      %v2612 = vadd.f32 0.0, %v2611
      %2613 = vmatmul.bf16.gmra.mxu0 %v2527
      %v2614 = vpop.f32.mrf.mxu0
      %v2615 = vadd.f32 0.0, %v2614
      %v2616 = vpop.f32.mrf.mxu0
      %v2617 = vadd.f32 0.0, %v2616
      %2618 = vmatmul.bf16.gmra.mxu0 %v2530
      %v2619 = vpop.f32.mrf.mxu0
      %v2620 = vadd.f32 0.0, %v2619
      %v2621 = vpop.f32.mrf.mxu0
      %v2622 = vadd.f32 0.0, %v2621
      %2623 = vmatmul.bf16.gmra.mxu0 %v2533
      %v2624 = vpop.f32.mrf.mxu0
      %v2625 = vadd.f32 0.0, %v2624
      %v2626 = vpop.f32.mrf.mxu0
      %v2627 = vadd.f32 0.0, %v2626
      %2628 = vmatmul.bf16.gmra.mxu0 %v2536
      %v2629 = vpop.f32.mrf.mxu0
      %v2630 = vadd.f32 0.0, %v2629
      %v2631 = vpop.f32.mrf.mxu0
      %v2632 = vadd.f32 0.0, %v2631
      %2633 = vmatmul.bf16.gmra.mxu0 %v2539
      %v2634 = vpop.f32.mrf.mxu0
      %v2635 = vadd.f32 0.0, %v2634
      %v2636 = vpop.f32.mrf.mxu0
      %v2637 = vadd.f32 0.0, %v2636
      %2638 = vmatmul.bf16.gmra.mxu0 %v2542
      %v2639 = vpop.f32.mrf.mxu0
      %v2640 = vadd.f32 0.0, %v2639
      %v2641 = vpop.f32.mrf.mxu0
      %v2642 = vadd.f32 0.0, %v2641
      %2643 = vmatmul.bf16.gmra.mxu0 %v2545
      %v2644 = vpop.f32.mrf.mxu0
      %v2645 = vadd.f32 0.0, %v2644
      %v2646 = vpop.f32.mrf.mxu0
      %v2647 = vadd.f32 0.0, %v2646
      %2648 = vdwg.mxu0
      %v2649 = vadd.f32 %v2280, %v2560
      %v2650 = vadd.f32 %v2281, %v2562
      %v2651 = vadd.f32 %v2282, %v2565
      %v2652 = vadd.f32 %v2283, %v2567
      %v2653 = vadd.f32 %v2284, %v2570
      %v2654 = vadd.f32 %v2285, %v2572
      %v2655 = vadd.f32 %v2286, %v2575
      %v2656 = vadd.f32 %v2287, %v2577
      %v2657 = vadd.f32 %v2288, %v2580
      %v2658 = vadd.f32 %v2289, %v2582
      %v2659 = vadd.f32 %v2290, %v2585
      %v2660 = vadd.f32 %v2291, %v2587
      %v2661 = vadd.f32 %v2292, %v2590
      %v2662 = vadd.f32 %v2293, %v2592
      %v2663 = vadd.f32 %v2294, %v2595
      %v2664 = vadd.f32 %v2295, %v2597
      %v2665 = vadd.f32 %v2296, %v2600
      %v2666 = vadd.f32 %v2297, %v2602
      %v2667 = vadd.f32 %v2298, %v2605
      %v2668 = vadd.f32 %v2299, %v2607
      %v2669 = vadd.f32 %v2300, %v2610
      %v2670 = vadd.f32 %v2301, %v2612
      %v2671 = vadd.f32 %v2302, %v2615
      %v2672 = vadd.f32 %v2303, %v2617
      %v2673 = vadd.f32 %v2304, %v2620
      %v2674 = vadd.f32 %v2305, %v2622
      %v2675 = vadd.f32 %v2306, %v2625
      %v2676 = vadd.f32 %v2307, %v2627
      %v2677 = vadd.f32 %v2308, %v2630
      %v2678 = vadd.f32 %v2309, %v2632
      %v2679 = vadd.f32 %v2310, %v2635
      %v2680 = vadd.f32 %v2311, %v2637
      %v2681 = vadd.f32 %v2312, %v2640
      %v2682 = vadd.f32 %v2313, %v2642
      %v2683 = vadd.f32 %v2314, %v2645
      %v2684 = vadd.f32 %v2315, %v2647
      %v2685 = vld [vmem:[%s165 + $0x10] sm:$0x8]
      %s2686 = scalar_lea.vmem %s1, 16
      %v2687 = vld [vmem:[%s2686] sm:$0x3]
      %v2689 = vunpack.c.l.b16 %v2685
      %v2690 = vpack.c.b16 %v2032, %v2689
      %vm2691 = vcmask 1044480
      %v2692 = vrot.slane %v2690, 3
      %v2693 = vrot.slane %v2069, 3
      %v2694 = vsel %vm2691, %v2692, %v2693
      %v2695 = vrot.slane %v2070, 3
      %v2696 = vsel %vm2691, %v2693, %v2695
      %v2697 = vrot.slane %v2071, 3
      %v2698 = vsel %vm2691, %v2695, %v2697
      %v2699 = vrot.slane %v2072, 3
      %v2700 = vsel %vm2691, %v2697, %v2699
      %v2701 = vrot.slane %v2073, 3
      %v2702 = vsel %vm2691, %v2699, %v2701
      %v2703 = vrot.slane %v2074, 3
      %v2704 = vsel %vm2691, %v2701, %v2703
      %v2705 = vrot.slane %v2075, 3
      %v2706 = vsel %vm2691, %v2703, %v2705
      %v2707 = vrot.slane %v2076, 3
      %v2708 = vsel %vm2691, %v2705, %v2707
      %v2709 = vrot.slane %v2077, 3
      %v2710 = vsel %vm2691, %v2707, %v2709
      %v2711 = vrot.slane %v2078, 3
      %v2712 = vsel %vm2691, %v2709, %v2711
      %v2713 = vrot.slane %v2079, 3
      %v2714 = vsel %vm2691, %v2711, %v2713
      %v2715 = vrot.slane %v2080, 3
      %v2716 = vsel %vm2691, %v2713, %v2715
      %v2717 = vrot.slane %v2081, 3
      %v2718 = vsel %vm2691, %v2715, %v2717
      %v2719 = vrot.slane %v2082, 3
      %v2720 = vsel %vm2691, %v2717, %v2719
      %v2721 = vrot.slane %v2083, 3
      %v2722 = vsel %vm2691, %v2719, %v2721
      %v2723 = vrot.slane %v2084, 3
      %v2724 = vsel %vm2691, %v2721, %v2723
      %v2725 = vrot.slane %v2085, 3
      %v2726 = vsel %vm2691, %v2723, %v2725
      %v2727 = vrot.slane %v2321, 3
      %v2728 = vsel %vm2691, %v2725, %v2727
      %v2730 = vsel %vm454, %v2694, 0
      %v2733 = vsel %vm454, %v2696, 0
      %v2736 = vsel %vm454, %v2698, 0
      %v2739 = vsel %vm454, %v2700, 0
      %v2742 = vsel %vm454, %v2702, 0
      %v2745 = vsel %vm454, %v2704, 0
      %v2748 = vsel %vm454, %v2706, 0
      %v2751 = vsel %vm454, %v2708, 0
      %v2754 = vsel %vm454, %v2710, 0
      %v2757 = vsel %vm454, %v2712, 0
      %v2760 = vsel %vm454, %v2714, 0
      %v2763 = vsel %vm454, %v2716, 0
      %v2766 = vsel %vm454, %v2718, 0
      %v2769 = vsel %vm454, %v2720, 0
      %v2772 = vsel %vm454, %v2722, 0
      %v2775 = vsel %vm454, %v2724, 0
      %v2778 = vsel %vm454, %v2726, 0
      %v2781 = vsel %vm454, %v2728, 0
      %v2784 = vand.u32 %v2687, %v512
      %2786 = vmatpush.bf16.msra.mxu0 0
      %2787 = vmatpush.bf16.msra.mxu0 0
      %2788 = vmatpush.bf16.msra.mxu0 0
      %2789 = vmatpush.bf16.msra.mxu0 0
      %2790 = vmatpush.bf16.msra.mxu0 0
      %2791 = vmatpush.bf16.msra.mxu0 0
      %2792 = vmatpush.bf16.msra.mxu0 0
      %2793 = vmatpush.bf16.msra.mxu0 %v2784
      %2794 = vmatmul.bf16.gmra.mxu0 %v2730
      %v2795 = vpop.f32.mrf.mxu0
      %v2796 = vadd.f32 0.0, %v2795
      %v2797 = vpop.f32.mrf.mxu0
      %v2798 = vadd.f32 0.0, %v2797
      %2799 = vmatmul.bf16.gmra.mxu0 %v2733
      %v2800 = vpop.f32.mrf.mxu0
      %v2801 = vadd.f32 0.0, %v2800
      %v2802 = vpop.f32.mrf.mxu0
      %v2803 = vadd.f32 0.0, %v2802
      %2804 = vmatmul.bf16.gmra.mxu0 %v2736
      %v2805 = vpop.f32.mrf.mxu0
      %v2806 = vadd.f32 0.0, %v2805
      %v2807 = vpop.f32.mrf.mxu0
      %v2808 = vadd.f32 0.0, %v2807
      %2809 = vmatmul.bf16.gmra.mxu0 %v2739
      %v2810 = vpop.f32.mrf.mxu0
      %v2811 = vadd.f32 0.0, %v2810
      %v2812 = vpop.f32.mrf.mxu0
      %v2813 = vadd.f32 0.0, %v2812
      %2814 = vmatmul.bf16.gmra.mxu0 %v2742
      %v2815 = vpop.f32.mrf.mxu0
      %v2816 = vadd.f32 0.0, %v2815
      %v2817 = vpop.f32.mrf.mxu0
      %v2818 = vadd.f32 0.0, %v2817
      %2819 = vmatmul.bf16.gmra.mxu0 %v2745
      %v2820 = vpop.f32.mrf.mxu0
      %v2821 = vadd.f32 0.0, %v2820
      %v2822 = vpop.f32.mrf.mxu0
      %v2823 = vadd.f32 0.0, %v2822
      %2824 = vmatmul.bf16.gmra.mxu0 %v2748
      %v2825 = vpop.f32.mrf.mxu0
      %v2826 = vadd.f32 0.0, %v2825
      %v2827 = vpop.f32.mrf.mxu0
      %v2828 = vadd.f32 0.0, %v2827
      %2829 = vmatmul.bf16.gmra.mxu0 %v2751
      %v2830 = vpop.f32.mrf.mxu0
      %v2831 = vadd.f32 0.0, %v2830
      %v2832 = vpop.f32.mrf.mxu0
      %v2833 = vadd.f32 0.0, %v2832
      %2834 = vmatmul.bf16.gmra.mxu0 %v2754
      %v2835 = vpop.f32.mrf.mxu0
      %v2836 = vadd.f32 0.0, %v2835
      %v2837 = vpop.f32.mrf.mxu0
      %v2838 = vadd.f32 0.0, %v2837
      %2839 = vmatmul.bf16.gmra.mxu0 %v2757
      %v2840 = vpop.f32.mrf.mxu0
      %v2841 = vadd.f32 0.0, %v2840
      %v2842 = vpop.f32.mrf.mxu0
      %v2843 = vadd.f32 0.0, %v2842
      %2844 = vmatmul.bf16.gmra.mxu0 %v2760
      %v2845 = vpop.f32.mrf.mxu0
      %v2846 = vadd.f32 0.0, %v2845
      %v2847 = vpop.f32.mrf.mxu0
      %v2848 = vadd.f32 0.0, %v2847
      %2849 = vmatmul.bf16.gmra.mxu0 %v2763
      %v2850 = vpop.f32.mrf.mxu0
      %v2851 = vadd.f32 0.0, %v2850
      %v2852 = vpop.f32.mrf.mxu0
      %v2853 = vadd.f32 0.0, %v2852
      %2854 = vmatmul.bf16.gmra.mxu0 %v2766
      %v2855 = vpop.f32.mrf.mxu0
      %v2856 = vadd.f32 0.0, %v2855
      %v2857 = vpop.f32.mrf.mxu0
      %v2858 = vadd.f32 0.0, %v2857
      %2859 = vmatmul.bf16.gmra.mxu0 %v2769
      %v2860 = vpop.f32.mrf.mxu0
      %v2861 = vadd.f32 0.0, %v2860
      %v2862 = vpop.f32.mrf.mxu0
      %v2863 = vadd.f32 0.0, %v2862
      %2864 = vmatmul.bf16.gmra.mxu0 %v2772
      %v2865 = vpop.f32.mrf.mxu0
      %v2866 = vadd.f32 0.0, %v2865
      %v2867 = vpop.f32.mrf.mxu0
      %v2868 = vadd.f32 0.0, %v2867
      %2869 = vmatmul.bf16.gmra.mxu0 %v2775
      %v2870 = vpop.f32.mrf.mxu0
      %v2871 = vadd.f32 0.0, %v2870
      %v2872 = vpop.f32.mrf.mxu0
      %v2873 = vadd.f32 0.0, %v2872
      %2874 = vmatmul.bf16.gmra.mxu0 %v2778
      %v2875 = vpop.f32.mrf.mxu0
      %v2876 = vadd.f32 0.0, %v2875
      %v2877 = vpop.f32.mrf.mxu0
      %v2878 = vadd.f32 0.0, %v2877
      %2879 = vmatmul.bf16.gmra.mxu0 %v2781
      %v2880 = vpop.f32.mrf.mxu0
      %v2881 = vadd.f32 0.0, %v2880
      %v2882 = vpop.f32.mrf.mxu0
      %v2883 = vadd.f32 0.0, %v2882
      %2884 = vdwg.mxu0
      %v2885 = vadd.f32 %v2649, %v2796
      %v2886 = vadd.f32 %v2650, %v2798
      %v2887 = vadd.f32 %v2651, %v2801
      %v2888 = vadd.f32 %v2652, %v2803
      %v2889 = vadd.f32 %v2653, %v2806
      %v2890 = vadd.f32 %v2654, %v2808
      %v2891 = vadd.f32 %v2655, %v2811
      %v2892 = vadd.f32 %v2656, %v2813
      %v2893 = vadd.f32 %v2657, %v2816
      %v2894 = vadd.f32 %v2658, %v2818
      %v2895 = vadd.f32 %v2659, %v2821
      %v2896 = vadd.f32 %v2660, %v2823
      %v2897 = vadd.f32 %v2661, %v2826
      %v2898 = vadd.f32 %v2662, %v2828
      %v2899 = vadd.f32 %v2663, %v2831
      %v2900 = vadd.f32 %v2664, %v2833
      %v2901 = vadd.f32 %v2665, %v2836
      %v2902 = vadd.f32 %v2666, %v2838
      %v2903 = vadd.f32 %v2667, %v2841
      %v2904 = vadd.f32 %v2668, %v2843
      %v2905 = vadd.f32 %v2669, %v2846
      %v2906 = vadd.f32 %v2670, %v2848
      %v2907 = vadd.f32 %v2671, %v2851
      %v2908 = vadd.f32 %v2672, %v2853
      %v2909 = vadd.f32 %v2673, %v2856
      %v2910 = vadd.f32 %v2674, %v2858
      %v2911 = vadd.f32 %v2675, %v2861
      %v2912 = vadd.f32 %v2676, %v2863
      %v2913 = vadd.f32 %v2677, %v2866
      %v2914 = vadd.f32 %v2678, %v2868
      %v2915 = vadd.f32 %v2679, %v2871
      %v2916 = vadd.f32 %v2680, %v2873
      %v2917 = vadd.f32 %v2681, %v2876
      %v2918 = vadd.f32 %v2682, %v2878
      %v2919 = vadd.f32 %v2683, %v2881
      %v2920 = vadd.f32 %v2684, %v2883
      %v2921 = vld [vmem:[%s2] sm:$0x1]
      %v2922 = vperm.slane %v2921, 0
      %v2923 = vmul.f32 %v2885, %v2922
      %v2924 = vmul.f32 %v2886, %v2922
      %v2925 = vmul.f32 %v2887, %v2922
      %v2926 = vmul.f32 %v2888, %v2922
      %v2927 = vmul.f32 %v2889, %v2922
      %v2928 = vmul.f32 %v2890, %v2922
      %v2929 = vmul.f32 %v2891, %v2922
      %v2930 = vmul.f32 %v2892, %v2922
      %v2931 = vmul.f32 %v2893, %v2922
      %v2932 = vmul.f32 %v2894, %v2922
      %v2933 = vmul.f32 %v2895, %v2922
      %v2934 = vmul.f32 %v2896, %v2922
      %v2935 = vmul.f32 %v2897, %v2922
      %v2936 = vmul.f32 %v2898, %v2922
      %v2937 = vmul.f32 %v2899, %v2922
      %v2938 = vmul.f32 %v2900, %v2922
      %v2939 = vmul.f32 %v2901, %v2922
      %v2940 = vmul.f32 %v2902, %v2922
      %v2941 = vmul.f32 %v2903, %v2922
      %v2942 = vmul.f32 %v2904, %v2922
      %v2943 = vmul.f32 %v2905, %v2922
      %v2944 = vmul.f32 %v2906, %v2922
      %v2945 = vmul.f32 %v2907, %v2922
      %v2946 = vmul.f32 %v2908, %v2922
      %v2947 = vmul.f32 %v2909, %v2922
      %v2948 = vmul.f32 %v2910, %v2922
      %v2949 = vmul.f32 %v2911, %v2922
      %v2950 = vmul.f32 %v2912, %v2922
      %v2951 = vmul.f32 %v2913, %v2922
      %v2952 = vmul.f32 %v2914, %v2922
      %v2953 = vmul.f32 %v2915, %v2922
      %v2954 = vmul.f32 %v2916, %v2922
      %v2955 = vmul.f32 %v2917, %v2922
      %v2956 = vmul.f32 %v2918, %v2922
      %v2957 = vmul.f32 %v2919, %v2922
      %v2958 = vmul.f32 %v2920, %v2922
      %v2959 = vld [vmem:[%s2 + $0x1] sm:$0x1]
      %v2960 = vperm.slane %v2959, 0
      %v2961 = vadd.f32 %v2923, %v2960
      %v2962 = vadd.f32 %v2924, %v2960
      %v2963 = vadd.f32 %v2925, %v2960
      %v2964 = vadd.f32 %v2926, %v2960
      %v2965 = vadd.f32 %v2927, %v2960
      %v2966 = vadd.f32 %v2928, %v2960
      %v2967 = vadd.f32 %v2929, %v2960
      %v2968 = vadd.f32 %v2930, %v2960
      %v2969 = vadd.f32 %v2931, %v2960
      %v2970 = vadd.f32 %v2932, %v2960
      %v2971 = vadd.f32 %v2933, %v2960
      %v2972 = vadd.f32 %v2934, %v2960
      %v2973 = vadd.f32 %v2935, %v2960
      %v2974 = vadd.f32 %v2936, %v2960
      %v2975 = vadd.f32 %v2937, %v2960
      %v2976 = vadd.f32 %v2938, %v2960
      %v2977 = vadd.f32 %v2939, %v2960
      %v2978 = vadd.f32 %v2940, %v2960
      %v2979 = vadd.f32 %v2941, %v2960
      %v2980 = vadd.f32 %v2942, %v2960
      %v2981 = vadd.f32 %v2943, %v2960
      %v2982 = vadd.f32 %v2944, %v2960
      %v2983 = vadd.f32 %v2945, %v2960
      %v2984 = vadd.f32 %v2946, %v2960
      %v2985 = vadd.f32 %v2947, %v2960
      %v2986 = vadd.f32 %v2948, %v2960
      %v2987 = vadd.f32 %v2949, %v2960
      %v2988 = vadd.f32 %v2950, %v2960
      %v2989 = vadd.f32 %v2951, %v2960
      %v2990 = vadd.f32 %v2952, %v2960
      %v2991 = vadd.f32 %v2953, %v2960
      %v2992 = vadd.f32 %v2954, %v2960
      %v2993 = vadd.f32 %v2955, %v2960
      %v2994 = vadd.f32 %v2956, %v2960
      %v2995 = vadd.f32 %v2957, %v2960
      %v2996 = vadd.f32 %v2958, %v2960
      %v2997 = vmin.f32 %v2961, 20.0
      %v2998 = vmin.f32 %v2962, 20.0
      %v2999 = vmin.f32 %v2963, 20.0
      %v3000 = vmin.f32 %v2964, 20.0
      %v3001 = vmin.f32 %v2965, 20.0
      %v3002 = vmin.f32 %v2966, 20.0
      %v3003 = vmin.f32 %v2967, 20.0
      %v3004 = vmin.f32 %v2968, 20.0
      %v3005 = vmin.f32 %v2969, 20.0
      %v3006 = vmin.f32 %v2970, 20.0
      %v3007 = vmin.f32 %v2971, 20.0
      %v3008 = vmin.f32 %v2972, 20.0
      %v3009 = vmin.f32 %v2973, 20.0
      %v3010 = vmin.f32 %v2974, 20.0
      %v3011 = vmin.f32 %v2975, 20.0
      %v3012 = vmin.f32 %v2976, 20.0
      %v3013 = vmin.f32 %v2977, 20.0
      %v3014 = vmin.f32 %v2978, 20.0
      %v3015 = vmin.f32 %v2979, 20.0
      %v3016 = vmin.f32 %v2980, 20.0
      %v3017 = vmin.f32 %v2981, 20.0
      %v3018 = vmin.f32 %v2982, 20.0
      %v3019 = vmin.f32 %v2983, 20.0
      %v3020 = vmin.f32 %v2984, 20.0
      %v3021 = vmin.f32 %v2985, 20.0
      %v3022 = vmin.f32 %v2986, 20.0
      %v3023 = vmin.f32 %v2987, 20.0
      %v3024 = vmin.f32 %v2988, 20.0
      %v3025 = vmin.f32 %v2989, 20.0
      %v3026 = vmin.f32 %v2990, 20.0
      %v3027 = vmin.f32 %v2991, 20.0
      %v3028 = vmin.f32 %v2992, 20.0
      %v3029 = vmin.f32 %v2993, 20.0
      %v3030 = vmin.f32 %v2994, 20.0
      %v3031 = vmin.f32 %v2995, 20.0
      %v3032 = vmin.f32 %v2996, 20.0
      %v3033 = vmul.f32 %v2997, 1.442695
      %v3034 = vpow.pop %v3033
      %v3035 = vmul.f32 %v2998, 1.442695
      %v3036 = vpow.pop %v3035
      %v3037 = vmul.f32 %v2999, 1.442695
      %v3038 = vpow.pop %v3037
      %v3039 = vmul.f32 %v3000, 1.442695
      %v3040 = vpow.pop %v3039
      %v3041 = vmul.f32 %v3001, 1.442695
      %v3042 = vpow.pop %v3041
      %v3043 = vmul.f32 %v3002, 1.442695
      %v3044 = vpow.pop %v3043
      %v3045 = vmul.f32 %v3003, 1.442695
      %v3046 = vpow.pop %v3045
      %v3047 = vmul.f32 %v3004, 1.442695
      %v3048 = vpow.pop %v3047
      %v3049 = vmul.f32 %v3005, 1.442695
      %v3050 = vpow.pop %v3049
      %v3051 = vmul.f32 %v3006, 1.442695
      %v3052 = vpow.pop %v3051
      %v3053 = vmul.f32 %v3007, 1.442695
      %v3054 = vpow.pop %v3053
      %v3055 = vmul.f32 %v3008, 1.442695
      %v3056 = vpow.pop %v3055
      %v3057 = vmul.f32 %v3009, 1.442695
      %v3058 = vpow.pop %v3057
      %v3059 = vmul.f32 %v3010, 1.442695
      %v3060 = vpow.pop %v3059
      %v3061 = vmul.f32 %v3011, 1.442695
      %v3062 = vpow.pop %v3061
      %v3063 = vmul.f32 %v3012, 1.442695
      %v3064 = vpow.pop %v3063
      %v3065 = vmul.f32 %v3013, 1.442695
      %v3066 = vpow.pop %v3065
      %v3067 = vmul.f32 %v3014, 1.442695
      %v3068 = vpow.pop %v3067
      %v3069 = vmul.f32 %v3015, 1.442695
      %v3070 = vpow.pop %v3069
      %v3071 = vmul.f32 %v3016, 1.442695
      %v3072 = vpow.pop %v3071
      %v3073 = vmul.f32 %v3017, 1.442695
      %v3074 = vpow.pop %v3073
      %v3075 = vmul.f32 %v3018, 1.442695
      %v3076 = vpow.pop %v3075
      %v3077 = vmul.f32 %v3019, 1.442695
      %v3078 = vpow.pop %v3077
      %v3079 = vmul.f32 %v3020, 1.442695
      %v3080 = vpow.pop %v3079
      %v3081 = vmul.f32 %v3021, 1.442695
      %v3082 = vpow.pop %v3081
      %v3083 = vmul.f32 %v3022, 1.442695
      %v3084 = vpow.pop %v3083
      %v3085 = vmul.f32 %v3023, 1.442695
      %v3086 = vpow.pop %v3085
      %v3087 = vmul.f32 %v3024, 1.442695
      %v3088 = vpow.pop %v3087
      %v3089 = vmul.f32 %v3025, 1.442695
      %v3090 = vpow.pop %v3089
      %v3091 = vmul.f32 %v3026, 1.442695
      %v3092 = vpow.pop %v3091
      %v3093 = vmul.f32 %v3027, 1.442695
      %v3094 = vpow.pop %v3093
      %v3095 = vmul.f32 %v3028, 1.442695
      %v3096 = vpow.pop %v3095
      %v3097 = vmul.f32 %v3029, 1.442695
      %v3098 = vpow.pop %v3097
      %v3099 = vmul.f32 %v3030, 1.442695
      %v3100 = vpow.pop %v3099
      %v3101 = vmul.f32 %v3031, 1.442695
      %v3102 = vpow.pop %v3101
      %v3103 = vmul.f32 %v3032, 1.442695
      %v3104 = vpow.pop %v3103
      %v3105 = vadd.f32 %v3034, 2.0
      %v3106 = vadd.f32 %v3036, 2.0
      %v3107 = vadd.f32 %v3038, 2.0
      %v3108 = vadd.f32 %v3040, 2.0
      %v3109 = vadd.f32 %v3042, 2.0
      %v3110 = vadd.f32 %v3044, 2.0
      %v3111 = vadd.f32 %v3046, 2.0
      %v3112 = vadd.f32 %v3048, 2.0
      %v3113 = vadd.f32 %v3050, 2.0
      %v3114 = vadd.f32 %v3052, 2.0
      %v3115 = vadd.f32 %v3054, 2.0
      %v3116 = vadd.f32 %v3056, 2.0
      %v3117 = vadd.f32 %v3058, 2.0
      %v3118 = vadd.f32 %v3060, 2.0
      %v3119 = vadd.f32 %v3062, 2.0
      %v3120 = vadd.f32 %v3064, 2.0
      %v3121 = vadd.f32 %v3066, 2.0
      %v3122 = vadd.f32 %v3068, 2.0
      %v3123 = vadd.f32 %v3070, 2.0
      %v3124 = vadd.f32 %v3072, 2.0
      %v3125 = vadd.f32 %v3074, 2.0
      %v3126 = vadd.f32 %v3076, 2.0
      %v3127 = vadd.f32 %v3078, 2.0
      %v3128 = vadd.f32 %v3080, 2.0
      %v3129 = vadd.f32 %v3082, 2.0
      %v3130 = vadd.f32 %v3084, 2.0
      %v3131 = vadd.f32 %v3086, 2.0
      %v3132 = vadd.f32 %v3088, 2.0
      %v3133 = vadd.f32 %v3090, 2.0
      %v3134 = vadd.f32 %v3092, 2.0
      %v3135 = vadd.f32 %v3094, 2.0
      %v3136 = vadd.f32 %v3096, 2.0
      %v3137 = vadd.f32 %v3098, 2.0
      %v3138 = vadd.f32 %v3100, 2.0
      %v3139 = vadd.f32 %v3102, 2.0
      %v3140 = vadd.f32 %v3104, 2.0
      %v3141 = vmul.f32 %v3034, %v3105
      %v3142 = vmul.f32 %v3036, %v3106
      %v3143 = vmul.f32 %v3038, %v3107
      %v3144 = vmul.f32 %v3040, %v3108
      %v3145 = vmul.f32 %v3042, %v3109
      %v3146 = vmul.f32 %v3044, %v3110
      %v3147 = vmul.f32 %v3046, %v3111
      %v3148 = vmul.f32 %v3048, %v3112
      %v3149 = vmul.f32 %v3050, %v3113
      %v3150 = vmul.f32 %v3052, %v3114
      %v3151 = vmul.f32 %v3054, %v3115
      %v3152 = vmul.f32 %v3056, %v3116
      %v3153 = vmul.f32 %v3058, %v3117
      %v3154 = vmul.f32 %v3060, %v3118
      %v3155 = vmul.f32 %v3062, %v3119
      %v3156 = vmul.f32 %v3064, %v3120
      %v3157 = vmul.f32 %v3066, %v3121
      %v3158 = vmul.f32 %v3068, %v3122
      %v3159 = vmul.f32 %v3070, %v3123
      %v3160 = vmul.f32 %v3072, %v3124
      %v3161 = vmul.f32 %v3074, %v3125
      %v3162 = vmul.f32 %v3076, %v3126
      %v3163 = vmul.f32 %v3078, %v3127
      %v3164 = vmul.f32 %v3080, %v3128
      %v3165 = vmul.f32 %v3082, %v3129
      %v3166 = vmul.f32 %v3084, %v3130
      %v3167 = vmul.f32 %v3086, %v3131
      %v3168 = vmul.f32 %v3088, %v3132
      %v3169 = vmul.f32 %v3090, %v3133
      %v3170 = vmul.f32 %v3092, %v3134
      %v3171 = vmul.f32 %v3094, %v3135
      %v3172 = vmul.f32 %v3096, %v3136
      %v3173 = vmul.f32 %v3098, %v3137
      %v3174 = vmul.f32 %v3100, %v3138
      %v3175 = vmul.f32 %v3102, %v3139
      %v3176 = vmul.f32 %v3104, %v3140
      %v3177 = vmul.f32 %v2961, %v3141
      %v3178 = vmul.f32 %v2962, %v3142
      %v3179 = vmul.f32 %v2963, %v3143
      %v3180 = vmul.f32 %v2964, %v3144
      %v3181 = vmul.f32 %v2965, %v3145
      %v3182 = vmul.f32 %v2966, %v3146
      %v3183 = vmul.f32 %v2967, %v3147
      %v3184 = vmul.f32 %v2968, %v3148
      %v3185 = vmul.f32 %v2969, %v3149
      %v3186 = vmul.f32 %v2970, %v3150
      %v3187 = vmul.f32 %v2971, %v3151
      %v3188 = vmul.f32 %v2972, %v3152
      %v3189 = vmul.f32 %v2973, %v3153
      %v3190 = vmul.f32 %v2974, %v3154
      %v3191 = vmul.f32 %v2975, %v3155
      %v3192 = vmul.f32 %v2976, %v3156
      %v3193 = vmul.f32 %v2977, %v3157
      %v3194 = vmul.f32 %v2978, %v3158
      %v3195 = vmul.f32 %v2979, %v3159
      %v3196 = vmul.f32 %v2980, %v3160
      %v3197 = vmul.f32 %v2981, %v3161
      %v3198 = vmul.f32 %v2982, %v3162
      %v3199 = vmul.f32 %v2983, %v3163
      %v3200 = vmul.f32 %v2984, %v3164
      %v3201 = vmul.f32 %v2985, %v3165
      %v3202 = vmul.f32 %v2986, %v3166
      %v3203 = vmul.f32 %v2987, %v3167
      %v3204 = vmul.f32 %v2988, %v3168
      %v3205 = vmul.f32 %v2989, %v3169
      %v3206 = vmul.f32 %v2990, %v3170
      %v3207 = vmul.f32 %v2991, %v3171
      %v3208 = vmul.f32 %v2992, %v3172
      %v3209 = vmul.f32 %v2993, %v3173
      %v3210 = vmul.f32 %v2994, %v3174
      %v3211 = vmul.f32 %v2995, %v3175
      %v3212 = vmul.f32 %v2996, %v3176
      %v3213 = vadd.f32 %v3141, 2.0
      %v3214 = vadd.f32 %v3142, 2.0
      %v3215 = vadd.f32 %v3143, 2.0
      %v3216 = vadd.f32 %v3144, 2.0
      %v3217 = vadd.f32 %v3145, 2.0
      %v3218 = vadd.f32 %v3146, 2.0
      %v3219 = vadd.f32 %v3147, 2.0
      %v3220 = vadd.f32 %v3148, 2.0
      %v3221 = vadd.f32 %v3149, 2.0
      %v3222 = vadd.f32 %v3150, 2.0
      %v3223 = vadd.f32 %v3151, 2.0
      %v3224 = vadd.f32 %v3152, 2.0
      %v3225 = vadd.f32 %v3153, 2.0
      %v3226 = vadd.f32 %v3154, 2.0
      %v3227 = vadd.f32 %v3155, 2.0
      %v3228 = vadd.f32 %v3156, 2.0
      %v3229 = vadd.f32 %v3157, 2.0
      %v3230 = vadd.f32 %v3158, 2.0
      %v3231 = vadd.f32 %v3159, 2.0
      %v3232 = vadd.f32 %v3160, 2.0
      %v3233 = vadd.f32 %v3161, 2.0
      %v3234 = vadd.f32 %v3162, 2.0
      %v3235 = vadd.f32 %v3163, 2.0
      %v3236 = vadd.f32 %v3164, 2.0
      %v3237 = vadd.f32 %v3165, 2.0
      %v3238 = vadd.f32 %v3166, 2.0
      %v3239 = vadd.f32 %v3167, 2.0
      %v3240 = vadd.f32 %v3168, 2.0
      %v3241 = vadd.f32 %v3169, 2.0
      %v3242 = vadd.f32 %v3170, 2.0
      %v3243 = vadd.f32 %v3171, 2.0
      %v3244 = vadd.f32 %v3172, 2.0
      %v3245 = vadd.f32 %v3173, 2.0
      %v3246 = vadd.f32 %v3174, 2.0
      %v3247 = vadd.f32 %v3175, 2.0
      %v3248 = vadd.f32 %v3176, 2.0
      %v3249 = vrcp.pop %v3213
      %v3250 = vrcp.pop %v3214
      %v3251 = vrcp.pop %v3215
      %v3252 = vrcp.pop %v3216
      %v3253 = vrcp.pop %v3217
      %v3254 = vrcp.pop %v3218
      %v3255 = vrcp.pop %v3219
      %v3256 = vrcp.pop %v3220
      %v3257 = vrcp.pop %v3221
      %v3258 = vrcp.pop %v3222
      %v3259 = vrcp.pop %v3223
      %v3260 = vrcp.pop %v3224
      %v3261 = vrcp.pop %v3225
      %v3262 = vrcp.pop %v3226
      %v3263 = vrcp.pop %v3227
      %v3264 = vrcp.pop %v3228
      %v3265 = vrcp.pop %v3229
      %v3266 = vrcp.pop %v3230
      %v3267 = vrcp.pop %v3231
      %v3268 = vrcp.pop %v3232
      %v3269 = vrcp.pop %v3233
      %v3270 = vrcp.pop %v3234
      %v3271 = vrcp.pop %v3235
      %v3272 = vrcp.pop %v3236
      %v3273 = vrcp.pop %v3237
      %v3274 = vrcp.pop %v3238
      %v3275 = vrcp.pop %v3239
      %v3276 = vrcp.pop %v3240
      %v3277 = vrcp.pop %v3241
      %v3278 = vrcp.pop %v3242
      %v3279 = vrcp.pop %v3243
      %v3280 = vrcp.pop %v3244
      %v3281 = vrcp.pop %v3245
      %v3282 = vrcp.pop %v3246
      %v3283 = vrcp.pop %v3247
      %v3284 = vrcp.pop %v3248
      %v3285 = vmul.f32 %v3177, %v3249
      %v3286 = vmul.f32 %v3178, %v3250
      %v3287 = vmul.f32 %v3179, %v3251
      %v3288 = vmul.f32 %v3180, %v3252
      %v3289 = vmul.f32 %v3181, %v3253
      %v3290 = vmul.f32 %v3182, %v3254
      %v3291 = vmul.f32 %v3183, %v3255
      %v3292 = vmul.f32 %v3184, %v3256
      %v3293 = vmul.f32 %v3185, %v3257
      %v3294 = vmul.f32 %v3186, %v3258
      %v3295 = vmul.f32 %v3187, %v3259
      %v3296 = vmul.f32 %v3188, %v3260
      %v3297 = vmul.f32 %v3189, %v3261
      %v3298 = vmul.f32 %v3190, %v3262
      %v3299 = vmul.f32 %v3191, %v3263
      %v3300 = vmul.f32 %v3192, %v3264
      %v3301 = vmul.f32 %v3193, %v3265
      %v3302 = vmul.f32 %v3194, %v3266
      %v3303 = vmul.f32 %v3195, %v3267
      %v3304 = vmul.f32 %v3196, %v3268
      %v3305 = vmul.f32 %v3197, %v3269
      %v3306 = vmul.f32 %v3198, %v3270
      %v3307 = vmul.f32 %v3199, %v3271
      %v3308 = vmul.f32 %v3200, %v3272
      %v3309 = vmul.f32 %v3201, %v3273
      %v3310 = vmul.f32 %v3202, %v3274
      %v3311 = vmul.f32 %v3203, %v3275
      %v3312 = vmul.f32 %v3204, %v3276
      %v3313 = vmul.f32 %v3205, %v3277
      %v3314 = vmul.f32 %v3206, %v3278
      %v3315 = vmul.f32 %v3207, %v3279
      %v3316 = vmul.f32 %v3208, %v3280
      %v3317 = vmul.f32 %v3209, %v3281
      %v3318 = vmul.f32 %v3210, %v3282
      %v3319 = vmul.f32 %v3211, %v3283
      %v3320 = vmul.f32 %v3212, %v3284
      %vm3321 = vcmp.gt.f32.partialorder %v2961, 20.0
      %vm3322 = vcmp.gt.f32.partialorder %v2962, 20.0
      %vm3323 = vcmp.gt.f32.partialorder %v2963, 20.0
      %vm3324 = vcmp.gt.f32.partialorder %v2964, 20.0
      %vm3325 = vcmp.gt.f32.partialorder %v2965, 20.0
      %vm3326 = vcmp.gt.f32.partialorder %v2966, 20.0
      %vm3327 = vcmp.gt.f32.partialorder %v2967, 20.0
      %vm3328 = vcmp.gt.f32.partialorder %v2968, 20.0
      %vm3329 = vcmp.gt.f32.partialorder %v2969, 20.0
      %vm3330 = vcmp.gt.f32.partialorder %v2970, 20.0
      %vm3331 = vcmp.gt.f32.partialorder %v2971, 20.0
      %vm3332 = vcmp.gt.f32.partialorder %v2972, 20.0
      %vm3333 = vcmp.gt.f32.partialorder %v2973, 20.0
      %vm3334 = vcmp.gt.f32.partialorder %v2974, 20.0
      %vm3335 = vcmp.gt.f32.partialorder %v2975, 20.0
      %vm3336 = vcmp.gt.f32.partialorder %v2976, 20.0
      %vm3337 = vcmp.gt.f32.partialorder %v2977, 20.0
      %vm3338 = vcmp.gt.f32.partialorder %v2978, 20.0
      %vm3339 = vcmp.gt.f32.partialorder %v2979, 20.0
      %vm3340 = vcmp.gt.f32.partialorder %v2980, 20.0
      %vm3341 = vcmp.gt.f32.partialorder %v2981, 20.0
      %vm3342 = vcmp.gt.f32.partialorder %v2982, 20.0
      %vm3343 = vcmp.gt.f32.partialorder %v2983, 20.0
      %vm3344 = vcmp.gt.f32.partialorder %v2984, 20.0
      %vm3345 = vcmp.gt.f32.partialorder %v2985, 20.0
      %vm3346 = vcmp.gt.f32.partialorder %v2986, 20.0
      %vm3347 = vcmp.gt.f32.partialorder %v2987, 20.0
      %vm3348 = vcmp.gt.f32.partialorder %v2988, 20.0
      %vm3349 = vcmp.gt.f32.partialorder %v2989, 20.0
      %vm3350 = vcmp.gt.f32.partialorder %v2990, 20.0
      %vm3351 = vcmp.gt.f32.partialorder %v2991, 20.0
      %vm3352 = vcmp.gt.f32.partialorder %v2992, 20.0
      %vm3353 = vcmp.gt.f32.partialorder %v2993, 20.0
      %vm3354 = vcmp.gt.f32.partialorder %v2994, 20.0
      %vm3355 = vcmp.gt.f32.partialorder %v2995, 20.0
      %vm3356 = vcmp.gt.f32.partialorder %v2996, 20.0
      %v3357 = vsel %vm3321, %v2961, %v3285
      %v3358 = vsel %vm3322, %v2962, %v3286
      %v3359 = vsel %vm3323, %v2963, %v3287
      %v3360 = vsel %vm3324, %v2964, %v3288
      %v3361 = vsel %vm3325, %v2965, %v3289
      %v3362 = vsel %vm3326, %v2966, %v3290
      %v3363 = vsel %vm3327, %v2967, %v3291
      %v3364 = vsel %vm3328, %v2968, %v3292
      %v3365 = vsel %vm3329, %v2969, %v3293
      %v3366 = vsel %vm3330, %v2970, %v3294
      %v3367 = vsel %vm3331, %v2971, %v3295
      %v3368 = vsel %vm3332, %v2972, %v3296
      %v3369 = vsel %vm3333, %v2973, %v3297
      %v3370 = vsel %vm3334, %v2974, %v3298
      %v3371 = vsel %vm3335, %v2975, %v3299
      %v3372 = vsel %vm3336, %v2976, %v3300
      %v3373 = vsel %vm3337, %v2977, %v3301
      %v3374 = vsel %vm3338, %v2978, %v3302
      %v3375 = vsel %vm3339, %v2979, %v3303
      %v3376 = vsel %vm3340, %v2980, %v3304
      %v3377 = vsel %vm3341, %v2981, %v3305
      %v3378 = vsel %vm3342, %v2982, %v3306
      %v3379 = vsel %vm3343, %v2983, %v3307
      %v3380 = vsel %vm3344, %v2984, %v3308
      %v3381 = vsel %vm3345, %v2985, %v3309
      %v3382 = vsel %vm3346, %v2986, %v3310
      %v3383 = vsel %vm3347, %v2987, %v3311
      %v3384 = vsel %vm3348, %v2988, %v3312
      %v3385 = vsel %vm3349, %v2989, %v3313
      %v3386 = vsel %vm3350, %v2990, %v3314
      %v3387 = vsel %vm3351, %v2991, %v3315
      %v3388 = vsel %vm3352, %v2992, %v3316
      %v3389 = vsel %vm3353, %v2993, %v3317
      %v3390 = vsel %vm3354, %v2994, %v3318
      %v3391 = vsel %vm3355, %v2995, %v3319
      %v3392 = vsel %vm3356, %v2996, %v3320
      %v3393 = vpack.c.bf16 %v3357, %v3357
      %v3394 = vpack.c.bf16 %v3358, %v3358
      %v3395 = vpack.c.bf16 %v3359, %v3359
      %v3396 = vpack.c.bf16 %v3360, %v3360
      %v3397 = vpack.c.bf16 %v3361, %v3361
      %v3398 = vpack.c.bf16 %v3362, %v3362
      %v3399 = vpack.c.bf16 %v3363, %v3363
      %v3400 = vpack.c.bf16 %v3364, %v3364
      %v3401 = vpack.c.bf16 %v3365, %v3365
      %v3402 = vpack.c.bf16 %v3366, %v3366
      %v3403 = vpack.c.bf16 %v3367, %v3367
      %v3404 = vpack.c.bf16 %v3368, %v3368
      %v3405 = vpack.c.bf16 %v3369, %v3369
      %v3406 = vpack.c.bf16 %v3370, %v3370
      %v3407 = vpack.c.bf16 %v3371, %v3371
      %v3408 = vpack.c.bf16 %v3372, %v3372
      %v3409 = vpack.c.bf16 %v3373, %v3373
      %v3410 = vpack.c.bf16 %v3374, %v3374
      %v3411 = vpack.c.bf16 %v3375, %v3375
      %v3412 = vpack.c.bf16 %v3376, %v3376
      %v3413 = vpack.c.bf16 %v3377, %v3377
      %v3414 = vpack.c.bf16 %v3378, %v3378
      %v3415 = vpack.c.bf16 %v3379, %v3379
      %v3416 = vpack.c.bf16 %v3380, %v3380
      %v3417 = vpack.c.bf16 %v3381, %v3381
      %v3418 = vpack.c.bf16 %v3382, %v3382
      %v3419 = vpack.c.bf16 %v3383, %v3383
      %v3420 = vpack.c.bf16 %v3384, %v3384
      %v3421 = vpack.c.bf16 %v3385, %v3385
      %v3422 = vpack.c.bf16 %v3386, %v3386
      %v3423 = vpack.c.bf16 %v3387, %v3387
      %v3424 = vpack.c.bf16 %v3388, %v3388
      %v3425 = vpack.c.bf16 %v3389, %v3389
      %v3426 = vpack.c.bf16 %v3390, %v3390
      %v3427 = vpack.c.bf16 %v3391, %v3391
      %v3428 = vpack.c.bf16 %v3392, %v3392
      %vm3429 = vcmask 60416
      %3430 = vst.msk [vmem:[%s170] sm:$0xf] %vm3429, %v3393
      %3431 = vst.msk [vmem:[%s170 + $0x4] sm:$0xf] %vm3429, %v3394
      %3432 = vst.msk [vmem:[%s170 + $0x8] sm:$0xf] %vm3429, %v3395
      %3433 = vst.msk [vmem:[%s170 + $0xc] sm:$0xf] %vm3429, %v3396
      %3434 = vst.msk [vmem:[%s170 + $0x10] sm:$0xf] %vm3429, %v3397
      %3435 = vst.msk [vmem:[%s170 + $0x14] sm:$0xf] %vm3429, %v3398
      %3436 = vst.msk [vmem:[%s170 + $0x18] sm:$0xf] %vm3429, %v3399
      %3437 = vst.msk [vmem:[%s170 + $0x1c] sm:$0xf] %vm3429, %v3400
      %3438 = vst.msk [vmem:[%s170 + $0x20] sm:$0xf] %vm3429, %v3401
      %3439 = vst.msk [vmem:[%s170 + $0x24] sm:$0xf] %vm3429, %v3402
      %3440 = vst.msk [vmem:[%s170 + $0x28] sm:$0xf] %vm3429, %v3403
      %3441 = vst.msk [vmem:[%s170 + $0x2c] sm:$0xf] %vm3429, %v3404
      %3442 = vst.msk [vmem:[%s170 + $0x30] sm:$0xf] %vm3429, %v3405
      %3443 = vst.msk [vmem:[%s170 + $0x34] sm:$0xf] %vm3429, %v3406
      %3444 = vst.msk [vmem:[%s170 + $0x38] sm:$0xf] %vm3429, %v3407
      %3445 = vst.msk [vmem:[%s170 + $0x3c] sm:$0xf] %vm3429, %v3408
      %3446 = vst.msk [vmem:[%s170 + $0x40] sm:$0xf] %vm3429, %v3409
      %3447 = vst.msk [vmem:[%s170 + $0x44] sm:$0xf] %vm3429, %v3410
      %3448 = vst.msk [vmem:[%s170 + $0x48] sm:$0xf] %vm3429, %v3411
      %3449 = vst.msk [vmem:[%s170 + $0x4c] sm:$0xf] %vm3429, %v3412
      %3450 = vst.msk [vmem:[%s170 + $0x50] sm:$0xf] %vm3429, %v3413
      %3451 = vst.msk [vmem:[%s170 + $0x54] sm:$0xf] %vm3429, %v3414
      %3452 = vst.msk [vmem:[%s170 + $0x58] sm:$0xf] %vm3429, %v3415
      %3453 = vst.msk [vmem:[%s170 + $0x5c] sm:$0xf] %vm3429, %v3416
      %3454 = vst.msk [vmem:[%s170 + $0x60] sm:$0xf] %vm3429, %v3417
      %3455 = vst.msk [vmem:[%s170 + $0x64] sm:$0xf] %vm3429, %v3418
      %3456 = vst.msk [vmem:[%s170 + $0x68] sm:$0xf] %vm3429, %v3419
      %3457 = vst.msk [vmem:[%s170 + $0x6c] sm:$0xf] %vm3429, %v3420
      %3458 = vst.msk [vmem:[%s170 + $0x70] sm:$0xf] %vm3429, %v3421
      %3459 = vst.msk [vmem:[%s170 + $0x74] sm:$0xf] %vm3429, %v3422
      %3460 = vst.msk [vmem:[%s170 + $0x78] sm:$0xf] %vm3429, %v3423
      %3461 = vst.msk [vmem:[%s170 + $0x7c] sm:$0xf] %vm3429, %v3424
      %3462 = vst.msk [vmem:[%s170 + $0x80] sm:$0xf] %vm3429, %v3425
      %3463 = vst.msk [vmem:[%s170 + $0x84] sm:$0xf] %vm3429, %v3426
      %3464 = vst.msk [vmem:[%s170 + $0x88] sm:$0xf] %vm3429, %v3427
      %3465 = vst.msk [vmem:[%s170 + $0x8c] sm:$0xf] %vm3429, %v3428
      %p3466 = scmp.lt.s32.totalorder %s14, 1
      %s3467 = scalar_select %p3466, %s14, 1
      %s3468 = smul.addr %s3467, 36
      %s3469 = smul.addr %s3468, 4
      %s3470 = scalar_lea.vmem %s3, %s3469
      // Predicated region
      $region33: #{_lambda_.8} parent=31 // pred_check
        %p3471 = pneg %p100
      $region34: #{_lambda_.8} parent=31 // pred_check_branch
        %3473 = sbr.rel (%p3471) target = $region36
      $region35: #{_lambda_.8} parent=31 // pred_region
        _
      $region36: #{_lambda_.8} parent=31 // pred_fallthru
        _
    $region32: #{_lambda_.8} parent=5 // pred_fallthru
      _
    %p3474 = scmp.le.s32.totalorder 2, %s9
    // Predicated region
    $region37: #{_lambda_.8} parent=5 // pred_check
      %p3475 = pneg %p3474
    $region38: #{_lambda_.8} parent=5 // pred_check_branch
      %3477 = sbr.rel (%p3475) target = $region40
    $region39: #{_lambda_.8} parent=5 // pred_region
      %s3478 = ssub.s32 %s9, 2
      // Predicated region
      $region41: #{_lambda_.8} parent=39 // pred_check
        %p3479 = pneg %p106
      $region42: #{_lambda_.8} parent=39 // pred_check_branch
        %3481 = sbr.rel (%p3479) target = $region44
      $region43: #{_lambda_.8} parent=39 // pred_region
        %p3482 = scmp.lt.s32.totalorder %s15, 1
        %s3483 = scalar_select %p3482, %s15, 1
        %s3484 = smul.addr %s3483, 36
        %s3485 = smul.addr %s3484, 4
        %s3486 = scalar_lea.vmem %s3, %s3485
      $region44: #{_lambda_.8} parent=39 // pred_fallthru
        _
    $region40: #{_lambda_.8} parent=5 // pred_fallthru
      _
  $region6: #{_lambda_.8} parent=0 // loop_footer
    %s13 = sadd.s32 1, %s9
  $region7: #{_lambda_.8} parent=0 // loop_footer_branch
    %8 = sbr.rel target = $region3
  $region8: #{_lambda_.8} parent=0 // loop_exit
    _

// kernel: _lambda_.10
$region0: #{_lambda_.10}
  #allocation0 [shape = 'u32[]', space=smem, size = 0x4, offset = 0x4, fixed_abs, tag = 'smem constant byte address 0x4 - core index']
  #allocation1 [shape = 'u32[72,128]{1,0:T(1,128)}', space=vmem, size = 0x9000, scoped, tag = 'internal scratch']
  %s0 = inlined_call_operand.vmem [shape: bf16[2,102,16], index: 0, kind: input, shape index: {}]
  %s1 = inlined_call_operand.vmem [shape: bf16[9,16,16], index: 1, kind: input, shape index: {}]
  %s2 = inlined_call_operand.vmem [shape: f32[2,16], index: 2, kind: input, shape index: {}]
  %s3 = inlined_call_operand.vmem [shape: bf16[2,80,16], index: 3, kind: input, shape index: {}]
  %s4 = inlined_call_operand.vmem [shape: bf16[2,80,16], index: 4, kind: output, shape index: {}]
  %s5 = sld [smem:[#allocation0]]
  $region49: #{_lambda_.10} parent=0
    _
  %s7 = ssub.s32 1, %s5
  %s8 = scalar_select 0, %s7, %s5
  loop: start=0, step=1, limit=4
  $region2: #{_lambda_.10} parent=0 // loop_pre_header
    _
  $region3: #{_lambda_.10} parent=0 // loop_header
    %s10 = sphi 0, %s14
    %p11 = scmp.ge.s32.totalorder %s10, 4
    %s20 = sphi 0, %s22
    %s23 = sphi 0, %s20
    %s24 = sphi 0, %s23
    %s40 = sphi 0, %s24
    %s44 = sphi 0, %s44
    %s46 = sphi 0, %s44
    %s47 = sphi 0, %s46
    %s61 = sphi 0, %s47
    %s65 = sphi 0, %s65
    %s67 = sphi 0, %s65
    %s68 = sphi 0, %s67
    %s82 = sphi 0, %s68
    %s88 = sphi 0, %s90
    %s91 = sphi 0, %s88
    %s92 = sphi 0, %s91
    %s108 = sphi 0, %s92
    %s114 = sphi 0, %s116
    %s117 = sphi 0, %s114
    %s118 = sphi 0, %s117
    %s134 = sphi 0, %s118
  $region4: #{_lambda_.10} parent=0 // loop_header_branch
    %13 = sbr.rel (%p11) target = $region8
  $region5: #{_lambda_.10} parent=0 // loop_body
    %s15 = ssub.s32 %s10, 1
    %s16 = ssub.s32 %s10, 2
    %s17 = sadd.s32 %s10, 1
    %s18 = ssub.s32 %s10, %s17
    %p19 = scmp.eq.s32.totalorder %s18, 0
    %s21 = sadd.s32 %s20, 1
    %s22 = scalar_select %p19, %s20, %s21
    %p25 = pneg %p19
    %p26 = scmp.eq.s32.totalorder %s10, 1
    %p27 = por %p25, %p26
    %p28 = scmp.ne.s32.totalorder %s20, %s23
    %p29 = scmp.eq.s32.totalorder %s10, 0
    %p30 = por %p28, %p29
    %p31 = scmp.ne.s32.totalorder %s20, %s23
    %p32 = scmp.eq.s32.totalorder %s15, 1
    %p33 = por %p31, %p32
    %p34 = scmp.ne.s32.totalorder %s23, %s24
    %p35 = scmp.eq.s32.totalorder %s15, 0
    %p36 = por %p34, %p35
    %p37 = scmp.ne.s32.totalorder %s23, %s24
    %p38 = scmp.eq.s32.totalorder %s16, 1
    %p39 = por %p37, %p38
    %p41 = scmp.ne.s32.totalorder %s24, %s40
    %p42 = scmp.eq.s32.totalorder %s16, 0
    %p43 = por %p41, %p42
    %s45 = sadd.s32 %s44, 1
    %p48 = scmp.eq.s32.totalorder %s10, 1
    %p49 = scmp.ne.s32.totalorder %s44, %s46
    %p50 = scmp.eq.s32.totalorder %s10, 0
    %p51 = por %p49, %p50
    %p52 = scmp.ne.s32.totalorder %s44, %s46
    %p53 = scmp.eq.s32.totalorder %s15, 1
    %p54 = por %p52, %p53
    %p55 = scmp.ne.s32.totalorder %s46, %s47
    %p56 = scmp.eq.s32.totalorder %s15, 0
    %p57 = por %p55, %p56
    %p58 = scmp.ne.s32.totalorder %s46, %s47
    %p59 = scmp.eq.s32.totalorder %s16, 1
    %p60 = por %p58, %p59
    %p62 = scmp.ne.s32.totalorder %s47, %s61
    %p63 = scmp.eq.s32.totalorder %s16, 0
    %p64 = por %p62, %p63
    %s66 = sadd.s32 %s65, 1
    %p69 = scmp.eq.s32.totalorder %s10, 1
    %p70 = scmp.ne.s32.totalorder %s65, %s67
    %p71 = scmp.eq.s32.totalorder %s10, 0
    %p72 = por %p70, %p71
    %p73 = scmp.ne.s32.totalorder %s65, %s67
    %p74 = scmp.eq.s32.totalorder %s15, 1
    %p75 = por %p73, %p74
    %p76 = scmp.ne.s32.totalorder %s67, %s68
    %p77 = scmp.eq.s32.totalorder %s15, 0
    %p78 = por %p76, %p77
    %p79 = scmp.ne.s32.totalorder %s67, %s68
    %p80 = scmp.eq.s32.totalorder %s16, 1
    %p81 = por %p79, %p80
    %p83 = scmp.ne.s32.totalorder %s68, %s82
    %p84 = scmp.eq.s32.totalorder %s16, 0
    %p85 = por %p83, %p84
    %s86 = ssub.s32 %s10, %s17
    %p87 = scmp.eq.s32.totalorder %s86, 0
    %s89 = sadd.s32 %s88, 1
    %s90 = scalar_select %p87, %s88, %s89
    %p93 = pneg %p87
    %p94 = scmp.eq.s32.totalorder %s10, 1
    %p95 = por %p93, %p94
    %p96 = scmp.ne.s32.totalorder %s88, %s91
    %p97 = scmp.eq.s32.totalorder %s10, 0
    %p98 = por %p96, %p97
    %p99 = scmp.ne.s32.totalorder %s88, %s91
    %p100 = scmp.eq.s32.totalorder %s15, 1
    %p101 = por %p99, %p100
    %p102 = scmp.ne.s32.totalorder %s91, %s92
    %p103 = scmp.eq.s32.totalorder %s15, 0
    %p104 = por %p102, %p103
    %p105 = scmp.ne.s32.totalorder %s91, %s92
    %p106 = scmp.eq.s32.totalorder %s16, 1
    %p107 = por %p105, %p106
    %p109 = scmp.ne.s32.totalorder %s92, %s108
    %p110 = scmp.eq.s32.totalorder %s16, 0
    %p111 = por %p109, %p110
    %s112 = ssub.s32 %s10, %s17
    %p113 = scmp.eq.s32.totalorder %s112, 0
    %s115 = sadd.s32 %s114, 1
    %s116 = scalar_select %p113, %s114, %s115
    %p119 = pneg %p113
    %p120 = scmp.eq.s32.totalorder %s10, 1
    %p121 = por %p119, %p120
    %p122 = scmp.ne.s32.totalorder %s114, %s117
    %p123 = scmp.eq.s32.totalorder %s10, 0
    %p124 = por %p122, %p123
    %p125 = scmp.ne.s32.totalorder %s114, %s117
    %p126 = scmp.eq.s32.totalorder %s15, 1
    %p127 = por %p125, %p126
    %p128 = scmp.ne.s32.totalorder %s117, %s118
    %p129 = scmp.eq.s32.totalorder %s15, 0
    %p130 = por %p128, %p129
    %p131 = scmp.ne.s32.totalorder %s117, %s118
    %p132 = scmp.eq.s32.totalorder %s16, 1
    %p133 = por %p131, %p132
    %p135 = scmp.ne.s32.totalorder %s118, %s134
    %p136 = scmp.eq.s32.totalorder %s16, 0
    %p137 = por %p135, %p136
    %p138 = scmp.le.s32.totalorder 1, %s10
    %p139 = scmp.lt.s32.totalorder %s10, 3
    %p140 = pnand %p138, %p139
    %p141 = pneg %p140
    // Predicated region
    $region9: #{_lambda_.10} parent=5 // pred_check
      _
    $region10: #{_lambda_.10} parent=5 // pred_check_branch
      %143 = sbr.rel (%p140) target = $region12
    $region11: #{_lambda_.10} parent=5 // pred_region
      %s144 = ssub.s32 %s10, 1
      // Predicated region
      $region13: #{_lambda_.10} parent=11 // pred_check
        %p145 = pneg %p57
      $region14: #{_lambda_.10} parent=11 // pred_check_branch
        %147 = sbr.rel (%p145) target = $region16
      $region15: #{_lambda_.10} parent=11 // pred_region
        _
      $region16: #{_lambda_.10} parent=11 // pred_fallthru
        _
      // Predicated region
      $region17: #{_lambda_.10} parent=11 // pred_check
        %p148 = pneg %p78
      $region18: #{_lambda_.10} parent=11 // pred_check_branch
        %150 = sbr.rel (%p148) target = $region20
      $region19: #{_lambda_.10} parent=11 // pred_region
        _
      $region20: #{_lambda_.10} parent=11 // pred_fallthru
        _
    $region12: #{_lambda_.10} parent=5 // pred_fallthru
      _
    %p151 = scmp.lt.s32.totalorder %s10, 2
    // Predicated region
    $region21: #{_lambda_.10} parent=5 // pred_check
      %p152 = pneg %p151
    $region22: #{_lambda_.10} parent=5 // pred_check_branch
      %154 = sbr.rel (%p152) target = $region24
    $region23: #{_lambda_.10} parent=5 // pred_region
      // Predicated region
      $region25: #{_lambda_.10} parent=23 // pred_check
        %p155 = pneg %p30
      $region26: #{_lambda_.10} parent=23 // pred_check_branch
        %157 = sbr.rel (%p155) target = $region28
      $region27: #{_lambda_.10} parent=23 // pred_region
        %p158 = scmp.lt.s32.totalorder %s10, 1
        %s159 = scalar_select %p158, %s10, 1
        %s160 = smul.addr %s159, 13
        %s161 = smul.addr %s160, 4
        %s162 = scalar_lea.vmem %s0, %s161
      $region28: #{_lambda_.10} parent=23 // pred_fallthru
        _
      // Predicated region
      $region29: #{_lambda_.10} parent=23 // pred_check
        %p163 = pneg %p98
      $region30: #{_lambda_.10} parent=23 // pred_check_branch
        %165 = sbr.rel (%p163) target = $region32
      $region31: #{_lambda_.10} parent=23 // pred_region
        %p166 = scmp.lt.s32.totalorder %s10, 1
        %s167 = scalar_select %p166, %s10, 1
        %s168 = smul.addr %s167, 10
        %s169 = smul.addr %s168, 4
        %s170 = scalar_lea.vmem %s3, %s169
      $region32: #{_lambda_.10} parent=23 // pred_fallthru
        _
    $region24: #{_lambda_.10} parent=5 // pred_fallthru
      _
    %p171 = scmp.le.s32.totalorder 1, %s10
    %p172 = scmp.lt.s32.totalorder %s10, 3
    %p173 = pnand %p171, %p172
    %p174 = pneg %p173
    // Predicated region
    $region33: #{_lambda_.10} parent=5 // pred_check
      _
    $region34: #{_lambda_.10} parent=5 // pred_check_branch
      %176 = sbr.rel (%p173) target = $region36
    $region35: #{_lambda_.10} parent=5 // pred_region
      %s177 = ssub.s32 %s10, 1
      %p178 = scmp.lt.s32.totalorder %s15, 1
      %s179 = scalar_select %p178, %s15, 1
      %s180 = smul.addr %s179, 13
      %s181 = smul.addr %s180, 4
      %s182 = scalar_lea.vmem %s0, %s181
      %p183 = pneg %p36
      %p184 = pneg %p33
      %p185 = pneg %p57
      %p186 = pneg %p54
      %p187 = pneg %p78
      %p188 = pneg %p75
      %p189 = scmp.lt.s32.totalorder %s15, 1
      %s190 = scalar_select %p189, %s15, 1
      %s191 = smul.addr %s190, 10
      %s192 = smul.addr %s191, 4
      %s193 = scalar_lea.vmem %s3, %s192
      %p194 = pneg %p104
      %p195 = pneg %p101
      %p196 = pneg %p130
      %p197 = pneg %p127
      %p198 = scmp.lt.s32.totalorder %s15, 1
      %s199 = scalar_select %p198, %s15, 1
      %s200 = smul.addr %s199, 10
      %s201 = smul.addr %s200, 4
      %s202 = scalar_lea.vmem %s4, %s201
      %p203 = scmp.lt.s32.totalorder %s15, 1
      %s204 = scalar_select %p203, %s15, 1
      %s205 = smul.addr %s204, 13
      %s206 = smul.addr %s205, 4
      %s207 = scalar_lea.vmem %s0, %s206
      %p208 = scmp.lt.s32.totalorder %s15, 1
      %s209 = scalar_select %p208, %s15, 1
      %s210 = smul.addr %s209, 10
      %s211 = smul.addr %s210, 4
      %s212 = scalar_lea.vmem %s3, %s211
      %p213 = scmp.lt.s32.totalorder %s15, 1
      %s214 = scalar_select %p213, %s15, 1
      %s215 = smul.addr %s214, 10
      %s216 = smul.addr %s215, 4
      %s217 = scalar_lea.vmem %s4, %s216
      %v219 = vld [vmem:[%s207] sm:$0xf]
      %v220 = vld [vmem:[%s207 + $0x4] sm:$0xf]
      %v221 = vld [vmem:[%s207 + $0x8] sm:$0xf]
      %v222 = vld [vmem:[%s207 + $0xc] sm:$0xf]
      %v223 = vld [vmem:[%s207 + $0x10] sm:$0xf]
      %v224 = vld [vmem:[%s207 + $0x14] sm:$0xf]
      %v225 = vld [vmem:[%s207 + $0x18] sm:$0xf]
      %v226 = vld [vmem:[%s207 + $0x1c] sm:$0xf]
      %v227 = vld [vmem:[%s207 + $0x20] sm:$0xf]
      %v228 = vld [vmem:[%s207 + $0x24] sm:$0xf]
      %v229 = vld [vmem:[%s1] sm:$0xf]
      %v230 = vld [vmem:[%s1 + $0x4] sm:$0xf]
      %v231 = vld [vmem:[%s207 + $0x28] sm:$0x1]
      %s232 = scalar_lea.vmem %s1, 8
      %v233 = vld [vmem:[%s232] sm:$0xf]
      %v234 = vld [vmem:[%s232 + $0x4] sm:$0xf]
      %v246 = vunpack.c.l.b16 %v219
      %v247 = vunpack.c.l.b16 %v220
      %v248 = vunpack.c.l.b16 %v221
      %v249 = vunpack.c.l.b16 %v222
      %v250 = vunpack.c.l.b16 %v223
      %v251 = vunpack.c.l.b16 %v224
      %v252 = vunpack.c.l.b16 %v225
      %v253 = vunpack.c.l.b16 %v226
      %v254 = vunpack.c.l.b16 %v227
      %v255 = vunpack.c.l.b16 %v228
      %v256 = vunpack.c.l.b16 %v231
      %v257 = vpack.c.b16 %v247, %v246
      %v258 = vpack.c.b16 %v249, %v248
      %v259 = vpack.c.b16 %v251, %v250
      %v260 = vpack.c.b16 %v253, %v252
      %v261 = vpack.c.b16 %v255, %v254
      %v262 = vpack.c.b16 %v256, %v256
      %vm263 = vsmask.f32 7424
      %v265 = vshrl.u32 %v257, 16
      %v267 = vshll.u32 %v257, 16
      %v269 = vrot.slane %v267, 1
      %v270 = vor.u32 %v265, %v269
      %v272 = vshll.u32 %v258, 16
      %v274 = vrot.slane %v272, 1
      %v275 = vsel %vm263, %v270, %v274
      %v276 = vshrl.u32 %v258, 16
      %v278 = vor.u32 %v276, %v274
      %v280 = vshll.u32 %v259, 16
      %v282 = vrot.slane %v280, 1
      %v283 = vsel %vm263, %v278, %v282
      %v284 = vshrl.u32 %v259, 16
      %v286 = vor.u32 %v284, %v282
      %v288 = vshll.u32 %v260, 16
      %v290 = vrot.slane %v288, 1
      %v291 = vsel %vm263, %v286, %v290
      %v292 = vshrl.u32 %v260, 16
      %v294 = vor.u32 %v292, %v290
      %v296 = vshll.u32 %v261, 16
      %v298 = vrot.slane %v296, 1
      %v299 = vsel %vm263, %v294, %v298
      %v300 = vshrl.u32 %v261, 16
      %v302 = vor.u32 %v300, %v298
      %v304 = vshll.u32 %v262, 16
      %v306 = vrot.slane %v304, 1
      %v307 = vsel %vm263, %v302, %v306
      %v310 = vunpack.c.l.b16 %v233
      %v311 = vunpack.c.l.b16 %v234
      %v312 = vpack.c.b16 %v311, %v310
      %vm314 = vcmask 130048
      %v316 = vsel %vm314, %v275, 0
      %v319 = vsel %vm314, %v283, 0
      %v322 = vsel %vm314, %v291, 0
      %v325 = vsel %vm314, %v299, 0
      %v328 = vsel %vm314, %v307, 0
      %330 = vmatpush.bf16.msra.mxu0 0
      %331 = vmatpush.bf16.msra.mxu0 0
      %332 = vmatpush.bf16.msra.mxu0 0
      %333 = vmatpush.bf16.msra.mxu0 0
      %334 = vmatpush.bf16.msra.mxu0 0
      %335 = vmatpush.bf16.msra.mxu0 0
      %336 = vmatpush.bf16.msra.mxu0 0
      %337 = vmatpush.bf16.msra.mxu0 %v312
      %338 = vmatmul.bf16.gmra.mxu0 %v316
      %v339 = vpop.f32.mrf.mxu0
      %v340 = vadd.f32 0.0, %v339
      %v341 = vpop.f32.mrf.mxu0
      %v342 = vadd.f32 0.0, %v341
      %343 = vmatmul.bf16.gmra.mxu0 %v319
      %v344 = vpop.f32.mrf.mxu0
      %v345 = vadd.f32 0.0, %v344
      %v346 = vpop.f32.mrf.mxu0
      %v347 = vadd.f32 0.0, %v346
      %348 = vmatmul.bf16.gmra.mxu0 %v322
      %v349 = vpop.f32.mrf.mxu0
      %v350 = vadd.f32 0.0, %v349
      %v351 = vpop.f32.mrf.mxu0
      %v352 = vadd.f32 0.0, %v351
      %353 = vmatmul.bf16.gmra.mxu0 %v325
      %v354 = vpop.f32.mrf.mxu0
      %v355 = vadd.f32 0.0, %v354
      %v356 = vpop.f32.mrf.mxu0
      %v357 = vadd.f32 0.0, %v356
      %358 = vmatmul.bf16.gmra.mxu0 %v328
      %v359 = vpop.f32.mrf.mxu0
      %v360 = vadd.f32 0.0, %v359
      %v361 = vpop.f32.mrf.mxu0
      %v362 = vadd.f32 0.0, %v361
      %363 = vdwg.mxu0
      %v366 = vunpack.c.l.b16 %v229
      %v367 = vunpack.c.l.b16 %v230
      %v368 = vpack.c.b16 %v367, %v366
      %v370 = vsel %vm314, %v257, 0
      %v372 = vsel %vm314, %v258, 0
      %v374 = vsel %vm314, %v259, 0
      %v376 = vsel %vm314, %v260, 0
      %v378 = vsel %vm314, %v261, 0
      %380 = vmatpush.bf16.msra.mxu0 0
      %381 = vmatpush.bf16.msra.mxu0 0
      %382 = vmatpush.bf16.msra.mxu0 0
      %383 = vmatpush.bf16.msra.mxu0 0
      %384 = vmatpush.bf16.msra.mxu0 0
      %385 = vmatpush.bf16.msra.mxu0 0
      %386 = vmatpush.bf16.msra.mxu0 0
      %387 = vmatpush.bf16.msra.mxu0 %v368
      %388 = vmatmul.bf16.gmra.mxu0 %v370
      %v389 = vpop.f32.mrf.mxu0
      %v390 = vadd.f32 %v340, %v389
      %v391 = vpop.f32.mrf.mxu0
      %v392 = vadd.f32 %v342, %v391
      %393 = vmatmul.bf16.gmra.mxu0 %v372
      %v394 = vpop.f32.mrf.mxu0
      %v395 = vadd.f32 %v345, %v394
      %v396 = vpop.f32.mrf.mxu0
      %v397 = vadd.f32 %v347, %v396
      %398 = vmatmul.bf16.gmra.mxu0 %v374
      %v399 = vpop.f32.mrf.mxu0
      %v400 = vadd.f32 %v350, %v399
      %v401 = vpop.f32.mrf.mxu0
      %v402 = vadd.f32 %v352, %v401
      %403 = vmatmul.bf16.gmra.mxu0 %v376
      %v404 = vpop.f32.mrf.mxu0
      %v405 = vadd.f32 %v355, %v404
      %v406 = vpop.f32.mrf.mxu0
      %v407 = vadd.f32 %v357, %v406
      %408 = vmatmul.bf16.gmra.mxu0 %v378
      %v409 = vpop.f32.mrf.mxu0
      %v410 = vadd.f32 %v360, %v409
      %v411 = vpop.f32.mrf.mxu0
      %v412 = vadd.f32 %v362, %v411
      %413 = vdwg.mxu0
      %v414 = vld [vmem:[%s207] sm:$0xe]
      %s415 = scalar_lea.vmem %s1, 16
      %v416 = vld [vmem:[%s415] sm:$0xf]
      %v417 = vld [vmem:[%s415 + $0x4] sm:$0xf]
      %v419 = vunpack.c.l.b16 %v414
      %v420 = vpack.c.b16 %v247, %v419
      %vm421 = vcmask 1046528
      %v422 = vrot.slane %v420, 1
      %v423 = vrot.slane %v258, 1
      %v424 = vsel %vm421, %v422, %v423
      %v425 = vrot.slane %v259, 1
      %v426 = vsel %vm421, %v423, %v425
      %v427 = vrot.slane %v260, 1
      %v428 = vsel %vm421, %v425, %v427
      %v429 = vrot.slane %v261, 1
      %v430 = vsel %vm421, %v427, %v429
      %v431 = vrot.slane %v262, 1
      %v432 = vsel %vm421, %v429, %v431
      %v435 = vunpack.c.l.b16 %v416
      %v436 = vunpack.c.l.b16 %v417
      %v437 = vpack.c.b16 %v436, %v435
      %v440 = vsel %vm314, %v424, 0
      %v443 = vsel %vm314, %v426, 0
      %v446 = vsel %vm314, %v428, 0
      %v449 = vsel %vm314, %v430, 0
      %v452 = vsel %vm314, %v432, 0
      %454 = vmatpush.bf16.msra.mxu0 0
      %455 = vmatpush.bf16.msra.mxu0 0
      %456 = vmatpush.bf16.msra.mxu0 0
      %457 = vmatpush.bf16.msra.mxu0 0
      %458 = vmatpush.bf16.msra.mxu0 0
      %459 = vmatpush.bf16.msra.mxu0 0
      %460 = vmatpush.bf16.msra.mxu0 0
      %461 = vmatpush.bf16.msra.mxu0 %v437
      %462 = vmatmul.bf16.gmra.mxu0 %v440
      %v463 = vpop.f32.mrf.mxu0
      %v464 = vadd.f32 0.0, %v463
      %v465 = vpop.f32.mrf.mxu0
      %v466 = vadd.f32 0.0, %v465
      %467 = vmatmul.bf16.gmra.mxu0 %v443
      %v468 = vpop.f32.mrf.mxu0
      %v469 = vadd.f32 0.0, %v468
      %v470 = vpop.f32.mrf.mxu0
      %v471 = vadd.f32 0.0, %v470
      %472 = vmatmul.bf16.gmra.mxu0 %v446
      %v473 = vpop.f32.mrf.mxu0
      %v474 = vadd.f32 0.0, %v473
      %v475 = vpop.f32.mrf.mxu0
      %v476 = vadd.f32 0.0, %v475
      %477 = vmatmul.bf16.gmra.mxu0 %v449
      %v478 = vpop.f32.mrf.mxu0
      %v479 = vadd.f32 0.0, %v478
      %v480 = vpop.f32.mrf.mxu0
      %v481 = vadd.f32 0.0, %v480
      %482 = vmatmul.bf16.gmra.mxu0 %v452
      %v483 = vpop.f32.mrf.mxu0
      %v484 = vadd.f32 0.0, %v483
      %v485 = vpop.f32.mrf.mxu0
      %v486 = vadd.f32 0.0, %v485
      %487 = vdwg.mxu0
      %v488 = vadd.f32 %v390, %v464
      %v489 = vadd.f32 %v392, %v466
      %v490 = vadd.f32 %v395, %v469
      %v491 = vadd.f32 %v397, %v471
      %v492 = vadd.f32 %v400, %v474
      %v493 = vadd.f32 %v402, %v476
      %v494 = vadd.f32 %v405, %v479
      %v495 = vadd.f32 %v407, %v481
      %v496 = vadd.f32 %v410, %v484
      %v497 = vadd.f32 %v412, %v486
      %v498 = vld [vmem:[%s207 + $0x4] sm:$0xe]
      %v499 = vld [vmem:[%s207 + $0x8] sm:$0xf]
      %v500 = vld [vmem:[%s207 + $0xc] sm:$0xf]
      %v501 = vld [vmem:[%s207 + $0x10] sm:$0xf]
      %v502 = vld [vmem:[%s207 + $0x14] sm:$0xf]
      %v503 = vld [vmem:[%s207 + $0x18] sm:$0xf]
      %v504 = vld [vmem:[%s207 + $0x1c] sm:$0xf]
      %v505 = vld [vmem:[%s207 + $0x20] sm:$0xf]
      %v506 = vld [vmem:[%s207 + $0x24] sm:$0xf]
      %v507 = vld [vmem:[%s207 + $0x28] sm:$0xf]
      %v508 = vld [vmem:[%s207 + $0x2c] sm:$0x1]
      %s509 = scalar_lea.vmem %s1, 24
      %v510 = vld [vmem:[%s509] sm:$0xf]
      %v511 = vld [vmem:[%s509 + $0x4] sm:$0xf]
      %v523 = vunpack.c.l.b16 %v498
      %v524 = vunpack.c.l.b16 %v499
      %v525 = vunpack.c.l.b16 %v500
      %v526 = vunpack.c.l.b16 %v501
      %v527 = vunpack.c.l.b16 %v502
      %v528 = vunpack.c.l.b16 %v503
      %v529 = vunpack.c.l.b16 %v504
      %v530 = vunpack.c.l.b16 %v505
      %v531 = vunpack.c.l.b16 %v506
      %v532 = vunpack.c.l.b16 %v507
      %v533 = vunpack.c.l.b16 %v508
      %v534 = vpack.c.b16 %v524, %v523
      %v535 = vpack.c.b16 %v526, %v525
      %v536 = vpack.c.b16 %v528, %v527
      %v537 = vpack.c.b16 %v530, %v529
      %v538 = vpack.c.b16 %v532, %v531
      %v539 = vpack.c.b16 %v533, %v533
      %v540 = vrot.slane %v534, 1
      %v541 = vrot.slane %v535, 1
      %v542 = vsel %vm421, %v540, %v541
      %v543 = vrot.slane %v536, 1
      %v544 = vsel %vm421, %v541, %v543
      %v545 = vrot.slane %v537, 1
      %v546 = vsel %vm421, %v543, %v545
      %v547 = vrot.slane %v538, 1
      %v548 = vsel %vm421, %v545, %v547
      %v549 = vrot.slane %v539, 1
      %v550 = vsel %vm421, %v547, %v549
      %v553 = vunpack.c.l.b16 %v510
      %v554 = vunpack.c.l.b16 %v511
      %v555 = vpack.c.b16 %v554, %v553
      %v558 = vsel %vm314, %v542, 0
      %v561 = vsel %vm314, %v544, 0
      %v564 = vsel %vm314, %v546, 0
      %v567 = vsel %vm314, %v548, 0
      %v570 = vsel %vm314, %v550, 0
      %572 = vmatpush.bf16.msra.mxu0 0
      %573 = vmatpush.bf16.msra.mxu0 0
      %574 = vmatpush.bf16.msra.mxu0 0
      %575 = vmatpush.bf16.msra.mxu0 0
      %576 = vmatpush.bf16.msra.mxu0 0
      %577 = vmatpush.bf16.msra.mxu0 0
      %578 = vmatpush.bf16.msra.mxu0 0
      %579 = vmatpush.bf16.msra.mxu0 %v555
      %580 = vmatmul.bf16.gmra.mxu0 %v558
      %v581 = vpop.f32.mrf.mxu0
      %v582 = vadd.f32 0.0, %v581
      %v583 = vpop.f32.mrf.mxu0
      %v584 = vadd.f32 0.0, %v583
      %585 = vmatmul.bf16.gmra.mxu0 %v561
      %v586 = vpop.f32.mrf.mxu0
      %v587 = vadd.f32 0.0, %v586
      %v588 = vpop.f32.mrf.mxu0
      %v589 = vadd.f32 0.0, %v588
      %590 = vmatmul.bf16.gmra.mxu0 %v564
      %v591 = vpop.f32.mrf.mxu0
      %v592 = vadd.f32 0.0, %v591
      %v593 = vpop.f32.mrf.mxu0
      %v594 = vadd.f32 0.0, %v593
      %595 = vmatmul.bf16.gmra.mxu0 %v567
      %v596 = vpop.f32.mrf.mxu0
      %v597 = vadd.f32 0.0, %v596
      %v598 = vpop.f32.mrf.mxu0
      %v599 = vadd.f32 0.0, %v598
      %600 = vmatmul.bf16.gmra.mxu0 %v570
      %v601 = vpop.f32.mrf.mxu0
      %v602 = vadd.f32 0.0, %v601
      %v603 = vpop.f32.mrf.mxu0
      %v604 = vadd.f32 0.0, %v603
      %605 = vdwg.mxu0
      %v606 = vadd.f32 %v488, %v582
      %v607 = vadd.f32 %v489, %v584
      %v608 = vadd.f32 %v490, %v587
      %v609 = vadd.f32 %v491, %v589
      %v610 = vadd.f32 %v492, %v592
      %v611 = vadd.f32 %v493, %v594
      %v612 = vadd.f32 %v494, %v597
      %v613 = vadd.f32 %v495, %v599
      %v614 = vadd.f32 %v496, %v602
      %v615 = vadd.f32 %v497, %v604
      %v616 = vld [vmem:[%s207 + $0x2c] sm:$0x3]
      %s617 = scalar_lea.vmem %s1, 32
      %v618 = vld [vmem:[%s617] sm:$0xf]
      %v619 = vld [vmem:[%s617 + $0x4] sm:$0xf]
      %v621 = vunpack.c.l.b16 %v616
      %v622 = vpack.c.b16 %v621, %v621
      %vm623 = vsmask.f32 6400
      %v625 = vshrl.u32 %v534, 16
      %v627 = vrot.slane %v625, 1
      %v628 = vshll.u32 %v534, 16
      %v630 = vrot.slane %v628, 2
      %v631 = vor.u32 %v627, %v630
      %v633 = vshrl.u32 %v535, 16
      %v635 = vrot.slane %v633, 1
      %v636 = vshll.u32 %v535, 16
      %v638 = vrot.slane %v636, 2
      %v639 = vor.u32 %v635, %v638
      %v640 = vsel %vm623, %v631, %v639
      %v642 = vshrl.u32 %v536, 16
      %v644 = vrot.slane %v642, 1
      %v645 = vshll.u32 %v536, 16
      %v647 = vrot.slane %v645, 2
      %v648 = vor.u32 %v644, %v647
      %v649 = vsel %vm623, %v639, %v648
      %v651 = vshrl.u32 %v537, 16
      %v653 = vrot.slane %v651, 1
      %v654 = vshll.u32 %v537, 16
      %v656 = vrot.slane %v654, 2
      %v657 = vor.u32 %v653, %v656
      %v658 = vsel %vm623, %v648, %v657
      %v660 = vshrl.u32 %v538, 16
      %v662 = vrot.slane %v660, 1
      %v663 = vshll.u32 %v538, 16
      %v665 = vrot.slane %v663, 2
      %v666 = vor.u32 %v662, %v665
      %v667 = vsel %vm623, %v657, %v666
      %v669 = vshrl.u32 %v622, 16
      %v671 = vrot.slane %v669, 1
      %v672 = vshll.u32 %v622, 16
      %v674 = vrot.slane %v672, 2
      %v675 = vor.u32 %v671, %v674
      %v676 = vsel %vm623, %v666, %v675
      %v679 = vunpack.c.l.b16 %v618
      %v680 = vunpack.c.l.b16 %v619
      %v681 = vpack.c.b16 %v680, %v679
      %v684 = vsel %vm314, %v640, 0
      %v687 = vsel %vm314, %v649, 0
      %v690 = vsel %vm314, %v658, 0
      %v693 = vsel %vm314, %v667, 0
      %v696 = vsel %vm314, %v676, 0
      %698 = vmatpush.bf16.msra.mxu0 0
      %699 = vmatpush.bf16.msra.mxu0 0
      %700 = vmatpush.bf16.msra.mxu0 0
      %701 = vmatpush.bf16.msra.mxu0 0
      %702 = vmatpush.bf16.msra.mxu0 0
      %703 = vmatpush.bf16.msra.mxu0 0
      %704 = vmatpush.bf16.msra.mxu0 0
      %705 = vmatpush.bf16.msra.mxu0 %v681
      %706 = vmatmul.bf16.gmra.mxu0 %v684
      %v707 = vpop.f32.mrf.mxu0
      %v708 = vadd.f32 0.0, %v707
      %v709 = vpop.f32.mrf.mxu0
      %v710 = vadd.f32 0.0, %v709
      %711 = vmatmul.bf16.gmra.mxu0 %v687
      %v712 = vpop.f32.mrf.mxu0
      %v713 = vadd.f32 0.0, %v712
      %v714 = vpop.f32.mrf.mxu0
      %v715 = vadd.f32 0.0, %v714
      %716 = vmatmul.bf16.gmra.mxu0 %v690
      %v717 = vpop.f32.mrf.mxu0
      %v718 = vadd.f32 0.0, %v717
      %v719 = vpop.f32.mrf.mxu0
      %v720 = vadd.f32 0.0, %v719
      %721 = vmatmul.bf16.gmra.mxu0 %v693
      %v722 = vpop.f32.mrf.mxu0
      %v723 = vadd.f32 0.0, %v722
      %v724 = vpop.f32.mrf.mxu0
      %v725 = vadd.f32 0.0, %v724
      %726 = vmatmul.bf16.gmra.mxu0 %v696
      %v727 = vpop.f32.mrf.mxu0
      %v728 = vadd.f32 0.0, %v727
      %v729 = vpop.f32.mrf.mxu0
      %v730 = vadd.f32 0.0, %v729
      %731 = vdwg.mxu0
      %v732 = vadd.f32 %v606, %v708
      %v733 = vadd.f32 %v607, %v710
      %v734 = vadd.f32 %v608, %v713
      %v735 = vadd.f32 %v609, %v715
      %v736 = vadd.f32 %v610, %v718
      %v737 = vadd.f32 %v611, %v720
      %v738 = vadd.f32 %v612, %v723
      %v739 = vadd.f32 %v613, %v725
      %v740 = vadd.f32 %v614, %v728
      %v741 = vadd.f32 %v615, %v730
      %v742 = vld [vmem:[%s207 + $0x4] sm:$0xc]
      %s743 = scalar_lea.vmem %s1, 40
      %v744 = vld [vmem:[%s743] sm:$0xf]
      %v745 = vld [vmem:[%s743 + $0x4] sm:$0xf]
      %v747 = vunpack.c.l.b16 %v742
      %v748 = vpack.c.b16 %v524, %v747
      %vm749 = vcmask 1045504
      %v750 = vrot.slane %v748, 2
      %v751 = vrot.slane %v535, 2
      %v752 = vsel %vm749, %v750, %v751
      %v753 = vrot.slane %v536, 2
      %v754 = vsel %vm749, %v751, %v753
      %v755 = vrot.slane %v537, 2
      %v756 = vsel %vm749, %v753, %v755
      %v757 = vrot.slane %v538, 2
      %v758 = vsel %vm749, %v755, %v757
      %v759 = vrot.slane %v622, 2
      %v760 = vsel %vm749, %v757, %v759
      %v763 = vunpack.c.l.b16 %v744
      %v764 = vunpack.c.l.b16 %v745
      %v765 = vpack.c.b16 %v764, %v763
      %v768 = vsel %vm314, %v752, 0
      %v771 = vsel %vm314, %v754, 0
      %v774 = vsel %vm314, %v756, 0
      %v777 = vsel %vm314, %v758, 0
      %v780 = vsel %vm314, %v760, 0
      %782 = vmatpush.bf16.msra.mxu0 0
      %783 = vmatpush.bf16.msra.mxu0 0
      %784 = vmatpush.bf16.msra.mxu0 0
      %785 = vmatpush.bf16.msra.mxu0 0
      %786 = vmatpush.bf16.msra.mxu0 0
      %787 = vmatpush.bf16.msra.mxu0 0
      %788 = vmatpush.bf16.msra.mxu0 0
      %789 = vmatpush.bf16.msra.mxu0 %v765
      %790 = vmatmul.bf16.gmra.mxu0 %v768
      %v791 = vpop.f32.mrf.mxu0
      %v792 = vadd.f32 0.0, %v791
      %v793 = vpop.f32.mrf.mxu0
      %v794 = vadd.f32 0.0, %v793
      %795 = vmatmul.bf16.gmra.mxu0 %v771
      %v796 = vpop.f32.mrf.mxu0
      %v797 = vadd.f32 0.0, %v796
      %v798 = vpop.f32.mrf.mxu0
      %v799 = vadd.f32 0.0, %v798
      %800 = vmatmul.bf16.gmra.mxu0 %v774
      %v801 = vpop.f32.mrf.mxu0
      %v802 = vadd.f32 0.0, %v801
      %v803 = vpop.f32.mrf.mxu0
      %v804 = vadd.f32 0.0, %v803
      %805 = vmatmul.bf16.gmra.mxu0 %v777
      %v806 = vpop.f32.mrf.mxu0
      %v807 = vadd.f32 0.0, %v806
      %v808 = vpop.f32.mrf.mxu0
      %v809 = vadd.f32 0.0, %v808
      %810 = vmatmul.bf16.gmra.mxu0 %v780
      %v811 = vpop.f32.mrf.mxu0
      %v812 = vadd.f32 0.0, %v811
      %v813 = vpop.f32.mrf.mxu0
      %v814 = vadd.f32 0.0, %v813
      %815 = vdwg.mxu0
      %v816 = vadd.f32 %v732, %v792
      %v817 = vadd.f32 %v733, %v794
      %v818 = vadd.f32 %v734, %v797
      %v819 = vadd.f32 %v735, %v799
      %v820 = vadd.f32 %v736, %v802
      %v821 = vadd.f32 %v737, %v804
      %v822 = vadd.f32 %v738, %v807
      %v823 = vadd.f32 %v739, %v809
      %v824 = vadd.f32 %v740, %v812
      %v825 = vadd.f32 %v741, %v814
      %v826 = vld [vmem:[%s207 + $0x8] sm:$0xc]
      %v827 = vld [vmem:[%s207 + $0xc] sm:$0xf]
      %v828 = vld [vmem:[%s207 + $0x10] sm:$0xf]
      %v829 = vld [vmem:[%s207 + $0x14] sm:$0xf]
      %v830 = vld [vmem:[%s207 + $0x18] sm:$0xf]
      %v831 = vld [vmem:[%s207 + $0x1c] sm:$0xf]
      %v832 = vld [vmem:[%s207 + $0x20] sm:$0xf]
      %v833 = vld [vmem:[%s207 + $0x24] sm:$0xf]
      %v834 = vld [vmem:[%s207 + $0x28] sm:$0xf]
      %v835 = vld [vmem:[%s207 + $0x2c] sm:$0xf]
      %v836 = vld [vmem:[%s207 + $0x30] sm:$0x3]
      %s837 = scalar_lea.vmem %s1, 48
      %v838 = vld [vmem:[%s837] sm:$0xf]
      %v839 = vld [vmem:[%s837 + $0x4] sm:$0xf]
      %v851 = vunpack.c.l.b16 %v826
      %v852 = vunpack.c.l.b16 %v827
      %v853 = vunpack.c.l.b16 %v828
      %v854 = vunpack.c.l.b16 %v829
      %v855 = vunpack.c.l.b16 %v830
      %v856 = vunpack.c.l.b16 %v831
      %v857 = vunpack.c.l.b16 %v832
      %v858 = vunpack.c.l.b16 %v833
      %v859 = vunpack.c.l.b16 %v834
      %v860 = vunpack.c.l.b16 %v835
      %v861 = vunpack.c.l.b16 %v836
      %v862 = vpack.c.b16 %v852, %v851
      %v863 = vpack.c.b16 %v854, %v853
      %v864 = vpack.c.b16 %v856, %v855
      %v865 = vpack.c.b16 %v858, %v857
      %v866 = vpack.c.b16 %v860, %v859
      %v867 = vpack.c.b16 %v861, %v861
      %v868 = vrot.slane %v862, 2
      %v869 = vrot.slane %v863, 2
      %v870 = vsel %vm749, %v868, %v869
      %v871 = vrot.slane %v864, 2
      %v872 = vsel %vm749, %v869, %v871
      %v873 = vrot.slane %v865, 2
      %v874 = vsel %vm749, %v871, %v873
      %v875 = vrot.slane %v866, 2
      %v876 = vsel %vm749, %v873, %v875
      %v877 = vrot.slane %v867, 2
      %v878 = vsel %vm749, %v875, %v877
      %v881 = vunpack.c.l.b16 %v838
      %v882 = vunpack.c.l.b16 %v839
      %v883 = vpack.c.b16 %v882, %v881
      %v886 = vsel %vm314, %v870, 0
      %v889 = vsel %vm314, %v872, 0
      %v892 = vsel %vm314, %v874, 0
      %v895 = vsel %vm314, %v876, 0
      %v898 = vsel %vm314, %v878, 0
      %900 = vmatpush.bf16.msra.mxu0 0
      %901 = vmatpush.bf16.msra.mxu0 0
      %902 = vmatpush.bf16.msra.mxu0 0
      %903 = vmatpush.bf16.msra.mxu0 0
      %904 = vmatpush.bf16.msra.mxu0 0
      %905 = vmatpush.bf16.msra.mxu0 0
      %906 = vmatpush.bf16.msra.mxu0 0
      %907 = vmatpush.bf16.msra.mxu0 %v883
      %908 = vmatmul.bf16.gmra.mxu0 %v886
      %v909 = vpop.f32.mrf.mxu0
      %v910 = vadd.f32 0.0, %v909
      %v911 = vpop.f32.mrf.mxu0
      %v912 = vadd.f32 0.0, %v911
      %913 = vmatmul.bf16.gmra.mxu0 %v889
      %v914 = vpop.f32.mrf.mxu0
      %v915 = vadd.f32 0.0, %v914
      %v916 = vpop.f32.mrf.mxu0
      %v917 = vadd.f32 0.0, %v916
      %918 = vmatmul.bf16.gmra.mxu0 %v892
      %v919 = vpop.f32.mrf.mxu0
      %v920 = vadd.f32 0.0, %v919
      %v921 = vpop.f32.mrf.mxu0
      %v922 = vadd.f32 0.0, %v921
      %923 = vmatmul.bf16.gmra.mxu0 %v895
      %v924 = vpop.f32.mrf.mxu0
      %v925 = vadd.f32 0.0, %v924
      %v926 = vpop.f32.mrf.mxu0
      %v927 = vadd.f32 0.0, %v926
      %928 = vmatmul.bf16.gmra.mxu0 %v898
      %v929 = vpop.f32.mrf.mxu0
      %v930 = vadd.f32 0.0, %v929
      %v931 = vpop.f32.mrf.mxu0
      %v932 = vadd.f32 0.0, %v931
      %933 = vdwg.mxu0
      %v934 = vadd.f32 %v816, %v910
      %v935 = vadd.f32 %v817, %v912
      %v936 = vadd.f32 %v818, %v915
      %v937 = vadd.f32 %v819, %v917
      %v938 = vadd.f32 %v820, %v920
      %v939 = vadd.f32 %v821, %v922
      %v940 = vadd.f32 %v822, %v925
      %v941 = vadd.f32 %v823, %v927
      %v942 = vadd.f32 %v824, %v930
      %v943 = vadd.f32 %v825, %v932
      %v944 = vld [vmem:[%s207 + $0x30] sm:$0x7]
      %s945 = scalar_lea.vmem %s1, 56
      %v946 = vld [vmem:[%s945] sm:$0xf]
      %v947 = vld [vmem:[%s945 + $0x4] sm:$0xf]
      %v949 = vunpack.c.l.b16 %v944
      %v950 = vpack.c.b16 %v949, %v949
      %vm951 = vsmask.f32 5376
      %v953 = vshrl.u32 %v862, 16
      %v955 = vrot.slane %v953, 2
      %v956 = vshll.u32 %v862, 16
      %v958 = vrot.slane %v956, 3
      %v959 = vor.u32 %v955, %v958
      %v961 = vshrl.u32 %v863, 16
      %v963 = vrot.slane %v961, 2
      %v964 = vshll.u32 %v863, 16
      %v966 = vrot.slane %v964, 3
      %v967 = vor.u32 %v963, %v966
      %v968 = vsel %vm951, %v959, %v967
      %v970 = vshrl.u32 %v864, 16
      %v972 = vrot.slane %v970, 2
      %v973 = vshll.u32 %v864, 16
      %v975 = vrot.slane %v973, 3
      %v976 = vor.u32 %v972, %v975
      %v977 = vsel %vm951, %v967, %v976
      %v979 = vshrl.u32 %v865, 16
      %v981 = vrot.slane %v979, 2
      %v982 = vshll.u32 %v865, 16
      %v984 = vrot.slane %v982, 3
      %v985 = vor.u32 %v981, %v984
      %v986 = vsel %vm951, %v976, %v985
      %v988 = vshrl.u32 %v866, 16
      %v990 = vrot.slane %v988, 2
      %v991 = vshll.u32 %v866, 16
      %v993 = vrot.slane %v991, 3
      %v994 = vor.u32 %v990, %v993
      %v995 = vsel %vm951, %v985, %v994
      %v997 = vshrl.u32 %v950, 16
      %v999 = vrot.slane %v997, 2
      %v1000 = vshll.u32 %v950, 16
      %v1002 = vrot.slane %v1000, 3
      %v1003 = vor.u32 %v999, %v1002
      %v1004 = vsel %vm951, %v994, %v1003
      %v1007 = vunpack.c.l.b16 %v946
      %v1008 = vunpack.c.l.b16 %v947
      %v1009 = vpack.c.b16 %v1008, %v1007
      %v1012 = vsel %vm314, %v968, 0
      %v1015 = vsel %vm314, %v977, 0
      %v1018 = vsel %vm314, %v986, 0
      %v1021 = vsel %vm314, %v995, 0
      %v1024 = vsel %vm314, %v1004, 0
      %1026 = vmatpush.bf16.msra.mxu0 0
      %1027 = vmatpush.bf16.msra.mxu0 0
      %1028 = vmatpush.bf16.msra.mxu0 0
      %1029 = vmatpush.bf16.msra.mxu0 0
      %1030 = vmatpush.bf16.msra.mxu0 0
      %1031 = vmatpush.bf16.msra.mxu0 0
      %1032 = vmatpush.bf16.msra.mxu0 0
      %1033 = vmatpush.bf16.msra.mxu0 %v1009
      %1034 = vmatmul.bf16.gmra.mxu0 %v1012
      %v1035 = vpop.f32.mrf.mxu0
      %v1036 = vadd.f32 0.0, %v1035
      %v1037 = vpop.f32.mrf.mxu0
      %v1038 = vadd.f32 0.0, %v1037
      %1039 = vmatmul.bf16.gmra.mxu0 %v1015
      %v1040 = vpop.f32.mrf.mxu0
      %v1041 = vadd.f32 0.0, %v1040
      %v1042 = vpop.f32.mrf.mxu0
      %v1043 = vadd.f32 0.0, %v1042
      %1044 = vmatmul.bf16.gmra.mxu0 %v1018
      %v1045 = vpop.f32.mrf.mxu0
      %v1046 = vadd.f32 0.0, %v1045
      %v1047 = vpop.f32.mrf.mxu0
      %v1048 = vadd.f32 0.0, %v1047
      %1049 = vmatmul.bf16.gmra.mxu0 %v1021
      %v1050 = vpop.f32.mrf.mxu0
      %v1051 = vadd.f32 0.0, %v1050
      %v1052 = vpop.f32.mrf.mxu0
      %v1053 = vadd.f32 0.0, %v1052
      %1054 = vmatmul.bf16.gmra.mxu0 %v1024
      %v1055 = vpop.f32.mrf.mxu0
      %v1056 = vadd.f32 0.0, %v1055
      %v1057 = vpop.f32.mrf.mxu0
      %v1058 = vadd.f32 0.0, %v1057
      %1059 = vdwg.mxu0
      %v1060 = vadd.f32 %v934, %v1036
      %v1061 = vadd.f32 %v935, %v1038
      %v1062 = vadd.f32 %v936, %v1041
      %v1063 = vadd.f32 %v937, %v1043
      %v1064 = vadd.f32 %v938, %v1046
      %v1065 = vadd.f32 %v939, %v1048
      %v1066 = vadd.f32 %v940, %v1051
      %v1067 = vadd.f32 %v941, %v1053
      %v1068 = vadd.f32 %v942, %v1056
      %v1069 = vadd.f32 %v943, %v1058
      %v1070 = vld [vmem:[%s207 + $0x8] sm:$0x8]
      %s1071 = scalar_lea.vmem %s1, 64
      %v1072 = vld [vmem:[%s1071] sm:$0xf]
      %v1073 = vld [vmem:[%s1071 + $0x4] sm:$0xf]
      %v1075 = vunpack.c.l.b16 %v1070
      %v1076 = vpack.c.b16 %v852, %v1075
      %vm1077 = vcmask 1044480
      %v1078 = vrot.slane %v1076, 3
      %v1079 = vrot.slane %v863, 3
      %v1080 = vsel %vm1077, %v1078, %v1079
      %v1081 = vrot.slane %v864, 3
      %v1082 = vsel %vm1077, %v1079, %v1081
      %v1083 = vrot.slane %v865, 3
      %v1084 = vsel %vm1077, %v1081, %v1083
      %v1085 = vrot.slane %v866, 3
      %v1086 = vsel %vm1077, %v1083, %v1085
      %v1087 = vrot.slane %v950, 3
      %v1088 = vsel %vm1077, %v1085, %v1087
      %v1091 = vunpack.c.l.b16 %v1072
      %v1092 = vunpack.c.l.b16 %v1073
      %v1093 = vpack.c.b16 %v1092, %v1091
      %v1096 = vsel %vm314, %v1080, 0
      %v1099 = vsel %vm314, %v1082, 0
      %v1102 = vsel %vm314, %v1084, 0
      %v1105 = vsel %vm314, %v1086, 0
      %v1108 = vsel %vm314, %v1088, 0
      %1110 = vmatpush.bf16.msra.mxu0 0
      %1111 = vmatpush.bf16.msra.mxu0 0
      %1112 = vmatpush.bf16.msra.mxu0 0
      %1113 = vmatpush.bf16.msra.mxu0 0
      %1114 = vmatpush.bf16.msra.mxu0 0
      %1115 = vmatpush.bf16.msra.mxu0 0
      %1116 = vmatpush.bf16.msra.mxu0 0
      %1117 = vmatpush.bf16.msra.mxu0 %v1093
      %1118 = vmatmul.bf16.gmra.mxu0 %v1096
      %v1119 = vpop.f32.mrf.mxu0
      %v1120 = vadd.f32 0.0, %v1119
      %v1121 = vpop.f32.mrf.mxu0
      %v1122 = vadd.f32 0.0, %v1121
      %1123 = vmatmul.bf16.gmra.mxu0 %v1099
      %v1124 = vpop.f32.mrf.mxu0
      %v1125 = vadd.f32 0.0, %v1124
      %v1126 = vpop.f32.mrf.mxu0
      %v1127 = vadd.f32 0.0, %v1126
      %1128 = vmatmul.bf16.gmra.mxu0 %v1102
      %v1129 = vpop.f32.mrf.mxu0
      %v1130 = vadd.f32 0.0, %v1129
      %v1131 = vpop.f32.mrf.mxu0
      %v1132 = vadd.f32 0.0, %v1131
      %1133 = vmatmul.bf16.gmra.mxu0 %v1105
      %v1134 = vpop.f32.mrf.mxu0
      %v1135 = vadd.f32 0.0, %v1134
      %v1136 = vpop.f32.mrf.mxu0
      %v1137 = vadd.f32 0.0, %v1136
      %1138 = vmatmul.bf16.gmra.mxu0 %v1108
      %v1139 = vpop.f32.mrf.mxu0
      %v1140 = vadd.f32 0.0, %v1139
      %v1141 = vpop.f32.mrf.mxu0
      %v1142 = vadd.f32 0.0, %v1141
      %1143 = vdwg.mxu0
      %v1144 = vadd.f32 %v1060, %v1120
      %v1145 = vadd.f32 %v1061, %v1122
      %v1146 = vadd.f32 %v1062, %v1125
      %v1147 = vadd.f32 %v1063, %v1127
      %v1148 = vadd.f32 %v1064, %v1130
      %v1149 = vadd.f32 %v1065, %v1132
      %v1150 = vadd.f32 %v1066, %v1135
      %v1151 = vadd.f32 %v1067, %v1137
      %v1152 = vadd.f32 %v1068, %v1140
      %v1153 = vadd.f32 %v1069, %v1142
      %v1154 = vld [vmem:[%s2] sm:$0x1]
      %v1155 = vperm.slane %v1154, 0
      %v1156 = vmul.f32 %v1144, %v1155
      %v1157 = vmul.f32 %v1145, %v1155
      %v1158 = vmul.f32 %v1146, %v1155
      %v1159 = vmul.f32 %v1147, %v1155
      %v1160 = vmul.f32 %v1148, %v1155
      %v1161 = vmul.f32 %v1149, %v1155
      %v1162 = vmul.f32 %v1150, %v1155
      %v1163 = vmul.f32 %v1151, %v1155
      %v1164 = vmul.f32 %v1152, %v1155
      %v1165 = vmul.f32 %v1153, %v1155
      %v1166 = vld [vmem:[%s2 + $0x1] sm:$0x1]
      %v1167 = vperm.slane %v1166, 0
      %v1168 = vadd.f32 %v1156, %v1167
      %v1169 = vadd.f32 %v1157, %v1167
      %v1170 = vadd.f32 %v1158, %v1167
      %v1171 = vadd.f32 %v1159, %v1167
      %v1172 = vadd.f32 %v1160, %v1167
      %v1173 = vadd.f32 %v1161, %v1167
      %v1174 = vadd.f32 %v1162, %v1167
      %v1175 = vadd.f32 %v1163, %v1167
      %v1176 = vadd.f32 %v1164, %v1167
      %v1177 = vadd.f32 %v1165, %v1167
      %v1178 = vmin.f32 %v1168, 20.0
      %v1179 = vmin.f32 %v1169, 20.0
      %v1180 = vmin.f32 %v1170, 20.0
      %v1181 = vmin.f32 %v1171, 20.0
      %v1182 = vmin.f32 %v1172, 20.0
      %v1183 = vmin.f32 %v1173, 20.0
      %v1184 = vmin.f32 %v1174, 20.0
      %v1185 = vmin.f32 %v1175, 20.0
      %v1186 = vmin.f32 %v1176, 20.0
      %v1187 = vmin.f32 %v1177, 20.0
      %v1188 = vmul.f32 %v1178, 1.442695
      %v1189 = vpow.pop %v1188
      %v1190 = vmul.f32 %v1179, 1.442695
      %v1191 = vpow.pop %v1190
      %v1192 = vmul.f32 %v1180, 1.442695
      %v1193 = vpow.pop %v1192
      %v1194 = vmul.f32 %v1181, 1.442695
      %v1195 = vpow.pop %v1194
      %v1196 = vmul.f32 %v1182, 1.442695
      %v1197 = vpow.pop %v1196
      %v1198 = vmul.f32 %v1183, 1.442695
      %v1199 = vpow.pop %v1198
      %v1200 = vmul.f32 %v1184, 1.442695
      %v1201 = vpow.pop %v1200
      %v1202 = vmul.f32 %v1185, 1.442695
      %v1203 = vpow.pop %v1202
      %v1204 = vmul.f32 %v1186, 1.442695
      %v1205 = vpow.pop %v1204
      %v1206 = vmul.f32 %v1187, 1.442695
      %v1207 = vpow.pop %v1206
      %v1208 = vadd.f32 %v1189, 2.0
      %v1209 = vadd.f32 %v1191, 2.0
      %v1210 = vadd.f32 %v1193, 2.0
      %v1211 = vadd.f32 %v1195, 2.0
      %v1212 = vadd.f32 %v1197, 2.0
      %v1213 = vadd.f32 %v1199, 2.0
      %v1214 = vadd.f32 %v1201, 2.0
      %v1215 = vadd.f32 %v1203, 2.0
      %v1216 = vadd.f32 %v1205, 2.0
      %v1217 = vadd.f32 %v1207, 2.0
      %v1218 = vmul.f32 %v1189, %v1208
      %v1219 = vmul.f32 %v1191, %v1209
      %v1220 = vmul.f32 %v1193, %v1210
      %v1221 = vmul.f32 %v1195, %v1211
      %v1222 = vmul.f32 %v1197, %v1212
      %v1223 = vmul.f32 %v1199, %v1213
      %v1224 = vmul.f32 %v1201, %v1214
      %v1225 = vmul.f32 %v1203, %v1215
      %v1226 = vmul.f32 %v1205, %v1216
      %v1227 = vmul.f32 %v1207, %v1217
      %v1228 = vmul.f32 %v1168, %v1218
      %v1229 = vmul.f32 %v1169, %v1219
      %v1230 = vmul.f32 %v1170, %v1220
      %v1231 = vmul.f32 %v1171, %v1221
      %v1232 = vmul.f32 %v1172, %v1222
      %v1233 = vmul.f32 %v1173, %v1223
      %v1234 = vmul.f32 %v1174, %v1224
      %v1235 = vmul.f32 %v1175, %v1225
      %v1236 = vmul.f32 %v1176, %v1226
      %v1237 = vmul.f32 %v1177, %v1227
      %v1238 = vadd.f32 %v1218, 2.0
      %v1239 = vadd.f32 %v1219, 2.0
      %v1240 = vadd.f32 %v1220, 2.0
      %v1241 = vadd.f32 %v1221, 2.0
      %v1242 = vadd.f32 %v1222, 2.0
      %v1243 = vadd.f32 %v1223, 2.0
      %v1244 = vadd.f32 %v1224, 2.0
      %v1245 = vadd.f32 %v1225, 2.0
      %v1246 = vadd.f32 %v1226, 2.0
      %v1247 = vadd.f32 %v1227, 2.0
      %v1248 = vrcp.pop %v1238
      %v1249 = vrcp.pop %v1239
      %v1250 = vrcp.pop %v1240
      %v1251 = vrcp.pop %v1241
      %v1252 = vrcp.pop %v1242
      %v1253 = vrcp.pop %v1243
      %v1254 = vrcp.pop %v1244
      %v1255 = vrcp.pop %v1245
      %v1256 = vrcp.pop %v1246
      %v1257 = vrcp.pop %v1247
      %v1258 = vmul.f32 %v1228, %v1248
      %v1259 = vmul.f32 %v1229, %v1249
      %v1260 = vmul.f32 %v1230, %v1250
      %v1261 = vmul.f32 %v1231, %v1251
      %v1262 = vmul.f32 %v1232, %v1252
      %v1263 = vmul.f32 %v1233, %v1253
      %v1264 = vmul.f32 %v1234, %v1254
      %v1265 = vmul.f32 %v1235, %v1255
      %v1266 = vmul.f32 %v1236, %v1256
      %v1267 = vmul.f32 %v1237, %v1257
      %vm1268 = vcmp.gt.f32.partialorder %v1168, 20.0
      %vm1269 = vcmp.gt.f32.partialorder %v1169, 20.0
      %vm1270 = vcmp.gt.f32.partialorder %v1170, 20.0
      %vm1271 = vcmp.gt.f32.partialorder %v1171, 20.0
      %vm1272 = vcmp.gt.f32.partialorder %v1172, 20.0
      %vm1273 = vcmp.gt.f32.partialorder %v1173, 20.0
      %vm1274 = vcmp.gt.f32.partialorder %v1174, 20.0
      %vm1275 = vcmp.gt.f32.partialorder %v1175, 20.0
      %vm1276 = vcmp.gt.f32.partialorder %v1176, 20.0
      %vm1277 = vcmp.gt.f32.partialorder %v1177, 20.0
      %v1278 = vsel %vm1268, %v1168, %v1258
      %v1279 = vsel %vm1269, %v1169, %v1259
      %v1280 = vsel %vm1270, %v1170, %v1260
      %v1281 = vsel %vm1271, %v1171, %v1261
      %v1282 = vsel %vm1272, %v1172, %v1262
      %v1283 = vsel %vm1273, %v1173, %v1263
      %v1284 = vsel %vm1274, %v1174, %v1264
      %v1285 = vsel %vm1275, %v1175, %v1265
      %v1286 = vsel %vm1276, %v1176, %v1266
      %v1287 = vsel %vm1277, %v1177, %v1267
      %v1288 = vld [vmem:[%s212] sm:$0xf]
      %v1289 = vld [vmem:[%s212 + $0x4] sm:$0xf]
      %v1290 = vld [vmem:[%s212 + $0x8] sm:$0xf]
      %v1291 = vld [vmem:[%s212 + $0xc] sm:$0xf]
      %v1292 = vld [vmem:[%s212 + $0x10] sm:$0xf]
      %v1293 = vld [vmem:[%s212 + $0x14] sm:$0xf]
      %v1294 = vld [vmem:[%s212 + $0x18] sm:$0xf]
      %v1295 = vld [vmem:[%s212 + $0x1c] sm:$0xf]
      %v1296 = vld [vmem:[%s212 + $0x20] sm:$0xf]
      %v1297 = vld [vmem:[%s212 + $0x24] sm:$0xf]
      %v1298 = vunpack.c.l.bf16 %v1288
      %v1299 = vunpack.c.l.bf16 %v1289
      %v1300 = vunpack.c.l.bf16 %v1290
      %v1301 = vunpack.c.l.bf16 %v1291
      %v1302 = vunpack.c.l.bf16 %v1292
      %v1303 = vunpack.c.l.bf16 %v1293
      %v1304 = vunpack.c.l.bf16 %v1294
      %v1305 = vunpack.c.l.bf16 %v1295
      %v1306 = vunpack.c.l.bf16 %v1296
      %v1307 = vunpack.c.l.bf16 %v1297
      %v1308 = vadd.f32 %v1278, %v1298
      %v1309 = vadd.f32 %v1279, %v1299
      %v1310 = vadd.f32 %v1280, %v1300
      %v1311 = vadd.f32 %v1281, %v1301
      %v1312 = vadd.f32 %v1282, %v1302
      %v1313 = vadd.f32 %v1283, %v1303
      %v1314 = vadd.f32 %v1284, %v1304
      %v1315 = vadd.f32 %v1285, %v1305
      %v1316 = vadd.f32 %v1286, %v1306
      %v1317 = vadd.f32 %v1287, %v1307
      %v1318 = vmul.f32 %v1308, 0.70710677
      %v1319 = vmul.f32 %v1309, 0.70710677
      %v1320 = vmul.f32 %v1310, 0.70710677
      %v1321 = vmul.f32 %v1311, 0.70710677
      %v1322 = vmul.f32 %v1312, 0.70710677
      %v1323 = vmul.f32 %v1313, 0.70710677
      %v1324 = vmul.f32 %v1314, 0.70710677
      %v1325 = vmul.f32 %v1315, 0.70710677
      %v1326 = vmul.f32 %v1316, 0.70710677
      %v1327 = vmul.f32 %v1317, 0.70710677
      %v1328 = vpack.c.bf16 %v1318, %v1318
      %v1329 = vpack.c.bf16 %v1319, %v1319
      %v1330 = vpack.c.bf16 %v1320, %v1320
      %v1331 = vpack.c.bf16 %v1321, %v1321
      %v1332 = vpack.c.bf16 %v1322, %v1322
      %v1333 = vpack.c.bf16 %v1323, %v1323
      %v1334 = vpack.c.bf16 %v1324, %v1324
      %v1335 = vpack.c.bf16 %v1325, %v1325
      %v1336 = vpack.c.bf16 %v1326, %v1326
      %v1337 = vpack.c.bf16 %v1327, %v1327
      %vm1338 = vcmask 125952
      %1339 = vst.msk [vmem:[%s217] sm:$0xf] %vm1338, %v1328
      %1340 = vst.msk [vmem:[%s217 + $0x4] sm:$0xf] %vm1338, %v1329
      %1341 = vst.msk [vmem:[%s217 + $0x8] sm:$0xf] %vm1338, %v1330
      %1342 = vst.msk [vmem:[%s217 + $0xc] sm:$0xf] %vm1338, %v1331
      %1343 = vst.msk [vmem:[%s217 + $0x10] sm:$0xf] %vm1338, %v1332
      %1344 = vst.msk [vmem:[%s217 + $0x14] sm:$0xf] %vm1338, %v1333
      %1345 = vst.msk [vmem:[%s217 + $0x18] sm:$0xf] %vm1338, %v1334
      %1346 = vst.msk [vmem:[%s217 + $0x1c] sm:$0xf] %vm1338, %v1335
      %1347 = vst.msk [vmem:[%s217 + $0x20] sm:$0xf] %vm1338, %v1336
      %1348 = vst.msk [vmem:[%s217 + $0x24] sm:$0xf] %vm1338, %v1337
      %p1349 = scmp.lt.s32.totalorder %s15, 1
      %s1350 = scalar_select %p1349, %s15, 1
      %s1351 = smul.addr %s1350, 10
      %s1352 = smul.addr %s1351, 4
      %s1353 = scalar_lea.vmem %s4, %s1352
      // Predicated region
      $region37: #{_lambda_.10} parent=35 // pred_check
        %p1354 = pneg %p127
      $region38: #{_lambda_.10} parent=35 // pred_check_branch
        %1356 = sbr.rel (%p1354) target = $region40
      $region39: #{_lambda_.10} parent=35 // pred_region
        _
      $region40: #{_lambda_.10} parent=35 // pred_fallthru
        _
    $region36: #{_lambda_.10} parent=5 // pred_fallthru
      _
    %p1357 = scmp.le.s32.totalorder 2, %s10
    // Predicated region
    $region41: #{_lambda_.10} parent=5 // pred_check
      %p1358 = pneg %p1357
    $region42: #{_lambda_.10} parent=5 // pred_check_branch
      %1360 = sbr.rel (%p1358) target = $region44
    $region43: #{_lambda_.10} parent=5 // pred_region
      %s1361 = ssub.s32 %s10, 2
      // Predicated region
      $region45: #{_lambda_.10} parent=43 // pred_check
        %p1362 = pneg %p133
      $region46: #{_lambda_.10} parent=43 // pred_check_branch
        %1364 = sbr.rel (%p1362) target = $region48
      $region47: #{_lambda_.10} parent=43 // pred_region
        %p1365 = scmp.lt.s32.totalorder %s16, 1
        %s1366 = scalar_select %p1365, %s16, 1
        %s1367 = smul.addr %s1366, 10
        %s1368 = smul.addr %s1367, 4
        %s1369 = scalar_lea.vmem %s4, %s1368
      $region48: #{_lambda_.10} parent=43 // pred_fallthru
        _
    $region44: #{_lambda_.10} parent=5 // pred_fallthru
      _
  $region6: #{_lambda_.10} parent=0 // loop_footer
    %s14 = sadd.s32 1, %s10
  $region7: #{_lambda_.10} parent=0 // loop_footer_branch
    %9 = sbr.rel target = $region3
  $region8: #{_lambda_.10} parent=0 // loop_exit
    _

// kernel: _lambda_.11
$region0: #{_lambda_.11}
  #allocation0 [shape = 'u32[]', space=smem, size = 0x4, offset = 0x4, fixed_abs, tag = 'smem constant byte address 0x4 - core index']
  #allocation1 [shape = 'u32[72,128]{1,0:T(1,128)}', space=vmem, size = 0x9000, scoped, tag = 'internal scratch']
  %s0 = inlined_call_operand.vmem [shape: bf16[2,4,26,16], index: 0, kind: input, shape index: {}]
  %s1 = inlined_call_operand.vmem [shape: bf16[9,16,32], index: 1, kind: input, shape index: {}]
  %s2 = inlined_call_operand.vmem [shape: f32[2,32], index: 2, kind: input, shape index: {}]
  %s3 = inlined_call_operand.vmem [shape: bf16[16,32], index: 3, kind: input, shape index: {}]
  %s4 = inlined_call_operand.vmem [shape: f32[1,32], index: 4, kind: input, shape index: {}]
  %s5 = inlined_call_operand.vmem [shape: bf16[2,20,32], index: 5, kind: output, shape index: {0}]
  %s6 = inlined_call_operand.vmem [shape: bf16[2,20,32], index: 6, kind: output, shape index: {1}]
  %7 = xla_tuple %s5, %s6
  %s8 = sld [smem:[#allocation0]]
  $region61: #{_lambda_.11} parent=0
    _
  %s10 = ssub.s32 1, %s8
  %s11 = scalar_select 0, %s10, %s8
  loop: start=0, step=1, limit=4
  $region2: #{_lambda_.11} parent=0 // loop_pre_header
    _
  $region3: #{_lambda_.11} parent=0 // loop_header
    %s13 = sphi 0, %s17
    %p14 = scmp.ge.s32.totalorder %s13, 4
    %s23 = sphi 0, %s25
    %s26 = sphi 0, %s23
    %s27 = sphi 0, %s26
    %s43 = sphi 0, %s27
    %s47 = sphi 0, %s47
    %s49 = sphi 0, %s47
    %s50 = sphi 0, %s49
    %s64 = sphi 0, %s50
    %s68 = sphi 0, %s68
    %s70 = sphi 0, %s68
    %s71 = sphi 0, %s70
    %s85 = sphi 0, %s71
    %s89 = sphi 0, %s89
    %s91 = sphi 0, %s89
    %s92 = sphi 0, %s91
    %s106 = sphi 0, %s92
    %s110 = sphi 0, %s110
    %s112 = sphi 0, %s110
    %s113 = sphi 0, %s112
    %s127 = sphi 0, %s113
    %s133 = sphi 0, %s135
    %s136 = sphi 0, %s133
    %s137 = sphi 0, %s136
    %s153 = sphi 0, %s137
    %s159 = sphi 0, %s161
    %s162 = sphi 0, %s159
    %s163 = sphi 0, %s162
    %s179 = sphi 0, %s163
  $region4: #{_lambda_.11} parent=0 // loop_header_branch
    %16 = sbr.rel (%p14) target = $region8
  $region5: #{_lambda_.11} parent=0 // loop_body
    %s18 = ssub.s32 %s13, 1
    %s19 = ssub.s32 %s13, 2
    %s20 = sadd.s32 %s13, 1
    %s21 = ssub.s32 %s13, %s20
    %p22 = scmp.eq.s32.totalorder %s21, 0
    %s24 = sadd.s32 %s23, 1
    %s25 = scalar_select %p22, %s23, %s24
    %p28 = pneg %p22
    %p29 = scmp.eq.s32.totalorder %s13, 1
    %p30 = por %p28, %p29
    %p31 = scmp.ne.s32.totalorder %s23, %s26
    %p32 = scmp.eq.s32.totalorder %s13, 0
    %p33 = por %p31, %p32
    %p34 = scmp.ne.s32.totalorder %s23, %s26
    %p35 = scmp.eq.s32.totalorder %s18, 1
    %p36 = por %p34, %p35
    %p37 = scmp.ne.s32.totalorder %s26, %s27
    %p38 = scmp.eq.s32.totalorder %s18, 0
    %p39 = por %p37, %p38
    %p40 = scmp.ne.s32.totalorder %s26, %s27
    %p41 = scmp.eq.s32.totalorder %s19, 1
    %p42 = por %p40, %p41
    %p44 = scmp.ne.s32.totalorder %s27, %s43
    %p45 = scmp.eq.s32.totalorder %s19, 0
    %p46 = por %p44, %p45
    %s48 = sadd.s32 %s47, 1
    %p51 = scmp.eq.s32.totalorder %s13, 1
    %p52 = scmp.ne.s32.totalorder %s47, %s49
    %p53 = scmp.eq.s32.totalorder %s13, 0
    %p54 = por %p52, %p53
    %p55 = scmp.ne.s32.totalorder %s47, %s49
    %p56 = scmp.eq.s32.totalorder %s18, 1
    %p57 = por %p55, %p56
    %p58 = scmp.ne.s32.totalorder %s49, %s50
    %p59 = scmp.eq.s32.totalorder %s18, 0
    %p60 = por %p58, %p59
    %p61 = scmp.ne.s32.totalorder %s49, %s50
    %p62 = scmp.eq.s32.totalorder %s19, 1
    %p63 = por %p61, %p62
    %p65 = scmp.ne.s32.totalorder %s50, %s64
    %p66 = scmp.eq.s32.totalorder %s19, 0
    %p67 = por %p65, %p66
    %s69 = sadd.s32 %s68, 1
    %p72 = scmp.eq.s32.totalorder %s13, 1
    %p73 = scmp.ne.s32.totalorder %s68, %s70
    %p74 = scmp.eq.s32.totalorder %s13, 0
    %p75 = por %p73, %p74
    %p76 = scmp.ne.s32.totalorder %s68, %s70
    %p77 = scmp.eq.s32.totalorder %s18, 1
    %p78 = por %p76, %p77
    %p79 = scmp.ne.s32.totalorder %s70, %s71
    %p80 = scmp.eq.s32.totalorder %s18, 0
    %p81 = por %p79, %p80
    %p82 = scmp.ne.s32.totalorder %s70, %s71
    %p83 = scmp.eq.s32.totalorder %s19, 1
    %p84 = por %p82, %p83
    %p86 = scmp.ne.s32.totalorder %s71, %s85
    %p87 = scmp.eq.s32.totalorder %s19, 0
    %p88 = por %p86, %p87
    %s90 = sadd.s32 %s89, 1
    %p93 = scmp.eq.s32.totalorder %s13, 1
    %p94 = scmp.ne.s32.totalorder %s89, %s91
    %p95 = scmp.eq.s32.totalorder %s13, 0
    %p96 = por %p94, %p95
    %p97 = scmp.ne.s32.totalorder %s89, %s91
    %p98 = scmp.eq.s32.totalorder %s18, 1
    %p99 = por %p97, %p98
    %p100 = scmp.ne.s32.totalorder %s91, %s92
    %p101 = scmp.eq.s32.totalorder %s18, 0
    %p102 = por %p100, %p101
    %p103 = scmp.ne.s32.totalorder %s91, %s92
    %p104 = scmp.eq.s32.totalorder %s19, 1
    %p105 = por %p103, %p104
    %p107 = scmp.ne.s32.totalorder %s92, %s106
    %p108 = scmp.eq.s32.totalorder %s19, 0
    %p109 = por %p107, %p108
    %s111 = sadd.s32 %s110, 1
    %p114 = scmp.eq.s32.totalorder %s13, 1
    %p115 = scmp.ne.s32.totalorder %s110, %s112
    %p116 = scmp.eq.s32.totalorder %s13, 0
    %p117 = por %p115, %p116
    %p118 = scmp.ne.s32.totalorder %s110, %s112
    %p119 = scmp.eq.s32.totalorder %s18, 1
    %p120 = por %p118, %p119
    %p121 = scmp.ne.s32.totalorder %s112, %s113
    %p122 = scmp.eq.s32.totalorder %s18, 0
    %p123 = por %p121, %p122
    %p124 = scmp.ne.s32.totalorder %s112, %s113
    %p125 = scmp.eq.s32.totalorder %s19, 1
    %p126 = por %p124, %p125
    %p128 = scmp.ne.s32.totalorder %s113, %s127
    %p129 = scmp.eq.s32.totalorder %s19, 0
    %p130 = por %p128, %p129
    %s131 = ssub.s32 %s13, %s20
    %p132 = scmp.eq.s32.totalorder %s131, 0
    %s134 = sadd.s32 %s133, 1
    %s135 = scalar_select %p132, %s133, %s134
    %p138 = pneg %p132
    %p139 = scmp.eq.s32.totalorder %s13, 1
    %p140 = por %p138, %p139
    %p141 = scmp.ne.s32.totalorder %s133, %s136
    %p142 = scmp.eq.s32.totalorder %s13, 0
    %p143 = por %p141, %p142
    %p144 = scmp.ne.s32.totalorder %s133, %s136
    %p145 = scmp.eq.s32.totalorder %s18, 1
    %p146 = por %p144, %p145
    %p147 = scmp.ne.s32.totalorder %s136, %s137
    %p148 = scmp.eq.s32.totalorder %s18, 0
    %p149 = por %p147, %p148
    %p150 = scmp.ne.s32.totalorder %s136, %s137
    %p151 = scmp.eq.s32.totalorder %s19, 1
    %p152 = por %p150, %p151
    %p154 = scmp.ne.s32.totalorder %s137, %s153
    %p155 = scmp.eq.s32.totalorder %s19, 0
    %p156 = por %p154, %p155
    %s157 = ssub.s32 %s13, %s20
    %p158 = scmp.eq.s32.totalorder %s157, 0
    %s160 = sadd.s32 %s159, 1
    %s161 = scalar_select %p158, %s159, %s160
    %p164 = pneg %p158
    %p165 = scmp.eq.s32.totalorder %s13, 1
    %p166 = por %p164, %p165
    %p167 = scmp.ne.s32.totalorder %s159, %s162
    %p168 = scmp.eq.s32.totalorder %s13, 0
    %p169 = por %p167, %p168
    %p170 = scmp.ne.s32.totalorder %s159, %s162
    %p171 = scmp.eq.s32.totalorder %s18, 1
    %p172 = por %p170, %p171
    %p173 = scmp.ne.s32.totalorder %s162, %s163
    %p174 = scmp.eq.s32.totalorder %s18, 0
    %p175 = por %p173, %p174
    %p176 = scmp.ne.s32.totalorder %s162, %s163
    %p177 = scmp.eq.s32.totalorder %s19, 1
    %p178 = por %p176, %p177
    %p180 = scmp.ne.s32.totalorder %s163, %s179
    %p181 = scmp.eq.s32.totalorder %s19, 0
    %p182 = por %p180, %p181
    %p183 = scmp.le.s32.totalorder 1, %s13
    %p184 = scmp.lt.s32.totalorder %s13, 3
    %p185 = pnand %p183, %p184
    %p186 = pneg %p185
    // Predicated region
    $region9: #{_lambda_.11} parent=5 // pred_check
      _
    $region10: #{_lambda_.11} parent=5 // pred_check_branch
      %188 = sbr.rel (%p185) target = $region12
    $region11: #{_lambda_.11} parent=5 // pred_region
      %s189 = ssub.s32 %s13, 1
      // Predicated region
      $region13: #{_lambda_.11} parent=11 // pred_check
        %p190 = pneg %p60
      $region14: #{_lambda_.11} parent=11 // pred_check_branch
        %192 = sbr.rel (%p190) target = $region16
      $region15: #{_lambda_.11} parent=11 // pred_region
        _
      $region16: #{_lambda_.11} parent=11 // pred_fallthru
        _
      // Predicated region
      $region17: #{_lambda_.11} parent=11 // pred_check
        %p193 = pneg %p81
      $region18: #{_lambda_.11} parent=11 // pred_check_branch
        %195 = sbr.rel (%p193) target = $region20
      $region19: #{_lambda_.11} parent=11 // pred_region
        _
      $region20: #{_lambda_.11} parent=11 // pred_fallthru
        _
      // Predicated region
      $region21: #{_lambda_.11} parent=11 // pred_check
        %p196 = pneg %p102
      $region22: #{_lambda_.11} parent=11 // pred_check_branch
        %198 = sbr.rel (%p196) target = $region24
      $region23: #{_lambda_.11} parent=11 // pred_region
        _
      $region24: #{_lambda_.11} parent=11 // pred_fallthru
        _
      // Predicated region
      $region25: #{_lambda_.11} parent=11 // pred_check
        %p199 = pneg %p123
      $region26: #{_lambda_.11} parent=11 // pred_check_branch
        %201 = sbr.rel (%p199) target = $region28
      $region27: #{_lambda_.11} parent=11 // pred_region
        _
      $region28: #{_lambda_.11} parent=11 // pred_fallthru
        _
    $region12: #{_lambda_.11} parent=5 // pred_fallthru
      _
    %p202 = scmp.lt.s32.totalorder %s13, 2
    // Predicated region
    $region29: #{_lambda_.11} parent=5 // pred_check
      %p203 = pneg %p202
    $region30: #{_lambda_.11} parent=5 // pred_check_branch
      %205 = sbr.rel (%p203) target = $region32
    $region31: #{_lambda_.11} parent=5 // pred_region
      // Predicated region
      $region33: #{_lambda_.11} parent=31 // pred_check
        %p206 = pneg %p33
      $region34: #{_lambda_.11} parent=31 // pred_check_branch
        %208 = sbr.rel (%p206) target = $region36
      $region35: #{_lambda_.11} parent=31 // pred_region
        %p209 = scmp.lt.s32.totalorder %s13, 1
        %s210 = scalar_select %p209, %s13, 1
        %s211 = smul.addr %s210, 16
        %s212 = smul.addr %s211, 4
        %s213 = scalar_lea.vmem %s0, %s212
      $region36: #{_lambda_.11} parent=31 // pred_fallthru
        _
    $region32: #{_lambda_.11} parent=5 // pred_fallthru
      _
    %p214 = scmp.le.s32.totalorder 1, %s13
    %p215 = scmp.lt.s32.totalorder %s13, 3
    %p216 = pnand %p214, %p215
    %p217 = pneg %p216
    // Predicated region
    $region37: #{_lambda_.11} parent=5 // pred_check
      _
    $region38: #{_lambda_.11} parent=5 // pred_check_branch
      %219 = sbr.rel (%p216) target = $region40
    $region39: #{_lambda_.11} parent=5 // pred_region
      %s220 = ssub.s32 %s13, 1
      %p221 = scmp.lt.s32.totalorder %s18, 1
      %s222 = scalar_select %p221, %s18, 1
      %s223 = smul.addr %s222, 16
      %s224 = smul.addr %s223, 4
      %s225 = scalar_lea.vmem %s0, %s224
      %p226 = pneg %p39
      %p227 = pneg %p36
      %p228 = pneg %p60
      %p229 = pneg %p57
      %p230 = pneg %p81
      %p231 = pneg %p78
      %p232 = pneg %p102
      %p233 = pneg %p99
      %p234 = pneg %p123
      %p235 = pneg %p120
      %p236 = pneg %p149
      %p237 = pneg %p146
      %p238 = scmp.lt.s32.totalorder %s18, 1
      %s239 = scalar_select %p238, %s18, 1
      %s240 = smul.addr %s239, 3
      %s241 = smul.addr %s240, 4
      %s242 = scalar_lea.vmem %s5, %s241
      %p243 = pneg %p175
      %p244 = pneg %p172
      %p245 = scmp.lt.s32.totalorder %s18, 1
      %s246 = scalar_select %p245, %s18, 1
      %s247 = smul.addr %s246, 3
      %s248 = smul.addr %s247, 4
      %s249 = scalar_lea.vmem %s6, %s248
      %p250 = scmp.lt.s32.totalorder %s18, 1
      %s251 = scalar_select %p250, %s18, 1
      %s252 = smul.addr %s251, 16
      %s253 = smul.addr %s252, 4
      %s254 = scalar_lea.vmem %s0, %s253
      %p255 = scmp.lt.s32.totalorder %s18, 1
      %s256 = scalar_select %p255, %s18, 1
      %s257 = smul.addr %s256, 3
      %s258 = smul.addr %s257, 4
      %s259 = scalar_lea.vmem %s5, %s258
      %p260 = scmp.lt.s32.totalorder %s18, 1
      %s261 = scalar_select %p260, %s18, 1
      %s262 = smul.addr %s261, 3
      %s263 = smul.addr %s262, 4
      %s264 = scalar_lea.vmem %s6, %s263
      %v266 = vld [vmem:[%s254] sm:$0xf]
      %v267 = vld [vmem:[%s254 + $0x4] sm:$0xf]
      %v268 = vld [vmem:[%s254 + $0x8] sm:$0x3]
      %v269 = vld [vmem:[%s1] sm:$0xf]
      %v270 = vld [vmem:[%s1 + $0x4] sm:$0xf]
      %s271 = scalar_lea.vmem %s254, 16
      %v272 = vld [vmem:[%s271] sm:$0xf]
      %v273 = vld [vmem:[%s271 + $0x4] sm:$0xf]
      %v274 = vld [vmem:[%s271 + $0x8] sm:$0x3]
      %s275 = scalar_lea.vmem %s1, 8
      %v276 = vld [vmem:[%s275] sm:$0xf]
      %v277 = vld [vmem:[%s275 + $0x4] sm:$0xf]
      %v281 = vunpack.c.l.b16 %v272
      %v282 = vunpack.c.l.b16 %v273
      %v283 = vunpack.c.l.b16 %v274
      %v284 = vpack.c.b16 %v282, %v281
      %v285 = vpack.c.b16 %v283, %v283
      %v288 = vunpack.c.l.b16 %v276
      %v289 = vunpack.c.l.b16 %v277
      %v290 = vpack.c.b16 %v289, %v288
      %vm292 = vcmask 130048
      %v294 = vsel %vm292, %v284, 0
      %v297 = vsel %vm292, %v285, 0
      %299 = vmatpush.bf16.msra.mxu0 0
      %300 = vmatpush.bf16.msra.mxu0 0
      %301 = vmatpush.bf16.msra.mxu0 0
      %302 = vmatpush.bf16.msra.mxu0 0
      %303 = vmatpush.bf16.msra.mxu0 0
      %304 = vmatpush.bf16.msra.mxu0 0
      %305 = vmatpush.bf16.msra.mxu0 0
      %306 = vmatpush.bf16.msra.mxu0 %v290
      %307 = vmatmul.bf16.gmra.mxu0 %v294
      %v308 = vpop.f32.mrf.mxu0
      %v309 = vadd.f32 0.0, %v308
      %v310 = vpop.f32.mrf.mxu0
      %v311 = vadd.f32 0.0, %v310
      %312 = vmatmul.bf16.gmra.mxu0 %v297
      %v313 = vpop.f32.mrf.mxu0
      %v314 = vadd.f32 0.0, %v313
      %v315 = vpop.f32.mrf.mxu0
      %316 = vdwg.mxu0
      %v320 = vunpack.c.l.b16 %v266
      %v321 = vunpack.c.l.b16 %v267
      %v322 = vunpack.c.l.b16 %v268
      %v323 = vpack.c.b16 %v321, %v320
      %v324 = vpack.c.b16 %v322, %v322
      %v327 = vunpack.c.l.b16 %v269
      %v328 = vunpack.c.l.b16 %v270
      %v329 = vpack.c.b16 %v328, %v327
      %v332 = vsel %vm292, %v323, 0
      %v335 = vsel %vm292, %v324, 0
      %337 = vmatpush.bf16.msra.mxu0 0
      %338 = vmatpush.bf16.msra.mxu0 0
      %339 = vmatpush.bf16.msra.mxu0 0
      %340 = vmatpush.bf16.msra.mxu0 0
      %341 = vmatpush.bf16.msra.mxu0 0
      %342 = vmatpush.bf16.msra.mxu0 0
      %343 = vmatpush.bf16.msra.mxu0 0
      %344 = vmatpush.bf16.msra.mxu0 %v329
      %345 = vmatmul.bf16.gmra.mxu0 %v332
      %v346 = vpop.f32.mrf.mxu0
      %v347 = vadd.f32 %v309, %v346
      %v348 = vpop.f32.mrf.mxu0
      %v349 = vadd.f32 %v311, %v348
      %350 = vmatmul.bf16.gmra.mxu0 %v335
      %v351 = vpop.f32.mrf.mxu0
      %v352 = vadd.f32 %v314, %v351
      %v353 = vpop.f32.mrf.mxu0
      %354 = vdwg.mxu0
      %v355 = vld [vmem:[%s254 + $0x8] sm:$0x7]
      %s356 = scalar_lea.vmem %s1, 16
      %v357 = vld [vmem:[%s356] sm:$0xf]
      %v358 = vld [vmem:[%s356 + $0x4] sm:$0xf]
      %v360 = vunpack.c.l.b16 %v355
      %v361 = vpack.c.b16 %v360, %v360
      %vm362 = vsmask.f32 7424
      %v363 = vshrl.u32 %v323, 16
      %v365 = vshll.u32 %v323, 16
      %v367 = vrot.slane %v365, 1
      %v368 = vor.u32 %v363, %v367
      %v370 = vshll.u32 %v361, 16
      %v372 = vrot.slane %v370, 1
      %v373 = vsel %vm362, %v368, %v372
      %v374 = vshrl.u32 %v361, 16
      %v376 = vor.u32 %v374, %v372
      %v379 = vunpack.c.l.b16 %v357
      %v380 = vunpack.c.l.b16 %v358
      %v381 = vpack.c.b16 %v380, %v379
      %v384 = vsel %vm292, %v373, 0
      %v387 = vsel %vm292, %v376, 0
      %389 = vmatpush.bf16.msra.mxu0 0
      %390 = vmatpush.bf16.msra.mxu0 0
      %391 = vmatpush.bf16.msra.mxu0 0
      %392 = vmatpush.bf16.msra.mxu0 0
      %393 = vmatpush.bf16.msra.mxu0 0
      %394 = vmatpush.bf16.msra.mxu0 0
      %395 = vmatpush.bf16.msra.mxu0 0
      %396 = vmatpush.bf16.msra.mxu0 %v381
      %397 = vmatmul.bf16.gmra.mxu0 %v384
      %v398 = vpop.f32.mrf.mxu0
      %v399 = vadd.f32 0.0, %v398
      %v400 = vpop.f32.mrf.mxu0
      %v401 = vadd.f32 0.0, %v400
      %402 = vmatmul.bf16.gmra.mxu0 %v387
      %v403 = vpop.f32.mrf.mxu0
      %v404 = vadd.f32 0.0, %v403
      %v405 = vpop.f32.mrf.mxu0
      %406 = vdwg.mxu0
      %v407 = vadd.f32 %v347, %v399
      %v408 = vadd.f32 %v349, %v401
      %v409 = vadd.f32 %v352, %v404
      %s410 = scalar_lea.vmem %s254, 32
      %v411 = vld [vmem:[%s410] sm:$0xf]
      %v412 = vld [vmem:[%s410 + $0x4] sm:$0xf]
      %v413 = vld [vmem:[%s410 + $0x8] sm:$0x3]
      %s414 = scalar_lea.vmem %s1, 24
      %v415 = vld [vmem:[%s414] sm:$0xf]
      %v416 = vld [vmem:[%s414 + $0x4] sm:$0xf]
      %v420 = vunpack.c.l.b16 %v411
      %v421 = vunpack.c.l.b16 %v412
      %v422 = vunpack.c.l.b16 %v413
      %v423 = vpack.c.b16 %v421, %v420
      %v424 = vpack.c.b16 %v422, %v422
      %v427 = vunpack.c.l.b16 %v415
      %v428 = vunpack.c.l.b16 %v416
      %v429 = vpack.c.b16 %v428, %v427
      %v432 = vsel %vm292, %v423, 0
      %v435 = vsel %vm292, %v424, 0
      %437 = vmatpush.bf16.msra.mxu0 0
      %438 = vmatpush.bf16.msra.mxu0 0
      %439 = vmatpush.bf16.msra.mxu0 0
      %440 = vmatpush.bf16.msra.mxu0 0
      %441 = vmatpush.bf16.msra.mxu0 0
      %442 = vmatpush.bf16.msra.mxu0 0
      %443 = vmatpush.bf16.msra.mxu0 0
      %444 = vmatpush.bf16.msra.mxu0 %v429
      %445 = vmatmul.bf16.gmra.mxu0 %v432
      %v446 = vpop.f32.mrf.mxu0
      %v447 = vadd.f32 0.0, %v446
      %v448 = vpop.f32.mrf.mxu0
      %v449 = vadd.f32 0.0, %v448
      %450 = vmatmul.bf16.gmra.mxu0 %v435
      %v451 = vpop.f32.mrf.mxu0
      %v452 = vadd.f32 0.0, %v451
      %v453 = vpop.f32.mrf.mxu0
      %454 = vdwg.mxu0
      %v455 = vadd.f32 %v407, %v447
      %v456 = vadd.f32 %v408, %v449
      %v457 = vadd.f32 %v409, %v452
      %s458 = scalar_lea.vmem %s254, 48
      %v459 = vld [vmem:[%s458] sm:$0xf]
      %v460 = vld [vmem:[%s458 + $0x4] sm:$0xf]
      %v461 = vld [vmem:[%s458 + $0x8] sm:$0x3]
      %s462 = scalar_lea.vmem %s1, 32
      %v463 = vld [vmem:[%s462] sm:$0xf]
      %v464 = vld [vmem:[%s462 + $0x4] sm:$0xf]
      %v468 = vunpack.c.l.b16 %v459
      %v469 = vunpack.c.l.b16 %v460
      %v470 = vunpack.c.l.b16 %v461
      %v471 = vpack.c.b16 %v469, %v468
      %v472 = vpack.c.b16 %v470, %v470
      %v475 = vunpack.c.l.b16 %v463
      %v476 = vunpack.c.l.b16 %v464
      %v477 = vpack.c.b16 %v476, %v475
      %v480 = vsel %vm292, %v471, 0
      %v483 = vsel %vm292, %v472, 0
      %485 = vmatpush.bf16.msra.mxu0 0
      %486 = vmatpush.bf16.msra.mxu0 0
      %487 = vmatpush.bf16.msra.mxu0 0
      %488 = vmatpush.bf16.msra.mxu0 0
      %489 = vmatpush.bf16.msra.mxu0 0
      %490 = vmatpush.bf16.msra.mxu0 0
      %491 = vmatpush.bf16.msra.mxu0 0
      %492 = vmatpush.bf16.msra.mxu0 %v477
      %493 = vmatmul.bf16.gmra.mxu0 %v480
      %v494 = vpop.f32.mrf.mxu0
      %v495 = vadd.f32 0.0, %v494
      %v496 = vpop.f32.mrf.mxu0
      %v497 = vadd.f32 0.0, %v496
      %498 = vmatmul.bf16.gmra.mxu0 %v483
      %v499 = vpop.f32.mrf.mxu0
      %v500 = vadd.f32 0.0, %v499
      %v501 = vpop.f32.mrf.mxu0
      %502 = vdwg.mxu0
      %v503 = vadd.f32 %v455, %v495
      %v504 = vadd.f32 %v456, %v497
      %v505 = vadd.f32 %v457, %v500
      %v506 = vld [vmem:[%s410 + $0x8] sm:$0x7]
      %s507 = scalar_lea.vmem %s1, 40
      %v508 = vld [vmem:[%s507] sm:$0xf]
      %v509 = vld [vmem:[%s507 + $0x4] sm:$0xf]
      %v511 = vunpack.c.l.b16 %v506
      %v512 = vpack.c.b16 %v511, %v511
      %v513 = vshrl.u32 %v423, 16
      %v515 = vshll.u32 %v423, 16
      %v517 = vrot.slane %v515, 1
      %v518 = vor.u32 %v513, %v517
      %v520 = vshll.u32 %v512, 16
      %v522 = vrot.slane %v520, 1
      %v523 = vsel %vm362, %v518, %v522
      %v524 = vshrl.u32 %v512, 16
      %v526 = vor.u32 %v524, %v522
      %v529 = vunpack.c.l.b16 %v508
      %v530 = vunpack.c.l.b16 %v509
      %v531 = vpack.c.b16 %v530, %v529
      %v534 = vsel %vm292, %v523, 0
      %v537 = vsel %vm292, %v526, 0
      %539 = vmatpush.bf16.msra.mxu0 0
      %540 = vmatpush.bf16.msra.mxu0 0
      %541 = vmatpush.bf16.msra.mxu0 0
      %542 = vmatpush.bf16.msra.mxu0 0
      %543 = vmatpush.bf16.msra.mxu0 0
      %544 = vmatpush.bf16.msra.mxu0 0
      %545 = vmatpush.bf16.msra.mxu0 0
      %546 = vmatpush.bf16.msra.mxu0 %v531
      %547 = vmatmul.bf16.gmra.mxu0 %v534
      %v548 = vpop.f32.mrf.mxu0
      %v549 = vadd.f32 0.0, %v548
      %v550 = vpop.f32.mrf.mxu0
      %v551 = vadd.f32 0.0, %v550
      %552 = vmatmul.bf16.gmra.mxu0 %v537
      %v553 = vpop.f32.mrf.mxu0
      %v554 = vadd.f32 0.0, %v553
      %v555 = vpop.f32.mrf.mxu0
      %556 = vdwg.mxu0
      %v557 = vadd.f32 %v503, %v549
      %v558 = vadd.f32 %v504, %v551
      %v559 = vadd.f32 %v505, %v554
      %v560 = vld [vmem:[%s254] sm:$0xc]
      %v561 = vld [vmem:[%s254 + $0x4] sm:$0xf]
      %v562 = vld [vmem:[%s254 + $0x8] sm:$0xf]
      %v563 = vld [vmem:[%s254 + $0xc] sm:$0x1]
      %s564 = scalar_lea.vmem %s1, 48
      %v565 = vld [vmem:[%s564] sm:$0xf]
      %v566 = vld [vmem:[%s564 + $0x4] sm:$0xf]
      %v571 = vunpack.c.l.b16 %v560
      %v572 = vunpack.c.l.b16 %v561
      %v573 = vunpack.c.l.b16 %v562
      %v574 = vunpack.c.l.b16 %v563
      %v575 = vpack.c.b16 %v572, %v571
      %v576 = vpack.c.b16 %v574, %v573
      %vm577 = vsmask.f32 5376
      %v579 = vshrl.u32 %v575, 16
      %v581 = vrot.slane %v579, 2
      %v582 = vshll.u32 %v575, 16
      %v584 = vrot.slane %v582, 3
      %v585 = vor.u32 %v581, %v584
      %v587 = vshrl.u32 %v576, 16
      %v589 = vrot.slane %v587, 2
      %v590 = vshll.u32 %v576, 16
      %v592 = vrot.slane %v590, 3
      %v593 = vor.u32 %v589, %v592
      %v594 = vsel %vm577, %v585, %v593
      %v597 = vunpack.c.l.b16 %v565
      %v598 = vunpack.c.l.b16 %v566
      %v599 = vpack.c.b16 %v598, %v597
      %v602 = vsel %vm292, %v594, 0
      %v605 = vsel %vm292, %v593, 0
      %607 = vmatpush.bf16.msra.mxu0 0
      %608 = vmatpush.bf16.msra.mxu0 0
      %609 = vmatpush.bf16.msra.mxu0 0
      %610 = vmatpush.bf16.msra.mxu0 0
      %611 = vmatpush.bf16.msra.mxu0 0
      %612 = vmatpush.bf16.msra.mxu0 0
      %613 = vmatpush.bf16.msra.mxu0 0
      %614 = vmatpush.bf16.msra.mxu0 %v599
      %615 = vmatmul.bf16.gmra.mxu0 %v602
      %v616 = vpop.f32.mrf.mxu0
      %v617 = vadd.f32 0.0, %v616
      %v618 = vpop.f32.mrf.mxu0
      %v619 = vadd.f32 0.0, %v618
      %620 = vmatmul.bf16.gmra.mxu0 %v605
      %v621 = vpop.f32.mrf.mxu0
      %v622 = vadd.f32 0.0, %v621
      %v623 = vpop.f32.mrf.mxu0
      %624 = vdwg.mxu0
      %v625 = vadd.f32 %v557, %v617
      %v626 = vadd.f32 %v558, %v619
      %v627 = vadd.f32 %v559, %v622
      %v628 = vld [vmem:[%s271] sm:$0xc]
      %v629 = vld [vmem:[%s271 + $0x4] sm:$0xf]
      %v630 = vld [vmem:[%s271 + $0x8] sm:$0xf]
      %v631 = vld [vmem:[%s271 + $0xc] sm:$0x1]
      %s632 = scalar_lea.vmem %s1, 56
      %v633 = vld [vmem:[%s632] sm:$0xf]
      %v634 = vld [vmem:[%s632 + $0x4] sm:$0xf]
      %v639 = vunpack.c.l.b16 %v628
      %v640 = vunpack.c.l.b16 %v629
      %v641 = vunpack.c.l.b16 %v630
      %v642 = vunpack.c.l.b16 %v631
      %v643 = vpack.c.b16 %v640, %v639
      %v644 = vpack.c.b16 %v642, %v641
      %v646 = vshrl.u32 %v643, 16
      %v648 = vrot.slane %v646, 2
      %v649 = vshll.u32 %v643, 16
      %v651 = vrot.slane %v649, 3
      %v652 = vor.u32 %v648, %v651
      %v654 = vshrl.u32 %v644, 16
      %v656 = vrot.slane %v654, 2
      %v657 = vshll.u32 %v644, 16
      %v659 = vrot.slane %v657, 3
      %v660 = vor.u32 %v656, %v659
      %v661 = vsel %vm577, %v652, %v660
      %v664 = vunpack.c.l.b16 %v633
      %v665 = vunpack.c.l.b16 %v634
      %v666 = vpack.c.b16 %v665, %v664
      %v669 = vsel %vm292, %v661, 0
      %v672 = vsel %vm292, %v660, 0
      %674 = vmatpush.bf16.msra.mxu0 0
      %675 = vmatpush.bf16.msra.mxu0 0
      %676 = vmatpush.bf16.msra.mxu0 0
      %677 = vmatpush.bf16.msra.mxu0 0
      %678 = vmatpush.bf16.msra.mxu0 0
      %679 = vmatpush.bf16.msra.mxu0 0
      %680 = vmatpush.bf16.msra.mxu0 0
      %681 = vmatpush.bf16.msra.mxu0 %v666
      %682 = vmatmul.bf16.gmra.mxu0 %v669
      %v683 = vpop.f32.mrf.mxu0
      %v684 = vadd.f32 0.0, %v683
      %v685 = vpop.f32.mrf.mxu0
      %v686 = vadd.f32 0.0, %v685
      %687 = vmatmul.bf16.gmra.mxu0 %v672
      %v688 = vpop.f32.mrf.mxu0
      %v689 = vadd.f32 0.0, %v688
      %v690 = vpop.f32.mrf.mxu0
      %691 = vdwg.mxu0
      %v692 = vadd.f32 %v625, %v684
      %v693 = vadd.f32 %v626, %v686
      %v694 = vadd.f32 %v627, %v689
      %v695 = vld [vmem:[%s254] sm:$0x8]
      %s696 = scalar_lea.vmem %s1, 64
      %v697 = vld [vmem:[%s696] sm:$0xf]
      %v698 = vld [vmem:[%s696 + $0x4] sm:$0xf]
      %v700 = vunpack.c.l.b16 %v695
      %v701 = vpack.c.b16 %v572, %v700
      %vm702 = vcmask 1044480
      %v703 = vrot.slane %v701, 3
      %v704 = vrot.slane %v576, 3
      %v705 = vsel %vm702, %v703, %v704
      %v708 = vunpack.c.l.b16 %v697
      %v709 = vunpack.c.l.b16 %v698
      %v710 = vpack.c.b16 %v709, %v708
      %v713 = vsel %vm292, %v705, 0
      %v716 = vsel %vm292, %v704, 0
      %718 = vmatpush.bf16.msra.mxu0 0
      %719 = vmatpush.bf16.msra.mxu0 0
      %720 = vmatpush.bf16.msra.mxu0 0
      %721 = vmatpush.bf16.msra.mxu0 0
      %722 = vmatpush.bf16.msra.mxu0 0
      %723 = vmatpush.bf16.msra.mxu0 0
      %724 = vmatpush.bf16.msra.mxu0 0
      %725 = vmatpush.bf16.msra.mxu0 %v710
      %726 = vmatmul.bf16.gmra.mxu0 %v713
      %v727 = vpop.f32.mrf.mxu0
      %v728 = vadd.f32 0.0, %v727
      %v729 = vpop.f32.mrf.mxu0
      %v730 = vadd.f32 0.0, %v729
      %731 = vmatmul.bf16.gmra.mxu0 %v716
      %v732 = vpop.f32.mrf.mxu0
      %v733 = vadd.f32 0.0, %v732
      %v734 = vpop.f32.mrf.mxu0
      %735 = vdwg.mxu0
      %v736 = vadd.f32 %v692, %v728
      %v737 = vadd.f32 %v693, %v730
      %v738 = vadd.f32 %v694, %v733
      %v739 = vld [vmem:[%s2] sm:$0x1]
      %v740 = vperm.slane %v739, 0
      %v741 = vmul.f32 %v736, %v740
      %v742 = vmul.f32 %v737, %v740
      %v743 = vmul.f32 %v738, %v740
      %v744 = vld [vmem:[%s2 + $0x1] sm:$0x1]
      %v745 = vperm.slane %v744, 0
      %v746 = vadd.f32 %v741, %v745
      %v747 = vadd.f32 %v742, %v745
      %v748 = vadd.f32 %v743, %v745
      %v749 = vmin.f32 %v746, 20.0
      %v750 = vmin.f32 %v747, 20.0
      %v751 = vmin.f32 %v748, 20.0
      %v752 = vmul.f32 %v749, 1.442695
      %v753 = vpow.pop %v752
      %v754 = vmul.f32 %v750, 1.442695
      %v755 = vpow.pop %v754
      %v756 = vmul.f32 %v751, 1.442695
      %v757 = vpow.pop %v756
      %v758 = vadd.f32 %v753, 2.0
      %v759 = vadd.f32 %v755, 2.0
      %v760 = vadd.f32 %v757, 2.0
      %v761 = vmul.f32 %v753, %v758
      %v762 = vmul.f32 %v755, %v759
      %v763 = vmul.f32 %v757, %v760
      %v764 = vmul.f32 %v746, %v761
      %v765 = vmul.f32 %v747, %v762
      %v766 = vmul.f32 %v748, %v763
      %v767 = vadd.f32 %v761, 2.0
      %v768 = vadd.f32 %v762, 2.0
      %v769 = vadd.f32 %v763, 2.0
      %v770 = vrcp.pop %v767
      %v771 = vrcp.pop %v768
      %v772 = vrcp.pop %v769
      %v773 = vmul.f32 %v764, %v770
      %v774 = vmul.f32 %v765, %v771
      %v775 = vmul.f32 %v766, %v772
      %vm776 = vcmp.gt.f32.partialorder %v746, 20.0
      %vm777 = vcmp.gt.f32.partialorder %v747, 20.0
      %vm778 = vcmp.gt.f32.partialorder %v748, 20.0
      %v779 = vsel %vm776, %v746, %v773
      %v780 = vsel %vm777, %v747, %v774
      %v781 = vsel %vm778, %v748, %v775
      %v782 = vld [vmem:[%s3] sm:$0xf]
      %v783 = vld [vmem:[%s3 + $0x4] sm:$0xf]
      %v786 = vunpack.c.l.b16 %v782
      %v787 = vunpack.c.l.b16 %v783
      %v788 = vpack.c.b16 %v787, %v786
      %790 = vmatpush.bf16.msra.mxu0 0
      %791 = vmatpush.bf16.msra.mxu0 0
      %792 = vmatpush.bf16.msra.mxu0 0
      %793 = vmatpush.bf16.msra.mxu0 0
      %794 = vmatpush.bf16.msra.mxu0 0
      %795 = vmatpush.bf16.msra.mxu0 0
      %796 = vmatpush.bf16.msra.mxu0 0
      %797 = vmatpush.bf16.msra.mxu0 %v788
      %798 = vmatmul.bf16.gmra.mxu0 %v534
      %v799 = vpop.f32.mrf.mxu0
      %v800 = vadd.f32 0.0, %v799
      %v801 = vpop.f32.mrf.mxu0
      %v802 = vadd.f32 0.0, %v801
      %803 = vmatmul.bf16.gmra.mxu0 %v537
      %v804 = vpop.f32.mrf.mxu0
      %v805 = vadd.f32 0.0, %v804
      %v806 = vpop.f32.mrf.mxu0
      %807 = vdwg.mxu0
      %808 = vmatpush.bf16.msra.mxu0 0
      %809 = vmatpush.bf16.msra.mxu0 0
      %810 = vmatpush.bf16.msra.mxu0 0
      %811 = vmatpush.bf16.msra.mxu0 0
      %812 = vmatpush.bf16.msra.mxu0 0
      %813 = vmatpush.bf16.msra.mxu0 0
      %814 = vmatpush.bf16.msra.mxu0 0
      %815 = vmatpush.bf16.msra.mxu0 %v788
      %816 = vmatmul.bf16.gmra.mxu0 %v480
      %v817 = vpop.f32.mrf.mxu0
      %v818 = vadd.f32 %v800, %v817
      %v819 = vpop.f32.mrf.mxu0
      %v820 = vadd.f32 %v802, %v819
      %821 = vmatmul.bf16.gmra.mxu0 %v483
      %v822 = vpop.f32.mrf.mxu0
      %v823 = vadd.f32 %v805, %v822
      %v824 = vpop.f32.mrf.mxu0
      %825 = vdwg.mxu0
      %826 = vmatpush.bf16.msra.mxu0 0
      %827 = vmatpush.bf16.msra.mxu0 0
      %828 = vmatpush.bf16.msra.mxu0 0
      %829 = vmatpush.bf16.msra.mxu0 0
      %830 = vmatpush.bf16.msra.mxu0 0
      %831 = vmatpush.bf16.msra.mxu0 0
      %832 = vmatpush.bf16.msra.mxu0 0
      %833 = vmatpush.bf16.msra.mxu0 %v788
      %834 = vmatmul.bf16.gmra.mxu0 %v669
      %v835 = vpop.f32.mrf.mxu0
      %v836 = vadd.f32 0.0, %v835
      %v837 = vpop.f32.mrf.mxu0
      %v838 = vadd.f32 0.0, %v837
      %839 = vmatmul.bf16.gmra.mxu0 %v672
      %v840 = vpop.f32.mrf.mxu0
      %v841 = vadd.f32 0.0, %v840
      %v842 = vpop.f32.mrf.mxu0
      %843 = vdwg.mxu0
      %v844 = vadd.f32 %v818, %v836
      %v845 = vadd.f32 %v820, %v838
      %v846 = vadd.f32 %v823, %v841
      %847 = vmatpush.bf16.msra.mxu0 0
      %848 = vmatpush.bf16.msra.mxu0 0
      %849 = vmatpush.bf16.msra.mxu0 0
      %850 = vmatpush.bf16.msra.mxu0 0
      %851 = vmatpush.bf16.msra.mxu0 0
      %852 = vmatpush.bf16.msra.mxu0 0
      %853 = vmatpush.bf16.msra.mxu0 0
      %854 = vmatpush.bf16.msra.mxu0 %v788
      %855 = vmatmul.bf16.gmra.mxu0 %v713
      %v856 = vpop.f32.mrf.mxu0
      %v857 = vadd.f32 0.0, %v856
      %v858 = vpop.f32.mrf.mxu0
      %v859 = vadd.f32 0.0, %v858
      %860 = vmatmul.bf16.gmra.mxu0 %v716
      %v861 = vpop.f32.mrf.mxu0
      %v862 = vadd.f32 0.0, %v861
      %v863 = vpop.f32.mrf.mxu0
      %864 = vdwg.mxu0
      %v865 = vadd.f32 %v844, %v857
      %v866 = vadd.f32 %v845, %v859
      %v867 = vadd.f32 %v846, %v862
      %v868 = vld [vmem:[%s4] sm:$0x1]
      %v870 = vperm.slane %v868, 0
      %v872 = vadd.f32 %v865, %v870
      %v873 = vadd.f32 %v866, %v870
      %v874 = vadd.f32 %v867, %v870
      %v875 = vpack.c.bf16 %v872, %v872
      %v876 = vpack.c.bf16 %v873, %v873
      %v877 = vpack.c.bf16 %v874, %v874
      %vm878 = vcmask 257024
      %879 = vst.msk [vmem:[%s264] sm:$0xf] %vm878, %v875
      %880 = vst.msk [vmem:[%s264 + $0x4] sm:$0xf] %vm878, %v876
      %vm881 = vcmask 254976
      %882 = vst.msk [vmem:[%s264 + $0x8] sm:$0x3] %vm881, %v877
      %v883 = vpack.c.bf16 %v779, %v779
      %v884 = vpack.c.bf16 %v780, %v780
      %v885 = vpack.c.bf16 %v781, %v781
      %886 = vst.msk [vmem:[%s259] sm:$0xf] %vm878, %v883
      %887 = vst.msk [vmem:[%s259 + $0x4] sm:$0xf] %vm878, %v884
      %888 = vst.msk [vmem:[%s259 + $0x8] sm:$0x3] %vm881, %v885
      %p889 = scmp.lt.s32.totalorder %s18, 1
      %s890 = scalar_select %p889, %s18, 1
      %s891 = smul.addr %s890, 3
      %s892 = smul.addr %s891, 4
      %s893 = scalar_lea.vmem %s5, %s892
      %p894 = scmp.lt.s32.totalorder %s18, 1
      %s895 = scalar_select %p894, %s18, 1
      %s896 = smul.addr %s895, 3
      %s897 = smul.addr %s896, 4
      %s898 = scalar_lea.vmem %s6, %s897
      // Predicated region
      $region41: #{_lambda_.11} parent=39 // pred_check
        %p899 = pneg %p146
      $region42: #{_lambda_.11} parent=39 // pred_check_branch
        %901 = sbr.rel (%p899) target = $region44
      $region43: #{_lambda_.11} parent=39 // pred_region
        _
      $region44: #{_lambda_.11} parent=39 // pred_fallthru
        _
      // Predicated region
      $region45: #{_lambda_.11} parent=39 // pred_check
        %p902 = pneg %p172
      $region46: #{_lambda_.11} parent=39 // pred_check_branch
        %904 = sbr.rel (%p902) target = $region48
      $region47: #{_lambda_.11} parent=39 // pred_region
        _
      $region48: #{_lambda_.11} parent=39 // pred_fallthru
        _
    $region40: #{_lambda_.11} parent=5 // pred_fallthru
      _
    %p905 = scmp.le.s32.totalorder 2, %s13
    // Predicated region
    $region49: #{_lambda_.11} parent=5 // pred_check
      %p906 = pneg %p905
    $region50: #{_lambda_.11} parent=5 // pred_check_branch
      %908 = sbr.rel (%p906) target = $region52
    $region51: #{_lambda_.11} parent=5 // pred_region
      %s909 = ssub.s32 %s13, 2
      // Predicated region
      $region53: #{_lambda_.11} parent=51 // pred_check
        %p910 = pneg %p152
      $region54: #{_lambda_.11} parent=51 // pred_check_branch
        %912 = sbr.rel (%p910) target = $region56
      $region55: #{_lambda_.11} parent=51 // pred_region
        %p913 = scmp.lt.s32.totalorder %s19, 1
        %s914 = scalar_select %p913, %s19, 1
        %s915 = smul.addr %s914, 3
        %s916 = smul.addr %s915, 4
        %s917 = scalar_lea.vmem %s5, %s916
      $region56: #{_lambda_.11} parent=51 // pred_fallthru
        _
      // Predicated region
      $region57: #{_lambda_.11} parent=51 // pred_check
        %p918 = pneg %p178
      $region58: #{_lambda_.11} parent=51 // pred_check_branch
        %920 = sbr.rel (%p918) target = $region60
      $region59: #{_lambda_.11} parent=51 // pred_region
        %p921 = scmp.lt.s32.totalorder %s19, 1
        %s922 = scalar_select %p921, %s19, 1
        %s923 = smul.addr %s922, 3
        %s924 = smul.addr %s923, 4
        %s925 = scalar_lea.vmem %s6, %s924
      $region60: #{_lambda_.11} parent=51 // pred_fallthru
        _
    $region52: #{_lambda_.11} parent=5 // pred_fallthru
      _
  $region6: #{_lambda_.11} parent=0 // loop_footer
    %s17 = sadd.s32 1, %s13
  $region7: #{_lambda_.11} parent=0 // loop_footer_branch
    %12 = sbr.rel target = $region3
  $region8: #{_lambda_.11} parent=0 // loop_exit
    _

// kernel: _lambda_.12
$region0: #{_lambda_.12}
  #allocation0 [shape = 'u32[]', space=smem, size = 0x4, offset = 0x4, fixed_abs, tag = 'smem constant byte address 0x4 - core index']
  #allocation1 [shape = 'u32[72,128]{1,0:T(1,128)}', space=vmem, size = 0x9000, scoped, tag = 'internal scratch']
  %s0 = inlined_call_operand.vmem [shape: bf16[2,38,32], index: 0, kind: input, shape index: {}]
  %s1 = inlined_call_operand.vmem [shape: bf16[9,32,32], index: 1, kind: input, shape index: {}]
  %s2 = inlined_call_operand.vmem [shape: f32[2,32], index: 2, kind: input, shape index: {}]
  %s3 = inlined_call_operand.vmem [shape: bf16[2,24,32], index: 3, kind: input, shape index: {}]
  %s4 = inlined_call_operand.vmem [shape: bf16[2,24,32], index: 4, kind: output, shape index: {}]
  %s5 = sld [smem:[#allocation0]]
  $region49: #{_lambda_.12} parent=0
    _
  %s7 = ssub.s32 1, %s5
  %s8 = scalar_select 0, %s7, %s5
  loop: start=0, step=1, limit=4
  $region2: #{_lambda_.12} parent=0 // loop_pre_header
    _
  $region3: #{_lambda_.12} parent=0 // loop_header
    %s10 = sphi 0, %s14
    %p11 = scmp.ge.s32.totalorder %s10, 4
    %s20 = sphi 0, %s22
    %s23 = sphi 0, %s20
    %s24 = sphi 0, %s23
    %s40 = sphi 0, %s24
    %s44 = sphi 0, %s44
    %s46 = sphi 0, %s44
    %s47 = sphi 0, %s46
    %s61 = sphi 0, %s47
    %s65 = sphi 0, %s65
    %s67 = sphi 0, %s65
    %s68 = sphi 0, %s67
    %s82 = sphi 0, %s68
    %s88 = sphi 0, %s90
    %s91 = sphi 0, %s88
    %s92 = sphi 0, %s91
    %s108 = sphi 0, %s92
    %s114 = sphi 0, %s116
    %s117 = sphi 0, %s114
    %s118 = sphi 0, %s117
    %s134 = sphi 0, %s118
  $region4: #{_lambda_.12} parent=0 // loop_header_branch
    %13 = sbr.rel (%p11) target = $region8
  $region5: #{_lambda_.12} parent=0 // loop_body
    %s15 = ssub.s32 %s10, 1
    %s16 = ssub.s32 %s10, 2
    %s17 = sadd.s32 %s10, 1
    %s18 = ssub.s32 %s10, %s17
    %p19 = scmp.eq.s32.totalorder %s18, 0
    %s21 = sadd.s32 %s20, 1
    %s22 = scalar_select %p19, %s20, %s21
    %p25 = pneg %p19
    %p26 = scmp.eq.s32.totalorder %s10, 1
    %p27 = por %p25, %p26
    %p28 = scmp.ne.s32.totalorder %s20, %s23
    %p29 = scmp.eq.s32.totalorder %s10, 0
    %p30 = por %p28, %p29
    %p31 = scmp.ne.s32.totalorder %s20, %s23
    %p32 = scmp.eq.s32.totalorder %s15, 1
    %p33 = por %p31, %p32
    %p34 = scmp.ne.s32.totalorder %s23, %s24
    %p35 = scmp.eq.s32.totalorder %s15, 0
    %p36 = por %p34, %p35
    %p37 = scmp.ne.s32.totalorder %s23, %s24
    %p38 = scmp.eq.s32.totalorder %s16, 1
    %p39 = por %p37, %p38
    %p41 = scmp.ne.s32.totalorder %s24, %s40
    %p42 = scmp.eq.s32.totalorder %s16, 0
    %p43 = por %p41, %p42
    %s45 = sadd.s32 %s44, 1
    %p48 = scmp.eq.s32.totalorder %s10, 1
    %p49 = scmp.ne.s32.totalorder %s44, %s46
    %p50 = scmp.eq.s32.totalorder %s10, 0
    %p51 = por %p49, %p50
    %p52 = scmp.ne.s32.totalorder %s44, %s46
    %p53 = scmp.eq.s32.totalorder %s15, 1
    %p54 = por %p52, %p53
    %p55 = scmp.ne.s32.totalorder %s46, %s47
    %p56 = scmp.eq.s32.totalorder %s15, 0
    %p57 = por %p55, %p56
    %p58 = scmp.ne.s32.totalorder %s46, %s47
    %p59 = scmp.eq.s32.totalorder %s16, 1
    %p60 = por %p58, %p59
    %p62 = scmp.ne.s32.totalorder %s47, %s61
    %p63 = scmp.eq.s32.totalorder %s16, 0
    %p64 = por %p62, %p63
    %s66 = sadd.s32 %s65, 1
    %p69 = scmp.eq.s32.totalorder %s10, 1
    %p70 = scmp.ne.s32.totalorder %s65, %s67
    %p71 = scmp.eq.s32.totalorder %s10, 0
    %p72 = por %p70, %p71
    %p73 = scmp.ne.s32.totalorder %s65, %s67
    %p74 = scmp.eq.s32.totalorder %s15, 1
    %p75 = por %p73, %p74
    %p76 = scmp.ne.s32.totalorder %s67, %s68
    %p77 = scmp.eq.s32.totalorder %s15, 0
    %p78 = por %p76, %p77
    %p79 = scmp.ne.s32.totalorder %s67, %s68
    %p80 = scmp.eq.s32.totalorder %s16, 1
    %p81 = por %p79, %p80
    %p83 = scmp.ne.s32.totalorder %s68, %s82
    %p84 = scmp.eq.s32.totalorder %s16, 0
    %p85 = por %p83, %p84
    %s86 = ssub.s32 %s10, %s17
    %p87 = scmp.eq.s32.totalorder %s86, 0
    %s89 = sadd.s32 %s88, 1
    %s90 = scalar_select %p87, %s88, %s89
    %p93 = pneg %p87
    %p94 = scmp.eq.s32.totalorder %s10, 1
    %p95 = por %p93, %p94
    %p96 = scmp.ne.s32.totalorder %s88, %s91
    %p97 = scmp.eq.s32.totalorder %s10, 0
    %p98 = por %p96, %p97
    %p99 = scmp.ne.s32.totalorder %s88, %s91
    %p100 = scmp.eq.s32.totalorder %s15, 1
    %p101 = por %p99, %p100
    %p102 = scmp.ne.s32.totalorder %s91, %s92
    %p103 = scmp.eq.s32.totalorder %s15, 0
    %p104 = por %p102, %p103
    %p105 = scmp.ne.s32.totalorder %s91, %s92
    %p106 = scmp.eq.s32.totalorder %s16, 1
    %p107 = por %p105, %p106
    %p109 = scmp.ne.s32.totalorder %s92, %s108
    %p110 = scmp.eq.s32.totalorder %s16, 0
    %p111 = por %p109, %p110
    %s112 = ssub.s32 %s10, %s17
    %p113 = scmp.eq.s32.totalorder %s112, 0
    %s115 = sadd.s32 %s114, 1
    %s116 = scalar_select %p113, %s114, %s115
    %p119 = pneg %p113
    %p120 = scmp.eq.s32.totalorder %s10, 1
    %p121 = por %p119, %p120
    %p122 = scmp.ne.s32.totalorder %s114, %s117
    %p123 = scmp.eq.s32.totalorder %s10, 0
    %p124 = por %p122, %p123
    %p125 = scmp.ne.s32.totalorder %s114, %s117
    %p126 = scmp.eq.s32.totalorder %s15, 1
    %p127 = por %p125, %p126
    %p128 = scmp.ne.s32.totalorder %s117, %s118
    %p129 = scmp.eq.s32.totalorder %s15, 0
    %p130 = por %p128, %p129
    %p131 = scmp.ne.s32.totalorder %s117, %s118
    %p132 = scmp.eq.s32.totalorder %s16, 1
    %p133 = por %p131, %p132
    %p135 = scmp.ne.s32.totalorder %s118, %s134
    %p136 = scmp.eq.s32.totalorder %s16, 0
    %p137 = por %p135, %p136
    %p138 = scmp.le.s32.totalorder 1, %s10
    %p139 = scmp.lt.s32.totalorder %s10, 3
    %p140 = pnand %p138, %p139
    %p141 = pneg %p140
    // Predicated region
    $region9: #{_lambda_.12} parent=5 // pred_check
      _
    $region10: #{_lambda_.12} parent=5 // pred_check_branch
      %143 = sbr.rel (%p140) target = $region12
    $region11: #{_lambda_.12} parent=5 // pred_region
      %s144 = ssub.s32 %s10, 1
      // Predicated region
      $region13: #{_lambda_.12} parent=11 // pred_check
        %p145 = pneg %p57
      $region14: #{_lambda_.12} parent=11 // pred_check_branch
        %147 = sbr.rel (%p145) target = $region16
      $region15: #{_lambda_.12} parent=11 // pred_region
        _
      $region16: #{_lambda_.12} parent=11 // pred_fallthru
        _
      // Predicated region
      $region17: #{_lambda_.12} parent=11 // pred_check
        %p148 = pneg %p78
      $region18: #{_lambda_.12} parent=11 // pred_check_branch
        %150 = sbr.rel (%p148) target = $region20
      $region19: #{_lambda_.12} parent=11 // pred_region
        _
      $region20: #{_lambda_.12} parent=11 // pred_fallthru
        _
    $region12: #{_lambda_.12} parent=5 // pred_fallthru
      _
    %p151 = scmp.lt.s32.totalorder %s10, 2
    // Predicated region
    $region21: #{_lambda_.12} parent=5 // pred_check
      %p152 = pneg %p151
    $region22: #{_lambda_.12} parent=5 // pred_check_branch
      %154 = sbr.rel (%p152) target = $region24
    $region23: #{_lambda_.12} parent=5 // pred_region
      // Predicated region
      $region25: #{_lambda_.12} parent=23 // pred_check
        %p155 = pneg %p30
      $region26: #{_lambda_.12} parent=23 // pred_check_branch
        %157 = sbr.rel (%p155) target = $region28
      $region27: #{_lambda_.12} parent=23 // pred_region
        %p158 = scmp.lt.s32.totalorder %s10, 1
        %s159 = scalar_select %p158, %s10, 1
        %s160 = smul.addr %s159, 5
        %s161 = smul.addr %s160, 4
        %s162 = scalar_lea.vmem %s0, %s161
      $region28: #{_lambda_.12} parent=23 // pred_fallthru
        _
      // Predicated region
      $region29: #{_lambda_.12} parent=23 // pred_check
        %p163 = pneg %p98
      $region30: #{_lambda_.12} parent=23 // pred_check_branch
        %165 = sbr.rel (%p163) target = $region32
      $region31: #{_lambda_.12} parent=23 // pred_region
        %p166 = scmp.lt.s32.totalorder %s10, 1
        %s167 = scalar_select %p166, %s10, 1
        %s168 = smul.addr %s167, 3
        %s169 = smul.addr %s168, 4
        %s170 = scalar_lea.vmem %s3, %s169
      $region32: #{_lambda_.12} parent=23 // pred_fallthru
        _
    $region24: #{_lambda_.12} parent=5 // pred_fallthru
      _
    %p171 = scmp.le.s32.totalorder 1, %s10
    %p172 = scmp.lt.s32.totalorder %s10, 3
    %p173 = pnand %p171, %p172
    %p174 = pneg %p173
    // Predicated region
    $region33: #{_lambda_.12} parent=5 // pred_check
      _
    $region34: #{_lambda_.12} parent=5 // pred_check_branch
      %176 = sbr.rel (%p173) target = $region36
    $region35: #{_lambda_.12} parent=5 // pred_region
      %s177 = ssub.s32 %s10, 1
      %p178 = scmp.lt.s32.totalorder %s15, 1
      %s179 = scalar_select %p178, %s15, 1
      %s180 = smul.addr %s179, 5
      %s181 = smul.addr %s180, 4
      %s182 = scalar_lea.vmem %s0, %s181
      %p183 = pneg %p36
      %p184 = pneg %p33
      %p185 = pneg %p57
      %p186 = pneg %p54
      %p187 = pneg %p78
      %p188 = pneg %p75
      %p189 = scmp.lt.s32.totalorder %s15, 1
      %s190 = scalar_select %p189, %s15, 1
      %s191 = smul.addr %s190, 3
      %s192 = smul.addr %s191, 4
      %s193 = scalar_lea.vmem %s3, %s192
      %p194 = pneg %p104
      %p195 = pneg %p101
      %p196 = pneg %p130
      %p197 = pneg %p127
      %p198 = scmp.lt.s32.totalorder %s15, 1
      %s199 = scalar_select %p198, %s15, 1
      %s200 = smul.addr %s199, 3
      %s201 = smul.addr %s200, 4
      %s202 = scalar_lea.vmem %s4, %s201
      %p203 = scmp.lt.s32.totalorder %s15, 1
      %s204 = scalar_select %p203, %s15, 1
      %s205 = smul.addr %s204, 5
      %s206 = smul.addr %s205, 4
      %s207 = scalar_lea.vmem %s0, %s206
      %p208 = scmp.lt.s32.totalorder %s15, 1
      %s209 = scalar_select %p208, %s15, 1
      %s210 = smul.addr %s209, 3
      %s211 = smul.addr %s210, 4
      %s212 = scalar_lea.vmem %s3, %s211
      %p213 = scmp.lt.s32.totalorder %s15, 1
      %s214 = scalar_select %p213, %s15, 1
      %s215 = smul.addr %s214, 3
      %s216 = smul.addr %s215, 4
      %s217 = scalar_lea.vmem %s4, %s216
      %v219 = vld [vmem:[%s207] sm:$0xf]
      %v220 = vld [vmem:[%s207 + $0x4] sm:$0xf]
      %v221 = vld [vmem:[%s207 + $0x8] sm:$0xf]
      %v222 = vld [vmem:[%s1] sm:$0xf]
      %v223 = vld [vmem:[%s1 + $0x4] sm:$0xf]
      %v224 = vld [vmem:[%s1 + $0x8] sm:$0xf]
      %v225 = vld [vmem:[%s1 + $0xc] sm:$0xf]
      %v226 = vld [vmem:[%s207 + $0xc] sm:$0x1]
      %s227 = scalar_lea.vmem %s1, 16
      %v228 = vld [vmem:[%s227] sm:$0xf]
      %v229 = vld [vmem:[%s227 + $0x4] sm:$0xf]
      %v230 = vld [vmem:[%s227 + $0x8] sm:$0xf]
      %v231 = vld [vmem:[%s227 + $0xc] sm:$0xf]
      %v236 = vunpack.c.l.b16 %v219
      %v237 = vunpack.c.l.b16 %v220
      %v238 = vunpack.c.l.b16 %v221
      %v239 = vunpack.c.l.b16 %v226
      %v240 = vpack.c.b16 %v237, %v236
      %v241 = vpack.c.b16 %v239, %v238
      %vm242 = vsmask.f32 7424
      %v244 = vshrl.u32 %v240, 16
      %v246 = vshll.u32 %v240, 16
      %v248 = vrot.slane %v246, 1
      %v249 = vor.u32 %v244, %v248
      %v251 = vshll.u32 %v241, 16
      %v253 = vrot.slane %v251, 1
      %v254 = vsel %vm242, %v249, %v253
      %v255 = vshrl.u32 %v241, 16
      %v257 = vor.u32 %v255, %v253
      %v262 = vunpack.c.l.b16 %v228
      %v263 = vunpack.c.l.b16 %v229
      %v264 = vunpack.c.l.b16 %v230
      %v265 = vunpack.c.l.b16 %v231
      %v266 = vpack.c.b16 %v263, %v262
      %v267 = vpack.c.b16 %v265, %v264
      %vm270 = vcmask 261120
      %v272 = vsel %vm270, %v254, 0
      %v275 = vsel %vm270, %v257, 0
      %277 = vmatpush.bf16.msra.mxu0 0
      %278 = vmatpush.bf16.msra.mxu0 0
      %279 = vmatpush.bf16.msra.mxu0 0
      %280 = vmatpush.bf16.msra.mxu0 0
      %281 = vmatpush.bf16.msra.mxu0 0
      %282 = vmatpush.bf16.msra.mxu0 0
      %283 = vmatpush.bf16.msra.mxu0 %v267
      %284 = vmatpush.bf16.msra.mxu0 %v266
      %285 = vmatmul.bf16.gmra.mxu0 %v272
      %v286 = vpop.f32.mrf.mxu0
      %v287 = vadd.f32 0.0, %v286
      %v288 = vpop.f32.mrf.mxu0
      %v289 = vadd.f32 0.0, %v288
      %290 = vmatmul.bf16.gmra.mxu0 %v275
      %v291 = vpop.f32.mrf.mxu0
      %v292 = vadd.f32 0.0, %v291
      %v293 = vpop.f32.mrf.mxu0
      %294 = vdwg.mxu0
      %v295 = vpack.c.b16 %v238, %v238
      %v300 = vunpack.c.l.b16 %v222
      %v301 = vunpack.c.l.b16 %v223
      %v302 = vunpack.c.l.b16 %v224
      %v303 = vunpack.c.l.b16 %v225
      %v304 = vpack.c.b16 %v301, %v300
      %v305 = vpack.c.b16 %v303, %v302
      %v308 = vsel %vm270, %v240, 0
      %v311 = vsel %vm270, %v295, 0
      %313 = vmatpush.bf16.msra.mxu0 0
      %314 = vmatpush.bf16.msra.mxu0 0
      %315 = vmatpush.bf16.msra.mxu0 0
      %316 = vmatpush.bf16.msra.mxu0 0
      %317 = vmatpush.bf16.msra.mxu0 0
      %318 = vmatpush.bf16.msra.mxu0 0
      %319 = vmatpush.bf16.msra.mxu0 %v305
      %320 = vmatpush.bf16.msra.mxu0 %v304
      %321 = vmatmul.bf16.gmra.mxu0 %v308
      %v322 = vpop.f32.mrf.mxu0
      %v323 = vadd.f32 %v287, %v322
      %v324 = vpop.f32.mrf.mxu0
      %v325 = vadd.f32 %v289, %v324
      %326 = vmatmul.bf16.gmra.mxu0 %v311
      %v327 = vpop.f32.mrf.mxu0
      %v328 = vadd.f32 %v292, %v327
      %v329 = vpop.f32.mrf.mxu0
      %330 = vdwg.mxu0
      %v331 = vld [vmem:[%s207] sm:$0xe]
      %s332 = scalar_lea.vmem %s1, 32
      %v333 = vld [vmem:[%s332] sm:$0xf]
      %v334 = vld [vmem:[%s332 + $0x4] sm:$0xf]
      %v335 = vld [vmem:[%s332 + $0x8] sm:$0xf]
      %v336 = vld [vmem:[%s332 + $0xc] sm:$0xf]
      %v338 = vunpack.c.l.b16 %v331
      %v339 = vpack.c.b16 %v237, %v338
      %vm340 = vcmask 1046528
      %v341 = vrot.slane %v339, 1
      %v342 = vrot.slane %v241, 1
      %v343 = vsel %vm340, %v341, %v342
      %v348 = vunpack.c.l.b16 %v333
      %v349 = vunpack.c.l.b16 %v334
      %v350 = vunpack.c.l.b16 %v335
      %v351 = vunpack.c.l.b16 %v336
      %v352 = vpack.c.b16 %v349, %v348
      %v353 = vpack.c.b16 %v351, %v350
      %v357 = vsel %vm270, %v343, 0
      %v360 = vsel %vm270, %v342, 0
      %362 = vmatpush.bf16.msra.mxu0 0
      %363 = vmatpush.bf16.msra.mxu0 0
      %364 = vmatpush.bf16.msra.mxu0 0
      %365 = vmatpush.bf16.msra.mxu0 0
      %366 = vmatpush.bf16.msra.mxu0 0
      %367 = vmatpush.bf16.msra.mxu0 0
      %368 = vmatpush.bf16.msra.mxu0 %v353
      %369 = vmatpush.bf16.msra.mxu0 %v352
      %370 = vmatmul.bf16.gmra.mxu0 %v357
      %v371 = vpop.f32.mrf.mxu0
      %v372 = vadd.f32 0.0, %v371
      %v373 = vpop.f32.mrf.mxu0
      %v374 = vadd.f32 0.0, %v373
      %375 = vmatmul.bf16.gmra.mxu0 %v360
      %v376 = vpop.f32.mrf.mxu0
      %v377 = vadd.f32 0.0, %v376
      %v378 = vpop.f32.mrf.mxu0
      %379 = vdwg.mxu0
      %v380 = vadd.f32 %v323, %v372
      %v381 = vadd.f32 %v325, %v374
      %v382 = vadd.f32 %v328, %v377
      %v383 = vld [vmem:[%s207] sm:$0x8]
      %v384 = vld [vmem:[%s207 + $0xc] sm:$0x7]
      %s385 = scalar_lea.vmem %s1, 48
      %v386 = vld [vmem:[%s385] sm:$0xf]
      %v387 = vld [vmem:[%s385 + $0x4] sm:$0xf]
      %v388 = vld [vmem:[%s385 + $0x8] sm:$0xf]
      %v389 = vld [vmem:[%s385 + $0xc] sm:$0xf]
      %v392 = vunpack.c.l.b16 %v383
      %v393 = vunpack.c.l.b16 %v384
      %v394 = vpack.c.b16 %v237, %v392
      %v395 = vpack.c.b16 %v393, %v238
      %vm396 = vcmask 1044480
      %v397 = vrot.slane %v394, 3
      %v398 = vrot.slane %v395, 3
      %v399 = vsel %vm396, %v397, %v398
      %v404 = vunpack.c.l.b16 %v386
      %v405 = vunpack.c.l.b16 %v387
      %v406 = vunpack.c.l.b16 %v388
      %v407 = vunpack.c.l.b16 %v389
      %v408 = vpack.c.b16 %v405, %v404
      %v409 = vpack.c.b16 %v407, %v406
      %v413 = vsel %vm270, %v399, 0
      %v416 = vsel %vm270, %v398, 0
      %418 = vmatpush.bf16.msra.mxu0 0
      %419 = vmatpush.bf16.msra.mxu0 0
      %420 = vmatpush.bf16.msra.mxu0 0
      %421 = vmatpush.bf16.msra.mxu0 0
      %422 = vmatpush.bf16.msra.mxu0 0
      %423 = vmatpush.bf16.msra.mxu0 0
      %424 = vmatpush.bf16.msra.mxu0 %v409
      %425 = vmatpush.bf16.msra.mxu0 %v408
      %426 = vmatmul.bf16.gmra.mxu0 %v413
      %v427 = vpop.f32.mrf.mxu0
      %v428 = vadd.f32 0.0, %v427
      %v429 = vpop.f32.mrf.mxu0
      %v430 = vadd.f32 0.0, %v429
      %431 = vmatmul.bf16.gmra.mxu0 %v416
      %v432 = vpop.f32.mrf.mxu0
      %v433 = vadd.f32 0.0, %v432
      %v434 = vpop.f32.mrf.mxu0
      %435 = vdwg.mxu0
      %v436 = vadd.f32 %v380, %v428
      %v437 = vadd.f32 %v381, %v430
      %v438 = vadd.f32 %v382, %v433
      %v439 = vld [vmem:[%s207 + $0xc] sm:$0xf]
      %s440 = scalar_lea.vmem %s1, 64
      %v441 = vld [vmem:[%s440] sm:$0xf]
      %v442 = vld [vmem:[%s440 + $0x4] sm:$0xf]
      %v443 = vld [vmem:[%s440 + $0x8] sm:$0xf]
      %v444 = vld [vmem:[%s440 + $0xc] sm:$0xf]
      %v446 = vunpack.c.l.b16 %v439
      %v447 = vpack.c.b16 %v446, %v238
      %vm448 = vsmask.f32 4352
      %v450 = vshrl.u32 %v394, 16
      %v452 = vrot.slane %v450, 3
      %v453 = vshll.u32 %v394, 16
      %v455 = vrot.slane %v453, 4
      %v456 = vor.u32 %v452, %v455
      %v458 = vshrl.u32 %v447, 16
      %v460 = vrot.slane %v458, 3
      %v461 = vshll.u32 %v447, 16
      %v463 = vrot.slane %v461, 4
      %v464 = vor.u32 %v460, %v463
      %v465 = vsel %vm448, %v456, %v464
      %v470 = vunpack.c.l.b16 %v441
      %v471 = vunpack.c.l.b16 %v442
      %v472 = vunpack.c.l.b16 %v443
      %v473 = vunpack.c.l.b16 %v444
      %v474 = vpack.c.b16 %v471, %v470
      %v475 = vpack.c.b16 %v473, %v472
      %v479 = vsel %vm270, %v465, 0
      %v482 = vsel %vm270, %v464, 0
      %484 = vmatpush.bf16.msra.mxu0 0
      %485 = vmatpush.bf16.msra.mxu0 0
      %486 = vmatpush.bf16.msra.mxu0 0
      %487 = vmatpush.bf16.msra.mxu0 0
      %488 = vmatpush.bf16.msra.mxu0 0
      %489 = vmatpush.bf16.msra.mxu0 0
      %490 = vmatpush.bf16.msra.mxu0 %v475
      %491 = vmatpush.bf16.msra.mxu0 %v474
      %492 = vmatmul.bf16.gmra.mxu0 %v479
      %v493 = vpop.f32.mrf.mxu0
      %v494 = vadd.f32 0.0, %v493
      %v495 = vpop.f32.mrf.mxu0
      %v496 = vadd.f32 0.0, %v495
      %497 = vmatmul.bf16.gmra.mxu0 %v482
      %v498 = vpop.f32.mrf.mxu0
      %v499 = vadd.f32 0.0, %v498
      %v500 = vpop.f32.mrf.mxu0
      %501 = vdwg.mxu0
      %v502 = vadd.f32 %v436, %v494
      %v503 = vadd.f32 %v437, %v496
      %v504 = vadd.f32 %v438, %v499
      %s505 = scalar_lea.vmem %s1, 80
      %v506 = vld [vmem:[%s505] sm:$0xf]
      %v507 = vld [vmem:[%s505 + $0x4] sm:$0xf]
      %v508 = vld [vmem:[%s505 + $0x8] sm:$0xf]
      %v509 = vld [vmem:[%s505 + $0xc] sm:$0xf]
      %v510 = vpack.c.b16 %v238, %v237
      %v511 = vpack.c.b16 %v446, %v446
      %v516 = vunpack.c.l.b16 %v506
      %v517 = vunpack.c.l.b16 %v507
      %v518 = vunpack.c.l.b16 %v508
      %v519 = vunpack.c.l.b16 %v509
      %v520 = vpack.c.b16 %v517, %v516
      %v521 = vpack.c.b16 %v519, %v518
      %v525 = vsel %vm270, %v510, 0
      %v528 = vsel %vm270, %v511, 0
      %530 = vmatpush.bf16.msra.mxu0 0
      %531 = vmatpush.bf16.msra.mxu0 0
      %532 = vmatpush.bf16.msra.mxu0 0
      %533 = vmatpush.bf16.msra.mxu0 0
      %534 = vmatpush.bf16.msra.mxu0 0
      %535 = vmatpush.bf16.msra.mxu0 0
      %536 = vmatpush.bf16.msra.mxu0 %v521
      %537 = vmatpush.bf16.msra.mxu0 %v520
      %538 = vmatmul.bf16.gmra.mxu0 %v525
      %v539 = vpop.f32.mrf.mxu0
      %v540 = vadd.f32 0.0, %v539
      %v541 = vpop.f32.mrf.mxu0
      %v542 = vadd.f32 0.0, %v541
      %543 = vmatmul.bf16.gmra.mxu0 %v528
      %v544 = vpop.f32.mrf.mxu0
      %v545 = vadd.f32 0.0, %v544
      %v546 = vpop.f32.mrf.mxu0
      %547 = vdwg.mxu0
      %v548 = vadd.f32 %v502, %v540
      %v549 = vadd.f32 %v503, %v542
      %v550 = vadd.f32 %v504, %v545
      %v551 = vld [vmem:[%s207 + $0x4] sm:$0xc]
      %v552 = vld [vmem:[%s207 + $0x8] sm:$0xf]
      %v553 = vld [vmem:[%s207 + $0xc] sm:$0xf]
      %v554 = vld [vmem:[%s207 + $0x10] sm:$0x3]
      %s555 = scalar_lea.vmem %s1, 96
      %v556 = vld [vmem:[%s555] sm:$0xf]
      %v557 = vld [vmem:[%s555 + $0x4] sm:$0xf]
      %v558 = vld [vmem:[%s555 + $0x8] sm:$0xf]
      %v559 = vld [vmem:[%s555 + $0xc] sm:$0xf]
      %v564 = vunpack.c.l.b16 %v551
      %v565 = vunpack.c.l.b16 %v552
      %v566 = vunpack.c.l.b16 %v553
      %v567 = vunpack.c.l.b16 %v554
      %v568 = vpack.c.b16 %v565, %v564
      %v569 = vpack.c.b16 %v567, %v566
      %vm570 = vcmask 1045504
      %v571 = vrot.slane %v568, 2
      %v572 = vrot.slane %v569, 2
      %v573 = vsel %vm570, %v571, %v572
      %v578 = vunpack.c.l.b16 %v556
      %v579 = vunpack.c.l.b16 %v557
      %v580 = vunpack.c.l.b16 %v558
      %v581 = vunpack.c.l.b16 %v559
      %v582 = vpack.c.b16 %v579, %v578
      %v583 = vpack.c.b16 %v581, %v580
      %v587 = vsel %vm270, %v573, 0
      %v590 = vsel %vm270, %v572, 0
      %592 = vmatpush.bf16.msra.mxu0 0
      %593 = vmatpush.bf16.msra.mxu0 0
      %594 = vmatpush.bf16.msra.mxu0 0
      %595 = vmatpush.bf16.msra.mxu0 0
      %596 = vmatpush.bf16.msra.mxu0 0
      %597 = vmatpush.bf16.msra.mxu0 0
      %598 = vmatpush.bf16.msra.mxu0 %v583
      %599 = vmatpush.bf16.msra.mxu0 %v582
      %600 = vmatmul.bf16.gmra.mxu0 %v587
      %v601 = vpop.f32.mrf.mxu0
      %v602 = vadd.f32 0.0, %v601
      %v603 = vpop.f32.mrf.mxu0
      %v604 = vadd.f32 0.0, %v603
      %605 = vmatmul.bf16.gmra.mxu0 %v590
      %v606 = vpop.f32.mrf.mxu0
      %v607 = vadd.f32 0.0, %v606
      %v608 = vpop.f32.mrf.mxu0
      %609 = vdwg.mxu0
      %v610 = vadd.f32 %v548, %v602
      %v611 = vadd.f32 %v549, %v604
      %v612 = vadd.f32 %v550, %v607
      %v613 = vld [vmem:[%s207 + $0x10] sm:$0x7]
      %s614 = scalar_lea.vmem %s1, 112
      %v615 = vld [vmem:[%s614] sm:$0xf]
      %v616 = vld [vmem:[%s614 + $0x4] sm:$0xf]
      %v617 = vld [vmem:[%s614 + $0x8] sm:$0xf]
      %v618 = vld [vmem:[%s614 + $0xc] sm:$0xf]
      %v620 = vunpack.c.l.b16 %v613
      %v621 = vpack.c.b16 %v620, %v566
      %vm622 = vsmask.f32 5376
      %v624 = vshrl.u32 %v568, 16
      %v626 = vrot.slane %v624, 2
      %v627 = vshll.u32 %v568, 16
      %v629 = vrot.slane %v627, 3
      %v630 = vor.u32 %v626, %v629
      %v632 = vshrl.u32 %v621, 16
      %v634 = vrot.slane %v632, 2
      %v635 = vshll.u32 %v621, 16
      %v637 = vrot.slane %v635, 3
      %v638 = vor.u32 %v634, %v637
      %v639 = vsel %vm622, %v630, %v638
      %v644 = vunpack.c.l.b16 %v615
      %v645 = vunpack.c.l.b16 %v616
      %v646 = vunpack.c.l.b16 %v617
      %v647 = vunpack.c.l.b16 %v618
      %v648 = vpack.c.b16 %v645, %v644
      %v649 = vpack.c.b16 %v647, %v646
      %v653 = vsel %vm270, %v639, 0
      %v656 = vsel %vm270, %v638, 0
      %658 = vmatpush.bf16.msra.mxu0 0
      %659 = vmatpush.bf16.msra.mxu0 0
      %660 = vmatpush.bf16.msra.mxu0 0
      %661 = vmatpush.bf16.msra.mxu0 0
      %662 = vmatpush.bf16.msra.mxu0 0
      %663 = vmatpush.bf16.msra.mxu0 0
      %664 = vmatpush.bf16.msra.mxu0 %v649
      %665 = vmatpush.bf16.msra.mxu0 %v648
      %666 = vmatmul.bf16.gmra.mxu0 %v653
      %v667 = vpop.f32.mrf.mxu0
      %v668 = vadd.f32 0.0, %v667
      %v669 = vpop.f32.mrf.mxu0
      %v670 = vadd.f32 0.0, %v669
      %671 = vmatmul.bf16.gmra.mxu0 %v656
      %v672 = vpop.f32.mrf.mxu0
      %v673 = vadd.f32 0.0, %v672
      %v674 = vpop.f32.mrf.mxu0
      %675 = vdwg.mxu0
      %v676 = vadd.f32 %v610, %v668
      %v677 = vadd.f32 %v611, %v670
      %v678 = vadd.f32 %v612, %v673
      %v679 = vld [vmem:[%s207 + $0x4] sm:$0x8]
      %s680 = scalar_lea.vmem %s1, 128
      %v681 = vld [vmem:[%s680] sm:$0xf]
      %v682 = vld [vmem:[%s680 + $0x4] sm:$0xf]
      %v683 = vld [vmem:[%s680 + $0x8] sm:$0xf]
      %v684 = vld [vmem:[%s680 + $0xc] sm:$0xf]
      %v686 = vunpack.c.l.b16 %v679
      %v687 = vpack.c.b16 %v565, %v686
      %v688 = vrot.slane %v687, 3
      %v689 = vrot.slane %v621, 3
      %v690 = vsel %vm396, %v688, %v689
      %v695 = vunpack.c.l.b16 %v681
      %v696 = vunpack.c.l.b16 %v682
      %v697 = vunpack.c.l.b16 %v683
      %v698 = vunpack.c.l.b16 %v684
      %v699 = vpack.c.b16 %v696, %v695
      %v700 = vpack.c.b16 %v698, %v697
      %v704 = vsel %vm270, %v690, 0
      %v707 = vsel %vm270, %v689, 0
      %709 = vmatpush.bf16.msra.mxu0 0
      %710 = vmatpush.bf16.msra.mxu0 0
      %711 = vmatpush.bf16.msra.mxu0 0
      %712 = vmatpush.bf16.msra.mxu0 0
      %713 = vmatpush.bf16.msra.mxu0 0
      %714 = vmatpush.bf16.msra.mxu0 0
      %715 = vmatpush.bf16.msra.mxu0 %v700
      %716 = vmatpush.bf16.msra.mxu0 %v699
      %717 = vmatmul.bf16.gmra.mxu0 %v704
      %v718 = vpop.f32.mrf.mxu0
      %v719 = vadd.f32 0.0, %v718
      %v720 = vpop.f32.mrf.mxu0
      %v721 = vadd.f32 0.0, %v720
      %722 = vmatmul.bf16.gmra.mxu0 %v707
      %v723 = vpop.f32.mrf.mxu0
      %v724 = vadd.f32 0.0, %v723
      %v725 = vpop.f32.mrf.mxu0
      %726 = vdwg.mxu0
      %v727 = vadd.f32 %v676, %v719
      %v728 = vadd.f32 %v677, %v721
      %v729 = vadd.f32 %v678, %v724
      %v730 = vld [vmem:[%s2] sm:$0x1]
      %v731 = vperm.slane %v730, 0
      %v732 = vmul.f32 %v727, %v731
      %v733 = vmul.f32 %v728, %v731
      %v734 = vmul.f32 %v729, %v731
      %v735 = vld [vmem:[%s2 + $0x1] sm:$0x1]
      %v736 = vperm.slane %v735, 0
      %v737 = vadd.f32 %v732, %v736
      %v738 = vadd.f32 %v733, %v736
      %v739 = vadd.f32 %v734, %v736
      %v740 = vmin.f32 %v737, 20.0
      %v741 = vmin.f32 %v738, 20.0
      %v742 = vmin.f32 %v739, 20.0
      %v743 = vmul.f32 %v740, 1.442695
      %v744 = vpow.pop %v743
      %v745 = vmul.f32 %v741, 1.442695
      %v746 = vpow.pop %v745
      %v747 = vmul.f32 %v742, 1.442695
      %v748 = vpow.pop %v747
      %v749 = vadd.f32 %v744, 2.0
      %v750 = vadd.f32 %v746, 2.0
      %v751 = vadd.f32 %v748, 2.0
      %v752 = vmul.f32 %v744, %v749
      %v753 = vmul.f32 %v746, %v750
      %v754 = vmul.f32 %v748, %v751
      %v755 = vmul.f32 %v737, %v752
      %v756 = vmul.f32 %v738, %v753
      %v757 = vmul.f32 %v739, %v754
      %v758 = vadd.f32 %v752, 2.0
      %v759 = vadd.f32 %v753, 2.0
      %v760 = vadd.f32 %v754, 2.0
      %v761 = vrcp.pop %v758
      %v762 = vrcp.pop %v759
      %v763 = vrcp.pop %v760
      %v764 = vmul.f32 %v755, %v761
      %v765 = vmul.f32 %v756, %v762
      %v766 = vmul.f32 %v757, %v763
      %vm767 = vcmp.gt.f32.partialorder %v737, 20.0
      %vm768 = vcmp.gt.f32.partialorder %v738, 20.0
      %vm769 = vcmp.gt.f32.partialorder %v739, 20.0
      %v770 = vsel %vm767, %v737, %v764
      %v771 = vsel %vm768, %v738, %v765
      %v772 = vsel %vm769, %v739, %v766
      %v773 = vld [vmem:[%s212] sm:$0xf]
      %v774 = vld [vmem:[%s212 + $0x4] sm:$0xf]
      %v775 = vld [vmem:[%s212 + $0x8] sm:$0xf]
      %v776 = vunpack.c.l.bf16 %v773
      %v777 = vunpack.c.l.bf16 %v774
      %v778 = vunpack.c.l.bf16 %v775
      %v779 = vadd.f32 %v770, %v776
      %v780 = vadd.f32 %v771, %v777
      %v781 = vadd.f32 %v772, %v778
      %v782 = vmul.f32 %v779, 0.70710677
      %v783 = vmul.f32 %v780, 0.70710677
      %v784 = vmul.f32 %v781, 0.70710677
      %v785 = vpack.c.bf16 %v782, %v782
      %v786 = vpack.c.bf16 %v783, %v783
      %v787 = vpack.c.bf16 %v784, %v784
      %vm788 = vcmask 257024
      %789 = vst.msk [vmem:[%s217] sm:$0xf] %vm788, %v785
      %790 = vst.msk [vmem:[%s217 + $0x4] sm:$0xf] %vm788, %v786
      %791 = vst.msk [vmem:[%s217 + $0x8] sm:$0xf] %vm788, %v787
      %p792 = scmp.lt.s32.totalorder %s15, 1
      %s793 = scalar_select %p792, %s15, 1
      %s794 = smul.addr %s793, 3
      %s795 = smul.addr %s794, 4
      %s796 = scalar_lea.vmem %s4, %s795
      // Predicated region
      $region37: #{_lambda_.12} parent=35 // pred_check
        %p797 = pneg %p127
      $region38: #{_lambda_.12} parent=35 // pred_check_branch
        %799 = sbr.rel (%p797) target = $region40
      $region39: #{_lambda_.12} parent=35 // pred_region
        _
      $region40: #{_lambda_.12} parent=35 // pred_fallthru
        _
    $region36: #{_lambda_.12} parent=5 // pred_fallthru
      _
    %p800 = scmp.le.s32.totalorder 2, %s10
    // Predicated region
    $region41: #{_lambda_.12} parent=5 // pred_check
      %p801 = pneg %p800
    $region42: #{_lambda_.12} parent=5 // pred_check_branch
      %803 = sbr.rel (%p801) target = $region44
    $region43: #{_lambda_.12} parent=5 // pred_region
      %s804 = ssub.s32 %s10, 2
      // Predicated region
      $region45: #{_lambda_.12} parent=43 // pred_check
        %p805 = pneg %p133
      $region46: #{_lambda_.12} parent=43 // pred_check_branch
        %807 = sbr.rel (%p805) target = $region48
      $region47: #{_lambda_.12} parent=43 // pred_region
        %p808 = scmp.lt.s32.totalorder %s16, 1
        %s809 = scalar_select %p808, %s16, 1
        %s810 = smul.addr %s809, 3
        %s811 = smul.addr %s810, 4
        %s812 = scalar_lea.vmem %s4, %s811
      $region48: #{_lambda_.12} parent=43 // pred_fallthru
        _
    $region44: #{_lambda_.12} parent=5 // pred_fallthru
      _
  $region6: #{_lambda_.12} parent=0 // loop_footer
    %s14 = sadd.s32 1, %s10
  $region7: #{_lambda_.12} parent=0 // loop_footer_branch
    %9 = sbr.rel target = $region3
  $region8: #{_lambda_.12} parent=0 // loop_exit
    _

// kernel: _lambda_.15
$region0: #{_lambda_.15}
  #allocation0 [shape = 'u32[]', space=smem, size = 0x4, offset = 0x4, fixed_abs, tag = 'smem constant byte address 0x4 - core index']
  #allocation1 [shape = 'u32[72,128]{1,0:T(1,128)}', space=vmem, size = 0x9000, scoped, tag = 'internal scratch']
  %s0 = inlined_call_operand.vmem [shape: bf16[2,32], index: 0, kind: input, shape index: {}]
  %s1 = inlined_call_operand.vmem [shape: bf16[32,32], index: 1, kind: input, shape index: {}]
  %s2 = inlined_call_operand.vmem [shape: f32[1,32], index: 2, kind: input, shape index: {}]
  %s3 = inlined_call_operand.hbm [shape: f32[2,32], index: 3, kind: output, shape index: {}]
  %s4 = sld [smem:[#allocation0]]
  $region22: #{_lambda_.15} parent=0
    _
  %s6 = ssub.s32 1, %s4
  %s7 = scalar_select 0, %s6, %s4
  $region1: #{_lambda_.15} parent=0
    #allocation2 [shape = 'u8[1024]{0}', space=vmem, size = 0x400, scoped, tag = 'output window, operand 0, single buffered']
    #allocation3 [shape = 's32[1]{0}', space=sflag, size = 0x4, scoped, tag = 'scoped memory for _lambda_.15']
    %8 = vsyncpa [#allocation3], 0
    // Predicated region
    $region2: #{_lambda_.15} parent=1 // pred_check
      _
    $region3: #{_lambda_.15} parent=1 // pred_check_branch
      %10 = sbr.rel (0) target = $region5
    $region4: #{_lambda_.15} parent=1 // pred_region
      _
    $region5: #{_lambda_.15} parent=1 // pred_fallthru
      _
    // Predicated region
    $region6: #{_lambda_.15} parent=1 // pred_check
      _
    $region7: #{_lambda_.15} parent=1 // pred_check_branch
      %12 = sbr.rel (0) target = $region9
    $region8: #{_lambda_.15} parent=1 // pred_region
      _
    $region9: #{_lambda_.15} parent=1 // pred_fallthru
      _
    // Predicated region
    $region10: #{_lambda_.15} parent=1 // pred_check
      _
    $region11: #{_lambda_.15} parent=1 // pred_check_branch
      %14 = sbr.rel (0) target = $region13
    $region12: #{_lambda_.15} parent=1 // pred_region
      _
    $region13: #{_lambda_.15} parent=1 // pred_fallthru
      _
    %v16 = vld [vmem:[%s0] sm:$0x1]
    %v17 = vld [vmem:[%s1] sm:$0xf]
    %v18 = vld [vmem:[%s1 + $0x4] sm:$0xf]
    %v19 = vld [vmem:[%s1 + $0x8] sm:$0xf]
    %v20 = vld [vmem:[%s1 + $0xc] sm:$0xf]
    %v21 = vld [vmem:[%s2] sm:$0x1]
    %v23 = vperm.slane %v21, 0
    %v29 = vunpack.c.l.b16 %v17
    %v30 = vunpack.c.l.b16 %v18
    %v31 = vunpack.c.l.b16 %v19
    %v32 = vunpack.c.l.b16 %v20
    %v33 = vpack.c.b16 %v30, %v29
    %v34 = vpack.c.b16 %v32, %v31
    %vm37 = vcmask 261120
    %v39 = vsel %vm37, %v16, 0
    %41 = vmatpush.bf16.msra.mxu0 0
    %42 = vmatpush.bf16.msra.mxu0 0
    %43 = vmatpush.bf16.msra.mxu0 0
    %44 = vmatpush.bf16.msra.mxu0 0
    %45 = vmatpush.bf16.msra.mxu0 0
    %46 = vmatpush.bf16.msra.mxu0 0
    %47 = vmatpush.bf16.msra.mxu0 %v34
    %48 = vmatpush.bf16.msra.mxu0 %v33
    %49 = vmatmul.bf16.gmra.mxu0 %v39
    %v50 = vpop.f32.mrf.mxu0
    %v51 = vadd.f32 %v23, %v50
    %v52 = vpop.f32.mrf.mxu0
    %53 = vdwg.mxu0
    %vm54 = vcmask 254976
    %55 = vst.msk [vmem:[#allocation2] sm:$0x3] %vm54, %v51
    // Predicated region
    $region14: #{_lambda_.15} parent=1 // pred_check
      _
    $region15: #{_lambda_.15} parent=1 // pred_check_branch
      %57 = sbr.rel (0) target = $region17
    $region16: #{_lambda_.15} parent=1 // pred_region
      %59 = vsyncadd [#allocation3], 0
      %s61 = sshll.u32 [#allocation2], 4
      %s62 = int_to_ptr.vmem [resolvable:$true] %s61
      %s63 = sshll.u32 %s3, 4
      %s64 = int_to_ptr.hbm [resolvable:$true] %s63
      %66 = dma.vmem_to_hbm [thread:$0]  %s62, 32, %s64, [#allocation3]
    $region17: #{_lambda_.15} parent=1 // pred_fallthru
      _
    // Predicated region
    $region18: #{_lambda_.15} parent=1 // pred_check
      _
    $region19: #{_lambda_.15} parent=1 // pred_check_branch
      %68 = sbr.rel (0) target = $region21
    $region20: #{_lambda_.15} parent=1 // pred_region
      %70 = dma.done [#allocation3], 32
    $region21: #{_lambda_.15} parent=1 // pred_fallthru
      _
    %71 = vsyncpa [#allocation3], 1

// kernel: _lambda_.13
$region0: #{_lambda_.13}
  #allocation0 [shape = 'u32[]', space=smem, size = 0x4, offset = 0x4, fixed_abs, tag = 'smem constant byte address 0x4 - core index']
  #allocation1 [shape = 'u32[72,128]{1,0:T(1,128)}', space=vmem, size = 0x9000, scoped, tag = 'internal scratch']
  %s0 = inlined_call_operand.vmem [shape: bf16[2,4,10,32], index: 0, kind: input, shape index: {}]
  %s1 = inlined_call_operand.vmem [shape: bf16[9,32,32], index: 1, kind: input, shape index: {}]
  %s2 = inlined_call_operand.vmem [shape: f32[2,32], index: 2, kind: input, shape index: {}]
  %s3 = inlined_call_operand.vmem [shape: bf16[2,6,32], index: 3, kind: output, shape index: {}]
  %s4 = sld [smem:[#allocation0]]
  $region45: #{_lambda_.13} parent=0
    _
  %s6 = ssub.s32 1, %s4
  %s7 = scalar_select 0, %s6, %s4
  loop: start=0, step=1, limit=4
  $region2: #{_lambda_.13} parent=0 // loop_pre_header
    _
  $region3: #{_lambda_.13} parent=0 // loop_header
    %s9 = sphi 0, %s13
    %p10 = scmp.ge.s32.totalorder %s9, 4
    %s19 = sphi 0, %s21
    %s22 = sphi 0, %s19
    %s23 = sphi 0, %s22
    %s39 = sphi 0, %s23
    %s43 = sphi 0, %s43
    %s45 = sphi 0, %s43
    %s46 = sphi 0, %s45
    %s60 = sphi 0, %s46
    %s64 = sphi 0, %s64
    %s66 = sphi 0, %s64
    %s67 = sphi 0, %s66
    %s81 = sphi 0, %s67
    %s87 = sphi 0, %s89
    %s90 = sphi 0, %s87
    %s91 = sphi 0, %s90
    %s107 = sphi 0, %s91
  $region4: #{_lambda_.13} parent=0 // loop_header_branch
    %12 = sbr.rel (%p10) target = $region8
  $region5: #{_lambda_.13} parent=0 // loop_body
    %s14 = ssub.s32 %s9, 1
    %s15 = ssub.s32 %s9, 2
    %s16 = sadd.s32 %s9, 1
    %s17 = ssub.s32 %s9, %s16
    %p18 = scmp.eq.s32.totalorder %s17, 0
    %s20 = sadd.s32 %s19, 1
    %s21 = scalar_select %p18, %s19, %s20
    %p24 = pneg %p18
    %p25 = scmp.eq.s32.totalorder %s9, 1
    %p26 = por %p24, %p25
    %p27 = scmp.ne.s32.totalorder %s19, %s22
    %p28 = scmp.eq.s32.totalorder %s9, 0
    %p29 = por %p27, %p28
    %p30 = scmp.ne.s32.totalorder %s19, %s22
    %p31 = scmp.eq.s32.totalorder %s14, 1
    %p32 = por %p30, %p31
    %p33 = scmp.ne.s32.totalorder %s22, %s23
    %p34 = scmp.eq.s32.totalorder %s14, 0
    %p35 = por %p33, %p34
    %p36 = scmp.ne.s32.totalorder %s22, %s23
    %p37 = scmp.eq.s32.totalorder %s15, 1
    %p38 = por %p36, %p37
    %p40 = scmp.ne.s32.totalorder %s23, %s39
    %p41 = scmp.eq.s32.totalorder %s15, 0
    %p42 = por %p40, %p41
    %s44 = sadd.s32 %s43, 1
    %p47 = scmp.eq.s32.totalorder %s9, 1
    %p48 = scmp.ne.s32.totalorder %s43, %s45
    %p49 = scmp.eq.s32.totalorder %s9, 0
    %p50 = por %p48, %p49
    %p51 = scmp.ne.s32.totalorder %s43, %s45
    %p52 = scmp.eq.s32.totalorder %s14, 1
    %p53 = por %p51, %p52
    %p54 = scmp.ne.s32.totalorder %s45, %s46
    %p55 = scmp.eq.s32.totalorder %s14, 0
    %p56 = por %p54, %p55
    %p57 = scmp.ne.s32.totalorder %s45, %s46
    %p58 = scmp.eq.s32.totalorder %s15, 1
    %p59 = por %p57, %p58
    %p61 = scmp.ne.s32.totalorder %s46, %s60
    %p62 = scmp.eq.s32.totalorder %s15, 0
    %p63 = por %p61, %p62
    %s65 = sadd.s32 %s64, 1
    %p68 = scmp.eq.s32.totalorder %s9, 1
    %p69 = scmp.ne.s32.totalorder %s64, %s66
    %p70 = scmp.eq.s32.totalorder %s9, 0
    %p71 = por %p69, %p70
    %p72 = scmp.ne.s32.totalorder %s64, %s66
    %p73 = scmp.eq.s32.totalorder %s14, 1
    %p74 = por %p72, %p73
    %p75 = scmp.ne.s32.totalorder %s66, %s67
    %p76 = scmp.eq.s32.totalorder %s14, 0
    %p77 = por %p75, %p76
    %p78 = scmp.ne.s32.totalorder %s66, %s67
    %p79 = scmp.eq.s32.totalorder %s15, 1
    %p80 = por %p78, %p79
    %p82 = scmp.ne.s32.totalorder %s67, %s81
    %p83 = scmp.eq.s32.totalorder %s15, 0
    %p84 = por %p82, %p83
    %s85 = ssub.s32 %s9, %s16
    %p86 = scmp.eq.s32.totalorder %s85, 0
    %s88 = sadd.s32 %s87, 1
    %s89 = scalar_select %p86, %s87, %s88
    %p92 = pneg %p86
    %p93 = scmp.eq.s32.totalorder %s9, 1
    %p94 = por %p92, %p93
    %p95 = scmp.ne.s32.totalorder %s87, %s90
    %p96 = scmp.eq.s32.totalorder %s9, 0
    %p97 = por %p95, %p96
    %p98 = scmp.ne.s32.totalorder %s87, %s90
    %p99 = scmp.eq.s32.totalorder %s14, 1
    %p100 = por %p98, %p99
    %p101 = scmp.ne.s32.totalorder %s90, %s91
    %p102 = scmp.eq.s32.totalorder %s14, 0
    %p103 = por %p101, %p102
    %p104 = scmp.ne.s32.totalorder %s90, %s91
    %p105 = scmp.eq.s32.totalorder %s15, 1
    %p106 = por %p104, %p105
    %p108 = scmp.ne.s32.totalorder %s91, %s107
    %p109 = scmp.eq.s32.totalorder %s15, 0
    %p110 = por %p108, %p109
    %p111 = scmp.le.s32.totalorder 1, %s9
    %p112 = scmp.lt.s32.totalorder %s9, 3
    %p113 = pnand %p111, %p112
    %p114 = pneg %p113
    // Predicated region
    $region9: #{_lambda_.13} parent=5 // pred_check
      _
    $region10: #{_lambda_.13} parent=5 // pred_check_branch
      %116 = sbr.rel (%p113) target = $region12
    $region11: #{_lambda_.13} parent=5 // pred_region
      %s117 = ssub.s32 %s9, 1
      // Predicated region
      $region13: #{_lambda_.13} parent=11 // pred_check
        %p118 = pneg %p56
      $region14: #{_lambda_.13} parent=11 // pred_check_branch
        %120 = sbr.rel (%p118) target = $region16
      $region15: #{_lambda_.13} parent=11 // pred_region
        _
      $region16: #{_lambda_.13} parent=11 // pred_fallthru
        _
      // Predicated region
      $region17: #{_lambda_.13} parent=11 // pred_check
        %p121 = pneg %p77
      $region18: #{_lambda_.13} parent=11 // pred_check_branch
        %123 = sbr.rel (%p121) target = $region20
      $region19: #{_lambda_.13} parent=11 // pred_region
        _
      $region20: #{_lambda_.13} parent=11 // pred_fallthru
        _
    $region12: #{_lambda_.13} parent=5 // pred_fallthru
      _
    %p124 = scmp.lt.s32.totalorder %s9, 2
    // Predicated region
    $region21: #{_lambda_.13} parent=5 // pred_check
      %p125 = pneg %p124
    $region22: #{_lambda_.13} parent=5 // pred_check_branch
      %127 = sbr.rel (%p125) target = $region24
    $region23: #{_lambda_.13} parent=5 // pred_region
      // Predicated region
      $region25: #{_lambda_.13} parent=23 // pred_check
        %p128 = pneg %p29
      $region26: #{_lambda_.13} parent=23 // pred_check_branch
        %130 = sbr.rel (%p128) target = $region28
      $region27: #{_lambda_.13} parent=23 // pred_region
        %p131 = scmp.lt.s32.totalorder %s9, 1
        %s132 = scalar_select %p131, %s9, 1
        %s133 = smul.addr %s132, 8
        %s134 = smul.addr %s133, 4
        %s135 = scalar_lea.vmem %s0, %s134
      $region28: #{_lambda_.13} parent=23 // pred_fallthru
        _
    $region24: #{_lambda_.13} parent=5 // pred_fallthru
      _
    %p136 = scmp.le.s32.totalorder 1, %s9
    %p137 = scmp.lt.s32.totalorder %s9, 3
    %p138 = pnand %p136, %p137
    %p139 = pneg %p138
    // Predicated region
    $region29: #{_lambda_.13} parent=5 // pred_check
      _
    $region30: #{_lambda_.13} parent=5 // pred_check_branch
      %141 = sbr.rel (%p138) target = $region32
    $region31: #{_lambda_.13} parent=5 // pred_region
      %s142 = ssub.s32 %s9, 1
      %p143 = scmp.lt.s32.totalorder %s14, 1
      %s144 = scalar_select %p143, %s14, 1
      %s145 = smul.addr %s144, 8
      %s146 = smul.addr %s145, 4
      %s147 = scalar_lea.vmem %s0, %s146
      %p148 = pneg %p35
      %p149 = pneg %p32
      %p150 = pneg %p56
      %p151 = pneg %p53
      %p152 = pneg %p77
      %p153 = pneg %p74
      %p154 = pneg %p103
      %p155 = pneg %p100
      %p156 = scmp.lt.s32.totalorder %s14, 1
      %s157 = scalar_select %p156, %s14, 1
      %s158 = smul.addr %s157, 4
      %s159 = scalar_lea.vmem %s3, %s158
      %p160 = scmp.lt.s32.totalorder %s14, 1
      %s161 = scalar_select %p160, %s14, 1
      %s162 = smul.addr %s161, 8
      %s163 = smul.addr %s162, 4
      %s164 = scalar_lea.vmem %s0, %s163
      %p165 = scmp.lt.s32.totalorder %s14, 1
      %s166 = scalar_select %p165, %s14, 1
      %s167 = smul.addr %s166, 4
      %s168 = scalar_lea.vmem %s3, %s167
      %v170 = vld [vmem:[%s164] sm:$0x7]
      %v171 = vld [vmem:[%s1] sm:$0xf]
      %v172 = vld [vmem:[%s1 + $0x4] sm:$0xf]
      %v173 = vld [vmem:[%s1 + $0x8] sm:$0xf]
      %v174 = vld [vmem:[%s1 + $0xc] sm:$0xf]
      %s175 = scalar_lea.vmem %s164, 8
      %v176 = vld [vmem:[%s175] sm:$0x7]
      %s177 = scalar_lea.vmem %s1, 16
      %v178 = vld [vmem:[%s177] sm:$0xf]
      %v179 = vld [vmem:[%s177 + $0x4] sm:$0xf]
      %v180 = vld [vmem:[%s177 + $0x8] sm:$0xf]
      %v181 = vld [vmem:[%s177 + $0xc] sm:$0xf]
      %v186 = vunpack.c.l.b16 %v178
      %v187 = vunpack.c.l.b16 %v179
      %v188 = vunpack.c.l.b16 %v180
      %v189 = vunpack.c.l.b16 %v181
      %v190 = vpack.c.b16 %v187, %v186
      %v191 = vpack.c.b16 %v189, %v188
      %vm194 = vcmask 261120
      %v196 = vsel %vm194, %v176, 0
      %198 = vmatpush.bf16.msra.mxu0 0
      %199 = vmatpush.bf16.msra.mxu0 0
      %200 = vmatpush.bf16.msra.mxu0 0
      %201 = vmatpush.bf16.msra.mxu0 0
      %202 = vmatpush.bf16.msra.mxu0 0
      %203 = vmatpush.bf16.msra.mxu0 0
      %204 = vmatpush.bf16.msra.mxu0 %v191
      %205 = vmatpush.bf16.msra.mxu0 %v190
      %206 = vmatmul.bf16.gmra.mxu0 %v196
      %v207 = vpop.f32.mrf.mxu0
      %v208 = vadd.f32 0.0, %v207
      %v209 = vpop.f32.mrf.mxu0
      %210 = vdwg.mxu0
      %v215 = vunpack.c.l.b16 %v171
      %v216 = vunpack.c.l.b16 %v172
      %v217 = vunpack.c.l.b16 %v173
      %v218 = vunpack.c.l.b16 %v174
      %v219 = vpack.c.b16 %v216, %v215
      %v220 = vpack.c.b16 %v218, %v217
      %v224 = vsel %vm194, %v170, 0
      %226 = vmatpush.bf16.msra.mxu0 0
      %227 = vmatpush.bf16.msra.mxu0 0
      %228 = vmatpush.bf16.msra.mxu0 0
      %229 = vmatpush.bf16.msra.mxu0 0
      %230 = vmatpush.bf16.msra.mxu0 0
      %231 = vmatpush.bf16.msra.mxu0 0
      %232 = vmatpush.bf16.msra.mxu0 %v220
      %233 = vmatpush.bf16.msra.mxu0 %v219
      %234 = vmatmul.bf16.gmra.mxu0 %v224
      %v235 = vpop.f32.mrf.mxu0
      %v236 = vadd.f32 %v208, %v235
      %v237 = vpop.f32.mrf.mxu0
      %238 = vdwg.mxu0
      %v239 = vld [vmem:[%s164] sm:$0xf]
      %s240 = scalar_lea.vmem %s1, 32
      %v241 = vld [vmem:[%s240] sm:$0xf]
      %v242 = vld [vmem:[%s240 + $0x4] sm:$0xf]
      %v243 = vld [vmem:[%s240 + $0x8] sm:$0xf]
      %v244 = vld [vmem:[%s240 + $0xc] sm:$0xf]
      %v246 = vunpack.c.l.b16 %v239
      %v247 = vpack.c.b16 %v246, %v246
      %v249 = vshrl.u32 %v247, 16
      %v251 = vshll.u32 %v247, 16
      %v253 = vrot.slane %v251, 1
      %v254 = vor.u32 %v249, %v253
      %v259 = vunpack.c.l.b16 %v241
      %v260 = vunpack.c.l.b16 %v242
      %v261 = vunpack.c.l.b16 %v243
      %v262 = vunpack.c.l.b16 %v244
      %v263 = vpack.c.b16 %v260, %v259
      %v264 = vpack.c.b16 %v262, %v261
      %v268 = vsel %vm194, %v254, 0
      %270 = vmatpush.bf16.msra.mxu0 0
      %271 = vmatpush.bf16.msra.mxu0 0
      %272 = vmatpush.bf16.msra.mxu0 0
      %273 = vmatpush.bf16.msra.mxu0 0
      %274 = vmatpush.bf16.msra.mxu0 0
      %275 = vmatpush.bf16.msra.mxu0 0
      %276 = vmatpush.bf16.msra.mxu0 %v264
      %277 = vmatpush.bf16.msra.mxu0 %v263
      %278 = vmatmul.bf16.gmra.mxu0 %v268
      %v279 = vpop.f32.mrf.mxu0
      %v280 = vadd.f32 0.0, %v279
      %v281 = vpop.f32.mrf.mxu0
      %282 = vdwg.mxu0
      %v283 = vadd.f32 %v236, %v280
      %s284 = scalar_lea.vmem %s164, 16
      %v285 = vld [vmem:[%s284] sm:$0x7]
      %s286 = scalar_lea.vmem %s1, 48
      %v287 = vld [vmem:[%s286] sm:$0xf]
      %v288 = vld [vmem:[%s286 + $0x4] sm:$0xf]
      %v289 = vld [vmem:[%s286 + $0x8] sm:$0xf]
      %v290 = vld [vmem:[%s286 + $0xc] sm:$0xf]
      %v295 = vunpack.c.l.b16 %v287
      %v296 = vunpack.c.l.b16 %v288
      %v297 = vunpack.c.l.b16 %v289
      %v298 = vunpack.c.l.b16 %v290
      %v299 = vpack.c.b16 %v296, %v295
      %v300 = vpack.c.b16 %v298, %v297
      %v304 = vsel %vm194, %v285, 0
      %306 = vmatpush.bf16.msra.mxu0 0
      %307 = vmatpush.bf16.msra.mxu0 0
      %308 = vmatpush.bf16.msra.mxu0 0
      %309 = vmatpush.bf16.msra.mxu0 0
      %310 = vmatpush.bf16.msra.mxu0 0
      %311 = vmatpush.bf16.msra.mxu0 0
      %312 = vmatpush.bf16.msra.mxu0 %v300
      %313 = vmatpush.bf16.msra.mxu0 %v299
      %314 = vmatmul.bf16.gmra.mxu0 %v304
      %v315 = vpop.f32.mrf.mxu0
      %v316 = vadd.f32 0.0, %v315
      %v317 = vpop.f32.mrf.mxu0
      %318 = vdwg.mxu0
      %v319 = vadd.f32 %v283, %v316
      %s320 = scalar_lea.vmem %s164, 24
      %v321 = vld [vmem:[%s320] sm:$0x7]
      %s322 = scalar_lea.vmem %s1, 64
      %v323 = vld [vmem:[%s322] sm:$0xf]
      %v324 = vld [vmem:[%s322 + $0x4] sm:$0xf]
      %v325 = vld [vmem:[%s322 + $0x8] sm:$0xf]
      %v326 = vld [vmem:[%s322 + $0xc] sm:$0xf]
      %v331 = vunpack.c.l.b16 %v323
      %v332 = vunpack.c.l.b16 %v324
      %v333 = vunpack.c.l.b16 %v325
      %v334 = vunpack.c.l.b16 %v326
      %v335 = vpack.c.b16 %v332, %v331
      %v336 = vpack.c.b16 %v334, %v333
      %v340 = vsel %vm194, %v321, 0
      %342 = vmatpush.bf16.msra.mxu0 0
      %343 = vmatpush.bf16.msra.mxu0 0
      %344 = vmatpush.bf16.msra.mxu0 0
      %345 = vmatpush.bf16.msra.mxu0 0
      %346 = vmatpush.bf16.msra.mxu0 0
      %347 = vmatpush.bf16.msra.mxu0 0
      %348 = vmatpush.bf16.msra.mxu0 %v336
      %349 = vmatpush.bf16.msra.mxu0 %v335
      %350 = vmatmul.bf16.gmra.mxu0 %v340
      %v351 = vpop.f32.mrf.mxu0
      %v352 = vadd.f32 0.0, %v351
      %v353 = vpop.f32.mrf.mxu0
      %354 = vdwg.mxu0
      %v355 = vadd.f32 %v319, %v352
      %v356 = vld [vmem:[%s284] sm:$0xf]
      %s357 = scalar_lea.vmem %s1, 80
      %v358 = vld [vmem:[%s357] sm:$0xf]
      %v359 = vld [vmem:[%s357 + $0x4] sm:$0xf]
      %v360 = vld [vmem:[%s357 + $0x8] sm:$0xf]
      %v361 = vld [vmem:[%s357 + $0xc] sm:$0xf]
      %v363 = vunpack.c.l.b16 %v356
      %v364 = vpack.c.b16 %v363, %v363
      %v366 = vshrl.u32 %v364, 16
      %v368 = vshll.u32 %v364, 16
      %v370 = vrot.slane %v368, 1
      %v371 = vor.u32 %v366, %v370
      %v376 = vunpack.c.l.b16 %v358
      %v377 = vunpack.c.l.b16 %v359
      %v378 = vunpack.c.l.b16 %v360
      %v379 = vunpack.c.l.b16 %v361
      %v380 = vpack.c.b16 %v377, %v376
      %v381 = vpack.c.b16 %v379, %v378
      %v385 = vsel %vm194, %v371, 0
      %387 = vmatpush.bf16.msra.mxu0 0
      %388 = vmatpush.bf16.msra.mxu0 0
      %389 = vmatpush.bf16.msra.mxu0 0
      %390 = vmatpush.bf16.msra.mxu0 0
      %391 = vmatpush.bf16.msra.mxu0 0
      %392 = vmatpush.bf16.msra.mxu0 0
      %393 = vmatpush.bf16.msra.mxu0 %v381
      %394 = vmatpush.bf16.msra.mxu0 %v380
      %395 = vmatmul.bf16.gmra.mxu0 %v385
      %v396 = vpop.f32.mrf.mxu0
      %v397 = vadd.f32 0.0, %v396
      %v398 = vpop.f32.mrf.mxu0
      %399 = vdwg.mxu0
      %v400 = vadd.f32 %v355, %v397
      %v401 = vld [vmem:[%s164] sm:$0xe]
      %v402 = vld [vmem:[%s164 + $0x4] sm:$0x1]
      %s403 = scalar_lea.vmem %s1, 96
      %v404 = vld [vmem:[%s403] sm:$0xf]
      %v405 = vld [vmem:[%s403 + $0x4] sm:$0xf]
      %v406 = vld [vmem:[%s403 + $0x8] sm:$0xf]
      %v407 = vld [vmem:[%s403 + $0xc] sm:$0xf]
      %v410 = vunpack.c.l.b16 %v401
      %v411 = vunpack.c.l.b16 %v402
      %v412 = vpack.c.b16 %v411, %v410
      %v414 = vshrl.u32 %v412, 16
      %v416 = vrot.slane %v414, 1
      %v417 = vshll.u32 %v412, 16
      %v419 = vrot.slane %v417, 2
      %v420 = vor.u32 %v416, %v419
      %v425 = vunpack.c.l.b16 %v404
      %v426 = vunpack.c.l.b16 %v405
      %v427 = vunpack.c.l.b16 %v406
      %v428 = vunpack.c.l.b16 %v407
      %v429 = vpack.c.b16 %v426, %v425
      %v430 = vpack.c.b16 %v428, %v427
      %v434 = vsel %vm194, %v420, 0
      %436 = vmatpush.bf16.msra.mxu0 0
      %437 = vmatpush.bf16.msra.mxu0 0
      %438 = vmatpush.bf16.msra.mxu0 0
      %439 = vmatpush.bf16.msra.mxu0 0
      %440 = vmatpush.bf16.msra.mxu0 0
      %441 = vmatpush.bf16.msra.mxu0 0
      %442 = vmatpush.bf16.msra.mxu0 %v430
      %443 = vmatpush.bf16.msra.mxu0 %v429
      %444 = vmatmul.bf16.gmra.mxu0 %v434
      %v445 = vpop.f32.mrf.mxu0
      %v446 = vadd.f32 0.0, %v445
      %v447 = vpop.f32.mrf.mxu0
      %448 = vdwg.mxu0
      %v449 = vadd.f32 %v400, %v446
      %v450 = vld [vmem:[%s175] sm:$0xe]
      %v451 = vld [vmem:[%s175 + $0x4] sm:$0x1]
      %s452 = scalar_lea.vmem %s1, 112
      %v453 = vld [vmem:[%s452] sm:$0xf]
      %v454 = vld [vmem:[%s452 + $0x4] sm:$0xf]
      %v455 = vld [vmem:[%s452 + $0x8] sm:$0xf]
      %v456 = vld [vmem:[%s452 + $0xc] sm:$0xf]
      %v459 = vunpack.c.l.b16 %v450
      %v460 = vunpack.c.l.b16 %v451
      %v461 = vpack.c.b16 %v460, %v459
      %v463 = vshrl.u32 %v461, 16
      %v465 = vrot.slane %v463, 1
      %v466 = vshll.u32 %v461, 16
      %v468 = vrot.slane %v466, 2
      %v469 = vor.u32 %v465, %v468
      %v474 = vunpack.c.l.b16 %v453
      %v475 = vunpack.c.l.b16 %v454
      %v476 = vunpack.c.l.b16 %v455
      %v477 = vunpack.c.l.b16 %v456
      %v478 = vpack.c.b16 %v475, %v474
      %v479 = vpack.c.b16 %v477, %v476
      %v483 = vsel %vm194, %v469, 0
      %485 = vmatpush.bf16.msra.mxu0 0
      %486 = vmatpush.bf16.msra.mxu0 0
      %487 = vmatpush.bf16.msra.mxu0 0
      %488 = vmatpush.bf16.msra.mxu0 0
      %489 = vmatpush.bf16.msra.mxu0 0
      %490 = vmatpush.bf16.msra.mxu0 0
      %491 = vmatpush.bf16.msra.mxu0 %v479
      %492 = vmatpush.bf16.msra.mxu0 %v478
      %493 = vmatmul.bf16.gmra.mxu0 %v483
      %v494 = vpop.f32.mrf.mxu0
      %v495 = vadd.f32 0.0, %v494
      %v496 = vpop.f32.mrf.mxu0
      %497 = vdwg.mxu0
      %v498 = vadd.f32 %v449, %v495
      %v499 = vld [vmem:[%s164] sm:$0xc]
      %s500 = scalar_lea.vmem %s1, 128
      %v501 = vld [vmem:[%s500] sm:$0xf]
      %v502 = vld [vmem:[%s500 + $0x4] sm:$0xf]
      %v503 = vld [vmem:[%s500 + $0x8] sm:$0xf]
      %v504 = vld [vmem:[%s500 + $0xc] sm:$0xf]
      %v506 = vunpack.c.l.b16 %v499
      %v507 = vpack.c.b16 %v411, %v506
      %v508 = vrot.slane %v507, 2
      %v513 = vunpack.c.l.b16 %v501
      %v514 = vunpack.c.l.b16 %v502
      %v515 = vunpack.c.l.b16 %v503
      %v516 = vunpack.c.l.b16 %v504
      %v517 = vpack.c.b16 %v514, %v513
      %v518 = vpack.c.b16 %v516, %v515
      %v522 = vsel %vm194, %v508, 0
      %524 = vmatpush.bf16.msra.mxu0 0
      %525 = vmatpush.bf16.msra.mxu0 0
      %526 = vmatpush.bf16.msra.mxu0 0
      %527 = vmatpush.bf16.msra.mxu0 0
      %528 = vmatpush.bf16.msra.mxu0 0
      %529 = vmatpush.bf16.msra.mxu0 0
      %530 = vmatpush.bf16.msra.mxu0 %v518
      %531 = vmatpush.bf16.msra.mxu0 %v517
      %532 = vmatmul.bf16.gmra.mxu0 %v522
      %v533 = vpop.f32.mrf.mxu0
      %v534 = vadd.f32 0.0, %v533
      %v535 = vpop.f32.mrf.mxu0
      %536 = vdwg.mxu0
      %v537 = vadd.f32 %v498, %v534
      %v538 = vld [vmem:[%s2] sm:$0x1]
      %v539 = vperm.slane %v538, 0
      %v540 = vmul.f32 %v537, %v539
      %v541 = vld [vmem:[%s2 + $0x1] sm:$0x1]
      %v542 = vperm.slane %v541, 0
      %v543 = vadd.f32 %v540, %v542
      %v544 = vmin.f32 %v543, 20.0
      %v545 = vmul.f32 %v544, 1.442695
      %v546 = vpow.pop %v545
      %v547 = vadd.f32 %v546, 2.0
      %v548 = vmul.f32 %v546, %v547
      %v549 = vmul.f32 %v543, %v548
      %v550 = vadd.f32 %v548, 2.0
      %v551 = vrcp.pop %v550
      %v552 = vmul.f32 %v549, %v551
      %vm553 = vcmp.gt.f32.partialorder %v543, 20.0
      %v554 = vsel %vm553, %v543, %v552
      %v555 = vpack.c.bf16 %v554, %v554
      %vm556 = vcmask 256000
      %557 = vst.msk [vmem:[%s168] sm:$0x7] %vm556, %v555
      %p558 = scmp.lt.s32.totalorder %s14, 1
      %s559 = scalar_select %p558, %s14, 1
      %s560 = smul.addr %s559, 4
      %s561 = scalar_lea.vmem %s3, %s560
      // Predicated region
      $region33: #{_lambda_.13} parent=31 // pred_check
        %p562 = pneg %p100
      $region34: #{_lambda_.13} parent=31 // pred_check_branch
        %564 = sbr.rel (%p562) target = $region36
      $region35: #{_lambda_.13} parent=31 // pred_region
        _
      $region36: #{_lambda_.13} parent=31 // pred_fallthru
        _
    $region32: #{_lambda_.13} parent=5 // pred_fallthru
      _
    %p565 = scmp.le.s32.totalorder 2, %s9
    // Predicated region
    $region37: #{_lambda_.13} parent=5 // pred_check
      %p566 = pneg %p565
    $region38: #{_lambda_.13} parent=5 // pred_check_branch
      %568 = sbr.rel (%p566) target = $region40
    $region39: #{_lambda_.13} parent=5 // pred_region
      %s569 = ssub.s32 %s9, 2
      // Predicated region
      $region41: #{_lambda_.13} parent=39 // pred_check
        %p570 = pneg %p106
      $region42: #{_lambda_.13} parent=39 // pred_check_branch
        %572 = sbr.rel (%p570) target = $region44
      $region43: #{_lambda_.13} parent=39 // pred_region
        %p573 = scmp.lt.s32.totalorder %s15, 1
        %s574 = scalar_select %p573, %s15, 1
        %s575 = smul.addr %s574, 4
        %s576 = scalar_lea.vmem %s3, %s575
      $region44: #{_lambda_.13} parent=39 // pred_fallthru
        _
    $region40: #{_lambda_.13} parent=5 // pred_fallthru
      _
  $region6: #{_lambda_.13} parent=0 // loop_footer
    %s13 = sadd.s32 1, %s9
  $region7: #{_lambda_.13} parent=0 // loop_footer_branch
    %8 = sbr.rel target = $region3
  $region8: #{_lambda_.13} parent=0 // loop_exit
    _

// kernel: _lambda_.14
$region0: #{_lambda_.14}
  #allocation0 [shape = 'u32[]', space=smem, size = 0x4, offset = 0x4, fixed_abs, tag = 'smem constant byte address 0x4 - core index']
  #allocation1 [shape = 'u32[72,128]{1,0:T(1,128)}', space=vmem, size = 0x9000, scoped, tag = 'internal scratch']
  %s0 = inlined_call_operand.vmem [shape: bf16[2,4,5,32], index: 0, kind: input, shape index: {}]
  %s1 = inlined_call_operand.vmem [shape: bf16[9,32,32], index: 1, kind: input, shape index: {}]
  %s2 = inlined_call_operand.vmem [shape: f32[2,32], index: 2, kind: input, shape index: {}]
  %s3 = inlined_call_operand.vmem [shape: bf16[2,2,32], index: 3, kind: output, shape index: {}]
  %s4 = sld [smem:[#allocation0]]
  $region45: #{_lambda_.14} parent=0
    _
  %s6 = ssub.s32 1, %s4
  %s7 = scalar_select 0, %s6, %s4
  loop: start=0, step=1, limit=4
  $region2: #{_lambda_.14} parent=0 // loop_pre_header
    _
  $region3: #{_lambda_.14} parent=0 // loop_header
    %s9 = sphi 0, %s13
    %p10 = scmp.ge.s32.totalorder %s9, 4
    %s19 = sphi 0, %s21
    %s22 = sphi 0, %s19
    %s23 = sphi 0, %s22
    %s39 = sphi 0, %s23
    %s43 = sphi 0, %s43
    %s45 = sphi 0, %s43
    %s46 = sphi 0, %s45
    %s60 = sphi 0, %s46
    %s64 = sphi 0, %s64
    %s66 = sphi 0, %s64
    %s67 = sphi 0, %s66
    %s81 = sphi 0, %s67
    %s87 = sphi 0, %s89
    %s90 = sphi 0, %s87
    %s91 = sphi 0, %s90
    %s107 = sphi 0, %s91
  $region4: #{_lambda_.14} parent=0 // loop_header_branch
    %12 = sbr.rel (%p10) target = $region8
  $region5: #{_lambda_.14} parent=0 // loop_body
    %s14 = ssub.s32 %s9, 1
    %s15 = ssub.s32 %s9, 2
    %s16 = sadd.s32 %s9, 1
    %s17 = ssub.s32 %s9, %s16
    %p18 = scmp.eq.s32.totalorder %s17, 0
    %s20 = sadd.s32 %s19, 1
    %s21 = scalar_select %p18, %s19, %s20
    %p24 = pneg %p18
    %p25 = scmp.eq.s32.totalorder %s9, 1
    %p26 = por %p24, %p25
    %p27 = scmp.ne.s32.totalorder %s19, %s22
    %p28 = scmp.eq.s32.totalorder %s9, 0
    %p29 = por %p27, %p28
    %p30 = scmp.ne.s32.totalorder %s19, %s22
    %p31 = scmp.eq.s32.totalorder %s14, 1
    %p32 = por %p30, %p31
    %p33 = scmp.ne.s32.totalorder %s22, %s23
    %p34 = scmp.eq.s32.totalorder %s14, 0
    %p35 = por %p33, %p34
    %p36 = scmp.ne.s32.totalorder %s22, %s23
    %p37 = scmp.eq.s32.totalorder %s15, 1
    %p38 = por %p36, %p37
    %p40 = scmp.ne.s32.totalorder %s23, %s39
    %p41 = scmp.eq.s32.totalorder %s15, 0
    %p42 = por %p40, %p41
    %s44 = sadd.s32 %s43, 1
    %p47 = scmp.eq.s32.totalorder %s9, 1
    %p48 = scmp.ne.s32.totalorder %s43, %s45
    %p49 = scmp.eq.s32.totalorder %s9, 0
    %p50 = por %p48, %p49
    %p51 = scmp.ne.s32.totalorder %s43, %s45
    %p52 = scmp.eq.s32.totalorder %s14, 1
    %p53 = por %p51, %p52
    %p54 = scmp.ne.s32.totalorder %s45, %s46
    %p55 = scmp.eq.s32.totalorder %s14, 0
    %p56 = por %p54, %p55
    %p57 = scmp.ne.s32.totalorder %s45, %s46
    %p58 = scmp.eq.s32.totalorder %s15, 1
    %p59 = por %p57, %p58
    %p61 = scmp.ne.s32.totalorder %s46, %s60
    %p62 = scmp.eq.s32.totalorder %s15, 0
    %p63 = por %p61, %p62
    %s65 = sadd.s32 %s64, 1
    %p68 = scmp.eq.s32.totalorder %s9, 1
    %p69 = scmp.ne.s32.totalorder %s64, %s66
    %p70 = scmp.eq.s32.totalorder %s9, 0
    %p71 = por %p69, %p70
    %p72 = scmp.ne.s32.totalorder %s64, %s66
    %p73 = scmp.eq.s32.totalorder %s14, 1
    %p74 = por %p72, %p73
    %p75 = scmp.ne.s32.totalorder %s66, %s67
    %p76 = scmp.eq.s32.totalorder %s14, 0
    %p77 = por %p75, %p76
    %p78 = scmp.ne.s32.totalorder %s66, %s67
    %p79 = scmp.eq.s32.totalorder %s15, 1
    %p80 = por %p78, %p79
    %p82 = scmp.ne.s32.totalorder %s67, %s81
    %p83 = scmp.eq.s32.totalorder %s15, 0
    %p84 = por %p82, %p83
    %s85 = ssub.s32 %s9, %s16
    %p86 = scmp.eq.s32.totalorder %s85, 0
    %s88 = sadd.s32 %s87, 1
    %s89 = scalar_select %p86, %s87, %s88
    %p92 = pneg %p86
    %p93 = scmp.eq.s32.totalorder %s9, 1
    %p94 = por %p92, %p93
    %p95 = scmp.ne.s32.totalorder %s87, %s90
    %p96 = scmp.eq.s32.totalorder %s9, 0
    %p97 = por %p95, %p96
    %p98 = scmp.ne.s32.totalorder %s87, %s90
    %p99 = scmp.eq.s32.totalorder %s14, 1
    %p100 = por %p98, %p99
    %p101 = scmp.ne.s32.totalorder %s90, %s91
    %p102 = scmp.eq.s32.totalorder %s14, 0
    %p103 = por %p101, %p102
    %p104 = scmp.ne.s32.totalorder %s90, %s91
    %p105 = scmp.eq.s32.totalorder %s15, 1
    %p106 = por %p104, %p105
    %p108 = scmp.ne.s32.totalorder %s91, %s107
    %p109 = scmp.eq.s32.totalorder %s15, 0
    %p110 = por %p108, %p109
    %p111 = scmp.le.s32.totalorder 1, %s9
    %p112 = scmp.lt.s32.totalorder %s9, 3
    %p113 = pnand %p111, %p112
    %p114 = pneg %p113
    // Predicated region
    $region9: #{_lambda_.14} parent=5 // pred_check
      _
    $region10: #{_lambda_.14} parent=5 // pred_check_branch
      %116 = sbr.rel (%p113) target = $region12
    $region11: #{_lambda_.14} parent=5 // pred_region
      %s117 = ssub.s32 %s9, 1
      // Predicated region
      $region13: #{_lambda_.14} parent=11 // pred_check
        %p118 = pneg %p56
      $region14: #{_lambda_.14} parent=11 // pred_check_branch
        %120 = sbr.rel (%p118) target = $region16
      $region15: #{_lambda_.14} parent=11 // pred_region
        _
      $region16: #{_lambda_.14} parent=11 // pred_fallthru
        _
      // Predicated region
      $region17: #{_lambda_.14} parent=11 // pred_check
        %p121 = pneg %p77
      $region18: #{_lambda_.14} parent=11 // pred_check_branch
        %123 = sbr.rel (%p121) target = $region20
      $region19: #{_lambda_.14} parent=11 // pred_region
        _
      $region20: #{_lambda_.14} parent=11 // pred_fallthru
        _
    $region12: #{_lambda_.14} parent=5 // pred_fallthru
      _
    %p124 = scmp.lt.s32.totalorder %s9, 2
    // Predicated region
    $region21: #{_lambda_.14} parent=5 // pred_check
      %p125 = pneg %p124
    $region22: #{_lambda_.14} parent=5 // pred_check_branch
      %127 = sbr.rel (%p125) target = $region24
    $region23: #{_lambda_.14} parent=5 // pred_region
      // Predicated region
      $region25: #{_lambda_.14} parent=23 // pred_check
        %p128 = pneg %p29
      $region26: #{_lambda_.14} parent=23 // pred_check_branch
        %130 = sbr.rel (%p128) target = $region28
      $region27: #{_lambda_.14} parent=23 // pred_region
        %p131 = scmp.lt.s32.totalorder %s9, 1
        %s132 = scalar_select %p131, %s9, 1
        %s133 = smul.addr %s132, 4
        %s134 = smul.addr %s133, 4
        %s135 = scalar_lea.vmem %s0, %s134
      $region28: #{_lambda_.14} parent=23 // pred_fallthru
        _
    $region24: #{_lambda_.14} parent=5 // pred_fallthru
      _
    %p136 = scmp.le.s32.totalorder 1, %s9
    %p137 = scmp.lt.s32.totalorder %s9, 3
    %p138 = pnand %p136, %p137
    %p139 = pneg %p138
    // Predicated region
    $region29: #{_lambda_.14} parent=5 // pred_check
      _
    $region30: #{_lambda_.14} parent=5 // pred_check_branch
      %141 = sbr.rel (%p138) target = $region32
    $region31: #{_lambda_.14} parent=5 // pred_region
      %s142 = ssub.s32 %s9, 1
      %p143 = scmp.lt.s32.totalorder %s14, 1
      %s144 = scalar_select %p143, %s14, 1
      %s145 = smul.addr %s144, 4
      %s146 = smul.addr %s145, 4
      %s147 = scalar_lea.vmem %s0, %s146
      %p148 = pneg %p35
      %p149 = pneg %p32
      %p150 = pneg %p56
      %p151 = pneg %p53
      %p152 = pneg %p77
      %p153 = pneg %p74
      %p154 = pneg %p103
      %p155 = pneg %p100
      %p156 = scmp.lt.s32.totalorder %s14, 1
      %s157 = scalar_select %p156, %s14, 1
      %s158 = scalar_lea.vmem %s3, %s157
      %p159 = scmp.lt.s32.totalorder %s14, 1
      %s160 = scalar_select %p159, %s14, 1
      %s161 = smul.addr %s160, 4
      %s162 = smul.addr %s161, 4
      %s163 = scalar_lea.vmem %s0, %s162
      %p164 = scmp.lt.s32.totalorder %s14, 1
      %s165 = scalar_select %p164, %s14, 1
      %s166 = scalar_lea.vmem %s3, %s165
      %v168 = vld [vmem:[%s163] sm:$0x1]
      %v169 = vld [vmem:[%s1] sm:$0xf]
      %v170 = vld [vmem:[%s1 + $0x4] sm:$0xf]
      %v171 = vld [vmem:[%s1 + $0x8] sm:$0xf]
      %v172 = vld [vmem:[%s1 + $0xc] sm:$0xf]
      %s173 = scalar_lea.vmem %s163, 4
      %v174 = vld [vmem:[%s173] sm:$0x1]
      %s175 = scalar_lea.vmem %s1, 16
      %v176 = vld [vmem:[%s175] sm:$0xf]
      %v177 = vld [vmem:[%s175 + $0x4] sm:$0xf]
      %v178 = vld [vmem:[%s175 + $0x8] sm:$0xf]
      %v179 = vld [vmem:[%s175 + $0xc] sm:$0xf]
      %v184 = vunpack.c.l.b16 %v176
      %v185 = vunpack.c.l.b16 %v177
      %v186 = vunpack.c.l.b16 %v178
      %v187 = vunpack.c.l.b16 %v179
      %v188 = vpack.c.b16 %v185, %v184
      %v189 = vpack.c.b16 %v187, %v186
      %vm192 = vcmask 261120
      %v194 = vsel %vm192, %v174, 0
      %196 = vmatpush.bf16.msra.mxu0 0
      %197 = vmatpush.bf16.msra.mxu0 0
      %198 = vmatpush.bf16.msra.mxu0 0
      %199 = vmatpush.bf16.msra.mxu0 0
      %200 = vmatpush.bf16.msra.mxu0 0
      %201 = vmatpush.bf16.msra.mxu0 0
      %202 = vmatpush.bf16.msra.mxu0 %v189
      %203 = vmatpush.bf16.msra.mxu0 %v188
      %204 = vmatmul.bf16.gmra.mxu0 %v194
      %v205 = vpop.f32.mrf.mxu0
      %v206 = vadd.f32 0.0, %v205
      %v207 = vpop.f32.mrf.mxu0
      %208 = vdwg.mxu0
      %v213 = vunpack.c.l.b16 %v169
      %v214 = vunpack.c.l.b16 %v170
      %v215 = vunpack.c.l.b16 %v171
      %v216 = vunpack.c.l.b16 %v172
      %v217 = vpack.c.b16 %v214, %v213
      %v218 = vpack.c.b16 %v216, %v215
      %v222 = vsel %vm192, %v168, 0
      %224 = vmatpush.bf16.msra.mxu0 0
      %225 = vmatpush.bf16.msra.mxu0 0
      %226 = vmatpush.bf16.msra.mxu0 0
      %227 = vmatpush.bf16.msra.mxu0 0
      %228 = vmatpush.bf16.msra.mxu0 0
      %229 = vmatpush.bf16.msra.mxu0 0
      %230 = vmatpush.bf16.msra.mxu0 %v218
      %231 = vmatpush.bf16.msra.mxu0 %v217
      %232 = vmatmul.bf16.gmra.mxu0 %v222
      %v233 = vpop.f32.mrf.mxu0
      %v234 = vadd.f32 %v206, %v233
      %v235 = vpop.f32.mrf.mxu0
      %236 = vdwg.mxu0
      %v237 = vld [vmem:[%s163] sm:$0x3]
      %s238 = scalar_lea.vmem %s1, 32
      %v239 = vld [vmem:[%s238] sm:$0xf]
      %v240 = vld [vmem:[%s238 + $0x4] sm:$0xf]
      %v241 = vld [vmem:[%s238 + $0x8] sm:$0xf]
      %v242 = vld [vmem:[%s238 + $0xc] sm:$0xf]
      %v244 = vunpack.c.l.b16 %v237
      %v245 = vpack.c.b16 %v244, %v244
      %v247 = vshrl.u32 %v245, 16
      %v249 = vshll.u32 %v245, 16
      %v251 = vrot.slane %v249, 1
      %v252 = vor.u32 %v247, %v251
      %v257 = vunpack.c.l.b16 %v239
      %v258 = vunpack.c.l.b16 %v240
      %v259 = vunpack.c.l.b16 %v241
      %v260 = vunpack.c.l.b16 %v242
      %v261 = vpack.c.b16 %v258, %v257
      %v262 = vpack.c.b16 %v260, %v259
      %v266 = vsel %vm192, %v252, 0
      %268 = vmatpush.bf16.msra.mxu0 0
      %269 = vmatpush.bf16.msra.mxu0 0
      %270 = vmatpush.bf16.msra.mxu0 0
      %271 = vmatpush.bf16.msra.mxu0 0
      %272 = vmatpush.bf16.msra.mxu0 0
      %273 = vmatpush.bf16.msra.mxu0 0
      %274 = vmatpush.bf16.msra.mxu0 %v262
      %275 = vmatpush.bf16.msra.mxu0 %v261
      %276 = vmatmul.bf16.gmra.mxu0 %v266
      %v277 = vpop.f32.mrf.mxu0
      %v278 = vadd.f32 0.0, %v277
      %v279 = vpop.f32.mrf.mxu0
      %280 = vdwg.mxu0
      %v281 = vadd.f32 %v234, %v278
      %s282 = scalar_lea.vmem %s163, 8
      %v283 = vld [vmem:[%s282] sm:$0x1]
      %s284 = scalar_lea.vmem %s1, 48
      %v285 = vld [vmem:[%s284] sm:$0xf]
      %v286 = vld [vmem:[%s284 + $0x4] sm:$0xf]
      %v287 = vld [vmem:[%s284 + $0x8] sm:$0xf]
      %v288 = vld [vmem:[%s284 + $0xc] sm:$0xf]
      %v293 = vunpack.c.l.b16 %v285
      %v294 = vunpack.c.l.b16 %v286
      %v295 = vunpack.c.l.b16 %v287
      %v296 = vunpack.c.l.b16 %v288
      %v297 = vpack.c.b16 %v294, %v293
      %v298 = vpack.c.b16 %v296, %v295
      %v302 = vsel %vm192, %v283, 0
      %304 = vmatpush.bf16.msra.mxu0 0
      %305 = vmatpush.bf16.msra.mxu0 0
      %306 = vmatpush.bf16.msra.mxu0 0
      %307 = vmatpush.bf16.msra.mxu0 0
      %308 = vmatpush.bf16.msra.mxu0 0
      %309 = vmatpush.bf16.msra.mxu0 0
      %310 = vmatpush.bf16.msra.mxu0 %v298
      %311 = vmatpush.bf16.msra.mxu0 %v297
      %312 = vmatmul.bf16.gmra.mxu0 %v302
      %v313 = vpop.f32.mrf.mxu0
      %v314 = vadd.f32 0.0, %v313
      %v315 = vpop.f32.mrf.mxu0
      %316 = vdwg.mxu0
      %v317 = vadd.f32 %v281, %v314
      %s318 = scalar_lea.vmem %s163, 12
      %v319 = vld [vmem:[%s318] sm:$0x1]
      %s320 = scalar_lea.vmem %s1, 64
      %v321 = vld [vmem:[%s320] sm:$0xf]
      %v322 = vld [vmem:[%s320 + $0x4] sm:$0xf]
      %v323 = vld [vmem:[%s320 + $0x8] sm:$0xf]
      %v324 = vld [vmem:[%s320 + $0xc] sm:$0xf]
      %v329 = vunpack.c.l.b16 %v321
      %v330 = vunpack.c.l.b16 %v322
      %v331 = vunpack.c.l.b16 %v323
      %v332 = vunpack.c.l.b16 %v324
      %v333 = vpack.c.b16 %v330, %v329
      %v334 = vpack.c.b16 %v332, %v331
      %v338 = vsel %vm192, %v319, 0
      %340 = vmatpush.bf16.msra.mxu0 0
      %341 = vmatpush.bf16.msra.mxu0 0
      %342 = vmatpush.bf16.msra.mxu0 0
      %343 = vmatpush.bf16.msra.mxu0 0
      %344 = vmatpush.bf16.msra.mxu0 0
      %345 = vmatpush.bf16.msra.mxu0 0
      %346 = vmatpush.bf16.msra.mxu0 %v334
      %347 = vmatpush.bf16.msra.mxu0 %v333
      %348 = vmatmul.bf16.gmra.mxu0 %v338
      %v349 = vpop.f32.mrf.mxu0
      %v350 = vadd.f32 0.0, %v349
      %v351 = vpop.f32.mrf.mxu0
      %352 = vdwg.mxu0
      %v353 = vadd.f32 %v317, %v350
      %v354 = vld [vmem:[%s282] sm:$0x3]
      %s355 = scalar_lea.vmem %s1, 80
      %v356 = vld [vmem:[%s355] sm:$0xf]
      %v357 = vld [vmem:[%s355 + $0x4] sm:$0xf]
      %v358 = vld [vmem:[%s355 + $0x8] sm:$0xf]
      %v359 = vld [vmem:[%s355 + $0xc] sm:$0xf]
      %v361 = vunpack.c.l.b16 %v354
      %v362 = vpack.c.b16 %v361, %v361
      %v364 = vshrl.u32 %v362, 16
      %v366 = vshll.u32 %v362, 16
      %v368 = vrot.slane %v366, 1
      %v369 = vor.u32 %v364, %v368
      %v374 = vunpack.c.l.b16 %v356
      %v375 = vunpack.c.l.b16 %v357
      %v376 = vunpack.c.l.b16 %v358
      %v377 = vunpack.c.l.b16 %v359
      %v378 = vpack.c.b16 %v375, %v374
      %v379 = vpack.c.b16 %v377, %v376
      %v383 = vsel %vm192, %v369, 0
      %385 = vmatpush.bf16.msra.mxu0 0
      %386 = vmatpush.bf16.msra.mxu0 0
      %387 = vmatpush.bf16.msra.mxu0 0
      %388 = vmatpush.bf16.msra.mxu0 0
      %389 = vmatpush.bf16.msra.mxu0 0
      %390 = vmatpush.bf16.msra.mxu0 0
      %391 = vmatpush.bf16.msra.mxu0 %v379
      %392 = vmatpush.bf16.msra.mxu0 %v378
      %393 = vmatmul.bf16.gmra.mxu0 %v383
      %v394 = vpop.f32.mrf.mxu0
      %v395 = vadd.f32 0.0, %v394
      %v396 = vpop.f32.mrf.mxu0
      %397 = vdwg.mxu0
      %v398 = vadd.f32 %v353, %v395
      %v399 = vld [vmem:[%s163] sm:$0x2]
      %s400 = scalar_lea.vmem %s1, 96
      %v401 = vld [vmem:[%s400] sm:$0xf]
      %v402 = vld [vmem:[%s400 + $0x4] sm:$0xf]
      %v403 = vld [vmem:[%s400 + $0x8] sm:$0xf]
      %v404 = vld [vmem:[%s400 + $0xc] sm:$0xf]
      %v406 = vunpack.c.l.b16 %v399
      %v407 = vpack.c.b16 %v406, %v406
      %v408 = vrot.slane %v407, 1
      %v413 = vunpack.c.l.b16 %v401
      %v414 = vunpack.c.l.b16 %v402
      %v415 = vunpack.c.l.b16 %v403
      %v416 = vunpack.c.l.b16 %v404
      %v417 = vpack.c.b16 %v414, %v413
      %v418 = vpack.c.b16 %v416, %v415
      %v422 = vsel %vm192, %v408, 0
      %424 = vmatpush.bf16.msra.mxu0 0
      %425 = vmatpush.bf16.msra.mxu0 0
      %426 = vmatpush.bf16.msra.mxu0 0
      %427 = vmatpush.bf16.msra.mxu0 0
      %428 = vmatpush.bf16.msra.mxu0 0
      %429 = vmatpush.bf16.msra.mxu0 0
      %430 = vmatpush.bf16.msra.mxu0 %v418
      %431 = vmatpush.bf16.msra.mxu0 %v417
      %432 = vmatmul.bf16.gmra.mxu0 %v422
      %v433 = vpop.f32.mrf.mxu0
      %v434 = vadd.f32 0.0, %v433
      %v435 = vpop.f32.mrf.mxu0
      %436 = vdwg.mxu0
      %v437 = vadd.f32 %v398, %v434
      %v438 = vld [vmem:[%s173] sm:$0x2]
      %s439 = scalar_lea.vmem %s1, 112
      %v440 = vld [vmem:[%s439] sm:$0xf]
      %v441 = vld [vmem:[%s439 + $0x4] sm:$0xf]
      %v442 = vld [vmem:[%s439 + $0x8] sm:$0xf]
      %v443 = vld [vmem:[%s439 + $0xc] sm:$0xf]
      %v445 = vunpack.c.l.b16 %v438
      %v446 = vpack.c.b16 %v445, %v445
      %v447 = vrot.slane %v446, 1
      %v452 = vunpack.c.l.b16 %v440
      %v453 = vunpack.c.l.b16 %v441
      %v454 = vunpack.c.l.b16 %v442
      %v455 = vunpack.c.l.b16 %v443
      %v456 = vpack.c.b16 %v453, %v452
      %v457 = vpack.c.b16 %v455, %v454
      %v461 = vsel %vm192, %v447, 0
      %463 = vmatpush.bf16.msra.mxu0 0
      %464 = vmatpush.bf16.msra.mxu0 0
      %465 = vmatpush.bf16.msra.mxu0 0
      %466 = vmatpush.bf16.msra.mxu0 0
      %467 = vmatpush.bf16.msra.mxu0 0
      %468 = vmatpush.bf16.msra.mxu0 0
      %469 = vmatpush.bf16.msra.mxu0 %v457
      %470 = vmatpush.bf16.msra.mxu0 %v456
      %471 = vmatmul.bf16.gmra.mxu0 %v461
      %v472 = vpop.f32.mrf.mxu0
      %v473 = vadd.f32 0.0, %v472
      %v474 = vpop.f32.mrf.mxu0
      %475 = vdwg.mxu0
      %v476 = vadd.f32 %v437, %v473
      %v477 = vld [vmem:[%s163] sm:$0x6]
      %s478 = scalar_lea.vmem %s1, 128
      %v479 = vld [vmem:[%s478] sm:$0xf]
      %v480 = vld [vmem:[%s478 + $0x4] sm:$0xf]
      %v481 = vld [vmem:[%s478 + $0x8] sm:$0xf]
      %v482 = vld [vmem:[%s478 + $0xc] sm:$0xf]
      %v484 = vunpack.c.l.b16 %v477
      %v485 = vpack.c.b16 %v484, %v484
      %v487 = vshrl.u32 %v485, 16
      %v489 = vrot.slane %v487, 1
      %v490 = vshll.u32 %v485, 16
      %v492 = vrot.slane %v490, 2
      %v493 = vor.u32 %v489, %v492
      %v498 = vunpack.c.l.b16 %v479
      %v499 = vunpack.c.l.b16 %v480
      %v500 = vunpack.c.l.b16 %v481
      %v501 = vunpack.c.l.b16 %v482
      %v502 = vpack.c.b16 %v499, %v498
      %v503 = vpack.c.b16 %v501, %v500
      %v507 = vsel %vm192, %v493, 0
      %509 = vmatpush.bf16.msra.mxu0 0
      %510 = vmatpush.bf16.msra.mxu0 0
      %511 = vmatpush.bf16.msra.mxu0 0
      %512 = vmatpush.bf16.msra.mxu0 0
      %513 = vmatpush.bf16.msra.mxu0 0
      %514 = vmatpush.bf16.msra.mxu0 0
      %515 = vmatpush.bf16.msra.mxu0 %v503
      %516 = vmatpush.bf16.msra.mxu0 %v502
      %517 = vmatmul.bf16.gmra.mxu0 %v507
      %v518 = vpop.f32.mrf.mxu0
      %v519 = vadd.f32 0.0, %v518
      %v520 = vpop.f32.mrf.mxu0
      %521 = vdwg.mxu0
      %v522 = vadd.f32 %v476, %v519
      %v523 = vld [vmem:[%s2] sm:$0x1]
      %v524 = vperm.slane %v523, 0
      %v525 = vmul.f32 %v522, %v524
      %v526 = vld [vmem:[%s2 + $0x1] sm:$0x1]
      %v527 = vperm.slane %v526, 0
      %v528 = vadd.f32 %v525, %v527
      %v529 = vmin.f32 %v528, 20.0
      %v530 = vmul.f32 %v529, 1.442695
      %v531 = vpow.pop %v530
      %v532 = vadd.f32 %v531, 2.0
      %v533 = vmul.f32 %v531, %v532
      %v534 = vmul.f32 %v528, %v533
      %v535 = vadd.f32 %v533, 2.0
      %v536 = vrcp.pop %v535
      %v537 = vmul.f32 %v534, %v536
      %vm538 = vcmp.gt.f32.partialorder %v528, 20.0
      %v539 = vsel %vm538, %v528, %v537
      %v540 = vpack.c.bf16 %v539, %v539
      %vm541 = vcmask 253952
      %542 = vst.msk [vmem:[%s166] sm:$0x1] %vm541, %v540
      %p543 = scmp.lt.s32.totalorder %s14, 1
      %s544 = scalar_select %p543, %s14, 1
      %s545 = scalar_lea.vmem %s3, %s544
      // Predicated region
      $region33: #{_lambda_.14} parent=31 // pred_check
        %p546 = pneg %p100
      $region34: #{_lambda_.14} parent=31 // pred_check_branch
        %548 = sbr.rel (%p546) target = $region36
      $region35: #{_lambda_.14} parent=31 // pred_region
        _
      $region36: #{_lambda_.14} parent=31 // pred_fallthru
        _
    $region32: #{_lambda_.14} parent=5 // pred_fallthru
      _
    %p549 = scmp.le.s32.totalorder 2, %s9
    // Predicated region
    $region37: #{_lambda_.14} parent=5 // pred_check
      %p550 = pneg %p549
    $region38: #{_lambda_.14} parent=5 // pred_check_branch
      %552 = sbr.rel (%p550) target = $region40
    $region39: #{_lambda_.14} parent=5 // pred_region
      %s553 = ssub.s32 %s9, 2
      // Predicated region
      $region41: #{_lambda_.14} parent=39 // pred_check
        %p554 = pneg %p106
      $region42: #{_lambda_.14} parent=39 // pred_check_branch
        %556 = sbr.rel (%p554) target = $region44
      $region43: #{_lambda_.14} parent=39 // pred_region
        %p557 = scmp.lt.s32.totalorder %s15, 1
        %s558 = scalar_select %p557, %s15, 1
        %s559 = scalar_lea.vmem %s3, %s558
      $region44: #{_lambda_.14} parent=39 // pred_fallthru
        _
    $region40: #{_lambda_.14} parent=5 // pred_fallthru
      _
  $region6: #{_lambda_.14} parent=0 // loop_footer
    %s13 = sadd.s32 1, %s9
  $region7: #{_lambda_.14} parent=0 // loop_footer_branch
    %8 = sbr.rel target = $region3
  $region8: #{_lambda_.14} parent=0 // loop_exit
    _

</llo_original>
